<compile_context>
chip_gen: v5e
topology: v5e:2x2
jax: 0.10.0
libtpu: 0.0.40
codegen_flags: <defaults>
</compile_context>

<pallas_src>
import numpy as np
import jax
import jax.numpy as jnp
from jax.experimental import pallas as pl
from jax.experimental.pallas import tpu as pltpu

# ----------------------------- configuration --------------------------------
B = 2            # batch
C_IN = 16        # dim
C_OUT = 32       # dim_out
GROUPS = 8       # GroupNorm groups
S = 8            # spatial size per axis (D = H = W = S)
N = S ** 3       # flattened voxels = 512  (lane-dense: 4 x 128)
EPS = 1e-5       # GroupNorm eps (PyTorch default)
K1 = 27 * C_IN   # im2col contraction depth of conv1 (432)
K2 = 27 * C_OUT  # im2col contraction depth of conv2 (864)

# Roll-based conv is only valid while every wrapped tap is masked out and the
# largest tap offset fits inside one flattened volume.
assert N > 2 * (S * S + S + 1)


# ------------------------------ kernel helpers -------------------------------
def _mish(x):
    # mish(x) = x * tanh(softplus(x)) = x * t / (t + 2),  t = e^x * (e^x + 2).
    # Single EUP transcendental (exp); the rest is VPU work.
    ex = jnp.exp(jnp.minimum(x, 20.0))
    t = ex * (ex + 2.0)
    y = x * t / (t + 2.0)
    return jnp.where(x > 20.0, x, y)          # mish(x) ~= x for large x


def _groupnorm(x, A, gamma, beta):
    # x: (C, N); A: (C, C) block matrix with 1/cpg inside each group block.
    # Reduce over lanes FIRST (mean(A@x) == (A @ sum(x)) / N), then combine the
    # tiny per-channel stats across the group.  Stats are carried at lane
    # width 128 so the combine matmul keeps a native-tile N dimension.
    c, n = x.shape
    sx = jnp.sum(x, axis=1, keepdims=True)            # (C, 1) lane reduction
    sxx = jnp.sum(x * x, axis=1, keepdims=True)       # (C, 1)
    sx_b = jnp.broadcast_to(sx, (c, 128))
    sxx_b = jnp.broadcast_to(sxx, (c, 128))
    mu = jnp.dot(A, sx_b, preferred_element_type=jnp.float32)[:, :1] / n   # (C,1)
    m2 = jnp.dot(A, sxx_b, preferred_element_type=jnp.float32)[:, :1] / n  # (C,1)
    var = m2 - mu * mu
    return (x - mu) * jax.lax.rsqrt(var + EPS) * gamma + beta


def _conv3x3x3(u, w_flat_ref, bias, mask, col_ref):
    # u: (Cin, N); w_flat_ref: (Cout, 27*Cin) tap-major along K; bias: (Cout,1)
    # mask: (27, N) zero-pad boundary indicators; col_ref: VMEM im2col scratch.
    # Build the im2col slab (27 lane-rolled, masked copies of u), then run ONE
    # deep-K MXU matmul instead of 27 pencil-thin ones.
    c_in = u.shape[0]
    tap = 0
    for dz in (-1, 0, 1):
        for dy in (-1, 0, 1):
            for dx in (-1, 0, 1):
                off = dz * S * S + dy * S + dx
                # shifted[:, n] = u[:, (n + off) % N]   (XLU lane rotation)
                shifted = pltpu.roll(u, shift=(-off) % N, axis=1) if off != 0 else u
                col_ref[tap * c_in:(tap + 1) * c_in, :] = shifted * mask[tap:tap + 1, :]
                tap += 1
    cols = col_ref[0:27 * c_in, :]                                  # (27*Cin, N)
    return jnp.dot(w_flat_ref[...], cols,
                   preferred_element_type=jnp.float32) + bias       # (Cout, N)


# ------------------------------ fused kernel --------------------------------
def resnet_block_kernel(x_ref, mask_ref,
                        g1w_ref, g1b_ref, a1_ref, w1_ref, b1_ref,
                        g2w_ref, g2b_ref, a2_ref, w2_ref, b2_ref,
                        wres_ref, bres_ref, o_ref, col_ref):
    x = x_ref[0]                                   # (C_IN, N)
    mask = mask_ref[...]                           # (27, N)

    # block1: GroupNorm -> Mish -> 3x3x3 conv (C_IN -> C_OUT)
    h = _mish(_groupnorm(x, a1_ref[...], g1w_ref[...], g1b_ref[...]))
    h1 = _conv3x3x3(h, w1_ref, b1_ref[...], mask, col_ref)         # (C_OUT, N)

    # block2: GroupNorm -> Mish -> 3x3x3 conv (C_OUT -> C_OUT)
    h2 = _mish(_groupnorm(h1, a2_ref[...], g2w_ref[...], g2b_ref[...]))
    h2 = _conv3x3x3(h2, w2_ref, b2_ref[...], mask, col_ref)

    # residual 1x1x1 conv (C_IN -> C_OUT) and add
    res = jnp.dot(wres_ref[...], x,
                  preferred_element_type=jnp.float32) + bres_ref[...]
    o_ref[0] = h2 + res


# ----------------------- host-side constants (built once) --------------------
def _make_tap_mask():
    zz, yy, xx = np.meshgrid(np.arange(S), np.arange(S), np.arange(S), indexing='ij')
    z, y, x = zz.reshape(-1), yy.reshape(-1), xx.reshape(-1)
    rows = []
    for dz in (-1, 0, 1):
        for dy in (-1, 0, 1):
            for dx in (-1, 0, 1):
                ok = ((z + dz >= 0) & (z + dz < S) &
                      (y + dy >= 0) & (y + dy < S) &
                      (x + dx >= 0) & (x + dx < S))
                rows.append(ok.astype(np.float32))
    return jnp.asarray(np.stack(rows, axis=0))     # (27, N)


def _group_avg_matrix(c):
    cpg = c // GROUPS
    a = np.zeros((c, c), np.float32)
    for g in range(GROUPS):
        a[g * cpg:(g + 1) * cpg, g * cpg:(g + 1) * cpg] = 1.0 / cpg
    return jnp.asarray(a)


TAP_MASK = _make_tap_mask()            # (27, N) boundary masks, built once
A_GROUP_IN = _group_avg_matrix(C_IN)   # (C_IN,  C_IN)
A_GROUP_OUT = _group_avg_matrix(C_OUT) # (C_OUT, C_OUT)


# ------------------------------ wrapper --------------------------------------
def _full_spec(a):
    nd = a.ndim
    return pl.BlockSpec(a.shape, lambda b, nd=nd: (0,) * nd)


def resnet_block(x5d, p):
    xf = x5d.reshape(B, C_IN, N)                   # NCDHW -> (B, C, N), pure reshape
    args = (xf, TAP_MASK,
            p['g1_w'], p['g1_b'], A_GROUP_IN, p['w1f'], p['b1'],
            p['g2_w'], p['g2_b'], A_GROUP_OUT, p['w2f'], p['b2'],
            p['wres'], p['bres'])
    in_specs = [pl.BlockSpec((1, C_IN, N), lambda b: (b, 0, 0))] \
             + [_full_spec(a) for a in args[1:]]
    out = pl.pallas_call(
        resnet_block_kernel,
        out_shape=jax.ShapeDtypeStruct((B, C_OUT, N), jnp.float32),
        grid=(B,),
        in_specs=in_specs,
        out_specs=pl.BlockSpec((1, C_OUT, N), lambda b: (b, 0, 0)),
        scratch_shapes=[pltpu.VMEM((K2, N), jnp.float32)],   # shared im2col slab (~1.8 MB)
        compiler_params=pltpu.CompilerParams(dimension_semantics=("parallel",)),
    )(*args)
    return out.reshape(B, C_OUT, S, S, S)


# ------------------------------ parameters -----------------------------------
def init_params(key):
    ks = jax.random.split(key, 10)

    def nrm(k, shape, s=0.05):
        return (s * jax.random.normal(k, shape)).astype(jnp.float32)

    p = {}
    p['g1_w'] = 1.0 + nrm(ks[0], (C_IN, 1), 0.02)
    p['g1_b'] = nrm(ks[1], (C_IN, 1), 0.02)
    p['w1'] = nrm(ks[2], (27, C_OUT, C_IN))        # tap t=(kz*3+ky)*3+kx, (Cout,Cin)
    p['b1'] = nrm(ks[3], (C_OUT, 1), 0.02)
    p['g2_w'] = 1.0 + nrm(ks[4], (C_OUT, 1), 0.02)
    p['g2_b'] = nrm(ks[5], (C_OUT, 1), 0.02)
    p['w2'] = nrm(ks[6], (27, C_OUT, C_OUT))
    p['b2'] = nrm(ks[7], (C_OUT, 1), 0.02)
    p['wres'] = nrm(ks[8], (C_OUT, C_IN))          # 1x1x1 res_conv
    p['bres'] = nrm(ks[9], (C_OUT, 1), 0.02)
    # Pre-flattened conv weights for the im2col matmul (built once, tap-major K):
    # w_flat[o, t*Cin + i] = w[t, o, i]
    p['w1f'] = jnp.transpose(p['w1'], (1, 0, 2)).reshape(C_OUT, K1)
    p['w2f'] = jnp.transpose(p['w2'], (1, 0, 2)).reshape(C_OUT, K2)
    return p


# ------------------------------ pure-JAX reference ---------------------------
def reference(x5d, p):
    x = x5d.reshape(B, C_IN, N)
    hp_prec = jax.lax.Precision.HIGHEST

    def mish(h):
        sp = jnp.where(h > 20.0, h, jnp.log1p(jnp.exp(jnp.minimum(h, 20.0))))
        return h * jnp.tanh(sp)

    def gn(h, w, b):
        Bc, C, Nn = h.shape
        hg = h.reshape(Bc, GROUPS, (C // GROUPS) * Nn)
        mu = hg.mean(axis=-1, keepdims=True)
        var = hg.var(axis=-1, keepdims=True)
        hn = ((hg - mu) / jnp.sqrt(var + EPS)).reshape(Bc, C, Nn)
        return hn * w.reshape(1, C, 1) + b.reshape(1, C, 1)

    def conv3(h, w27, bias):
        Bc, Ci, Nn = h.shape
        Co = w27.shape[1]
        hz = h.reshape(Bc, Ci, S, S, S)
        hpd = jnp.pad(hz, ((0, 0), (0, 0), (1, 1), (1, 1), (1, 1)))
        acc = jnp.zeros((Bc, Co, S, S, S), jnp.float32)
        t = 0
        for kz in range(3):
            for ky in range(3):
                for kx in range(3):
                    patch = hpd[:, :, kz:kz + S, ky:ky + S, kx:kx + S]
                    acc = acc + jnp.einsum('oi,bizyx->bozyx', w27[t], patch,
                                           precision=hp_prec)
                    t += 1
        return acc.reshape(Bc, Co, Nn) + bias.reshape(1, Co, 1)

    h = conv3(mish(gn(x, p['g1_w'], p['g1_b'])), p['w1'], p['b1'])
    h2 = conv3(mish(gn(h, p['g2_w'], p['g2_b'])), p['w2'], p['b2'])
    res = jnp.einsum('oi,bin->bon', p['wres'], x, precision=hp_prec) \
        + p['bres'].reshape(1, C_OUT, 1)
    return (h2 + res).reshape(B, C_OUT, S, S, S)


# ------------------------------ main ------------------------------------------
if __name__ == "__main__":
    key = jax.random.PRNGKey(0)
    kx, kp = jax.random.split(key)
    x = jax.random.normal(kx, (B, C_IN, S, S, S), dtype=jnp.float32)
    params = init_params(kp)

    out = resnet_block(x, params)
    out = jax.block_until_ready(out)

    ref = reference(x, params)
    # f32 MXU accumulation over K=432/864 vs HIGHEST-precision reference.
    np.testing.assert_allclose(np.asarray(out), np.asarray(ref),
                               rtol=5e-4, atol=5e-4)
    print("KERNEL_OK")
</pallas_src>

<mosaic_0001>
module attributes {stable_mosaic.version = 11 : i64} {
  func.func @resnet_block_kernel(%arg0: i32, %arg1: memref<1x16x512xf32, #tpu.memory_space<vmem>>, %arg2: memref<27x512xf32, #tpu.memory_space<vmem>>, %arg3: memref<16x1xf32, #tpu.memory_space<vmem>>, %arg4: memref<16x1xf32, #tpu.memory_space<vmem>>, %arg5: memref<16x16xf32, #tpu.memory_space<vmem>>, %arg6: memref<32x432xf32, #tpu.memory_space<vmem>>, %arg7: memref<32x1xf32, #tpu.memory_space<vmem>>, %arg8: memref<32x1xf32, #tpu.memory_space<vmem>>, %arg9: memref<32x1xf32, #tpu.memory_space<vmem>>, %arg10: memref<32x32xf32, #tpu.memory_space<vmem>>, %arg11: memref<32x864xf32, #tpu.memory_space<vmem>>, %arg12: memref<32x1xf32, #tpu.memory_space<vmem>>, %arg13: memref<32x16xf32, #tpu.memory_space<vmem>>, %arg14: memref<32x1xf32, #tpu.memory_space<vmem>>, %arg15: memref<1x32x512xf32, #tpu.memory_space<vmem>>, %arg16: memref<864x512xf32, #tpu.memory_space<vmem>>) attributes {dimension_semantics = [#tpu.dimension_semantics<parallel>], iteration_bounds = array<i64: 2>, scalar_prefetch = 0 : i64, scratch_operands = 1 : i64, tpu.core_type = #tpu.core_type<tc>, window_params = [{transform_indices = @transform_0, window_bounds = array<i64: 1, 16, 512>}, {pipeline_mode = #tpu.pipeline_mode<synchronous>, transform_indices = @transform_1, window_bounds = array<i64: 27, 512>}, {pipeline_mode = #tpu.pipeline_mode<synchronous>, transform_indices = @transform_2, window_bounds = array<i64: 16, 1>}, {pipeline_mode = #tpu.pipeline_mode<synchronous>, transform_indices = @transform_3, window_bounds = array<i64: 16, 1>}, {pipeline_mode = #tpu.pipeline_mode<synchronous>, transform_indices = @transform_4, window_bounds = array<i64: 16, 16>}, {pipeline_mode = #tpu.pipeline_mode<synchronous>, transform_indices = @transform_5, window_bounds = array<i64: 32, 432>}, {pipeline_mode = #tpu.pipeline_mode<synchronous>, transform_indices = @transform_6, window_bounds = array<i64: 32, 1>}, {pipeline_mode = #tpu.pipeline_mode<synchronous>, transform_indices = @transform_7, window_bounds = array<i64: 32, 1>}, {pipeline_mode = #tpu.pipeline_mode<synchronous>, transform_indices = @transform_8, window_bounds = array<i64: 32, 1>}, {pipeline_mode = #tpu.pipeline_mode<synchronous>, transform_indices = @transform_9, window_bounds = array<i64: 32, 32>}, {pipeline_mode = #tpu.pipeline_mode<synchronous>, transform_indices = @transform_10, window_bounds = array<i64: 32, 864>}, {pipeline_mode = #tpu.pipeline_mode<synchronous>, transform_indices = @transform_11, window_bounds = array<i64: 32, 1>}, {pipeline_mode = #tpu.pipeline_mode<synchronous>, transform_indices = @transform_12, window_bounds = array<i64: 32, 16>}, {pipeline_mode = #tpu.pipeline_mode<synchronous>, transform_indices = @transform_13, window_bounds = array<i64: 32, 1>}, {transform_indices = @transform_14, window_bounds = array<i64: 1, 32, 512>}]} {
    %c0 = arith.constant 0 : index
    %c0_0 = arith.constant 0 : index
    %c0_1 = arith.constant 0 : index
    %0 = vector.load %arg1[%c0, %c0_0, %c0_1] : memref<1x16x512xf32, #tpu.memory_space<vmem>>, vector<1x16x512xf32>
    %1 = vector.shape_cast %0 : vector<1x16x512xf32> to vector<16x512xf32>
    %c0_2 = arith.constant 0 : index
    %c0_3 = arith.constant 0 : index
    %2 = vector.load %arg2[%c0_2, %c0_3] : memref<27x512xf32, #tpu.memory_space<vmem>>, vector<27x512xf32>
    %c0_4 = arith.constant 0 : index
    %c0_5 = arith.constant 0 : index
    %3 = vector.load %arg5[%c0_4, %c0_5] : memref<16x16xf32, #tpu.memory_space<vmem>>, vector<16x16xf32>
    %c0_6 = arith.constant 0 : index
    %c0_7 = arith.constant 0 : index
    %4 = vector.load %arg3[%c0_6, %c0_7] : memref<16x1xf32, #tpu.memory_space<vmem>>, vector<16x1xf32>
    %c0_8 = arith.constant 0 : index
    %c0_9 = arith.constant 0 : index
    %5 = vector.load %arg4[%c0_8, %c0_9] : memref<16x1xf32, #tpu.memory_space<vmem>>, vector<16x1xf32>
    %cst = arith.constant dense<0.000000e+00> : vector<16xf32>
    %6 = vector.multi_reduction <add>, %1, %cst [1] : vector<16x512xf32> to vector<16xf32>
    %7 = vector.shape_cast %6 : vector<16xf32> to vector<16x1xf32>
    %8 = arith.mulf %1, %1 : vector<16x512xf32>
    %cst_10 = arith.constant dense<0.000000e+00> : vector<16xf32>
    %9 = vector.multi_reduction <add>, %8, %cst_10 [1] : vector<16x512xf32> to vector<16xf32>
    %10 = vector.shape_cast %9 : vector<16xf32> to vector<16x1xf32>
    %11 = vector.shape_cast %7 : vector<16x1xf32> to vector<16x1xf32>
    %12 = vector.broadcast %11 : vector<16x1xf32> to vector<16x128xf32>
    %13 = vector.shape_cast %10 : vector<16x1xf32> to vector<16x1xf32>
    %14 = vector.broadcast %13 : vector<16x1xf32> to vector<16x128xf32>
    %cst_11 = arith.constant dense<0.000000e+00> : vector<16x128xf32>
    %15 = tpu.matmul %3, %12, %cst_11 {dimension_numbers = #tpu.dot_dimension_numbers<[1], [0], [0], [1], [0, 0, 1, 1], [], []>} : vector<16x16xf32>, vector<16x128xf32>, vector<16x128xf32> -> vector<16x128xf32>
    %16 = vector.extract_strided_slice %15 {offsets = [0, 0], sizes = [16, 1], strides = [1, 1]} : vector<16x128xf32> to vector<16x1xf32>
    %cst_12 = arith.constant 5.120000e+02 : f32
    %17 = vector.broadcast %cst_12 : f32 to vector<16x1xf32>
    %18 = arith.divf %16, %17 : vector<16x1xf32>
    %cst_13 = arith.constant dense<0.000000e+00> : vector<16x128xf32>
    %19 = tpu.matmul %3, %14, %cst_13 {dimension_numbers = #tpu.dot_dimension_numbers<[1], [0], [0], [1], [0, 0, 1, 1], [], []>} : vector<16x16xf32>, vector<16x128xf32>, vector<16x128xf32> -> vector<16x128xf32>
    %20 = vector.extract_strided_slice %19 {offsets = [0, 0], sizes = [16, 1], strides = [1, 1]} : vector<16x128xf32> to vector<16x1xf32>
    %cst_14 = arith.constant 5.120000e+02 : f32
    %21 = vector.broadcast %cst_14 : f32 to vector<16x1xf32>
    %22 = arith.divf %20, %21 : vector<16x1xf32>
    %23 = arith.mulf %18, %18 : vector<16x1xf32>
    %24 = arith.subf %22, %23 : vector<16x1xf32>
    %25 = vector.broadcast %18 : vector<16x1xf32> to vector<16x512xf32>
    %26 = arith.subf %1, %25 : vector<16x512xf32>
    %cst_15 = arith.constant 9.99999974E-6 : f32
    %27 = vector.broadcast %cst_15 : f32 to vector<16x1xf32>
    %28 = arith.addf %24, %27 : vector<16x1xf32>
    %29 = math.rsqrt %28 : vector<16x1xf32>
    %30 = vector.broadcast %29 : vector<16x1xf32> to vector<16x512xf32>
    %31 = arith.mulf %26, %30 : vector<16x512xf32>
    %32 = vector.broadcast %4 : vector<16x1xf32> to vector<16x512xf32>
    %33 = arith.mulf %31, %32 : vector<16x512xf32>
    %34 = vector.broadcast %5 : vector<16x1xf32> to vector<16x512xf32>
    %35 = arith.addf %33, %34 : vector<16x512xf32>
    %cst_16 = arith.constant 2.000000e+01 : f32
    %36 = vector.broadcast %cst_16 : f32 to vector<16x512xf32>
    %37 = arith.minimumf %35, %36 : vector<16x512xf32>
    %38 = math.exp %37 : vector<16x512xf32>
    %cst_17 = arith.constant 2.000000e+00 : f32
    %39 = vector.broadcast %cst_17 : f32 to vector<16x512xf32>
    %40 = arith.addf %38, %39 : vector<16x512xf32>
    %41 = arith.mulf %38, %40 : vector<16x512xf32>
    %42 = arith.mulf %35, %41 : vector<16x512xf32>
    %cst_18 = arith.constant 2.000000e+00 : f32
    %43 = vector.broadcast %cst_18 : f32 to vector<16x512xf32>
    %44 = arith.addf %41, %43 : vector<16x512xf32>
    %45 = arith.divf %42, %44 : vector<16x512xf32>
    %cst_19 = arith.constant 2.000000e+01 : f32
    %46 = vector.broadcast %cst_19 : f32 to vector<16x512xf32>
    %47 = arith.cmpf ogt, %35, %46 : vector<16x512xf32>
    %48 = arith.select %47, %35, %45 : vector<16x512xi1>, vector<16x512xf32>
    %c0_20 = arith.constant 0 : index
    %c0_21 = arith.constant 0 : index
    %49 = vector.load %arg7[%c0_20, %c0_21] : memref<32x1xf32, #tpu.memory_space<vmem>>, vector<32x1xf32>
    %c73_i32 = arith.constant 73 : i32
    %50 = tpu.dynamic_rotate %48 by %c73_i32 dim 1 : vector<16x512xf32>, i32 -> vector<16x512xf32>
    %51 = vector.extract_strided_slice %2 {offsets = [0, 0], sizes = [1, 512], strides = [1, 1]} : vector<27x512xf32> to vector<1x512xf32>
    %52 = vector.broadcast %51 : vector<1x512xf32> to vector<16x512xf32>
    %53 = arith.mulf %50, %52 : vector<16x512xf32>
    %c0_22 = arith.constant 0 : index
    %c0_23 = arith.constant 0 : index
    %54 = vector.load %arg16[%c0_22, %c0_23] : memref<864x512xf32, #tpu.memory_space<vmem>>, vector<16x512xf32>
    tpu.vector_store %arg16[%c0_22, %c0_23], %53 {strides = array<i32>} : memref<864x512xf32, #tpu.memory_space<vmem>>, vector<16x512xf32>,
    %c72_i32 = arith.constant 72 : i32
    %55 = tpu.dynamic_rotate %48 by %c72_i32 dim 1 : vector<16x512xf32>, i32 -> vector<16x512xf32>
    %56 = vector.extract_strided_slice %2 {offsets = [1, 0], sizes = [1, 512], strides = [1, 1]} : vector<27x512xf32> to vector<1x512xf32>
    %57 = vector.broadcast %56 : vector<1x512xf32> to vector<16x512xf32>
    %58 = arith.mulf %55, %57 : vector<16x512xf32>
    %c16 = arith.constant 16 : index
    %c0_24 = arith.constant 0 : index
    %59 = vector.load %arg16[%c16, %c0_24] : memref<864x512xf32, #tpu.memory_space<vmem>>, vector<16x512xf32>
    tpu.vector_store %arg16[%c16, %c0_24], %58 {strides = array<i32>} : memref<864x512xf32, #tpu.memory_space<vmem>>, vector<16x512xf32>,
    %c71_i32 = arith.constant 71 : i32
    %60 = tpu.dynamic_rotate %48 by %c71_i32 dim 1 : vector<16x512xf32>, i32 -> vector<16x512xf32>
    %61 = vector.extract_strided_slice %2 {offsets = [2, 0], sizes = [1, 512], strides = [1, 1]} : vector<27x512xf32> to vector<1x512xf32>
    %62 = vector.broadcast %61 : vector<1x512xf32> to vector<16x512xf32>
    %63 = arith.mulf %60, %62 : vector<16x512xf32>
    %c32 = arith.constant 32 : index
    %c0_25 = arith.constant 0 : index
    %64 = vector.load %arg16[%c32, %c0_25] : memref<864x512xf32, #tpu.memory_space<vmem>>, vector<16x512xf32>
    tpu.vector_store %arg16[%c32, %c0_25], %63 {strides = array<i32>} : memref<864x512xf32, #tpu.memory_space<vmem>>, vector<16x512xf32>,
    %c65_i32 = arith.constant 65 : i32
    %65 = tpu.dynamic_rotate %48 by %c65_i32 dim 1 : vector<16x512xf32>, i32 -> vector<16x512xf32>
    %66 = vector.extract_strided_slice %2 {offsets = [3, 0], sizes = [1, 512], strides = [1, 1]} : vector<27x512xf32> to vector<1x512xf32>
    %67 = vector.broadcast %66 : vector<1x512xf32> to vector<16x512xf32>
    %68 = arith.mulf %65, %67 : vector<16x512xf32>
    %c48 = arith.constant 48 : index
    %c0_26 = arith.constant 0 : index
    %69 = vector.load %arg16[%c48, %c0_26] : memref<864x512xf32, #tpu.memory_space<vmem>>, vector<16x512xf32>
    tpu.vector_store %arg16[%c48, %c0_26], %68 {strides = array<i32>} : memref<864x512xf32, #tpu.memory_space<vmem>>, vector<16x512xf32>,
    %c64_i32 = arith.constant 64 : i32
    %70 = tpu.dynamic_rotate %48 by %c64_i32 dim 1 : vector<16x512xf32>, i32 -> vector<16x512xf32>
    %71 = vector.extract_strided_slice %2 {offsets = [4, 0], sizes = [1, 512], strides = [1, 1]} : vector<27x512xf32> to vector<1x512xf32>
    %72 = vector.broadcast %71 : vector<1x512xf32> to vector<16x512xf32>
    %73 = arith.mulf %70, %72 : vector<16x512xf32>
    %c64 = arith.constant 64 : index
    %c0_27 = arith.constant 0 : index
    %74 = vector.load %arg16[%c64, %c0_27] : memref<864x512xf32, #tpu.memory_space<vmem>>, vector<16x512xf32>
    tpu.vector_store %arg16[%c64, %c0_27], %73 {strides = array<i32>} : memref<864x512xf32, #tpu.memory_space<vmem>>, vector<16x512xf32>,
    %c63_i32 = arith.constant 63 : i32
    %75 = tpu.dynamic_rotate %48 by %c63_i32 dim 1 : vector<16x512xf32>, i32 -> vector<16x512xf32>
    %76 = vector.extract_strided_slice %2 {offsets = [5, 0], sizes = [1, 512], strides = [1, 1]} : vector<27x512xf32> to vector<1x512xf32>
    %77 = vector.broadcast %76 : vector<1x512xf32> to vector<16x512xf32>
    %78 = arith.mulf %75, %77 : vector<16x512xf32>
    %c80 = arith.constant 80 : index
    %c0_28 = arith.constant 0 : index
    %79 = vector.load %arg16[%c80, %c0_28] : memref<864x512xf32, #tpu.memory_space<vmem>>, vector<16x512xf32>
    tpu.vector_store %arg16[%c80, %c0_28], %78 {strides = array<i32>} : memref<864x512xf32, #tpu.memory_space<vmem>>, vector<16x512xf32>,
    %c57_i32 = arith.constant 57 : i32
    %80 = tpu.dynamic_rotate %48 by %c57_i32 dim 1 : vector<16x512xf32>, i32 -> vector<16x512xf32>
    %81 = vector.extract_strided_slice %2 {offsets = [6, 0], sizes = [1, 512], strides = [1, 1]} : vector<27x512xf32> to vector<1x512xf32>
    %82 = vector.broadcast %81 : vector<1x512xf32> to vector<16x512xf32>
    %83 = arith.mulf %80, %82 : vector<16x512xf32>
    %c96 = arith.constant 96 : index
    %c0_29 = arith.constant 0 : index
    %84 = vector.load %arg16[%c96, %c0_29] : memref<864x512xf32, #tpu.memory_space<vmem>>, vector<16x512xf32>
    tpu.vector_store %arg16[%c96, %c0_29], %83 {strides = array<i32>} : memref<864x512xf32, #tpu.memory_space<vmem>>, vector<16x512xf32>,
    %c56_i32 = arith.constant 56 : i32
    %85 = tpu.dynamic_rotate %48 by %c56_i32 dim 1 : vector<16x512xf32>, i32 -> vector<16x512xf32>
    %86 = vector.extract_strided_slice %2 {offsets = [7, 0], sizes = [1, 512], strides = [1, 1]} : vector<27x512xf32> to vector<1x512xf32>
    %87 = vector.broadcast %86 : vector<1x512xf32> to vector<16x512xf32>
    %88 = arith.mulf %85, %87 : vector<16x512xf32>
    %c112 = arith.constant 112 : index
    %c0_30 = arith.constant 0 : index
    %89 = vector.load %arg16[%c112, %c0_30] : memref<864x512xf32, #tpu.memory_space<vmem>>, vector<16x512xf32>
    tpu.vector_store %arg16[%c112, %c0_30], %88 {strides = array<i32>} : memref<864x512xf32, #tpu.memory_space<vmem>>, vector<16x512xf32>,
    %c55_i32 = arith.constant 55 : i32
    %90 = tpu.dynamic_rotate %48 by %c55_i32 dim 1 : vector<16x512xf32>, i32 -> vector<16x512xf32>
    %91 = vector.extract_strided_slice %2 {offsets = [8, 0], sizes = [1, 512], strides = [1, 1]} : vector<27x512xf32> to vector<1x512xf32>
    %92 = vector.broadcast %91 : vector<1x512xf32> to vector<16x512xf32>
    %93 = arith.mulf %90, %92 : vector<16x512xf32>
    %c128 = arith.constant 128 : index
    %c0_31 = arith.constant 0 : index
    %94 = vector.load %arg16[%c128, %c0_31] : memref<864x512xf32, #tpu.memory_space<vmem>>, vector<16x512xf32>
    tpu.vector_store %arg16[%c128, %c0_31], %93 {strides = array<i32>} : memref<864x512xf32, #tpu.memory_space<vmem>>, vector<16x512xf32>,
    %c9_i32 = arith.constant 9 : i32
    %95 = tpu.dynamic_rotate %48 by %c9_i32 dim 1 : vector<16x512xf32>, i32 -> vector<16x512xf32>
    %96 = vector.extract_strided_slice %2 {offsets = [9, 0], sizes = [1, 512], strides = [1, 1]} : vector<27x512xf32> to vector<1x512xf32>
    %97 = vector.broadcast %96 : vector<1x512xf32> to vector<16x512xf32>
    %98 = arith.mulf %95, %97 : vector<16x512xf32>
    %c144 = arith.constant 144 : index
    %c0_32 = arith.constant 0 : index
    %99 = vector.load %arg16[%c144, %c0_32] : memref<864x512xf32, #tpu.memory_space<vmem>>, vector<16x512xf32>
    tpu.vector_store %arg16[%c144, %c0_32], %98 {strides = array<i32>} : memref<864x512xf32, #tpu.memory_space<vmem>>, vector<16x512xf32>,
    %c8_i32 = arith.constant 8 : i32
    %100 = tpu.dynamic_rotate %48 by %c8_i32 dim 1 : vector<16x512xf32>, i32 -> vector<16x512xf32>
    %101 = vector.extract_strided_slice %2 {offsets = [10, 0], sizes = [1, 512], strides = [1, 1]} : vector<27x512xf32> to vector<1x512xf32>
    %102 = vector.broadcast %101 : vector<1x512xf32> to vector<16x512xf32>
    %103 = arith.mulf %100, %102 : vector<16x512xf32>
    %c160 = arith.constant 160 : index
    %c0_33 = arith.constant 0 : index
    %104 = vector.load %arg16[%c160, %c0_33] : memref<864x512xf32, #tpu.memory_space<vmem>>, vector<16x512xf32>
    tpu.vector_store %arg16[%c160, %c0_33], %103 {strides = array<i32>} : memref<864x512xf32, #tpu.memory_space<vmem>>, vector<16x512xf32>,
    %c7_i32 = arith.constant 7 : i32
    %105 = tpu.dynamic_rotate %48 by %c7_i32 dim 1 : vector<16x512xf32>, i32 -> vector<16x512xf32>
    %106 = vector.extract_strided_slice %2 {offsets = [11, 0], sizes = [1, 512], strides = [1, 1]} : vector<27x512xf32> to vector<1x512xf32>
    %107 = vector.broadcast %106 : vector<1x512xf32> to vector<16x512xf32>
    %108 = arith.mulf %105, %107 : vector<16x512xf32>
    %c176 = arith.constant 176 : index
    %c0_34 = arith.constant 0 : index
    %109 = vector.load %arg16[%c176, %c0_34] : memref<864x512xf32, #tpu.memory_space<vmem>>, vector<16x512xf32>
    tpu.vector_store %arg16[%c176, %c0_34], %108 {strides = array<i32>} : memref<864x512xf32, #tpu.memory_space<vmem>>, vector<16x512xf32>,
    %c1_i32 = arith.constant 1 : i32
    %110 = tpu.dynamic_rotate %48 by %c1_i32 dim 1 : vector<16x512xf32>, i32 -> vector<16x512xf32>
    %111 = vector.extract_strided_slice %2 {offsets = [12, 0], sizes = [1, 512], strides = [1, 1]} : vector<27x512xf32> to vector<1x512xf32>
    %112 = vector.broadcast %111 : vector<1x512xf32> to vector<16x512xf32>
    %113 = arith.mulf %110, %112 : vector<16x512xf32>
    %c192 = arith.constant 192 : index
    %c0_35 = arith.constant 0 : index
    %114 = vector.load %arg16[%c192, %c0_35] : memref<864x512xf32, #tpu.memory_space<vmem>>, vector<16x512xf32>
    tpu.vector_store %arg16[%c192, %c0_35], %113 {strides = array<i32>} : memref<864x512xf32, #tpu.memory_space<vmem>>, vector<16x512xf32>,
    %115 = vector.extract_strided_slice %2 {offsets = [13, 0], sizes = [1, 512], strides = [1, 1]} : vector<27x512xf32> to vector<1x512xf32>
    %116 = vector.broadcast %115 : vector<1x512xf32> to vector<16x512xf32>
    %117 = arith.mulf %48, %116 : vector<16x512xf32>
    %c208 = arith.constant 208 : index
    %c0_36 = arith.constant 0 : index
    %118 = vector.load %arg16[%c208, %c0_36] : memref<864x512xf32, #tpu.memory_space<vmem>>, vector<16x512xf32>
    tpu.vector_store %arg16[%c208, %c0_36], %117 {strides = array<i32>} : memref<864x512xf32, #tpu.memory_space<vmem>>, vector<16x512xf32>,
    %c511_i32 = arith.constant 511 : i32
    %119 = tpu.dynamic_rotate %48 by %c511_i32 dim 1 : vector<16x512xf32>, i32 -> vector<16x512xf32>
    %120 = vector.extract_strided_slice %2 {offsets = [14, 0], sizes = [1, 512], strides = [1, 1]} : vector<27x512xf32> to vector<1x512xf32>
    %121 = vector.broadcast %120 : vector<1x512xf32> to vector<16x512xf32>
    %122 = arith.mulf %119, %121 : vector<16x512xf32>
    %c224 = arith.constant 224 : index
    %c0_37 = arith.constant 0 : index
    %123 = vector.load %arg16[%c224, %c0_37] : memref<864x512xf32, #tpu.memory_space<vmem>>, vector<16x512xf32>
    tpu.vector_store %arg16[%c224, %c0_37], %122 {strides = array<i32>} : memref<864x512xf32, #tpu.memory_space<vmem>>, vector<16x512xf32>,
    %c505_i32 = arith.constant 505 : i32
    %124 = tpu.dynamic_rotate %48 by %c505_i32 dim 1 : vector<16x512xf32>, i32 -> vector<16x512xf32>
    %125 = vector.extract_strided_slice %2 {offsets = [15, 0], sizes = [1, 512], strides = [1, 1]} : vector<27x512xf32> to vector<1x512xf32>
    %126 = vector.broadcast %125 : vector<1x512xf32> to vector<16x512xf32>
    %127 = arith.mulf %124, %126 : vector<16x512xf32>
    %c240 = arith.constant 240 : index
    %c0_38 = arith.constant 0 : index
    %128 = vector.load %arg16[%c240, %c0_38] : memref<864x512xf32, #tpu.memory_space<vmem>>, vector<16x512xf32>
    tpu.vector_store %arg16[%c240, %c0_38], %127 {strides = array<i32>} : memref<864x512xf32, #tpu.memory_space<vmem>>, vector<16x512xf32>,
    %c504_i32 = arith.constant 504 : i32
    %129 = tpu.dynamic_rotate %48 by %c504_i32 dim 1 : vector<16x512xf32>, i32 -> vector<16x512xf32>
    %130 = vector.extract_strided_slice %2 {offsets = [16, 0], sizes = [1, 512], strides = [1, 1]} : vector<27x512xf32> to vector<1x512xf32>
    %131 = vector.broadcast %130 : vector<1x512xf32> to vector<16x512xf32>
    %132 = arith.mulf %129, %131 : vector<16x512xf32>
    %c256 = arith.constant 256 : index
    %c0_39 = arith.constant 0 : index
    %133 = vector.load %arg16[%c256, %c0_39] : memref<864x512xf32, #tpu.memory_space<vmem>>, vector<16x512xf32>
    tpu.vector_store %arg16[%c256, %c0_39], %132 {strides = array<i32>} : memref<864x512xf32, #tpu.memory_space<vmem>>, vector<16x512xf32>,
    %c503_i32 = arith.constant 503 : i32
    %134 = tpu.dynamic_rotate %48 by %c503_i32 dim 1 : vector<16x512xf32>, i32 -> vector<16x512xf32>
    %135 = vector.extract_strided_slice %2 {offsets = [17, 0], sizes = [1, 512], strides = [1, 1]} : vector<27x512xf32> to vector<1x512xf32>
    %136 = vector.broadcast %135 : vector<1x512xf32> to vector<16x512xf32>
    %137 = arith.mulf %134, %136 : vector<16x512xf32>
    %c272 = arith.constant 272 : index
    %c0_40 = arith.constant 0 : index
    %138 = vector.load %arg16[%c272, %c0_40] : memref<864x512xf32, #tpu.memory_space<vmem>>, vector<16x512xf32>
    tpu.vector_store %arg16[%c272, %c0_40], %137 {strides = array<i32>} : memref<864x512xf32, #tpu.memory_space<vmem>>, vector<16x512xf32>,
    %c457_i32 = arith.constant 457 : i32
    %139 = tpu.dynamic_rotate %48 by %c457_i32 dim 1 : vector<16x512xf32>, i32 -> vector<16x512xf32>
    %140 = vector.extract_strided_slice %2 {offsets = [18, 0], sizes = [1, 512], strides = [1, 1]} : vector<27x512xf32> to vector<1x512xf32>
    %141 = vector.broadcast %140 : vector<1x512xf32> to vector<16x512xf32>
    %142 = arith.mulf %139, %141 : vector<16x512xf32>
    %c288 = arith.constant 288 : index
    %c0_41 = arith.constant 0 : index
    %143 = vector.load %arg16[%c288, %c0_41] : memref<864x512xf32, #tpu.memory_space<vmem>>, vector<16x512xf32>
    tpu.vector_store %arg16[%c288, %c0_41], %142 {strides = array<i32>} : memref<864x512xf32, #tpu.memory_space<vmem>>, vector<16x512xf32>,
    %c456_i32 = arith.constant 456 : i32
    %144 = tpu.dynamic_rotate %48 by %c456_i32 dim 1 : vector<16x512xf32>, i32 -> vector<16x512xf32>
    %145 = vector.extract_strided_slice %2 {offsets = [19, 0], sizes = [1, 512], strides = [1, 1]} : vector<27x512xf32> to vector<1x512xf32>
    %146 = vector.broadcast %145 : vector<1x512xf32> to vector<16x512xf32>
    %147 = arith.mulf %144, %146 : vector<16x512xf32>
    %c304 = arith.constant 304 : index
    %c0_42 = arith.constant 0 : index
    %148 = vector.load %arg16[%c304, %c0_42] : memref<864x512xf32, #tpu.memory_space<vmem>>, vector<16x512xf32>
    tpu.vector_store %arg16[%c304, %c0_42], %147 {strides = array<i32>} : memref<864x512xf32, #tpu.memory_space<vmem>>, vector<16x512xf32>,
    %c455_i32 = arith.constant 455 : i32
    %149 = tpu.dynamic_rotate %48 by %c455_i32 dim 1 : vector<16x512xf32>, i32 -> vector<16x512xf32>
    %150 = vector.extract_strided_slice %2 {offsets = [20, 0], sizes = [1, 512], strides = [1, 1]} : vector<27x512xf32> to vector<1x512xf32>
    %151 = vector.broadcast %150 : vector<1x512xf32> to vector<16x512xf32>
    %152 = arith.mulf %149, %151 : vector<16x512xf32>
    %c320 = arith.constant 320 : index
    %c0_43 = arith.constant 0 : index
    %153 = vector.load %arg16[%c320, %c0_43] : memref<864x512xf32, #tpu.memory_space<vmem>>, vector<16x512xf32>
    tpu.vector_store %arg16[%c320, %c0_43], %152 {strides = array<i32>} : memref<864x512xf32, #tpu.memory_space<vmem>>, vector<16x512xf32>,
    %c449_i32 = arith.constant 449 : i32
    %154 = tpu.dynamic_rotate %48 by %c449_i32 dim 1 : vector<16x512xf32>, i32 -> vector<16x512xf32>
    %155 = vector.extract_strided_slice %2 {offsets = [21, 0], sizes = [1, 512], strides = [1, 1]} : vector<27x512xf32> to vector<1x512xf32>
    %156 = vector.broadcast %155 : vector<1x512xf32> to vector<16x512xf32>
    %157 = arith.mulf %154, %156 : vector<16x512xf32>
    %c336 = arith.constant 336 : index
    %c0_44 = arith.constant 0 : index
    %158 = vector.load %arg16[%c336, %c0_44] : memref<864x512xf32, #tpu.memory_space<vmem>>, vector<16x512xf32>
    tpu.vector_store %arg16[%c336, %c0_44], %157 {strides = array<i32>} : memref<864x512xf32, #tpu.memory_space<vmem>>, vector<16x512xf32>,
    %c448_i32 = arith.constant 448 : i32
    %159 = tpu.dynamic_rotate %48 by %c448_i32 dim 1 : vector<16x512xf32>, i32 -> vector<16x512xf32>
    %160 = vector.extract_strided_slice %2 {offsets = [22, 0], sizes = [1, 512], strides = [1, 1]} : vector<27x512xf32> to vector<1x512xf32>
    %161 = vector.broadcast %160 : vector<1x512xf32> to vector<16x512xf32>
    %162 = arith.mulf %159, %161 : vector<16x512xf32>
    %c352 = arith.constant 352 : index
    %c0_45 = arith.constant 0 : index
    %163 = vector.load %arg16[%c352, %c0_45] : memref<864x512xf32, #tpu.memory_space<vmem>>, vector<16x512xf32>
    tpu.vector_store %arg16[%c352, %c0_45], %162 {strides = array<i32>} : memref<864x512xf32, #tpu.memory_space<vmem>>, vector<16x512xf32>,
    %c447_i32 = arith.constant 447 : i32
    %164 = tpu.dynamic_rotate %48 by %c447_i32 dim 1 : vector<16x512xf32>, i32 -> vector<16x512xf32>
    %165 = vector.extract_strided_slice %2 {offsets = [23, 0], sizes = [1, 512], strides = [1, 1]} : vector<27x512xf32> to vector<1x512xf32>
    %166 = vector.broadcast %165 : vector<1x512xf32> to vector<16x512xf32>
    %167 = arith.mulf %164, %166 : vector<16x512xf32>
    %c368 = arith.constant 368 : index
    %c0_46 = arith.constant 0 : index
    %168 = vector.load %arg16[%c368, %c0_46] : memref<864x512xf32, #tpu.memory_space<vmem>>, vector<16x512xf32>
    tpu.vector_store %arg16[%c368, %c0_46], %167 {strides = array<i32>} : memref<864x512xf32, #tpu.memory_space<vmem>>, vector<16x512xf32>,
    %c441_i32 = arith.constant 441 : i32
    %169 = tpu.dynamic_rotate %48 by %c441_i32 dim 1 : vector<16x512xf32>, i32 -> vector<16x512xf32>
    %170 = vector.extract_strided_slice %2 {offsets = [24, 0], sizes = [1, 512], strides = [1, 1]} : vector<27x512xf32> to vector<1x512xf32>
    %171 = vector.broadcast %170 : vector<1x512xf32> to vector<16x512xf32>
    %172 = arith.mulf %169, %171 : vector<16x512xf32>
    %c384 = arith.constant 384 : index
    %c0_47 = arith.constant 0 : index
    %173 = vector.load %arg16[%c384, %c0_47] : memref<864x512xf32, #tpu.memory_space<vmem>>, vector<16x512xf32>
    tpu.vector_store %arg16[%c384, %c0_47], %172 {strides = array<i32>} : memref<864x512xf32, #tpu.memory_space<vmem>>, vector<16x512xf32>,
    %c440_i32 = arith.constant 440 : i32
    %174 = tpu.dynamic_rotate %48 by %c440_i32 dim 1 : vector<16x512xf32>, i32 -> vector<16x512xf32>
    %175 = vector.extract_strided_slice %2 {offsets = [25, 0], sizes = [1, 512], strides = [1, 1]} : vector<27x512xf32> to vector<1x512xf32>
    %176 = vector.broadcast %175 : vector<1x512xf32> to vector<16x512xf32>
    %177 = arith.mulf %174, %176 : vector<16x512xf32>
    %c400 = arith.constant 400 : index
    %c0_48 = arith.constant 0 : index
    %178 = vector.load %arg16[%c400, %c0_48] : memref<864x512xf32, #tpu.memory_space<vmem>>, vector<16x512xf32>
    tpu.vector_store %arg16[%c400, %c0_48], %177 {strides = array<i32>} : memref<864x512xf32, #tpu.memory_space<vmem>>, vector<16x512xf32>,
    %c439_i32 = arith.constant 439 : i32
    %179 = tpu.dynamic_rotate %48 by %c439_i32 dim 1 : vector<16x512xf32>, i32 -> vector<16x512xf32>
    %180 = vector.extract_strided_slice %2 {offsets = [26, 0], sizes = [1, 512], strides = [1, 1]} : vector<27x512xf32> to vector<1x512xf32>
    %181 = vector.broadcast %180 : vector<1x512xf32> to vector<16x512xf32>
    %182 = arith.mulf %179, %181 : vector<16x512xf32>
    %c416 = arith.constant 416 : index
    %c0_49 = arith.constant 0 : index
    %183 = vector.load %arg16[%c416, %c0_49] : memref<864x512xf32, #tpu.memory_space<vmem>>, vector<16x512xf32>
    tpu.vector_store %arg16[%c416, %c0_49], %182 {strides = array<i32>} : memref<864x512xf32, #tpu.memory_space<vmem>>, vector<16x512xf32>,
    %c0_50 = arith.constant 0 : index
    %c0_51 = arith.constant 0 : index
    %184 = vector.load %arg16[%c0_50, %c0_51] : memref<864x512xf32, #tpu.memory_space<vmem>>, vector<432x512xf32>
    %c0_52 = arith.constant 0 : index
    %c0_53 = arith.constant 0 : index
    %185 = vector.load %arg6[%c0_52, %c0_53] : memref<32x432xf32, #tpu.memory_space<vmem>>, vector<32x432xf32>
    %cst_54 = arith.constant dense<0.000000e+00> : vector<32x512xf32>
    %186 = tpu.matmul %185, %184, %cst_54 {dimension_numbers = #tpu.dot_dimension_numbers<[1], [0], [0], [1], [0, 0, 1, 1], [], []>} : vector<32x432xf32>, vector<432x512xf32>, vector<32x512xf32> -> vector<32x512xf32>
    %187 = vector.broadcast %49 : vector<32x1xf32> to vector<32x512xf32>
    %188 = arith.addf %186, %187 : vector<32x512xf32>
    %c0_55 = arith.constant 0 : index
    %c0_56 = arith.constant 0 : index
    %189 = vector.load %arg10[%c0_55, %c0_56] : memref<32x32xf32, #tpu.memory_space<vmem>>, vector<32x32xf32>
    %c0_57 = arith.constant 0 : index
    %c0_58 = arith.constant 0 : index
    %190 = vector.load %arg8[%c0_57, %c0_58] : memref<32x1xf32, #tpu.memory_space<vmem>>, vector<32x1xf32>
    %c0_59 = arith.constant 0 : index
    %c0_60 = arith.constant 0 : index
    %191 = vector.load %arg9[%c0_59, %c0_60] : memref<32x1xf32, #tpu.memory_space<vmem>>, vector<32x1xf32>
    %cst_61 = arith.constant dense<0.000000e+00> : vector<32xf32>
    %192 = vector.multi_reduction <add>, %188, %cst_61 [1] : vector<32x512xf32> to vector<32xf32>
    %193 = vector.shape_cast %192 : vector<32xf32> to vector<32x1xf32>
    %194 = arith.mulf %188, %188 : vector<32x512xf32>
    %cst_62 = arith.constant dense<0.000000e+00> : vector<32xf32>
    %195 = vector.multi_reduction <add>, %194, %cst_62 [1] : vector<32x512xf32> to vector<32xf32>
    %196 = vector.shape_cast %195 : vector<32xf32> to vector<32x1xf32>
    %197 = vector.shape_cast %193 : vector<32x1xf32> to vector<32x1xf32>
    %198 = vector.broadcast %197 : vector<32x1xf32> to vector<32x128xf32>
    %199 = vector.shape_cast %196 : vector<32x1xf32> to vector<32x1xf32>
    %200 = vector.broadcast %199 : vector<32x1xf32> to vector<32x128xf32>
    %cst_63 = arith.constant dense<0.000000e+00> : vector<32x128xf32>
    %201 = tpu.matmul %189, %198, %cst_63 {dimension_numbers = #tpu.dot_dimension_numbers<[1], [0], [0], [1], [0, 0, 1, 1], [], []>} : vector<32x32xf32>, vector<32x128xf32>, vector<32x128xf32> -> vector<32x128xf32>
    %202 = vector.extract_strided_slice %201 {offsets = [0, 0], sizes = [32, 1], strides = [1, 1]} : vector<32x128xf32> to vector<32x1xf32>
    %cst_64 = arith.constant 5.120000e+02 : f32
    %203 = vector.broadcast %cst_64 : f32 to vector<32x1xf32>
    %204 = arith.divf %202, %203 : vector<32x1xf32>
    %cst_65 = arith.constant dense<0.000000e+00> : vector<32x128xf32>
    %205 = tpu.matmul %189, %200, %cst_65 {dimension_numbers = #tpu.dot_dimension_numbers<[1], [0], [0], [1], [0, 0, 1, 1], [], []>} : vector<32x32xf32>, vector<32x128xf32>, vector<32x128xf32> -> vector<32x128xf32>
    %206 = vector.extract_strided_slice %205 {offsets = [0, 0], sizes = [32, 1], strides = [1, 1]} : vector<32x128xf32> to vector<32x1xf32>
    %cst_66 = arith.constant 5.120000e+02 : f32
    %207 = vector.broadcast %cst_66 : f32 to vector<32x1xf32>
    %208 = arith.divf %206, %207 : vector<32x1xf32>
    %209 = arith.mulf %204, %204 : vector<32x1xf32>
    %210 = arith.subf %208, %209 : vector<32x1xf32>
    %211 = vector.broadcast %204 : vector<32x1xf32> to vector<32x512xf32>
    %212 = arith.subf %188, %211 : vector<32x512xf32>
    %cst_67 = arith.constant 9.99999974E-6 : f32
    %213 = vector.broadcast %cst_67 : f32 to vector<32x1xf32>
    %214 = arith.addf %210, %213 : vector<32x1xf32>
    %215 = math.rsqrt %214 : vector<32x1xf32>
    %216 = vector.broadcast %215 : vector<32x1xf32> to vector<32x512xf32>
    %217 = arith.mulf %212, %216 : vector<32x512xf32>
    %218 = vector.broadcast %190 : vector<32x1xf32> to vector<32x512xf32>
    %219 = arith.mulf %217, %218 : vector<32x512xf32>
    %220 = vector.broadcast %191 : vector<32x1xf32> to vector<32x512xf32>
    %221 = arith.addf %219, %220 : vector<32x512xf32>
    %cst_68 = arith.constant 2.000000e+01 : f32
    %222 = vector.broadcast %cst_68 : f32 to vector<32x512xf32>
    %223 = arith.minimumf %221, %222 : vector<32x512xf32>
    %224 = math.exp %223 : vector<32x512xf32>
    %cst_69 = arith.constant 2.000000e+00 : f32
    %225 = vector.broadcast %cst_69 : f32 to vector<32x512xf32>
    %226 = arith.addf %224, %225 : vector<32x512xf32>
    %227 = arith.mulf %224, %226 : vector<32x512xf32>
    %228 = arith.mulf %221, %227 : vector<32x512xf32>
    %cst_70 = arith.constant 2.000000e+00 : f32
    %229 = vector.broadcast %cst_70 : f32 to vector<32x512xf32>
    %230 = arith.addf %227, %229 : vector<32x512xf32>
    %231 = arith.divf %228, %230 : vector<32x512xf32>
    %cst_71 = arith.constant 2.000000e+01 : f32
    %232 = vector.broadcast %cst_71 : f32 to vector<32x512xf32>
    %233 = arith.cmpf ogt, %221, %232 : vector<32x512xf32>
    %234 = arith.select %233, %221, %231 : vector<32x512xi1>, vector<32x512xf32>
    %c0_72 = arith.constant 0 : index
    %c0_73 = arith.constant 0 : index
    %235 = vector.load %arg12[%c0_72, %c0_73] : memref<32x1xf32, #tpu.memory_space<vmem>>, vector<32x1xf32>
    %c73_i32_74 = arith.constant 73 : i32
    %236 = tpu.dynamic_rotate %234 by %c73_i32_74 dim 1 : vector<32x512xf32>, i32 -> vector<32x512xf32>
    %237 = vector.extract_strided_slice %2 {offsets = [0, 0], sizes = [1, 512], strides = [1, 1]} : vector<27x512xf32> to vector<1x512xf32>
    %238 = vector.broadcast %237 : vector<1x512xf32> to vector<32x512xf32>
    %239 = arith.mulf %236, %238 : vector<32x512xf32>
    %c0_75 = arith.constant 0 : index
    %c0_76 = arith.constant 0 : index
    %240 = vector.load %arg16[%c0_75, %c0_76] : memref<864x512xf32, #tpu.memory_space<vmem>>, vector<32x512xf32>
    tpu.vector_store %arg16[%c0_75, %c0_76], %239 {strides = array<i32>} : memref<864x512xf32, #tpu.memory_space<vmem>>, vector<32x512xf32>,
    %c72_i32_77 = arith.constant 72 : i32
    %241 = tpu.dynamic_rotate %234 by %c72_i32_77 dim 1 : vector<32x512xf32>, i32 -> vector<32x512xf32>
    %242 = vector.extract_strided_slice %2 {offsets = [1, 0], sizes = [1, 512], strides = [1, 1]} : vector<27x512xf32> to vector<1x512xf32>
    %243 = vector.broadcast %242 : vector<1x512xf32> to vector<32x512xf32>
    %244 = arith.mulf %241, %243 : vector<32x512xf32>
    %c32_78 = arith.constant 32 : index
    %c0_79 = arith.constant 0 : index
    %245 = vector.load %arg16[%c32_78, %c0_79] : memref<864x512xf32, #tpu.memory_space<vmem>>, vector<32x512xf32>
    tpu.vector_store %arg16[%c32_78, %c0_79], %244 {strides = array<i32>} : memref<864x512xf32, #tpu.memory_space<vmem>>, vector<32x512xf32>,
    %c71_i32_80 = arith.constant 71 : i32
    %246 = tpu.dynamic_rotate %234 by %c71_i32_80 dim 1 : vector<32x512xf32>, i32 -> vector<32x512xf32>
    %247 = vector.extract_strided_slice %2 {offsets = [2, 0], sizes = [1, 512], strides = [1, 1]} : vector<27x512xf32> to vector<1x512xf32>
    %248 = vector.broadcast %247 : vector<1x512xf32> to vector<32x512xf32>
    %249 = arith.mulf %246, %248 : vector<32x512xf32>
    %c64_81 = arith.constant 64 : index
    %c0_82 = arith.constant 0 : index
    %250 = vector.load %arg16[%c64_81, %c0_82] : memref<864x512xf32, #tpu.memory_space<vmem>>, vector<32x512xf32>
    tpu.vector_store %arg16[%c64_81, %c0_82], %249 {strides = array<i32>} : memref<864x512xf32, #tpu.memory_space<vmem>>, vector<32x512xf32>,
    %c65_i32_83 = arith.constant 65 : i32
    %251 = tpu.dynamic_rotate %234 by %c65_i32_83 dim 1 : vector<32x512xf32>, i32 -> vector<32x512xf32>
    %252 = vector.extract_strided_slice %2 {offsets = [3, 0], sizes = [1, 512], strides = [1, 1]} : vector<27x512xf32> to vector<1x512xf32>
    %253 = vector.broadcast %252 : vector<1x512xf32> to vector<32x512xf32>
    %254 = arith.mulf %251, %253 : vector<32x512xf32>
    %c96_84 = arith.constant 96 : index
    %c0_85 = arith.constant 0 : index
    %255 = vector.load %arg16[%c96_84, %c0_85] : memref<864x512xf32, #tpu.memory_space<vmem>>, vector<32x512xf32>
    tpu.vector_store %arg16[%c96_84, %c0_85], %254 {strides = array<i32>} : memref<864x512xf32, #tpu.memory_space<vmem>>, vector<32x512xf32>,
    %c64_i32_86 = arith.constant 64 : i32
    %256 = tpu.dynamic_rotate %234 by %c64_i32_86 dim 1 : vector<32x512xf32>, i32 -> vector<32x512xf32>
    %257 = vector.extract_strided_slice %2 {offsets = [4, 0], sizes = [1, 512], strides = [1, 1]} : vector<27x512xf32> to vector<1x512xf32>
    %258 = vector.broadcast %257 : vector<1x512xf32> to vector<32x512xf32>
    %259 = arith.mulf %256, %258 : vector<32x512xf32>
    %c128_87 = arith.constant 128 : index
    %c0_88 = arith.constant 0 : index
    %260 = vector.load %arg16[%c128_87, %c0_88] : memref<864x512xf32, #tpu.memory_space<vmem>>, vector<32x512xf32>
    tpu.vector_store %arg16[%c128_87, %c0_88], %259 {strides = array<i32>} : memref<864x512xf32, #tpu.memory_space<vmem>>, vector<32x512xf32>,
    %c63_i32_89 = arith.constant 63 : i32
    %261 = tpu.dynamic_rotate %234 by %c63_i32_89 dim 1 : vector<32x512xf32>, i32 -> vector<32x512xf32>
    %262 = vector.extract_strided_slice %2 {offsets = [5, 0], sizes = [1, 512], strides = [1, 1]} : vector<27x512xf32> to vector<1x512xf32>
    %263 = vector.broadcast %262 : vector<1x512xf32> to vector<32x512xf32>
    %264 = arith.mulf %261, %263 : vector<32x512xf32>
    %c160_90 = arith.constant 160 : index
    %c0_91 = arith.constant 0 : index
    %265 = vector.load %arg16[%c160_90, %c0_91] : memref<864x512xf32, #tpu.memory_space<vmem>>, vector<32x512xf32>
    tpu.vector_store %arg16[%c160_90, %c0_91], %264 {strides = array<i32>} : memref<864x512xf32, #tpu.memory_space<vmem>>, vector<32x512xf32>,
    %c57_i32_92 = arith.constant 57 : i32
    %266 = tpu.dynamic_rotate %234 by %c57_i32_92 dim 1 : vector<32x512xf32>, i32 -> vector<32x512xf32>
    %267 = vector.extract_strided_slice %2 {offsets = [6, 0], sizes = [1, 512], strides = [1, 1]} : vector<27x512xf32> to vector<1x512xf32>
    %268 = vector.broadcast %267 : vector<1x512xf32> to vector<32x512xf32>
    %269 = arith.mulf %266, %268 : vector<32x512xf32>
    %c192_93 = arith.constant 192 : index
    %c0_94 = arith.constant 0 : index
    %270 = vector.load %arg16[%c192_93, %c0_94] : memref<864x512xf32, #tpu.memory_space<vmem>>, vector<32x512xf32>
    tpu.vector_store %arg16[%c192_93, %c0_94], %269 {strides = array<i32>} : memref<864x512xf32, #tpu.memory_space<vmem>>, vector<32x512xf32>,
    %c56_i32_95 = arith.constant 56 : i32
    %271 = tpu.dynamic_rotate %234 by %c56_i32_95 dim 1 : vector<32x512xf32>, i32 -> vector<32x512xf32>
    %272 = vector.extract_strided_slice %2 {offsets = [7, 0], sizes = [1, 512], strides = [1, 1]} : vector<27x512xf32> to vector<1x512xf32>
    %273 = vector.broadcast %272 : vector<1x512xf32> to vector<32x512xf32>
    %274 = arith.mulf %271, %273 : vector<32x512xf32>
    %c224_96 = arith.constant 224 : index
    %c0_97 = arith.constant 0 : index
    %275 = vector.load %arg16[%c224_96, %c0_97] : memref<864x512xf32, #tpu.memory_space<vmem>>, vector<32x512xf32>
    tpu.vector_store %arg16[%c224_96, %c0_97], %274 {strides = array<i32>} : memref<864x512xf32, #tpu.memory_space<vmem>>, vector<32x512xf32>,
    %c55_i32_98 = arith.constant 55 : i32
    %276 = tpu.dynamic_rotate %234 by %c55_i32_98 dim 1 : vector<32x512xf32>, i32 -> vector<32x512xf32>
    %277 = vector.extract_strided_slice %2 {offsets = [8, 0], sizes = [1, 512], strides = [1, 1]} : vector<27x512xf32> to vector<1x512xf32>
    %278 = vector.broadcast %277 : vector<1x512xf32> to vector<32x512xf32>
    %279 = arith.mulf %276, %278 : vector<32x512xf32>
    %c256_99 = arith.constant 256 : index
    %c0_100 = arith.constant 0 : index
    %280 = vector.load %arg16[%c256_99, %c0_100] : memref<864x512xf32, #tpu.memory_space<vmem>>, vector<32x512xf32>
    tpu.vector_store %arg16[%c256_99, %c0_100], %279 {strides = array<i32>} : memref<864x512xf32, #tpu.memory_space<vmem>>, vector<32x512xf32>,
    %c9_i32_101 = arith.constant 9 : i32
    %281 = tpu.dynamic_rotate %234 by %c9_i32_101 dim 1 : vector<32x512xf32>, i32 -> vector<32x512xf32>
    %282 = vector.extract_strided_slice %2 {offsets = [9, 0], sizes = [1, 512], strides = [1, 1]} : vector<27x512xf32> to vector<1x512xf32>
    %283 = vector.broadcast %282 : vector<1x512xf32> to vector<32x512xf32>
    %284 = arith.mulf %281, %283 : vector<32x512xf32>
    %c288_102 = arith.constant 288 : index
    %c0_103 = arith.constant 0 : index
    %285 = vector.load %arg16[%c288_102, %c0_103] : memref<864x512xf32, #tpu.memory_space<vmem>>, vector<32x512xf32>
    tpu.vector_store %arg16[%c288_102, %c0_103], %284 {strides = array<i32>} : memref<864x512xf32, #tpu.memory_space<vmem>>, vector<32x512xf32>,
    %c8_i32_104 = arith.constant 8 : i32
    %286 = tpu.dynamic_rotate %234 by %c8_i32_104 dim 1 : vector<32x512xf32>, i32 -> vector<32x512xf32>
    %287 = vector.extract_strided_slice %2 {offsets = [10, 0], sizes = [1, 512], strides = [1, 1]} : vector<27x512xf32> to vector<1x512xf32>
    %288 = vector.broadcast %287 : vector<1x512xf32> to vector<32x512xf32>
    %289 = arith.mulf %286, %288 : vector<32x512xf32>
    %c320_105 = arith.constant 320 : index
    %c0_106 = arith.constant 0 : index
    %290 = vector.load %arg16[%c320_105, %c0_106] : memref<864x512xf32, #tpu.memory_space<vmem>>, vector<32x512xf32>
    tpu.vector_store %arg16[%c320_105, %c0_106], %289 {strides = array<i32>} : memref<864x512xf32, #tpu.memory_space<vmem>>, vector<32x512xf32>,
    %c7_i32_107 = arith.constant 7 : i32
    %291 = tpu.dynamic_rotate %234 by %c7_i32_107 dim 1 : vector<32x512xf32>, i32 -> vector<32x512xf32>
    %292 = vector.extract_strided_slice %2 {offsets = [11, 0], sizes = [1, 512], strides = [1, 1]} : vector<27x512xf32> to vector<1x512xf32>
    %293 = vector.broadcast %292 : vector<1x512xf32> to vector<32x512xf32>
    %294 = arith.mulf %291, %293 : vector<32x512xf32>
    %c352_108 = arith.constant 352 : index
    %c0_109 = arith.constant 0 : index
    %295 = vector.load %arg16[%c352_108, %c0_109] : memref<864x512xf32, #tpu.memory_space<vmem>>, vector<32x512xf32>
    tpu.vector_store %arg16[%c352_108, %c0_109], %294 {strides = array<i32>} : memref<864x512xf32, #tpu.memory_space<vmem>>, vector<32x512xf32>,
    %c1_i32_110 = arith.constant 1 : i32
    %296 = tpu.dynamic_rotate %234 by %c1_i32_110 dim 1 : vector<32x512xf32>, i32 -> vector<32x512xf32>
    %297 = vector.extract_strided_slice %2 {offsets = [12, 0], sizes = [1, 512], strides = [1, 1]} : vector<27x512xf32> to vector<1x512xf32>
    %298 = vector.broadcast %297 : vector<1x512xf32> to vector<32x512xf32>
    %299 = arith.mulf %296, %298 : vector<32x512xf32>
    %c384_111 = arith.constant 384 : index
    %c0_112 = arith.constant 0 : index
    %300 = vector.load %arg16[%c384_111, %c0_112] : memref<864x512xf32, #tpu.memory_space<vmem>>, vector<32x512xf32>
    tpu.vector_store %arg16[%c384_111, %c0_112], %299 {strides = array<i32>} : memref<864x512xf32, #tpu.memory_space<vmem>>, vector<32x512xf32>,
    %301 = vector.extract_strided_slice %2 {offsets = [13, 0], sizes = [1, 512], strides = [1, 1]} : vector<27x512xf32> to vector<1x512xf32>
    %302 = vector.broadcast %301 : vector<1x512xf32> to vector<32x512xf32>
    %303 = arith.mulf %234, %302 : vector<32x512xf32>
    %c416_113 = arith.constant 416 : index
    %c0_114 = arith.constant 0 : index
    %304 = vector.load %arg16[%c416_113, %c0_114] : memref<864x512xf32, #tpu.memory_space<vmem>>, vector<32x512xf32>
    tpu.vector_store %arg16[%c416_113, %c0_114], %303 {strides = array<i32>} : memref<864x512xf32, #tpu.memory_space<vmem>>, vector<32x512xf32>,
    %c511_i32_115 = arith.constant 511 : i32
    %305 = tpu.dynamic_rotate %234 by %c511_i32_115 dim 1 : vector<32x512xf32>, i32 -> vector<32x512xf32>
    %306 = vector.extract_strided_slice %2 {offsets = [14, 0], sizes = [1, 512], strides = [1, 1]} : vector<27x512xf32> to vector<1x512xf32>
    %307 = vector.broadcast %306 : vector<1x512xf32> to vector<32x512xf32>
    %308 = arith.mulf %305, %307 : vector<32x512xf32>
    %c448 = arith.constant 448 : index
    %c0_116 = arith.constant 0 : index
    %309 = vector.load %arg16[%c448, %c0_116] : memref<864x512xf32, #tpu.memory_space<vmem>>, vector<32x512xf32>
    tpu.vector_store %arg16[%c448, %c0_116], %308 {strides = array<i32>} : memref<864x512xf32, #tpu.memory_space<vmem>>, vector<32x512xf32>,
    %c505_i32_117 = arith.constant 505 : i32
    %310 = tpu.dynamic_rotate %234 by %c505_i32_117 dim 1 : vector<32x512xf32>, i32 -> vector<32x512xf32>
    %311 = vector.extract_strided_slice %2 {offsets = [15, 0], sizes = [1, 512], strides = [1, 1]} : vector<27x512xf32> to vector<1x512xf32>
    %312 = vector.broadcast %311 : vector<1x512xf32> to vector<32x512xf32>
    %313 = arith.mulf %310, %312 : vector<32x512xf32>
    %c480 = arith.constant 480 : index
    %c0_118 = arith.constant 0 : index
    %314 = vector.load %arg16[%c480, %c0_118] : memref<864x512xf32, #tpu.memory_space<vmem>>, vector<32x512xf32>
    tpu.vector_store %arg16[%c480, %c0_118], %313 {strides = array<i32>} : memref<864x512xf32, #tpu.memory_space<vmem>>, vector<32x512xf32>,
    %c504_i32_119 = arith.constant 504 : i32
    %315 = tpu.dynamic_rotate %234 by %c504_i32_119 dim 1 : vector<32x512xf32>, i32 -> vector<32x512xf32>
    %316 = vector.extract_strided_slice %2 {offsets = [16, 0], sizes = [1, 512], strides = [1, 1]} : vector<27x512xf32> to vector<1x512xf32>
    %317 = vector.broadcast %316 : vector<1x512xf32> to vector<32x512xf32>
    %318 = arith.mulf %315, %317 : vector<32x512xf32>
    %c512 = arith.constant 512 : index
    %c0_120 = arith.constant 0 : index
    %319 = vector.load %arg16[%c512, %c0_120] : memref<864x512xf32, #tpu.memory_space<vmem>>, vector<32x512xf32>
    tpu.vector_store %arg16[%c512, %c0_120], %318 {strides = array<i32>} : memref<864x512xf32, #tpu.memory_space<vmem>>, vector<32x512xf32>,
    %c503_i32_121 = arith.constant 503 : i32
    %320 = tpu.dynamic_rotate %234 by %c503_i32_121 dim 1 : vector<32x512xf32>, i32 -> vector<32x512xf32>
    %321 = vector.extract_strided_slice %2 {offsets = [17, 0], sizes = [1, 512], strides = [1, 1]} : vector<27x512xf32> to vector<1x512xf32>
    %322 = vector.broadcast %321 : vector<1x512xf32> to vector<32x512xf32>
    %323 = arith.mulf %320, %322 : vector<32x512xf32>
    %c544 = arith.constant 544 : index
    %c0_122 = arith.constant 0 : index
    %324 = vector.load %arg16[%c544, %c0_122] : memref<864x512xf32, #tpu.memory_space<vmem>>, vector<32x512xf32>
    tpu.vector_store %arg16[%c544, %c0_122], %323 {strides = array<i32>} : memref<864x512xf32, #tpu.memory_space<vmem>>, vector<32x512xf32>,
    %c457_i32_123 = arith.constant 457 : i32
    %325 = tpu.dynamic_rotate %234 by %c457_i32_123 dim 1 : vector<32x512xf32>, i32 -> vector<32x512xf32>
    %326 = vector.extract_strided_slice %2 {offsets = [18, 0], sizes = [1, 512], strides = [1, 1]} : vector<27x512xf32> to vector<1x512xf32>
    %327 = vector.broadcast %326 : vector<1x512xf32> to vector<32x512xf32>
    %328 = arith.mulf %325, %327 : vector<32x512xf32>
    %c576 = arith.constant 576 : index
    %c0_124 = arith.constant 0 : index
    %329 = vector.load %arg16[%c576, %c0_124] : memref<864x512xf32, #tpu.memory_space<vmem>>, vector<32x512xf32>
    tpu.vector_store %arg16[%c576, %c0_124], %328 {strides = array<i32>} : memref<864x512xf32, #tpu.memory_space<vmem>>, vector<32x512xf32>,
    %c456_i32_125 = arith.constant 456 : i32
    %330 = tpu.dynamic_rotate %234 by %c456_i32_125 dim 1 : vector<32x512xf32>, i32 -> vector<32x512xf32>
    %331 = vector.extract_strided_slice %2 {offsets = [19, 0], sizes = [1, 512], strides = [1, 1]} : vector<27x512xf32> to vector<1x512xf32>
    %332 = vector.broadcast %331 : vector<1x512xf32> to vector<32x512xf32>
    %333 = arith.mulf %330, %332 : vector<32x512xf32>
    %c608 = arith.constant 608 : index
    %c0_126 = arith.constant 0 : index
    %334 = vector.load %arg16[%c608, %c0_126] : memref<864x512xf32, #tpu.memory_space<vmem>>, vector<32x512xf32>
    tpu.vector_store %arg16[%c608, %c0_126], %333 {strides = array<i32>} : memref<864x512xf32, #tpu.memory_space<vmem>>, vector<32x512xf32>,
    %c455_i32_127 = arith.constant 455 : i32
    %335 = tpu.dynamic_rotate %234 by %c455_i32_127 dim 1 : vector<32x512xf32>, i32 -> vector<32x512xf32>
    %336 = vector.extract_strided_slice %2 {offsets = [20, 0], sizes = [1, 512], strides = [1, 1]} : vector<27x512xf32> to vector<1x512xf32>
    %337 = vector.broadcast %336 : vector<1x512xf32> to vector<32x512xf32>
    %338 = arith.mulf %335, %337 : vector<32x512xf32>
    %c640 = arith.constant 640 : index
    %c0_128 = arith.constant 0 : index
    %339 = vector.load %arg16[%c640, %c0_128] : memref<864x512xf32, #tpu.memory_space<vmem>>, vector<32x512xf32>
    tpu.vector_store %arg16[%c640, %c0_128], %338 {strides = array<i32>} : memref<864x512xf32, #tpu.memory_space<vmem>>, vector<32x512xf32>,
    %c449_i32_129 = arith.constant 449 : i32
    %340 = tpu.dynamic_rotate %234 by %c449_i32_129 dim 1 : vector<32x512xf32>, i32 -> vector<32x512xf32>
    %341 = vector.extract_strided_slice %2 {offsets = [21, 0], sizes = [1, 512], strides = [1, 1]} : vector<27x512xf32> to vector<1x512xf32>
    %342 = vector.broadcast %341 : vector<1x512xf32> to vector<32x512xf32>
    %343 = arith.mulf %340, %342 : vector<32x512xf32>
    %c672 = arith.constant 672 : index
    %c0_130 = arith.constant 0 : index
    %344 = vector.load %arg16[%c672, %c0_130] : memref<864x512xf32, #tpu.memory_space<vmem>>, vector<32x512xf32>
    tpu.vector_store %arg16[%c672, %c0_130], %343 {strides = array<i32>} : memref<864x512xf32, #tpu.memory_space<vmem>>, vector<32x512xf32>,
    %c448_i32_131 = arith.constant 448 : i32
    %345 = tpu.dynamic_rotate %234 by %c448_i32_131 dim 1 : vector<32x512xf32>, i32 -> vector<32x512xf32>
    %346 = vector.extract_strided_slice %2 {offsets = [22, 0], sizes = [1, 512], strides = [1, 1]} : vector<27x512xf32> to vector<1x512xf32>
    %347 = vector.broadcast %346 : vector<1x512xf32> to vector<32x512xf32>
    %348 = arith.mulf %345, %347 : vector<32x512xf32>
    %c704 = arith.constant 704 : index
    %c0_132 = arith.constant 0 : index
    %349 = vector.load %arg16[%c704, %c0_132] : memref<864x512xf32, #tpu.memory_space<vmem>>, vector<32x512xf32>
    tpu.vector_store %arg16[%c704, %c0_132], %348 {strides = array<i32>} : memref<864x512xf32, #tpu.memory_space<vmem>>, vector<32x512xf32>,
    %c447_i32_133 = arith.constant 447 : i32
    %350 = tpu.dynamic_rotate %234 by %c447_i32_133 dim 1 : vector<32x512xf32>, i32 -> vector<32x512xf32>
    %351 = vector.extract_strided_slice %2 {offsets = [23, 0], sizes = [1, 512], strides = [1, 1]} : vector<27x512xf32> to vector<1x512xf32>
    %352 = vector.broadcast %351 : vector<1x512xf32> to vector<32x512xf32>
    %353 = arith.mulf %350, %352 : vector<32x512xf32>
    %c736 = arith.constant 736 : index
    %c0_134 = arith.constant 0 : index
    %354 = vector.load %arg16[%c736, %c0_134] : memref<864x512xf32, #tpu.memory_space<vmem>>, vector<32x512xf32>
    tpu.vector_store %arg16[%c736, %c0_134], %353 {strides = array<i32>} : memref<864x512xf32, #tpu.memory_space<vmem>>, vector<32x512xf32>,
    %c441_i32_135 = arith.constant 441 : i32
    %355 = tpu.dynamic_rotate %234 by %c441_i32_135 dim 1 : vector<32x512xf32>, i32 -> vector<32x512xf32>
    %356 = vector.extract_strided_slice %2 {offsets = [24, 0], sizes = [1, 512], strides = [1, 1]} : vector<27x512xf32> to vector<1x512xf32>
    %357 = vector.broadcast %356 : vector<1x512xf32> to vector<32x512xf32>
    %358 = arith.mulf %355, %357 : vector<32x512xf32>
    %c768 = arith.constant 768 : index
    %c0_136 = arith.constant 0 : index
    %359 = vector.load %arg16[%c768, %c0_136] : memref<864x512xf32, #tpu.memory_space<vmem>>, vector<32x512xf32>
    tpu.vector_store %arg16[%c768, %c0_136], %358 {strides = array<i32>} : memref<864x512xf32, #tpu.memory_space<vmem>>, vector<32x512xf32>,
    %c440_i32_137 = arith.constant 440 : i32
    %360 = tpu.dynamic_rotate %234 by %c440_i32_137 dim 1 : vector<32x512xf32>, i32 -> vector<32x512xf32>
    %361 = vector.extract_strided_slice %2 {offsets = [25, 0], sizes = [1, 512], strides = [1, 1]} : vector<27x512xf32> to vector<1x512xf32>
    %362 = vector.broadcast %361 : vector<1x512xf32> to vector<32x512xf32>
    %363 = arith.mulf %360, %362 : vector<32x512xf32>
    %c800 = arith.constant 800 : index
    %c0_138 = arith.constant 0 : index
    %364 = vector.load %arg16[%c800, %c0_138] : memref<864x512xf32, #tpu.memory_space<vmem>>, vector<32x512xf32>
    tpu.vector_store %arg16[%c800, %c0_138], %363 {strides = array<i32>} : memref<864x512xf32, #tpu.memory_space<vmem>>, vector<32x512xf32>,
    %c439_i32_139 = arith.constant 439 : i32
    %365 = tpu.dynamic_rotate %234 by %c439_i32_139 dim 1 : vector<32x512xf32>, i32 -> vector<32x512xf32>
    %366 = vector.extract_strided_slice %2 {offsets = [26, 0], sizes = [1, 512], strides = [1, 1]} : vector<27x512xf32> to vector<1x512xf32>
    %367 = vector.broadcast %366 : vector<1x512xf32> to vector<32x512xf32>
    %368 = arith.mulf %365, %367 : vector<32x512xf32>
    %c832 = arith.constant 832 : index
    %c0_140 = arith.constant 0 : index
    %369 = vector.load %arg16[%c832, %c0_140] : memref<864x512xf32, #tpu.memory_space<vmem>>, vector<32x512xf32>
    tpu.vector_store %arg16[%c832, %c0_140], %368 {strides = array<i32>} : memref<864x512xf32, #tpu.memory_space<vmem>>, vector<32x512xf32>,
    %c0_141 = arith.constant 0 : index
    %c0_142 = arith.constant 0 : index
    %370 = vector.load %arg16[%c0_141, %c0_142] : memref<864x512xf32, #tpu.memory_space<vmem>>, vector<864x512xf32>
    %c0_143 = arith.constant 0 : index
    %c0_144 = arith.constant 0 : index
    %371 = vector.load %arg11[%c0_143, %c0_144] : memref<32x864xf32, #tpu.memory_space<vmem>>, vector<32x864xf32>
    %cst_145 = arith.constant dense<0.000000e+00> : vector<32x512xf32>
    %372 = tpu.matmul %371, %370, %cst_145 {dimension_numbers = #tpu.dot_dimension_numbers<[1], [0], [0], [1], [0, 0, 1, 1], [], []>} : vector<32x864xf32>, vector<864x512xf32>, vector<32x512xf32> -> vector<32x512xf32>
    %373 = vector.broadcast %235 : vector<32x1xf32> to vector<32x512xf32>
    %374 = arith.addf %372, %373 : vector<32x512xf32>
    %c0_146 = arith.constant 0 : index
    %c0_147 = arith.constant 0 : index
    %375 = vector.load %arg13[%c0_146, %c0_147] : memref<32x16xf32, #tpu.memory_space<vmem>>, vector<32x16xf32>
    %cst_148 = arith.constant dense<0.000000e+00> : vector<32x512xf32>
    %376 = tpu.matmul %375, %1, %cst_148 {dimension_numbers = #tpu.dot_dimension_numbers<[1], [0], [0], [1], [0, 0, 1, 1], [], []>} : vector<32x16xf32>, vector<16x512xf32>, vector<32x512xf32> -> vector<32x512xf32>
    %c0_149 = arith.constant 0 : index
    %c0_150 = arith.constant 0 : index
    %377 = vector.load %arg14[%c0_149, %c0_150] : memref<32x1xf32, #tpu.memory_space<vmem>>, vector<32x1xf32>
    %378 = vector.broadcast %377 : vector<32x1xf32> to vector<32x512xf32>
    %379 = arith.addf %376, %378 : vector<32x512xf32>
    %380 = arith.addf %374, %379 : vector<32x512xf32>
    %c0_151 = arith.constant 0 : index
    %c0_152 = arith.constant 0 : index
    %c0_153 = arith.constant 0 : index
    %381 = vector.load %arg15[%c0_151, %c0_152, %c0_153] : memref<1x32x512xf32, #tpu.memory_space<vmem>>, vector<1x32x512xf32>
    %382 = vector.shape_cast %381 : vector<1x32x512xf32> to vector<32x512xf32>
    %383 = vector.shape_cast %380 : vector<32x512xf32> to vector<1x32x512xf32>
    tpu.vector_store %arg15[%c0_151, %c0_152, %c0_153], %383 {strides = array<i32>} : memref<1x32x512xf32, #tpu.memory_space<vmem>>, vector<1x32x512xf32>,
    return
  }
  func.func @transform_0(%arg0: i32) -> (i32, i32, i32) {
    %c0_i32 = arith.constant 0 : i32
    %c0_i32_0 = arith.constant 0 : i32
    %c0_i32_1 = arith.constant 0 : i32
    return %arg0, %c0_i32, %c0_i32_0 : i32, i32, i32
  }
  func.func @transform_1(%arg0: i32) -> (i32, i32) {
    %c0_i32 = arith.constant 0 : i32
    %c0_i32_0 = arith.constant 0 : i32
    %c0_i32_1 = arith.constant 0 : i32
    return %c0_i32, %c0_i32_0 : i32, i32
  }
  func.func @transform_2(%arg0: i32) -> (i32, i32) {
    %c0_i32 = arith.constant 0 : i32
    %c0_i32_0 = arith.constant 0 : i32
    %c0_i32_1 = arith.constant 0 : i32
    return %c0_i32, %c0_i32_0 : i32, i32
  }
  func.func @transform_3(%arg0: i32) -> (i32, i32) {
    %c0_i32 = arith.constant 0 : i32
    %c0_i32_0 = arith.constant 0 : i32
    %c0_i32_1 = arith.constant 0 : i32
    return %c0_i32, %c0_i32_0 : i32, i32
  }
  func.func @transform_4(%arg0: i32) -> (i32, i32) {
    %c0_i32 = arith.constant 0 : i32
    %c0_i32_0 = arith.constant 0 : i32
    %c0_i32_1 = arith.constant 0 : i32
    return %c0_i32, %c0_i32_0 : i32, i32
  }
  func.func @transform_5(%arg0: i32) -> (i32, i32) {
    %c0_i32 = arith.constant 0 : i32
    %c0_i32_0 = arith.constant 0 : i32
    %c0_i32_1 = arith.constant 0 : i32
    return %c0_i32, %c0_i32_0 : i32, i32
  }
  func.func @transform_6(%arg0: i32) -> (i32, i32) {
    %c0_i32 = arith.constant 0 : i32
    %c0_i32_0 = arith.constant 0 : i32
    %c0_i32_1 = arith.constant 0 : i32
    return %c0_i32, %c0_i32_0 : i32, i32
  }
  func.func @transform_7(%arg0: i32) -> (i32, i32) {
    %c0_i32 = arith.constant 0 : i32
    %c0_i32_0 = arith.constant 0 : i32
    %c0_i32_1 = arith.constant 0 : i32
    return %c0_i32, %c0_i32_0 : i32, i32
  }
  func.func @transform_8(%arg0: i32) -> (i32, i32) {
    %c0_i32 = arith.constant 0 : i32
    %c0_i32_0 = arith.constant 0 : i32
    %c0_i32_1 = arith.constant 0 : i32
    return %c0_i32, %c0_i32_0 : i32, i32
  }
  func.func @transform_9(%arg0: i32) -> (i32, i32) {
    %c0_i32 = arith.constant 0 : i32
    %c0_i32_0 = arith.constant 0 : i32
    %c0_i32_1 = arith.constant 0 : i32
    return %c0_i32, %c0_i32_0 : i32, i32
  }
  func.func @transform_10(%arg0: i32) -> (i32, i32) {
    %c0_i32 = arith.constant 0 : i32
    %c0_i32_0 = arith.constant 0 : i32
    %c0_i32_1 = arith.constant 0 : i32
    return %c0_i32, %c0_i32_0 : i32, i32
  }
  func.func @transform_11(%arg0: i32) -> (i32, i32) {
    %c0_i32 = arith.constant 0 : i32
    %c0_i32_0 = arith.constant 0 : i32
    %c0_i32_1 = arith.constant 0 : i32
    return %c0_i32, %c0_i32_0 : i32, i32
  }
  func.func @transform_12(%arg0: i32) -> (i32, i32) {
    %c0_i32 = arith.constant 0 : i32
    %c0_i32_0 = arith.constant 0 : i32
    %c0_i32_1 = arith.constant 0 : i32
    return %c0_i32, %c0_i32_0 : i32, i32
  }
  func.func @transform_13(%arg0: i32) -> (i32, i32) {
    %c0_i32 = arith.constant 0 : i32
    %c0_i32_0 = arith.constant 0 : i32
    %c0_i32_1 = arith.constant 0 : i32
    return %c0_i32, %c0_i32_0 : i32, i32
  }
  func.func @transform_14(%arg0: i32) -> (i32, i32, i32) {
    %c0_i32 = arith.constant 0 : i32
    %c0_i32_0 = arith.constant 0 : i32
    %c0_i32_1 = arith.constant 0 : i32
    return %arg0, %c0_i32, %c0_i32_0 : i32, i32, i32
  }
}

</mosaic_0001>

<llo_original>
// kernel: tpu_custom_call.1
$region0: #{tpu_custom_call.1}
  #allocation0 [shape = 'u32[]', space=smem, size = 0x4, offset = 0x4, fixed_abs, tag = 'smem constant byte address 0x4 - core index']
  #allocation1 [shape = 'u32[72,128]{1,0:T(1,128)}', space=vmem, size = 0x9000, scoped, tag = 'internal scratch']
  #allocation2 [shape = 'f32[864,512]{1,0:T(8,128)}', space=vmem, size = 0x1b0000, scoped, tag = 'scratch operand']
  %s0 = inlined_call_operand.hbm [shape: f32[2,16,512], index: 0, kind: input, shape index: {}]
  %s1 = inlined_call_operand.hbm [shape: f32[27,512], index: 1, kind: input, shape index: {}]
  %s2 = inlined_call_operand.vmem [shape: f32[16,1], index: 2, kind: input, shape index: {}]
  %s3 = inlined_call_operand.vmem [shape: f32[16,1], index: 3, kind: input, shape index: {}]
  %s4 = inlined_call_operand.vmem [shape: f32[16,16], index: 4, kind: input, shape index: {}]
  %s5 = inlined_call_operand.hbm [shape: f32[32,432], index: 5, kind: input, shape index: {}]
  %s6 = inlined_call_operand.vmem [shape: f32[32,1], index: 6, kind: input, shape index: {}]
  %s7 = inlined_call_operand.vmem [shape: f32[32,1], index: 7, kind: input, shape index: {}]
  %s8 = inlined_call_operand.vmem [shape: f32[32,1], index: 8, kind: input, shape index: {}]
  %s9 = inlined_call_operand.vmem [shape: f32[32,32], index: 9, kind: input, shape index: {}]
  %s10 = inlined_call_operand.hbm [shape: f32[32,864], index: 10, kind: input, shape index: {}]
  %s11 = inlined_call_operand.vmem [shape: f32[32,1], index: 11, kind: input, shape index: {}]
  %s12 = inlined_call_operand.vmem [shape: f32[32,16], index: 12, kind: input, shape index: {}]
  %s13 = inlined_call_operand.vmem [shape: f32[32,1], index: 13, kind: input, shape index: {}]
  %s14 = inlined_call_operand.hbm [shape: f32[2,32,512], index: 14, kind: output, shape index: {}]
  %s15 = sld [smem:[#allocation0]]
  $region105: #{tpu_custom_call.1} parent=0
    _
  %s17 = ssub.s32 1, %s15
  %s18 = scalar_select 0, %s17, %s15
  $region1: #{tpu_custom_call.1} parent=0
    #allocation3 [shape = 'u8[65536]{0}', space=vmem, size = 0x10000, scoped, tag = 'input window, operand 0']
    #allocation4 [shape = 's32[2]{0}', space=sflag, size = 0x8, scoped, tag = 'scoped memory for tpu_custom_call.1']
    #allocation5 [shape = 's32[2]{0}', space=sflag, size = 0x8, scoped, tag = 'scoped memory for tpu_custom_call.1']
    #allocation6 [shape = 'u8[65536]{0}', space=vmem, size = 0x10000, scoped, tag = 'input window, operand 1, single buffered']
    #allocation7 [shape = 's32[1]{0}', space=sflag, size = 0x4, scoped, tag = 'scoped memory for tpu_custom_call.1']
    #allocation8 [shape = 'u8[65536]{0}', space=vmem, size = 0x10000, scoped, tag = 'input window, operand 5, single buffered']
    #allocation9 [shape = 'u8[114688]{0}', space=vmem, size = 0x1c000, scoped, tag = 'input window, operand 10, single buffered']
    #allocation10 [shape = 's32[1]{0}', space=sflag, size = 0x4, scoped, tag = 'scoped memory for tpu_custom_call.1']
    #allocation11 [shape = 'u8[131072]{0}', space=vmem, size = 0x20000, scoped, tag = 'output window, operand 0']
    %19 = vsyncpa [#allocation4], 0
    %s20 = scalar_lea.sflag [#allocation4], 1
    %21 = vsyncpa %s20, 0
    %22 = vsyncpa [#allocation7], 0
    %23 = vsyncpa [#allocation10], 0
    %24 = vsyncpa [#allocation5], 0
    %s25 = scalar_lea.sflag [#allocation5], 1
    %26 = vsyncpa %s25, 0
    loop: start=0, step=1, limit=4
    $region2: #{tpu_custom_call.1} parent=1 // loop_pre_header
      _
    $region3: #{tpu_custom_call.1} parent=1 // loop_header
      %s28 = sphi 0, %s32
      %p29 = scmp.ge.s32.totalorder %s28, 4
      %s38 = sphi 0, %s40
      %s41 = sphi 0, %s38
      %s42 = sphi 0, %s41
      %s58 = sphi 0, %s42
      %s62 = sphi 0, %s62
      %s64 = sphi 0, %s62
      %s65 = sphi 0, %s64
      %s79 = sphi 0, %s65
      %s83 = sphi 0, %s83
      %s85 = sphi 0, %s83
      %s86 = sphi 0, %s85
      %s100 = sphi 0, %s86
      %s104 = sphi 0, %s104
      %s106 = sphi 0, %s104
      %s107 = sphi 0, %s106
      %s121 = sphi 0, %s107
      %s125 = sphi 0, %s125
      %s127 = sphi 0, %s125
      %s128 = sphi 0, %s127
      %s142 = sphi 0, %s128
      %s146 = sphi 0, %s146
      %s148 = sphi 0, %s146
      %s149 = sphi 0, %s148
      %s163 = sphi 0, %s149
      %s167 = sphi 0, %s167
      %s169 = sphi 0, %s167
      %s170 = sphi 0, %s169
      %s184 = sphi 0, %s170
      %s188 = sphi 0, %s188
      %s190 = sphi 0, %s188
      %s191 = sphi 0, %s190
      %s205 = sphi 0, %s191
      %s209 = sphi 0, %s209
      %s211 = sphi 0, %s209
      %s212 = sphi 0, %s211
      %s226 = sphi 0, %s212
      %s230 = sphi 0, %s230
      %s232 = sphi 0, %s230
      %s233 = sphi 0, %s232
      %s247 = sphi 0, %s233
      %s251 = sphi 0, %s251
      %s253 = sphi 0, %s251
      %s254 = sphi 0, %s253
      %s268 = sphi 0, %s254
      %s272 = sphi 0, %s272
      %s274 = sphi 0, %s272
      %s275 = sphi 0, %s274
      %s289 = sphi 0, %s275
      %s293 = sphi 0, %s293
      %s295 = sphi 0, %s293
      %s296 = sphi 0, %s295
      %s310 = sphi 0, %s296
      %s314 = sphi 0, %s314
      %s316 = sphi 0, %s314
      %s317 = sphi 0, %s316
      %s331 = sphi 0, %s317
      %s337 = sphi 0, %s339
      %s340 = sphi 0, %s337
      %s341 = sphi 0, %s340
      %s357 = sphi 0, %s341
    $region4: #{tpu_custom_call.1} parent=1 // loop_header_branch
      %31 = sbr.rel (%p29) target = $region8
    $region5: #{tpu_custom_call.1} parent=1 // loop_body
      %s33 = ssub.s32 %s28, 1
      %s34 = ssub.s32 %s28, 2
      %s35 = sadd.s32 %s28, 1
      %s36 = ssub.s32 %s28, %s35
      %p37 = scmp.eq.s32.totalorder %s36, 0
      %s39 = sadd.s32 %s38, 1
      %s40 = scalar_select %p37, %s38, %s39
      %p43 = pneg %p37
      %p44 = scmp.eq.s32.totalorder %s28, 1
      %p45 = por %p43, %p44
      %p46 = scmp.ne.s32.totalorder %s38, %s41
      %p47 = scmp.eq.s32.totalorder %s28, 0
      %p48 = por %p46, %p47
      %p49 = scmp.ne.s32.totalorder %s38, %s41
      %p50 = scmp.eq.s32.totalorder %s33, 1
      %p51 = por %p49, %p50
      %p52 = scmp.ne.s32.totalorder %s41, %s42
      %p53 = scmp.eq.s32.totalorder %s33, 0
      %p54 = por %p52, %p53
      %p55 = scmp.ne.s32.totalorder %s41, %s42
      %p56 = scmp.eq.s32.totalorder %s34, 1
      %p57 = por %p55, %p56
      %p59 = scmp.ne.s32.totalorder %s42, %s58
      %p60 = scmp.eq.s32.totalorder %s34, 0
      %p61 = por %p59, %p60
      %s63 = sadd.s32 %s62, 1
      %p66 = scmp.eq.s32.totalorder %s28, 1
      %p67 = scmp.ne.s32.totalorder %s62, %s64
      %p68 = scmp.eq.s32.totalorder %s28, 0
      %p69 = por %p67, %p68
      %p70 = scmp.ne.s32.totalorder %s62, %s64
      %p71 = scmp.eq.s32.totalorder %s33, 1
      %p72 = por %p70, %p71
      %p73 = scmp.ne.s32.totalorder %s64, %s65
      %p74 = scmp.eq.s32.totalorder %s33, 0
      %p75 = por %p73, %p74
      %p76 = scmp.ne.s32.totalorder %s64, %s65
      %p77 = scmp.eq.s32.totalorder %s34, 1
      %p78 = por %p76, %p77
      %p80 = scmp.ne.s32.totalorder %s65, %s79
      %p81 = scmp.eq.s32.totalorder %s34, 0
      %p82 = por %p80, %p81
      %s84 = sadd.s32 %s83, 1
      %p87 = scmp.eq.s32.totalorder %s28, 1
      %p88 = scmp.ne.s32.totalorder %s83, %s85
      %p89 = scmp.eq.s32.totalorder %s28, 0
      %p90 = por %p88, %p89
      %p91 = scmp.ne.s32.totalorder %s83, %s85
      %p92 = scmp.eq.s32.totalorder %s33, 1
      %p93 = por %p91, %p92
      %p94 = scmp.ne.s32.totalorder %s85, %s86
      %p95 = scmp.eq.s32.totalorder %s33, 0
      %p96 = por %p94, %p95
      %p97 = scmp.ne.s32.totalorder %s85, %s86
      %p98 = scmp.eq.s32.totalorder %s34, 1
      %p99 = por %p97, %p98
      %p101 = scmp.ne.s32.totalorder %s86, %s100
      %p102 = scmp.eq.s32.totalorder %s34, 0
      %p103 = por %p101, %p102
      %s105 = sadd.s32 %s104, 1
      %p108 = scmp.eq.s32.totalorder %s28, 1
      %p109 = scmp.ne.s32.totalorder %s104, %s106
      %p110 = scmp.eq.s32.totalorder %s28, 0
      %p111 = por %p109, %p110
      %p112 = scmp.ne.s32.totalorder %s104, %s106
      %p113 = scmp.eq.s32.totalorder %s33, 1
      %p114 = por %p112, %p113
      %p115 = scmp.ne.s32.totalorder %s106, %s107
      %p116 = scmp.eq.s32.totalorder %s33, 0
      %p117 = por %p115, %p116
      %p118 = scmp.ne.s32.totalorder %s106, %s107
      %p119 = scmp.eq.s32.totalorder %s34, 1
      %p120 = por %p118, %p119
      %p122 = scmp.ne.s32.totalorder %s107, %s121
      %p123 = scmp.eq.s32.totalorder %s34, 0
      %p124 = por %p122, %p123
      %s126 = sadd.s32 %s125, 1
      %p129 = scmp.eq.s32.totalorder %s28, 1
      %p130 = scmp.ne.s32.totalorder %s125, %s127
      %p131 = scmp.eq.s32.totalorder %s28, 0
      %p132 = por %p130, %p131
      %p133 = scmp.ne.s32.totalorder %s125, %s127
      %p134 = scmp.eq.s32.totalorder %s33, 1
      %p135 = por %p133, %p134
      %p136 = scmp.ne.s32.totalorder %s127, %s128
      %p137 = scmp.eq.s32.totalorder %s33, 0
      %p138 = por %p136, %p137
      %p139 = scmp.ne.s32.totalorder %s127, %s128
      %p140 = scmp.eq.s32.totalorder %s34, 1
      %p141 = por %p139, %p140
      %p143 = scmp.ne.s32.totalorder %s128, %s142
      %p144 = scmp.eq.s32.totalorder %s34, 0
      %p145 = por %p143, %p144
      %s147 = sadd.s32 %s146, 1
      %p150 = scmp.eq.s32.totalorder %s28, 1
      %p151 = scmp.ne.s32.totalorder %s146, %s148
      %p152 = scmp.eq.s32.totalorder %s28, 0
      %p153 = por %p151, %p152
      %p154 = scmp.ne.s32.totalorder %s146, %s148
      %p155 = scmp.eq.s32.totalorder %s33, 1
      %p156 = por %p154, %p155
      %p157 = scmp.ne.s32.totalorder %s148, %s149
      %p158 = scmp.eq.s32.totalorder %s33, 0
      %p159 = por %p157, %p158
      %p160 = scmp.ne.s32.totalorder %s148, %s149
      %p161 = scmp.eq.s32.totalorder %s34, 1
      %p162 = por %p160, %p161
      %p164 = scmp.ne.s32.totalorder %s149, %s163
      %p165 = scmp.eq.s32.totalorder %s34, 0
      %p166 = por %p164, %p165
      %s168 = sadd.s32 %s167, 1
      %p171 = scmp.eq.s32.totalorder %s28, 1
      %p172 = scmp.ne.s32.totalorder %s167, %s169
      %p173 = scmp.eq.s32.totalorder %s28, 0
      %p174 = por %p172, %p173
      %p175 = scmp.ne.s32.totalorder %s167, %s169
      %p176 = scmp.eq.s32.totalorder %s33, 1
      %p177 = por %p175, %p176
      %p178 = scmp.ne.s32.totalorder %s169, %s170
      %p179 = scmp.eq.s32.totalorder %s33, 0
      %p180 = por %p178, %p179
      %p181 = scmp.ne.s32.totalorder %s169, %s170
      %p182 = scmp.eq.s32.totalorder %s34, 1
      %p183 = por %p181, %p182
      %p185 = scmp.ne.s32.totalorder %s170, %s184
      %p186 = scmp.eq.s32.totalorder %s34, 0
      %p187 = por %p185, %p186
      %s189 = sadd.s32 %s188, 1
      %p192 = scmp.eq.s32.totalorder %s28, 1
      %p193 = scmp.ne.s32.totalorder %s188, %s190
      %p194 = scmp.eq.s32.totalorder %s28, 0
      %p195 = por %p193, %p194
      %p196 = scmp.ne.s32.totalorder %s188, %s190
      %p197 = scmp.eq.s32.totalorder %s33, 1
      %p198 = por %p196, %p197
      %p199 = scmp.ne.s32.totalorder %s190, %s191
      %p200 = scmp.eq.s32.totalorder %s33, 0
      %p201 = por %p199, %p200
      %p202 = scmp.ne.s32.totalorder %s190, %s191
      %p203 = scmp.eq.s32.totalorder %s34, 1
      %p204 = por %p202, %p203
      %p206 = scmp.ne.s32.totalorder %s191, %s205
      %p207 = scmp.eq.s32.totalorder %s34, 0
      %p208 = por %p206, %p207
      %s210 = sadd.s32 %s209, 1
      %p213 = scmp.eq.s32.totalorder %s28, 1
      %p214 = scmp.ne.s32.totalorder %s209, %s211
      %p215 = scmp.eq.s32.totalorder %s28, 0
      %p216 = por %p214, %p215
      %p217 = scmp.ne.s32.totalorder %s209, %s211
      %p218 = scmp.eq.s32.totalorder %s33, 1
      %p219 = por %p217, %p218
      %p220 = scmp.ne.s32.totalorder %s211, %s212
      %p221 = scmp.eq.s32.totalorder %s33, 0
      %p222 = por %p220, %p221
      %p223 = scmp.ne.s32.totalorder %s211, %s212
      %p224 = scmp.eq.s32.totalorder %s34, 1
      %p225 = por %p223, %p224
      %p227 = scmp.ne.s32.totalorder %s212, %s226
      %p228 = scmp.eq.s32.totalorder %s34, 0
      %p229 = por %p227, %p228
      %s231 = sadd.s32 %s230, 1
      %p234 = scmp.eq.s32.totalorder %s28, 1
      %p235 = scmp.ne.s32.totalorder %s230, %s232
      %p236 = scmp.eq.s32.totalorder %s28, 0
      %p237 = por %p235, %p236
      %p238 = scmp.ne.s32.totalorder %s230, %s232
      %p239 = scmp.eq.s32.totalorder %s33, 1
      %p240 = por %p238, %p239
      %p241 = scmp.ne.s32.totalorder %s232, %s233
      %p242 = scmp.eq.s32.totalorder %s33, 0
      %p243 = por %p241, %p242
      %p244 = scmp.ne.s32.totalorder %s232, %s233
      %p245 = scmp.eq.s32.totalorder %s34, 1
      %p246 = por %p244, %p245
      %p248 = scmp.ne.s32.totalorder %s233, %s247
      %p249 = scmp.eq.s32.totalorder %s34, 0
      %p250 = por %p248, %p249
      %s252 = sadd.s32 %s251, 1
      %p255 = scmp.eq.s32.totalorder %s28, 1
      %p256 = scmp.ne.s32.totalorder %s251, %s253
      %p257 = scmp.eq.s32.totalorder %s28, 0
      %p258 = por %p256, %p257
      %p259 = scmp.ne.s32.totalorder %s251, %s253
      %p260 = scmp.eq.s32.totalorder %s33, 1
      %p261 = por %p259, %p260
      %p262 = scmp.ne.s32.totalorder %s253, %s254
      %p263 = scmp.eq.s32.totalorder %s33, 0
      %p264 = por %p262, %p263
      %p265 = scmp.ne.s32.totalorder %s253, %s254
      %p266 = scmp.eq.s32.totalorder %s34, 1
      %p267 = por %p265, %p266
      %p269 = scmp.ne.s32.totalorder %s254, %s268
      %p270 = scmp.eq.s32.totalorder %s34, 0
      %p271 = por %p269, %p270
      %s273 = sadd.s32 %s272, 1
      %p276 = scmp.eq.s32.totalorder %s28, 1
      %p277 = scmp.ne.s32.totalorder %s272, %s274
      %p278 = scmp.eq.s32.totalorder %s28, 0
      %p279 = por %p277, %p278
      %p280 = scmp.ne.s32.totalorder %s272, %s274
      %p281 = scmp.eq.s32.totalorder %s33, 1
      %p282 = por %p280, %p281
      %p283 = scmp.ne.s32.totalorder %s274, %s275
      %p284 = scmp.eq.s32.totalorder %s33, 0
      %p285 = por %p283, %p284
      %p286 = scmp.ne.s32.totalorder %s274, %s275
      %p287 = scmp.eq.s32.totalorder %s34, 1
      %p288 = por %p286, %p287
      %p290 = scmp.ne.s32.totalorder %s275, %s289
      %p291 = scmp.eq.s32.totalorder %s34, 0
      %p292 = por %p290, %p291
      %s294 = sadd.s32 %s293, 1
      %p297 = scmp.eq.s32.totalorder %s28, 1
      %p298 = scmp.ne.s32.totalorder %s293, %s295
      %p299 = scmp.eq.s32.totalorder %s28, 0
      %p300 = por %p298, %p299
      %p301 = scmp.ne.s32.totalorder %s293, %s295
      %p302 = scmp.eq.s32.totalorder %s33, 1
      %p303 = por %p301, %p302
      %p304 = scmp.ne.s32.totalorder %s295, %s296
      %p305 = scmp.eq.s32.totalorder %s33, 0
      %p306 = por %p304, %p305
      %p307 = scmp.ne.s32.totalorder %s295, %s296
      %p308 = scmp.eq.s32.totalorder %s34, 1
      %p309 = por %p307, %p308
      %p311 = scmp.ne.s32.totalorder %s296, %s310
      %p312 = scmp.eq.s32.totalorder %s34, 0
      %p313 = por %p311, %p312
      %s315 = sadd.s32 %s314, 1
      %p318 = scmp.eq.s32.totalorder %s28, 1
      %p319 = scmp.ne.s32.totalorder %s314, %s316
      %p320 = scmp.eq.s32.totalorder %s28, 0
      %p321 = por %p319, %p320
      %p322 = scmp.ne.s32.totalorder %s314, %s316
      %p323 = scmp.eq.s32.totalorder %s33, 1
      %p324 = por %p322, %p323
      %p325 = scmp.ne.s32.totalorder %s316, %s317
      %p326 = scmp.eq.s32.totalorder %s33, 0
      %p327 = por %p325, %p326
      %p328 = scmp.ne.s32.totalorder %s316, %s317
      %p329 = scmp.eq.s32.totalorder %s34, 1
      %p330 = por %p328, %p329
      %p332 = scmp.ne.s32.totalorder %s317, %s331
      %p333 = scmp.eq.s32.totalorder %s34, 0
      %p334 = por %p332, %p333
      %s335 = ssub.s32 %s28, %s35
      %p336 = scmp.eq.s32.totalorder %s335, 0
      %s338 = sadd.s32 %s337, 1
      %s339 = scalar_select %p336, %s337, %s338
      %p342 = pneg %p336
      %p343 = scmp.eq.s32.totalorder %s28, 1
      %p344 = por %p342, %p343
      %p345 = scmp.ne.s32.totalorder %s337, %s340
      %p346 = scmp.eq.s32.totalorder %s28, 0
      %p347 = por %p345, %p346
      %p348 = scmp.ne.s32.totalorder %s337, %s340
      %p349 = scmp.eq.s32.totalorder %s33, 1
      %p350 = por %p348, %p349
      %p351 = scmp.ne.s32.totalorder %s340, %s341
      %p352 = scmp.eq.s32.totalorder %s33, 0
      %p353 = por %p351, %p352
      %p354 = scmp.ne.s32.totalorder %s340, %s341
      %p355 = scmp.eq.s32.totalorder %s34, 1
      %p356 = por %p354, %p355
      %p358 = scmp.ne.s32.totalorder %s341, %s357
      %p359 = scmp.eq.s32.totalorder %s34, 0
      %p360 = por %p358, %p359
      %p361 = scmp.le.s32.totalorder 1, %s28
      %p362 = scmp.lt.s32.totalorder %s28, 3
      %p363 = pnand %p361, %p362
      %p364 = pneg %p363
      // Predicated region
      $region9: #{tpu_custom_call.1} parent=5 // pred_check
        _
      $region10: #{tpu_custom_call.1} parent=5 // pred_check_branch
        %366 = sbr.rel (%p363) target = $region12
      $region11: #{tpu_custom_call.1} parent=5 // pred_region
        %s367 = ssub.s32 %s28, 1
        // Predicated region
        $region13: #{tpu_custom_call.1} parent=11 // pred_check
          %p368 = pneg %p75
        $region14: #{tpu_custom_call.1} parent=11 // pred_check_branch
          %370 = sbr.rel (%p368) target = $region16
        $region15: #{tpu_custom_call.1} parent=11 // pred_region
          %372 = vsyncadd [#allocation7], 0
          %s373 = sshll.u32 %s1, 4
          %s374 = int_to_ptr.hbm [resolvable:$true] %s373
          %s375 = sshll.u32 [#allocation6], 4
          %s376 = int_to_ptr.vmem [resolvable:$true] %s375
          %381 = dma.hbm_to_vmem [thread:$0]  %s374, 2048, %s376, [#allocation7], 512, 512, 32
        $region16: #{tpu_custom_call.1} parent=11 // pred_fallthru
          _
        // Predicated region
        $region17: #{tpu_custom_call.1} parent=11 // pred_check
          %p382 = pneg %p96
        $region18: #{tpu_custom_call.1} parent=11 // pred_check_branch
          %384 = sbr.rel (%p382) target = $region20
        $region19: #{tpu_custom_call.1} parent=11 // pred_region
          _
        $region20: #{tpu_custom_call.1} parent=11 // pred_fallthru
          _
        // Predicated region
        $region21: #{tpu_custom_call.1} parent=11 // pred_check
          %p385 = pneg %p117
        $region22: #{tpu_custom_call.1} parent=11 // pred_check_branch
          %387 = sbr.rel (%p385) target = $region24
        $region23: #{tpu_custom_call.1} parent=11 // pred_region
          _
        $region24: #{tpu_custom_call.1} parent=11 // pred_fallthru
          _
        // Predicated region
        $region25: #{tpu_custom_call.1} parent=11 // pred_check
          %p388 = pneg %p138
        $region26: #{tpu_custom_call.1} parent=11 // pred_check_branch
          %390 = sbr.rel (%p388) target = $region28
        $region27: #{tpu_custom_call.1} parent=11 // pred_region
          _
        $region28: #{tpu_custom_call.1} parent=11 // pred_fallthru
          _
        // Predicated region
        $region29: #{tpu_custom_call.1} parent=11 // pred_check
          %p391 = pneg %p159
        $region30: #{tpu_custom_call.1} parent=11 // pred_check_branch
          %393 = sbr.rel (%p391) target = $region32
        $region31: #{tpu_custom_call.1} parent=11 // pred_region
          %395 = vsyncadd [#allocation7], 0
          %s396 = sshll.u32 %s5, 4
          %s397 = int_to_ptr.hbm [resolvable:$true] %s396
          %s398 = sshll.u32 [#allocation8], 4
          %s399 = int_to_ptr.vmem [resolvable:$true] %s398
          %404 = dma.hbm_to_vmem [thread:$0]  %s397, 2048, %s399, [#allocation7], 512, 512, 32
        $region32: #{tpu_custom_call.1} parent=11 // pred_fallthru
          _
        // Predicated region
        $region33: #{tpu_custom_call.1} parent=11 // pred_check
          %p405 = pneg %p180
        $region34: #{tpu_custom_call.1} parent=11 // pred_check_branch
          %407 = sbr.rel (%p405) target = $region36
        $region35: #{tpu_custom_call.1} parent=11 // pred_region
          _
        $region36: #{tpu_custom_call.1} parent=11 // pred_fallthru
          _
        // Predicated region
        $region37: #{tpu_custom_call.1} parent=11 // pred_check
          %p408 = pneg %p201
        $region38: #{tpu_custom_call.1} parent=11 // pred_check_branch
          %410 = sbr.rel (%p408) target = $region40
        $region39: #{tpu_custom_call.1} parent=11 // pred_region
          _
        $region40: #{tpu_custom_call.1} parent=11 // pred_fallthru
          _
        // Predicated region
        $region41: #{tpu_custom_call.1} parent=11 // pred_check
          %p411 = pneg %p222
        $region42: #{tpu_custom_call.1} parent=11 // pred_check_branch
          %413 = sbr.rel (%p411) target = $region44
        $region43: #{tpu_custom_call.1} parent=11 // pred_region
          _
        $region44: #{tpu_custom_call.1} parent=11 // pred_fallthru
          _
        // Predicated region
        $region45: #{tpu_custom_call.1} parent=11 // pred_check
          %p414 = pneg %p243
        $region46: #{tpu_custom_call.1} parent=11 // pred_check_branch
          %416 = sbr.rel (%p414) target = $region48
        $region47: #{tpu_custom_call.1} parent=11 // pred_region
          _
        $region48: #{tpu_custom_call.1} parent=11 // pred_fallthru
          _
        // Predicated region
        $region49: #{tpu_custom_call.1} parent=11 // pred_check
          %p417 = pneg %p264
        $region50: #{tpu_custom_call.1} parent=11 // pred_check_branch
          %419 = sbr.rel (%p417) target = $region52
        $region51: #{tpu_custom_call.1} parent=11 // pred_region
          %421 = vsyncadd [#allocation10], 0
          %s422 = sshll.u32 %s10, 4
          %s423 = int_to_ptr.hbm [resolvable:$true] %s422
          %s424 = sshll.u32 [#allocation9], 4
          %s425 = int_to_ptr.vmem [resolvable:$true] %s424
          %430 = dma.hbm_to_vmem [thread:$0]  %s423, 3584, %s425, [#allocation10], 896, 896, 56
        $region52: #{tpu_custom_call.1} parent=11 // pred_fallthru
          _
        // Predicated region
        $region53: #{tpu_custom_call.1} parent=11 // pred_check
          %p431 = pneg %p285
        $region54: #{tpu_custom_call.1} parent=11 // pred_check_branch
          %433 = sbr.rel (%p431) target = $region56
        $region55: #{tpu_custom_call.1} parent=11 // pred_region
          _
        $region56: #{tpu_custom_call.1} parent=11 // pred_fallthru
          _
        // Predicated region
        $region57: #{tpu_custom_call.1} parent=11 // pred_check
          %p434 = pneg %p306
        $region58: #{tpu_custom_call.1} parent=11 // pred_check_branch
          %436 = sbr.rel (%p434) target = $region60
        $region59: #{tpu_custom_call.1} parent=11 // pred_region
          _
        $region60: #{tpu_custom_call.1} parent=11 // pred_fallthru
          _
        // Predicated region
        $region61: #{tpu_custom_call.1} parent=11 // pred_check
          %p437 = pneg %p327
        $region62: #{tpu_custom_call.1} parent=11 // pred_check_branch
          %439 = sbr.rel (%p437) target = $region64
        $region63: #{tpu_custom_call.1} parent=11 // pred_region
          _
        $region64: #{tpu_custom_call.1} parent=11 // pred_fallthru
          _
      $region12: #{tpu_custom_call.1} parent=5 // pred_fallthru
        _
      %p440 = scmp.lt.s32.totalorder %s28, 2
      // Predicated region
      $region65: #{tpu_custom_call.1} parent=5 // pred_check
        %p441 = pneg %p440
      $region66: #{tpu_custom_call.1} parent=5 // pred_check_branch
        %443 = sbr.rel (%p441) target = $region68
      $region67: #{tpu_custom_call.1} parent=5 // pred_region
        // Predicated region
        $region69: #{tpu_custom_call.1} parent=67 // pred_check
          %p444 = pneg %p48
        $region70: #{tpu_custom_call.1} parent=67 // pred_check_branch
          %446 = sbr.rel (%p444) target = $region72
        $region71: #{tpu_custom_call.1} parent=67 // pred_region
          %s447 = sand.u32 %s38, 1
          %s448 = scalar_lea.sflag [#allocation4], %s447
          %s449 = sand.u32 %s38, 1
          %s450 = smul.addr %s449, 64
          %s451 = scalar_lea.vmem [#allocation3], %s450
          %453 = vsyncadd %s448, 0
          %s454 = smul.addr %s28, 8
          %s455 = smul.addr %s454, 8
          %s456 = scalar_lea.hbm %s0, %s455
          %s457 = sshll.u32 %s456, 4
          %s458 = int_to_ptr.hbm [resolvable:$true] %s457
          %s459 = sshll.u32 %s451, 4
          %s460 = int_to_ptr.vmem [resolvable:$true] %s459
          %465 = dma.hbm_to_vmem [thread:$0]  %s458, 1024, %s460, %s448, 512, 512, 32
        $region72: #{tpu_custom_call.1} parent=67 // pred_fallthru
          _
      $region68: #{tpu_custom_call.1} parent=5 // pred_fallthru
        _
      %p466 = scmp.le.s32.totalorder 1, %s28
      %p467 = scmp.lt.s32.totalorder %s28, 3
      %p468 = pnand %p466, %p467
      %p469 = pneg %p468
      // Predicated region
      $region73: #{tpu_custom_call.1} parent=5 // pred_check
        _
      $region74: #{tpu_custom_call.1} parent=5 // pred_check_branch
        %471 = sbr.rel (%p468) target = $region76
      $region75: #{tpu_custom_call.1} parent=5 // pred_region
        %s472 = ssub.s32 %s28, 1
        %s473 = sand.u32 %s41, 1
        %s474 = scalar_lea.sflag [#allocation4], %s473
        %s475 = sand.u32 %s41, 1
        %s476 = smul.addr %s475, 64
        %s477 = scalar_lea.vmem [#allocation3], %s476
        // Predicated region
        $region77: #{tpu_custom_call.1} parent=75 // pred_check
          %p478 = pneg %p54
        $region78: #{tpu_custom_call.1} parent=75 // pred_check_branch
          %480 = sbr.rel (%p478) target = $region80
        $region79: #{tpu_custom_call.1} parent=75 // pred_region
          %482 = dma.done %s474, 1024
        $region80: #{tpu_custom_call.1} parent=75 // pred_fallthru
          _
        // Predicated region
        $region81: #{tpu_custom_call.1} parent=75 // pred_check
          %p483 = pneg %p75
        $region82: #{tpu_custom_call.1} parent=75 // pred_check_branch
          %485 = sbr.rel (%p483) target = $region84
        $region83: #{tpu_custom_call.1} parent=75 // pred_region
          %487 = dma.done [#allocation7], 2048
        $region84: #{tpu_custom_call.1} parent=75 // pred_fallthru
          _
        // Predicated region
        $region85: #{tpu_custom_call.1} parent=75 // pred_check
          %p488 = pneg %p159
        $region86: #{tpu_custom_call.1} parent=75 // pred_check_branch
          %490 = sbr.rel (%p488) target = $region88
        $region87: #{tpu_custom_call.1} parent=75 // pred_region
          %492 = dma.done [#allocation7], 2048
        $region88: #{tpu_custom_call.1} parent=75 // pred_fallthru
          _
        // Predicated region
        $region89: #{tpu_custom_call.1} parent=75 // pred_check
          %p493 = pneg %p264
        $region90: #{tpu_custom_call.1} parent=75 // pred_check_branch
          %495 = sbr.rel (%p493) target = $region92
        $region91: #{tpu_custom_call.1} parent=75 // pred_region
          %497 = dma.done [#allocation10], 3584
        $region92: #{tpu_custom_call.1} parent=75 // pred_fallthru
          _
        %s498 = sand.u32 %s41, 1
        %s499 = scalar_lea.sflag [#allocation4], %s498
        %s500 = sand.u32 %s41, 1
        %s501 = smul.addr %s500, 64
        %s502 = scalar_lea.vmem [#allocation3], %s501
        %p503 = pneg %p54
        %p504 = pneg %p51
        %p505 = pneg %p75
        %p506 = pneg %p72
        %p507 = pneg %p96
        %p508 = pneg %p93
        %p509 = pneg %p117
        %p510 = pneg %p114
        %p511 = pneg %p138
        %p512 = pneg %p135
        %p513 = pneg %p159
        %p514 = pneg %p156
        %p515 = pneg %p180
        %p516 = pneg %p177
        %p517 = pneg %p201
        %p518 = pneg %p198
        %p519 = pneg %p222
        %p520 = pneg %p219
        %p521 = pneg %p243
        %p522 = pneg %p240
        %p523 = pneg %p264
        %p524 = pneg %p261
        %p525 = pneg %p285
        %p526 = pneg %p282
        %p527 = pneg %p306
        %p528 = pneg %p303
        %p529 = pneg %p327
        %p530 = pneg %p324
        %p531 = pneg %p353
        %p532 = pneg %p350
        %s533 = sand.u32 %s340, 1
        %s534 = scalar_lea.sflag [#allocation5], %s533
        %s535 = sand.u32 %s340, 1
        %s536 = smul.addr %s535, 128
        %s537 = scalar_lea.vmem [#allocation11], %s536
        %v538 = vld [vmem:[%s477] sm:$0xff]
        %v539 = vld [vmem:[%s477 + $0x8] sm:$0xff]
        %v540 = vld [vmem:[%s477 + $0x10] sm:$0xff]
        %v541 = vld [vmem:[%s477 + $0x18] sm:$0xff]
        %v542 = vld [vmem:[%s477 + $0x20] sm:$0xff]
        %v543 = vld [vmem:[%s477 + $0x28] sm:$0xff]
        %v544 = vld [vmem:[%s477 + $0x30] sm:$0xff]
        %v545 = vld [vmem:[%s477 + $0x38] sm:$0xff]
        %v546 = vld [vmem:[#allocation6] sm:$0xff]
        %v547 = vld [vmem:[#allocation6 + $0x8] sm:$0xff]
        %v548 = vld [vmem:[#allocation6 + $0x10] sm:$0xff]
        %v549 = vld [vmem:[#allocation6 + $0x18] sm:$0xff]
        %v550 = vld [vmem:[#allocation6 + $0x20] sm:$0xff]
        %v551 = vld [vmem:[#allocation6 + $0x28] sm:$0xff]
        %v552 = vld [vmem:[#allocation6 + $0x30] sm:$0xff]
        %v553 = vld [vmem:[#allocation6 + $0x38] sm:$0xff]
        %v554 = vld [vmem:[#allocation6 + $0x40] sm:$0xff]
        %v555 = vld [vmem:[#allocation6 + $0x48] sm:$0xff]
        %v556 = vld [vmem:[#allocation6 + $0x50] sm:$0xff]
        %v557 = vld [vmem:[#allocation6 + $0x58] sm:$0xff]
        %v558 = vld [vmem:[#allocation6 + $0x60] sm:$0x7]
        %v559 = vld [vmem:[#allocation6 + $0x68] sm:$0x7]
        %v560 = vld [vmem:[#allocation6 + $0x70] sm:$0x7]
        %v561 = vld [vmem:[#allocation6 + $0x78] sm:$0x7]
        %v562 = vld [vmem:[%s4] sm:$0xff]
        %v563 = vld [vmem:[%s4 + $0x8] sm:$0xff]
        %v564 = vld [vmem:[%s2] sm:$0xff]
        %v565 = vld [vmem:[%s2 + $0x8] sm:$0xff]
        %v566 = vld [vmem:[%s3] sm:$0xff]
        %v567 = vld [vmem:[%s3 + $0x8] sm:$0xff]
        %v568 = vadd.f32 %v538, %v539
        %v569 = vadd.f32 %v568, %v540
        %v570 = vadd.f32 %v569, %v541
        %571 = vadd.xlane.f32.xlu0 %v570
        %v572 = vpop.xlane.xlu0 %571
        %v573 = vadd.f32 %v542, %v543
        %v574 = vadd.f32 %v573, %v544
        %v575 = vadd.f32 %v574, %v545
        %576 = vadd.xlane.f32.xlu0 %v575
        %v577 = vpop.xlane.xlu0 %576
        %v578 = vmul.f32 %v538, %v538
        %v579 = vmul.f32 %v539, %v539
        %v580 = vmul.f32 %v540, %v540
        %v581 = vmul.f32 %v541, %v541
        %v582 = vmul.f32 %v542, %v542
        %v583 = vmul.f32 %v543, %v543
        %v584 = vmul.f32 %v544, %v544
        %v585 = vmul.f32 %v545, %v545
        %v586 = vadd.f32 %v578, %v579
        %v587 = vadd.f32 %v586, %v580
        %v588 = vadd.f32 %v587, %v581
        %589 = vadd.xlane.f32.xlu0 %v588
        %v590 = vpop.xlane.xlu0 %589
        %v591 = vadd.f32 %v582, %v583
        %v592 = vadd.f32 %v591, %v584
        %v593 = vadd.f32 %v592, %v585
        %594 = vadd.xlane.f32.xlu0 %v593
        %v595 = vpop.xlane.xlu0 %594
        %vm596 = vcmask 130048
        %v598 = vsel %vm596, %v562, 0
        %v601 = vsel %vm596, %v563, 0
        %603 = vmatpush.msra.mxu0 0.0
        %604 = vmatpush.msra.mxu0 0.0
        %605 = vmatpush.msra.mxu0 0.0
        %606 = vmatpush.msra.mxu0 0.0
        %607 = vmatpush.msra.mxu0 0.0
        %608 = vmatpush.msra.mxu0 0.0
        %609 = vmatpush.msra.mxu0 0.0
        %610 = vmatpush.msra.mxu0 0.0
        %611 = vmatpush.msra.mxu0 0.0
        %612 = vmatpush.msra.mxu0 0.0
        %613 = vmatpush.msra.mxu0 0.0
        %614 = vmatpush.msra.mxu0 0.0
        %615 = vmatpush.msra.mxu0 0.0
        %616 = vmatpush.msra.mxu0 0.0
        %617 = vmatpush.msra.mxu0 %v577
        %618 = vmatpush.msra.mxu0 %v572
        %619 = vmatmul.f32.gmra.mxu0 %v598
        %v620 = vpop.f32.mrf.mxu0
        %v621 = vadd.f32 0.0, %v620
        %622 = vmatmul.f32.gmra.mxu0 %v601
        %v623 = vpop.f32.mrf.mxu0
        %v624 = vadd.f32 0.0, %v623
        %625 = vdwg.mxu0
        %v626 = vrcp.pop 512.0
        %v627 = vmul.f32 512.0, %v626
        %v628 = vsub.f32 1.0, %v627
        %v629 = vmul.f32 %v626, %v628
        %v630 = vadd.f32 %v626, %v629
        %vm631 = vweird.f32 %v626
        %v632 = vsel %vm631, %v626, %v630
        %v633 = vmul.f32 %v621, %v632
        %v634 = vmul.f32 %v624, %v632
        %635 = vmatpush.msra.mxu0 0.0
        %636 = vmatpush.msra.mxu0 0.0
        %637 = vmatpush.msra.mxu0 0.0
        %638 = vmatpush.msra.mxu0 0.0
        %639 = vmatpush.msra.mxu0 0.0
        %640 = vmatpush.msra.mxu0 0.0
        %641 = vmatpush.msra.mxu0 0.0
        %642 = vmatpush.msra.mxu0 0.0
        %643 = vmatpush.msra.mxu0 0.0
        %644 = vmatpush.msra.mxu0 0.0
        %645 = vmatpush.msra.mxu0 0.0
        %646 = vmatpush.msra.mxu0 0.0
        %647 = vmatpush.msra.mxu0 0.0
        %648 = vmatpush.msra.mxu0 0.0
        %649 = vmatpush.msra.mxu0 %v595
        %650 = vmatpush.msra.mxu0 %v590
        %651 = vmatmul.f32.gmra.mxu0 %v598
        %v652 = vpop.f32.mrf.mxu0
        %v653 = vadd.f32 0.0, %v652
        %654 = vmatmul.f32.gmra.mxu0 %v601
        %v655 = vpop.f32.mrf.mxu0
        %v656 = vadd.f32 0.0, %v655
        %657 = vdwg.mxu0
        %v658 = vmul.f32 %v653, %v632
        %v659 = vmul.f32 %v656, %v632
        %v660 = vmul.f32 %v633, %v633
        %v661 = vmul.f32 %v634, %v634
        %v662 = vsub.f32 %v658, %v660
        %v663 = vsub.f32 %v659, %v661
        %665 = vset.pattern.permute.xlu0 0
        %666 = vperm.xlu0 %665, %v633
        %v667 = vpop.permute.xlu0 %666
        %670 = vset.pattern.permute.xlu0 0
        %671 = vperm.xlu0 %670, %v634
        %v672 = vpop.permute.xlu0 %671
        %v674 = vsub.f32 %v538, %v667
        %v675 = vsub.f32 %v539, %v667
        %v676 = vsub.f32 %v540, %v667
        %v677 = vsub.f32 %v541, %v667
        %v678 = vsub.f32 %v542, %v672
        %v679 = vsub.f32 %v543, %v672
        %v680 = vsub.f32 %v544, %v672
        %v681 = vsub.f32 %v545, %v672
        %v682 = vadd.f32 %v662, 1e-05
        %v683 = vadd.f32 %v663, 1e-05
        %v684 = vrsqrt.pop %v682
        %v685 = vmul.f32 %v684, %v682
        %v686 = vmul.f32 %v685, %v684
        %v687 = vmul.f32 0.5, %v686
        %v688 = vsub.f32 1.5, %v687
        %v689 = vmul.f32 %v684, %v688
        %vm690 = vweird.f32 %v682
        %vm691 = vweird.f32 %v684
        %vm692 = vmor %vm690, %vm691
        %v693 = vsel %vm692, %v684, %v689
        %v694 = vrsqrt.pop %v683
        %v695 = vmul.f32 %v694, %v683
        %v696 = vmul.f32 %v695, %v694
        %v697 = vmul.f32 0.5, %v696
        %v698 = vsub.f32 1.5, %v697
        %v699 = vmul.f32 %v694, %v698
        %vm700 = vweird.f32 %v683
        %vm701 = vweird.f32 %v694
        %vm702 = vmor %vm700, %vm701
        %v703 = vsel %vm702, %v694, %v699
        %705 = vset.pattern.permute.xlu0 0
        %706 = vperm.xlu0 %705, %v693
        %v707 = vpop.permute.xlu0 %706
        %710 = vset.pattern.permute.xlu0 0
        %711 = vperm.xlu0 %710, %v703
        %v712 = vpop.permute.xlu0 %711
        %v714 = vmul.f32 %v674, %v707
        %v715 = vmul.f32 %v675, %v707
        %v716 = vmul.f32 %v676, %v707
        %v717 = vmul.f32 %v677, %v707
        %v718 = vmul.f32 %v678, %v712
        %v719 = vmul.f32 %v679, %v712
        %v720 = vmul.f32 %v680, %v712
        %v721 = vmul.f32 %v681, %v712
        %723 = vset.pattern.permute.xlu0 0
        %724 = vperm.xlu0 %723, %v564
        %v725 = vpop.permute.xlu0 %724
        %728 = vset.pattern.permute.xlu0 0
        %729 = vperm.xlu0 %728, %v565
        %v730 = vpop.permute.xlu0 %729
        %v732 = vmul.f32 %v714, %v725
        %v733 = vmul.f32 %v715, %v725
        %v734 = vmul.f32 %v716, %v725
        %v735 = vmul.f32 %v717, %v725
        %v736 = vmul.f32 %v718, %v730
        %v737 = vmul.f32 %v719, %v730
        %v738 = vmul.f32 %v720, %v730
        %v739 = vmul.f32 %v721, %v730
        %741 = vset.pattern.permute.xlu0 0
        %742 = vperm.xlu0 %741, %v566
        %v743 = vpop.permute.xlu0 %742
        %746 = vset.pattern.permute.xlu0 0
        %747 = vperm.xlu0 %746, %v567
        %v748 = vpop.permute.xlu0 %747
        %v750 = vadd.f32 %v732, %v743
        %v751 = vadd.f32 %v733, %v743
        %v752 = vadd.f32 %v734, %v743
        %v753 = vadd.f32 %v735, %v743
        %v754 = vadd.f32 %v736, %v748
        %v755 = vadd.f32 %v737, %v748
        %v756 = vadd.f32 %v738, %v748
        %v757 = vadd.f32 %v739, %v748
        %v758 = vmin.f32 %v750, 20.0
        %v759 = vmin.f32 %v751, 20.0
        %v760 = vmin.f32 %v752, 20.0
        %v761 = vmin.f32 %v753, 20.0
        %v762 = vmin.f32 %v754, 20.0
        %v763 = vmin.f32 %v755, 20.0
        %v764 = vmin.f32 %v756, 20.0
        %v765 = vmin.f32 %v757, 20.0
        %v766 = vmul.f32 %v758, 1.442695
        %v767 = vpow.pop %v766
        %v768 = vmul.f32 %v759, 1.442695
        %v769 = vpow.pop %v768
        %v770 = vmul.f32 %v760, 1.442695
        %v771 = vpow.pop %v770
        %v772 = vmul.f32 %v761, 1.442695
        %v773 = vpow.pop %v772
        %v774 = vmul.f32 %v762, 1.442695
        %v775 = vpow.pop %v774
        %v776 = vmul.f32 %v763, 1.442695
        %v777 = vpow.pop %v776
        %v778 = vmul.f32 %v764, 1.442695
        %v779 = vpow.pop %v778
        %v780 = vmul.f32 %v765, 1.442695
        %v781 = vpow.pop %v780
        %v782 = vadd.f32 %v767, 2.0
        %v783 = vadd.f32 %v769, 2.0
        %v784 = vadd.f32 %v771, 2.0
        %v785 = vadd.f32 %v773, 2.0
        %v786 = vadd.f32 %v775, 2.0
        %v787 = vadd.f32 %v777, 2.0
        %v788 = vadd.f32 %v779, 2.0
        %v789 = vadd.f32 %v781, 2.0
        %v790 = vmul.f32 %v767, %v782
        %v791 = vmul.f32 %v769, %v783
        %v792 = vmul.f32 %v771, %v784
        %v793 = vmul.f32 %v773, %v785
        %v794 = vmul.f32 %v775, %v786
        %v795 = vmul.f32 %v777, %v787
        %v796 = vmul.f32 %v779, %v788
        %v797 = vmul.f32 %v781, %v789
        %v798 = vmul.f32 %v750, %v790
        %v799 = vmul.f32 %v751, %v791
        %v800 = vmul.f32 %v752, %v792
        %v801 = vmul.f32 %v753, %v793
        %v802 = vmul.f32 %v754, %v794
        %v803 = vmul.f32 %v755, %v795
        %v804 = vmul.f32 %v756, %v796
        %v805 = vmul.f32 %v757, %v797
        %v806 = vadd.f32 %v790, 2.0
        %v807 = vadd.f32 %v791, 2.0
        %v808 = vadd.f32 %v792, 2.0
        %v809 = vadd.f32 %v793, 2.0
        %v810 = vadd.f32 %v794, 2.0
        %v811 = vadd.f32 %v795, 2.0
        %v812 = vadd.f32 %v796, 2.0
        %v813 = vadd.f32 %v797, 2.0
        %v814 = vrcp.pop %v806
        %v815 = vmul.f32 %v806, %v814
        %v816 = vsub.f32 1.0, %v815
        %v817 = vmul.f32 %v814, %v816
        %v818 = vadd.f32 %v814, %v817
        %vm819 = vweird.f32 %v806
        %vm820 = vweird.f32 %v814
        %vm821 = vmor %vm819, %vm820
        %v822 = vsel %vm821, %v814, %v818
        %v823 = vand.u32 2147483647, %v806
        %vm824 = vcmp.eq.f32.partialorder %v823, 8.507059e+37
        %v825 = vand.u32 %v806, 2147483648
        %v826 = vor.u32 1.1754944e-38, %v825
        %v827 = vsel %vm824, %v826, %v822
        %v828 = vmul.f32 %v798, %v827
        %v829 = vrcp.pop %v807
        %v830 = vmul.f32 %v807, %v829
        %v831 = vsub.f32 1.0, %v830
        %v832 = vmul.f32 %v829, %v831
        %v833 = vadd.f32 %v829, %v832
        %vm834 = vweird.f32 %v807
        %vm835 = vweird.f32 %v829
        %vm836 = vmor %vm834, %vm835
        %v837 = vsel %vm836, %v829, %v833
        %v838 = vand.u32 2147483647, %v807
        %vm839 = vcmp.eq.f32.partialorder %v838, 8.507059e+37
        %v840 = vand.u32 %v807, 2147483648
        %v841 = vor.u32 1.1754944e-38, %v840
        %v842 = vsel %vm839, %v841, %v837
        %v843 = vmul.f32 %v799, %v842
        %v844 = vrcp.pop %v808
        %v845 = vmul.f32 %v808, %v844
        %v846 = vsub.f32 1.0, %v845
        %v847 = vmul.f32 %v844, %v846
        %v848 = vadd.f32 %v844, %v847
        %vm849 = vweird.f32 %v808
        %vm850 = vweird.f32 %v844
        %vm851 = vmor %vm849, %vm850
        %v852 = vsel %vm851, %v844, %v848
        %v853 = vand.u32 2147483647, %v808
        %vm854 = vcmp.eq.f32.partialorder %v853, 8.507059e+37
        %v855 = vand.u32 %v808, 2147483648
        %v856 = vor.u32 1.1754944e-38, %v855
        %v857 = vsel %vm854, %v856, %v852
        %v858 = vmul.f32 %v800, %v857
        %v859 = vrcp.pop %v809
        %v860 = vmul.f32 %v809, %v859
        %v861 = vsub.f32 1.0, %v860
        %v862 = vmul.f32 %v859, %v861
        %v863 = vadd.f32 %v859, %v862
        %vm864 = vweird.f32 %v809
        %vm865 = vweird.f32 %v859
        %vm866 = vmor %vm864, %vm865
        %v867 = vsel %vm866, %v859, %v863
        %v868 = vand.u32 2147483647, %v809
        %vm869 = vcmp.eq.f32.partialorder %v868, 8.507059e+37
        %v870 = vand.u32 %v809, 2147483648
        %v871 = vor.u32 1.1754944e-38, %v870
        %v872 = vsel %vm869, %v871, %v867
        %v873 = vmul.f32 %v801, %v872
        %v874 = vrcp.pop %v810
        %v875 = vmul.f32 %v810, %v874
        %v876 = vsub.f32 1.0, %v875
        %v877 = vmul.f32 %v874, %v876
        %v878 = vadd.f32 %v874, %v877
        %vm879 = vweird.f32 %v810
        %vm880 = vweird.f32 %v874
        %vm881 = vmor %vm879, %vm880
        %v882 = vsel %vm881, %v874, %v878
        %v883 = vand.u32 2147483647, %v810
        %vm884 = vcmp.eq.f32.partialorder %v883, 8.507059e+37
        %v885 = vand.u32 %v810, 2147483648
        %v886 = vor.u32 1.1754944e-38, %v885
        %v887 = vsel %vm884, %v886, %v882
        %v888 = vmul.f32 %v802, %v887
        %v889 = vrcp.pop %v811
        %v890 = vmul.f32 %v811, %v889
        %v891 = vsub.f32 1.0, %v890
        %v892 = vmul.f32 %v889, %v891
        %v893 = vadd.f32 %v889, %v892
        %vm894 = vweird.f32 %v811
        %vm895 = vweird.f32 %v889
        %vm896 = vmor %vm894, %vm895
        %v897 = vsel %vm896, %v889, %v893
        %v898 = vand.u32 2147483647, %v811
        %vm899 = vcmp.eq.f32.partialorder %v898, 8.507059e+37
        %v900 = vand.u32 %v811, 2147483648
        %v901 = vor.u32 1.1754944e-38, %v900
        %v902 = vsel %vm899, %v901, %v897
        %v903 = vmul.f32 %v803, %v902
        %v904 = vrcp.pop %v812
        %v905 = vmul.f32 %v812, %v904
        %v906 = vsub.f32 1.0, %v905
        %v907 = vmul.f32 %v904, %v906
        %v908 = vadd.f32 %v904, %v907
        %vm909 = vweird.f32 %v812
        %vm910 = vweird.f32 %v904
        %vm911 = vmor %vm909, %vm910
        %v912 = vsel %vm911, %v904, %v908
        %v913 = vand.u32 2147483647, %v812
        %vm914 = vcmp.eq.f32.partialorder %v913, 8.507059e+37
        %v915 = vand.u32 %v812, 2147483648
        %v916 = vor.u32 1.1754944e-38, %v915
        %v917 = vsel %vm914, %v916, %v912
        %v918 = vmul.f32 %v804, %v917
        %v919 = vrcp.pop %v813
        %v920 = vmul.f32 %v813, %v919
        %v921 = vsub.f32 1.0, %v920
        %v922 = vmul.f32 %v919, %v921
        %v923 = vadd.f32 %v919, %v922
        %vm924 = vweird.f32 %v813
        %vm925 = vweird.f32 %v919
        %vm926 = vmor %vm924, %vm925
        %v927 = vsel %vm926, %v919, %v923
        %v928 = vand.u32 2147483647, %v813
        %vm929 = vcmp.eq.f32.partialorder %v928, 8.507059e+37
        %v930 = vand.u32 %v813, 2147483648
        %v931 = vor.u32 1.1754944e-38, %v930
        %v932 = vsel %vm929, %v931, %v927
        %v933 = vmul.f32 %v805, %v932
        %vm934 = vcmp.gt.f32.partialorder %v750, 20.0
        %vm935 = vcmp.gt.f32.partialorder %v751, 20.0
        %vm936 = vcmp.gt.f32.partialorder %v752, 20.0
        %vm937 = vcmp.gt.f32.partialorder %v753, 20.0
        %vm938 = vcmp.gt.f32.partialorder %v754, 20.0
        %vm939 = vcmp.gt.f32.partialorder %v755, 20.0
        %vm940 = vcmp.gt.f32.partialorder %v756, 20.0
        %vm941 = vcmp.gt.f32.partialorder %v757, 20.0
        %v942 = vsel %vm934, %v750, %v828
        %v943 = vsel %vm935, %v751, %v843
        %v944 = vsel %vm936, %v752, %v858
        %v945 = vsel %vm937, %v753, %v873
        %v946 = vsel %vm938, %v754, %v888
        %v947 = vsel %vm939, %v755, %v903
        %v948 = vsel %vm940, %v756, %v918
        %v949 = vsel %vm941, %v757, %v933
        %v950 = vld [vmem:[%s6] sm:$0xff]
        %v951 = vld [vmem:[%s6 + $0x8] sm:$0xff]
        %v952 = vld [vmem:[%s6 + $0x10] sm:$0xff]
        %v953 = vld [vmem:[%s6 + $0x18] sm:$0xff]
        %954 = vrot.lane.b32.xlu0 %v942, 73
        %v955 = vpop.permute.xlu0 %954
        %956 = vrot.lane.b32.xlu0 %v946, 73
        %v957 = vpop.permute.xlu0 %956
        %958 = vrot.lane.b32.xlu0 %v943, 73
        %v959 = vpop.permute.xlu0 %958
        %960 = vrot.lane.b32.xlu0 %v947, 73
        %v961 = vpop.permute.xlu0 %960
        %962 = vrot.lane.b32.xlu0 %v944, 73
        %v963 = vpop.permute.xlu0 %962
        %964 = vrot.lane.b32.xlu0 %v948, 73
        %v965 = vpop.permute.xlu0 %964
        %966 = vrot.lane.b32.xlu0 %v945, 73
        %v967 = vpop.permute.xlu0 %966
        %968 = vrot.lane.b32.xlu0 %v949, 73
        %v969 = vpop.permute.xlu0 %968
        %v970 = vlaneseq
        %v971 = vand.u32 %v970, 127
        %vm972 = vcmp.lt.s32.totalorder %v971, 73
        %v973 = vsel %vm972, %v963, %v967
        %v974 = vsel %vm972, %v965, %v969
        %v975 = vsel %vm972, %v959, %v963
        %v976 = vsel %vm972, %v961, %v965
        %v977 = vsel %vm972, %v955, %v959
        %v978 = vsel %vm972, %v957, %v961
        %v979 = vsel %vm972, %v967, %v955
        %v980 = vsel %vm972, %v969, %v957
        %v981 = vperm.slane %v546, 0
        %v982 = vperm.slane %v547, 0
        %v983 = vperm.slane %v548, 0
        %v984 = vperm.slane %v549, 0
        %v985 = vmul.f32 %v979, %v981
        %v986 = vmul.f32 %v977, %v982
        %v987 = vmul.f32 %v975, %v983
        %v988 = vmul.f32 %v973, %v984
        %v989 = vmul.f32 %v980, %v981
        %v990 = vmul.f32 %v978, %v982
        %v991 = vmul.f32 %v976, %v983
        %v992 = vmul.f32 %v974, %v984
        %993 = vst [vmem:[#allocation2] sm:$0xff] %v985
        %994 = vst [vmem:[#allocation2 + $0x8] sm:$0xff] %v986
        %995 = vst [vmem:[#allocation2 + $0x10] sm:$0xff] %v987
        %996 = vst [vmem:[#allocation2 + $0x18] sm:$0xff] %v988
        %997 = vst [vmem:[#allocation2 + $0x20] sm:$0xff] %v989
        %998 = vst [vmem:[#allocation2 + $0x28] sm:$0xff] %v990
        %999 = vst [vmem:[#allocation2 + $0x30] sm:$0xff] %v991
        %1000 = vst [vmem:[#allocation2 + $0x38] sm:$0xff] %v992
        %1001 = vrot.lane.b32.xlu0 %v942, 72
        %v1002 = vpop.permute.xlu0 %1001
        %1003 = vrot.lane.b32.xlu0 %v946, 72
        %v1004 = vpop.permute.xlu0 %1003
        %1005 = vrot.lane.b32.xlu0 %v943, 72
        %v1006 = vpop.permute.xlu0 %1005
        %1007 = vrot.lane.b32.xlu0 %v947, 72
        %v1008 = vpop.permute.xlu0 %1007
        %1009 = vrot.lane.b32.xlu0 %v944, 72
        %v1010 = vpop.permute.xlu0 %1009
        %1011 = vrot.lane.b32.xlu0 %v948, 72
        %v1012 = vpop.permute.xlu0 %1011
        %1013 = vrot.lane.b32.xlu0 %v945, 72
        %v1014 = vpop.permute.xlu0 %1013
        %1015 = vrot.lane.b32.xlu0 %v949, 72
        %v1016 = vpop.permute.xlu0 %1015
        %vm1017 = vcmp.lt.s32.totalorder %v971, 72
        %v1018 = vsel %vm1017, %v1010, %v1014
        %v1019 = vsel %vm1017, %v1012, %v1016
        %v1020 = vsel %vm1017, %v1006, %v1010
        %v1021 = vsel %vm1017, %v1008, %v1012
        %v1022 = vsel %vm1017, %v1002, %v1006
        %v1023 = vsel %vm1017, %v1004, %v1008
        %v1024 = vsel %vm1017, %v1014, %v1002
        %v1025 = vsel %vm1017, %v1016, %v1004
        %v1026 = vperm.slane %v546, 1
        %v1027 = vperm.slane %v547, 1
        %v1028 = vperm.slane %v548, 1
        %v1029 = vperm.slane %v549, 1
        %v1030 = vmul.f32 %v1024, %v1026
        %v1031 = vmul.f32 %v1022, %v1027
        %v1032 = vmul.f32 %v1020, %v1028
        %v1033 = vmul.f32 %v1018, %v1029
        %v1034 = vmul.f32 %v1025, %v1026
        %v1035 = vmul.f32 %v1023, %v1027
        %v1036 = vmul.f32 %v1021, %v1028
        %v1037 = vmul.f32 %v1019, %v1029
        %1038 = vst [vmem:[#allocation2 + $0x40] sm:$0xff] %v1030
        %1039 = vst [vmem:[#allocation2 + $0x48] sm:$0xff] %v1031
        %1040 = vst [vmem:[#allocation2 + $0x50] sm:$0xff] %v1032
        %1041 = vst [vmem:[#allocation2 + $0x58] sm:$0xff] %v1033
        %1042 = vst [vmem:[#allocation2 + $0x60] sm:$0xff] %v1034
        %1043 = vst [vmem:[#allocation2 + $0x68] sm:$0xff] %v1035
        %1044 = vst [vmem:[#allocation2 + $0x70] sm:$0xff] %v1036
        %1045 = vst [vmem:[#allocation2 + $0x78] sm:$0xff] %v1037
        %1046 = vrot.lane.b32.xlu0 %v942, 71
        %v1047 = vpop.permute.xlu0 %1046
        %1048 = vrot.lane.b32.xlu0 %v946, 71
        %v1049 = vpop.permute.xlu0 %1048
        %1050 = vrot.lane.b32.xlu0 %v943, 71
        %v1051 = vpop.permute.xlu0 %1050
        %1052 = vrot.lane.b32.xlu0 %v947, 71
        %v1053 = vpop.permute.xlu0 %1052
        %1054 = vrot.lane.b32.xlu0 %v944, 71
        %v1055 = vpop.permute.xlu0 %1054
        %1056 = vrot.lane.b32.xlu0 %v948, 71
        %v1057 = vpop.permute.xlu0 %1056
        %1058 = vrot.lane.b32.xlu0 %v945, 71
        %v1059 = vpop.permute.xlu0 %1058
        %1060 = vrot.lane.b32.xlu0 %v949, 71
        %v1061 = vpop.permute.xlu0 %1060
        %vm1062 = vcmp.lt.s32.totalorder %v971, 71
        %v1063 = vsel %vm1062, %v1055, %v1059
        %v1064 = vsel %vm1062, %v1057, %v1061
        %v1065 = vsel %vm1062, %v1051, %v1055
        %v1066 = vsel %vm1062, %v1053, %v1057
        %v1067 = vsel %vm1062, %v1047, %v1051
        %v1068 = vsel %vm1062, %v1049, %v1053
        %v1069 = vsel %vm1062, %v1059, %v1047
        %v1070 = vsel %vm1062, %v1061, %v1049
        %v1071 = vperm.slane %v546, 2
        %v1072 = vperm.slane %v547, 2
        %v1073 = vperm.slane %v548, 2
        %v1074 = vperm.slane %v549, 2
        %v1075 = vmul.f32 %v1069, %v1071
        %v1076 = vmul.f32 %v1067, %v1072
        %v1077 = vmul.f32 %v1065, %v1073
        %v1078 = vmul.f32 %v1063, %v1074
        %v1079 = vmul.f32 %v1070, %v1071
        %v1080 = vmul.f32 %v1068, %v1072
        %v1081 = vmul.f32 %v1066, %v1073
        %v1082 = vmul.f32 %v1064, %v1074
        %1083 = vst [vmem:[#allocation2 + $0x80] sm:$0xff] %v1075
        %1084 = vst [vmem:[#allocation2 + $0x88] sm:$0xff] %v1076
        %1085 = vst [vmem:[#allocation2 + $0x90] sm:$0xff] %v1077
        %1086 = vst [vmem:[#allocation2 + $0x98] sm:$0xff] %v1078
        %1087 = vst [vmem:[#allocation2 + $0xa0] sm:$0xff] %v1079
        %1088 = vst [vmem:[#allocation2 + $0xa8] sm:$0xff] %v1080
        %1089 = vst [vmem:[#allocation2 + $0xb0] sm:$0xff] %v1081
        %1090 = vst [vmem:[#allocation2 + $0xb8] sm:$0xff] %v1082
        %1091 = vrot.lane.b32.xlu0 %v942, 65
        %v1092 = vpop.permute.xlu0 %1091
        %1093 = vrot.lane.b32.xlu0 %v946, 65
        %v1094 = vpop.permute.xlu0 %1093
        %1095 = vrot.lane.b32.xlu0 %v943, 65
        %v1096 = vpop.permute.xlu0 %1095
        %1097 = vrot.lane.b32.xlu0 %v947, 65
        %v1098 = vpop.permute.xlu0 %1097
        %1099 = vrot.lane.b32.xlu0 %v944, 65
        %v1100 = vpop.permute.xlu0 %1099
        %1101 = vrot.lane.b32.xlu0 %v948, 65
        %v1102 = vpop.permute.xlu0 %1101
        %1103 = vrot.lane.b32.xlu0 %v945, 65
        %v1104 = vpop.permute.xlu0 %1103
        %1105 = vrot.lane.b32.xlu0 %v949, 65
        %v1106 = vpop.permute.xlu0 %1105
        %vm1107 = vcmp.lt.s32.totalorder %v971, 65
        %v1108 = vsel %vm1107, %v1100, %v1104
        %v1109 = vsel %vm1107, %v1102, %v1106
        %v1110 = vsel %vm1107, %v1096, %v1100
        %v1111 = vsel %vm1107, %v1098, %v1102
        %v1112 = vsel %vm1107, %v1092, %v1096
        %v1113 = vsel %vm1107, %v1094, %v1098
        %v1114 = vsel %vm1107, %v1104, %v1092
        %v1115 = vsel %vm1107, %v1106, %v1094
        %v1116 = vperm.slane %v546, 3
        %v1117 = vperm.slane %v547, 3
        %v1118 = vperm.slane %v548, 3
        %v1119 = vperm.slane %v549, 3
        %v1120 = vmul.f32 %v1114, %v1116
        %v1121 = vmul.f32 %v1112, %v1117
        %v1122 = vmul.f32 %v1110, %v1118
        %v1123 = vmul.f32 %v1108, %v1119
        %v1124 = vmul.f32 %v1115, %v1116
        %v1125 = vmul.f32 %v1113, %v1117
        %v1126 = vmul.f32 %v1111, %v1118
        %v1127 = vmul.f32 %v1109, %v1119
        %1128 = vst [vmem:[#allocation2 + $0xc0] sm:$0xff] %v1120
        %1129 = vst [vmem:[#allocation2 + $0xc8] sm:$0xff] %v1121
        %1130 = vst [vmem:[#allocation2 + $0xd0] sm:$0xff] %v1122
        %1131 = vst [vmem:[#allocation2 + $0xd8] sm:$0xff] %v1123
        %1132 = vst [vmem:[#allocation2 + $0xe0] sm:$0xff] %v1124
        %1133 = vst [vmem:[#allocation2 + $0xe8] sm:$0xff] %v1125
        %1134 = vst [vmem:[#allocation2 + $0xf0] sm:$0xff] %v1126
        %1135 = vst [vmem:[#allocation2 + $0xf8] sm:$0xff] %v1127
        %1136 = vrot.lane.b32.xlu0 %v942, 64
        %v1137 = vpop.permute.xlu0 %1136
        %1138 = vrot.lane.b32.xlu0 %v946, 64
        %v1139 = vpop.permute.xlu0 %1138
        %1140 = vrot.lane.b32.xlu0 %v943, 64
        %v1141 = vpop.permute.xlu0 %1140
        %1142 = vrot.lane.b32.xlu0 %v947, 64
        %v1143 = vpop.permute.xlu0 %1142
        %1144 = vrot.lane.b32.xlu0 %v944, 64
        %v1145 = vpop.permute.xlu0 %1144
        %1146 = vrot.lane.b32.xlu0 %v948, 64
        %v1147 = vpop.permute.xlu0 %1146
        %1148 = vrot.lane.b32.xlu0 %v945, 64
        %v1149 = vpop.permute.xlu0 %1148
        %1150 = vrot.lane.b32.xlu0 %v949, 64
        %v1151 = vpop.permute.xlu0 %1150
        %vm1152 = vcmp.lt.s32.totalorder %v971, 64
        %v1153 = vsel %vm1152, %v1145, %v1149
        %v1154 = vsel %vm1152, %v1147, %v1151
        %v1155 = vsel %vm1152, %v1141, %v1145
        %v1156 = vsel %vm1152, %v1143, %v1147
        %v1157 = vsel %vm1152, %v1137, %v1141
        %v1158 = vsel %vm1152, %v1139, %v1143
        %v1159 = vsel %vm1152, %v1149, %v1137
        %v1160 = vsel %vm1152, %v1151, %v1139
        %v1161 = vperm.slane %v546, 4
        %v1162 = vperm.slane %v547, 4
        %v1163 = vperm.slane %v548, 4
        %v1164 = vperm.slane %v549, 4
        %v1165 = vmul.f32 %v1159, %v1161
        %v1166 = vmul.f32 %v1157, %v1162
        %v1167 = vmul.f32 %v1155, %v1163
        %v1168 = vmul.f32 %v1153, %v1164
        %v1169 = vmul.f32 %v1160, %v1161
        %v1170 = vmul.f32 %v1158, %v1162
        %v1171 = vmul.f32 %v1156, %v1163
        %v1172 = vmul.f32 %v1154, %v1164
        %1173 = vst [vmem:[#allocation2 + $0x100] sm:$0xff] %v1165
        %1174 = vst [vmem:[#allocation2 + $0x108] sm:$0xff] %v1166
        %1175 = vst [vmem:[#allocation2 + $0x110] sm:$0xff] %v1167
        %1176 = vst [vmem:[#allocation2 + $0x118] sm:$0xff] %v1168
        %1177 = vst [vmem:[#allocation2 + $0x120] sm:$0xff] %v1169
        %1178 = vst [vmem:[#allocation2 + $0x128] sm:$0xff] %v1170
        %1179 = vst [vmem:[#allocation2 + $0x130] sm:$0xff] %v1171
        %1180 = vst [vmem:[#allocation2 + $0x138] sm:$0xff] %v1172
        %1181 = vrot.lane.b32.xlu0 %v942, 63
        %v1182 = vpop.permute.xlu0 %1181
        %1183 = vrot.lane.b32.xlu0 %v946, 63
        %v1184 = vpop.permute.xlu0 %1183
        %1185 = vrot.lane.b32.xlu0 %v943, 63
        %v1186 = vpop.permute.xlu0 %1185
        %1187 = vrot.lane.b32.xlu0 %v947, 63
        %v1188 = vpop.permute.xlu0 %1187
        %1189 = vrot.lane.b32.xlu0 %v944, 63
        %v1190 = vpop.permute.xlu0 %1189
        %1191 = vrot.lane.b32.xlu0 %v948, 63
        %v1192 = vpop.permute.xlu0 %1191
        %1193 = vrot.lane.b32.xlu0 %v945, 63
        %v1194 = vpop.permute.xlu0 %1193
        %1195 = vrot.lane.b32.xlu0 %v949, 63
        %v1196 = vpop.permute.xlu0 %1195
        %vm1197 = vcmp.lt.s32.totalorder %v971, 63
        %v1198 = vsel %vm1197, %v1190, %v1194
        %v1199 = vsel %vm1197, %v1192, %v1196
        %v1200 = vsel %vm1197, %v1186, %v1190
        %v1201 = vsel %vm1197, %v1188, %v1192
        %v1202 = vsel %vm1197, %v1182, %v1186
        %v1203 = vsel %vm1197, %v1184, %v1188
        %v1204 = vsel %vm1197, %v1194, %v1182
        %v1205 = vsel %vm1197, %v1196, %v1184
        %v1206 = vperm.slane %v546, 5
        %v1207 = vperm.slane %v547, 5
        %v1208 = vperm.slane %v548, 5
        %v1209 = vperm.slane %v549, 5
        %v1210 = vmul.f32 %v1204, %v1206
        %v1211 = vmul.f32 %v1202, %v1207
        %v1212 = vmul.f32 %v1200, %v1208
        %v1213 = vmul.f32 %v1198, %v1209
        %v1214 = vmul.f32 %v1205, %v1206
        %v1215 = vmul.f32 %v1203, %v1207
        %v1216 = vmul.f32 %v1201, %v1208
        %v1217 = vmul.f32 %v1199, %v1209
        %1218 = vst [vmem:[#allocation2 + $0x140] sm:$0xff] %v1210
        %1219 = vst [vmem:[#allocation2 + $0x148] sm:$0xff] %v1211
        %1220 = vst [vmem:[#allocation2 + $0x150] sm:$0xff] %v1212
        %1221 = vst [vmem:[#allocation2 + $0x158] sm:$0xff] %v1213
        %1222 = vst [vmem:[#allocation2 + $0x160] sm:$0xff] %v1214
        %1223 = vst [vmem:[#allocation2 + $0x168] sm:$0xff] %v1215
        %1224 = vst [vmem:[#allocation2 + $0x170] sm:$0xff] %v1216
        %1225 = vst [vmem:[#allocation2 + $0x178] sm:$0xff] %v1217
        %1226 = vrot.lane.b32.xlu0 %v942, 57
        %v1227 = vpop.permute.xlu0 %1226
        %1228 = vrot.lane.b32.xlu0 %v946, 57
        %v1229 = vpop.permute.xlu0 %1228
        %1230 = vrot.lane.b32.xlu0 %v943, 57
        %v1231 = vpop.permute.xlu0 %1230
        %1232 = vrot.lane.b32.xlu0 %v947, 57
        %v1233 = vpop.permute.xlu0 %1232
        %1234 = vrot.lane.b32.xlu0 %v944, 57
        %v1235 = vpop.permute.xlu0 %1234
        %1236 = vrot.lane.b32.xlu0 %v948, 57
        %v1237 = vpop.permute.xlu0 %1236
        %1238 = vrot.lane.b32.xlu0 %v945, 57
        %v1239 = vpop.permute.xlu0 %1238
        %1240 = vrot.lane.b32.xlu0 %v949, 57
        %v1241 = vpop.permute.xlu0 %1240
        %vm1242 = vcmp.lt.s32.totalorder %v971, 57
        %v1243 = vsel %vm1242, %v1235, %v1239
        %v1244 = vsel %vm1242, %v1237, %v1241
        %v1245 = vsel %vm1242, %v1231, %v1235
        %v1246 = vsel %vm1242, %v1233, %v1237
        %v1247 = vsel %vm1242, %v1227, %v1231
        %v1248 = vsel %vm1242, %v1229, %v1233
        %v1249 = vsel %vm1242, %v1239, %v1227
        %v1250 = vsel %vm1242, %v1241, %v1229
        %v1251 = vperm.slane %v546, 6
        %v1252 = vperm.slane %v547, 6
        %v1253 = vperm.slane %v548, 6
        %v1254 = vperm.slane %v549, 6
        %v1255 = vmul.f32 %v1249, %v1251
        %v1256 = vmul.f32 %v1247, %v1252
        %v1257 = vmul.f32 %v1245, %v1253
        %v1258 = vmul.f32 %v1243, %v1254
        %v1259 = vmul.f32 %v1250, %v1251
        %v1260 = vmul.f32 %v1248, %v1252
        %v1261 = vmul.f32 %v1246, %v1253
        %v1262 = vmul.f32 %v1244, %v1254
        %1263 = vst [vmem:[#allocation2 + $0x180] sm:$0xff] %v1255
        %1264 = vst [vmem:[#allocation2 + $0x188] sm:$0xff] %v1256
        %1265 = vst [vmem:[#allocation2 + $0x190] sm:$0xff] %v1257
        %1266 = vst [vmem:[#allocation2 + $0x198] sm:$0xff] %v1258
        %1267 = vst [vmem:[#allocation2 + $0x1a0] sm:$0xff] %v1259
        %1268 = vst [vmem:[#allocation2 + $0x1a8] sm:$0xff] %v1260
        %1269 = vst [vmem:[#allocation2 + $0x1b0] sm:$0xff] %v1261
        %1270 = vst [vmem:[#allocation2 + $0x1b8] sm:$0xff] %v1262
        %1271 = vrot.lane.b32.xlu0 %v942, 56
        %v1272 = vpop.permute.xlu0 %1271
        %1273 = vrot.lane.b32.xlu0 %v946, 56
        %v1274 = vpop.permute.xlu0 %1273
        %1275 = vrot.lane.b32.xlu0 %v943, 56
        %v1276 = vpop.permute.xlu0 %1275
        %1277 = vrot.lane.b32.xlu0 %v947, 56
        %v1278 = vpop.permute.xlu0 %1277
        %1279 = vrot.lane.b32.xlu0 %v944, 56
        %v1280 = vpop.permute.xlu0 %1279
        %1281 = vrot.lane.b32.xlu0 %v948, 56
        %v1282 = vpop.permute.xlu0 %1281
        %1283 = vrot.lane.b32.xlu0 %v945, 56
        %v1284 = vpop.permute.xlu0 %1283
        %1285 = vrot.lane.b32.xlu0 %v949, 56
        %v1286 = vpop.permute.xlu0 %1285
        %vm1287 = vcmp.lt.s32.totalorder %v971, 56
        %v1288 = vsel %vm1287, %v1280, %v1284
        %v1289 = vsel %vm1287, %v1282, %v1286
        %v1290 = vsel %vm1287, %v1276, %v1280
        %v1291 = vsel %vm1287, %v1278, %v1282
        %v1292 = vsel %vm1287, %v1272, %v1276
        %v1293 = vsel %vm1287, %v1274, %v1278
        %v1294 = vsel %vm1287, %v1284, %v1272
        %v1295 = vsel %vm1287, %v1286, %v1274
        %v1296 = vperm.slane %v546, 7
        %v1297 = vperm.slane %v547, 7
        %v1298 = vperm.slane %v548, 7
        %v1299 = vperm.slane %v549, 7
        %v1300 = vmul.f32 %v1294, %v1296
        %v1301 = vmul.f32 %v1292, %v1297
        %v1302 = vmul.f32 %v1290, %v1298
        %v1303 = vmul.f32 %v1288, %v1299
        %v1304 = vmul.f32 %v1295, %v1296
        %v1305 = vmul.f32 %v1293, %v1297
        %v1306 = vmul.f32 %v1291, %v1298
        %v1307 = vmul.f32 %v1289, %v1299
        %1308 = vst [vmem:[#allocation2 + $0x1c0] sm:$0xff] %v1300
        %1309 = vst [vmem:[#allocation2 + $0x1c8] sm:$0xff] %v1301
        %1310 = vst [vmem:[#allocation2 + $0x1d0] sm:$0xff] %v1302
        %1311 = vst [vmem:[#allocation2 + $0x1d8] sm:$0xff] %v1303
        %1312 = vst [vmem:[#allocation2 + $0x1e0] sm:$0xff] %v1304
        %1313 = vst [vmem:[#allocation2 + $0x1e8] sm:$0xff] %v1305
        %1314 = vst [vmem:[#allocation2 + $0x1f0] sm:$0xff] %v1306
        %1315 = vst [vmem:[#allocation2 + $0x1f8] sm:$0xff] %v1307
        %1316 = vrot.lane.b32.xlu0 %v942, 55
        %v1317 = vpop.permute.xlu0 %1316
        %1318 = vrot.lane.b32.xlu0 %v946, 55
        %v1319 = vpop.permute.xlu0 %1318
        %1320 = vrot.lane.b32.xlu0 %v943, 55
        %v1321 = vpop.permute.xlu0 %1320
        %1322 = vrot.lane.b32.xlu0 %v947, 55
        %v1323 = vpop.permute.xlu0 %1322
        %1324 = vrot.lane.b32.xlu0 %v944, 55
        %v1325 = vpop.permute.xlu0 %1324
        %1326 = vrot.lane.b32.xlu0 %v948, 55
        %v1327 = vpop.permute.xlu0 %1326
        %1328 = vrot.lane.b32.xlu0 %v945, 55
        %v1329 = vpop.permute.xlu0 %1328
        %1330 = vrot.lane.b32.xlu0 %v949, 55
        %v1331 = vpop.permute.xlu0 %1330
        %vm1332 = vcmp.lt.s32.totalorder %v971, 55
        %v1333 = vsel %vm1332, %v1325, %v1329
        %v1334 = vsel %vm1332, %v1327, %v1331
        %v1335 = vsel %vm1332, %v1321, %v1325
        %v1336 = vsel %vm1332, %v1323, %v1327
        %v1337 = vsel %vm1332, %v1317, %v1321
        %v1338 = vsel %vm1332, %v1319, %v1323
        %v1339 = vsel %vm1332, %v1329, %v1317
        %v1340 = vsel %vm1332, %v1331, %v1319
        %v1341 = vperm.slane %v550, 0
        %v1342 = vperm.slane %v551, 0
        %v1343 = vperm.slane %v552, 0
        %v1344 = vperm.slane %v553, 0
        %v1345 = vmul.f32 %v1339, %v1341
        %v1346 = vmul.f32 %v1337, %v1342
        %v1347 = vmul.f32 %v1335, %v1343
        %v1348 = vmul.f32 %v1333, %v1344
        %v1349 = vmul.f32 %v1340, %v1341
        %v1350 = vmul.f32 %v1338, %v1342
        %v1351 = vmul.f32 %v1336, %v1343
        %v1352 = vmul.f32 %v1334, %v1344
        %1353 = vst [vmem:[#allocation2 + $0x200] sm:$0xff] %v1345
        %1354 = vst [vmem:[#allocation2 + $0x208] sm:$0xff] %v1346
        %1355 = vst [vmem:[#allocation2 + $0x210] sm:$0xff] %v1347
        %1356 = vst [vmem:[#allocation2 + $0x218] sm:$0xff] %v1348
        %1357 = vst [vmem:[#allocation2 + $0x220] sm:$0xff] %v1349
        %1358 = vst [vmem:[#allocation2 + $0x228] sm:$0xff] %v1350
        %1359 = vst [vmem:[#allocation2 + $0x230] sm:$0xff] %v1351
        %1360 = vst [vmem:[#allocation2 + $0x238] sm:$0xff] %v1352
        %1361 = vrot.lane.b32.xlu0 %v942, 9
        %v1362 = vpop.permute.xlu0 %1361
        %1363 = vrot.lane.b32.xlu0 %v946, 9
        %v1364 = vpop.permute.xlu0 %1363
        %1365 = vrot.lane.b32.xlu0 %v943, 9
        %v1366 = vpop.permute.xlu0 %1365
        %1367 = vrot.lane.b32.xlu0 %v947, 9
        %v1368 = vpop.permute.xlu0 %1367
        %1369 = vrot.lane.b32.xlu0 %v944, 9
        %v1370 = vpop.permute.xlu0 %1369
        %1371 = vrot.lane.b32.xlu0 %v948, 9
        %v1372 = vpop.permute.xlu0 %1371
        %1373 = vrot.lane.b32.xlu0 %v945, 9
        %v1374 = vpop.permute.xlu0 %1373
        %1375 = vrot.lane.b32.xlu0 %v949, 9
        %v1376 = vpop.permute.xlu0 %1375
        %vm1377 = vcmp.lt.s32.totalorder %v971, 9
        %v1378 = vsel %vm1377, %v1370, %v1374
        %v1379 = vsel %vm1377, %v1372, %v1376
        %v1380 = vsel %vm1377, %v1366, %v1370
        %v1381 = vsel %vm1377, %v1368, %v1372
        %v1382 = vsel %vm1377, %v1362, %v1366
        %v1383 = vsel %vm1377, %v1364, %v1368
        %v1384 = vsel %vm1377, %v1374, %v1362
        %v1385 = vsel %vm1377, %v1376, %v1364
        %v1386 = vperm.slane %v550, 1
        %v1387 = vperm.slane %v551, 1
        %v1388 = vperm.slane %v552, 1
        %v1389 = vperm.slane %v553, 1
        %v1390 = vmul.f32 %v1384, %v1386
        %v1391 = vmul.f32 %v1382, %v1387
        %v1392 = vmul.f32 %v1380, %v1388
        %v1393 = vmul.f32 %v1378, %v1389
        %v1394 = vmul.f32 %v1385, %v1386
        %v1395 = vmul.f32 %v1383, %v1387
        %v1396 = vmul.f32 %v1381, %v1388
        %v1397 = vmul.f32 %v1379, %v1389
        %1398 = vst [vmem:[#allocation2 + $0x240] sm:$0xff] %v1390
        %1399 = vst [vmem:[#allocation2 + $0x248] sm:$0xff] %v1391
        %1400 = vst [vmem:[#allocation2 + $0x250] sm:$0xff] %v1392
        %1401 = vst [vmem:[#allocation2 + $0x258] sm:$0xff] %v1393
        %1402 = vst [vmem:[#allocation2 + $0x260] sm:$0xff] %v1394
        %1403 = vst [vmem:[#allocation2 + $0x268] sm:$0xff] %v1395
        %1404 = vst [vmem:[#allocation2 + $0x270] sm:$0xff] %v1396
        %1405 = vst [vmem:[#allocation2 + $0x278] sm:$0xff] %v1397
        %1406 = vrot.lane.b32.xlu0 %v942, 8
        %v1407 = vpop.permute.xlu0 %1406
        %1408 = vrot.lane.b32.xlu0 %v946, 8
        %v1409 = vpop.permute.xlu0 %1408
        %1410 = vrot.lane.b32.xlu0 %v943, 8
        %v1411 = vpop.permute.xlu0 %1410
        %1412 = vrot.lane.b32.xlu0 %v947, 8
        %v1413 = vpop.permute.xlu0 %1412
        %1414 = vrot.lane.b32.xlu0 %v944, 8
        %v1415 = vpop.permute.xlu0 %1414
        %1416 = vrot.lane.b32.xlu0 %v948, 8
        %v1417 = vpop.permute.xlu0 %1416
        %1418 = vrot.lane.b32.xlu0 %v945, 8
        %v1419 = vpop.permute.xlu0 %1418
        %1420 = vrot.lane.b32.xlu0 %v949, 8
        %v1421 = vpop.permute.xlu0 %1420
        %vm1422 = vcmp.lt.s32.totalorder %v971, 8
        %v1423 = vsel %vm1422, %v1415, %v1419
        %v1424 = vsel %vm1422, %v1417, %v1421
        %v1425 = vsel %vm1422, %v1411, %v1415
        %v1426 = vsel %vm1422, %v1413, %v1417
        %v1427 = vsel %vm1422, %v1407, %v1411
        %v1428 = vsel %vm1422, %v1409, %v1413
        %v1429 = vsel %vm1422, %v1419, %v1407
        %v1430 = vsel %vm1422, %v1421, %v1409
        %v1431 = vperm.slane %v550, 2
        %v1432 = vperm.slane %v551, 2
        %v1433 = vperm.slane %v552, 2
        %v1434 = vperm.slane %v553, 2
        %v1435 = vmul.f32 %v1429, %v1431
        %v1436 = vmul.f32 %v1427, %v1432
        %v1437 = vmul.f32 %v1425, %v1433
        %v1438 = vmul.f32 %v1423, %v1434
        %v1439 = vmul.f32 %v1430, %v1431
        %v1440 = vmul.f32 %v1428, %v1432
        %v1441 = vmul.f32 %v1426, %v1433
        %v1442 = vmul.f32 %v1424, %v1434
        %1443 = vst [vmem:[#allocation2 + $0x280] sm:$0xff] %v1435
        %1444 = vst [vmem:[#allocation2 + $0x288] sm:$0xff] %v1436
        %1445 = vst [vmem:[#allocation2 + $0x290] sm:$0xff] %v1437
        %1446 = vst [vmem:[#allocation2 + $0x298] sm:$0xff] %v1438
        %1447 = vst [vmem:[#allocation2 + $0x2a0] sm:$0xff] %v1439
        %1448 = vst [vmem:[#allocation2 + $0x2a8] sm:$0xff] %v1440
        %1449 = vst [vmem:[#allocation2 + $0x2b0] sm:$0xff] %v1441
        %1450 = vst [vmem:[#allocation2 + $0x2b8] sm:$0xff] %v1442
        %1451 = vrot.lane.b32.xlu0 %v942, 7
        %v1452 = vpop.permute.xlu0 %1451
        %1453 = vrot.lane.b32.xlu0 %v946, 7
        %v1454 = vpop.permute.xlu0 %1453
        %1455 = vrot.lane.b32.xlu0 %v943, 7
        %v1456 = vpop.permute.xlu0 %1455
        %1457 = vrot.lane.b32.xlu0 %v947, 7
        %v1458 = vpop.permute.xlu0 %1457
        %1459 = vrot.lane.b32.xlu0 %v944, 7
        %v1460 = vpop.permute.xlu0 %1459
        %1461 = vrot.lane.b32.xlu0 %v948, 7
        %v1462 = vpop.permute.xlu0 %1461
        %1463 = vrot.lane.b32.xlu0 %v945, 7
        %v1464 = vpop.permute.xlu0 %1463
        %1465 = vrot.lane.b32.xlu0 %v949, 7
        %v1466 = vpop.permute.xlu0 %1465
        %vm1467 = vcmp.lt.s32.totalorder %v971, 7
        %v1468 = vsel %vm1467, %v1460, %v1464
        %v1469 = vsel %vm1467, %v1462, %v1466
        %v1470 = vsel %vm1467, %v1456, %v1460
        %v1471 = vsel %vm1467, %v1458, %v1462
        %v1472 = vsel %vm1467, %v1452, %v1456
        %v1473 = vsel %vm1467, %v1454, %v1458
        %v1474 = vsel %vm1467, %v1464, %v1452
        %v1475 = vsel %vm1467, %v1466, %v1454
        %v1476 = vperm.slane %v550, 3
        %v1477 = vperm.slane %v551, 3
        %v1478 = vperm.slane %v552, 3
        %v1479 = vperm.slane %v553, 3
        %v1480 = vmul.f32 %v1474, %v1476
        %v1481 = vmul.f32 %v1472, %v1477
        %v1482 = vmul.f32 %v1470, %v1478
        %v1483 = vmul.f32 %v1468, %v1479
        %v1484 = vmul.f32 %v1475, %v1476
        %v1485 = vmul.f32 %v1473, %v1477
        %v1486 = vmul.f32 %v1471, %v1478
        %v1487 = vmul.f32 %v1469, %v1479
        %1488 = vst [vmem:[#allocation2 + $0x2c0] sm:$0xff] %v1480
        %1489 = vst [vmem:[#allocation2 + $0x2c8] sm:$0xff] %v1481
        %1490 = vst [vmem:[#allocation2 + $0x2d0] sm:$0xff] %v1482
        %1491 = vst [vmem:[#allocation2 + $0x2d8] sm:$0xff] %v1483
        %1492 = vst [vmem:[#allocation2 + $0x2e0] sm:$0xff] %v1484
        %1493 = vst [vmem:[#allocation2 + $0x2e8] sm:$0xff] %v1485
        %1494 = vst [vmem:[#allocation2 + $0x2f0] sm:$0xff] %v1486
        %1495 = vst [vmem:[#allocation2 + $0x2f8] sm:$0xff] %v1487
        %1496 = vrot.lane.b32.xlu0 %v942, 1
        %v1497 = vpop.permute.xlu0 %1496
        %1498 = vrot.lane.b32.xlu0 %v946, 1
        %v1499 = vpop.permute.xlu0 %1498
        %1500 = vrot.lane.b32.xlu0 %v943, 1
        %v1501 = vpop.permute.xlu0 %1500
        %1502 = vrot.lane.b32.xlu0 %v947, 1
        %v1503 = vpop.permute.xlu0 %1502
        %1504 = vrot.lane.b32.xlu0 %v944, 1
        %v1505 = vpop.permute.xlu0 %1504
        %1506 = vrot.lane.b32.xlu0 %v948, 1
        %v1507 = vpop.permute.xlu0 %1506
        %1508 = vrot.lane.b32.xlu0 %v945, 1
        %v1509 = vpop.permute.xlu0 %1508
        %1510 = vrot.lane.b32.xlu0 %v949, 1
        %v1511 = vpop.permute.xlu0 %1510
        %vm1512 = vcmp.lt.s32.totalorder %v971, 1
        %v1513 = vsel %vm1512, %v1505, %v1509
        %v1514 = vsel %vm1512, %v1507, %v1511
        %v1515 = vsel %vm1512, %v1501, %v1505
        %v1516 = vsel %vm1512, %v1503, %v1507
        %v1517 = vsel %vm1512, %v1497, %v1501
        %v1518 = vsel %vm1512, %v1499, %v1503
        %v1519 = vsel %vm1512, %v1509, %v1497
        %v1520 = vsel %vm1512, %v1511, %v1499
        %v1521 = vperm.slane %v550, 4
        %v1522 = vperm.slane %v551, 4
        %v1523 = vperm.slane %v552, 4
        %v1524 = vperm.slane %v553, 4
        %v1525 = vmul.f32 %v1519, %v1521
        %v1526 = vmul.f32 %v1517, %v1522
        %v1527 = vmul.f32 %v1515, %v1523
        %v1528 = vmul.f32 %v1513, %v1524
        %v1529 = vmul.f32 %v1520, %v1521
        %v1530 = vmul.f32 %v1518, %v1522
        %v1531 = vmul.f32 %v1516, %v1523
        %v1532 = vmul.f32 %v1514, %v1524
        %1533 = vst [vmem:[#allocation2 + $0x300] sm:$0xff] %v1525
        %1534 = vst [vmem:[#allocation2 + $0x308] sm:$0xff] %v1526
        %1535 = vst [vmem:[#allocation2 + $0x310] sm:$0xff] %v1527
        %1536 = vst [vmem:[#allocation2 + $0x318] sm:$0xff] %v1528
        %1537 = vst [vmem:[#allocation2 + $0x320] sm:$0xff] %v1529
        %1538 = vst [vmem:[#allocation2 + $0x328] sm:$0xff] %v1530
        %1539 = vst [vmem:[#allocation2 + $0x330] sm:$0xff] %v1531
        %1540 = vst [vmem:[#allocation2 + $0x338] sm:$0xff] %v1532
        %v1541 = vperm.slane %v550, 5
        %v1542 = vperm.slane %v551, 5
        %v1543 = vperm.slane %v552, 5
        %v1544 = vperm.slane %v553, 5
        %v1545 = vmul.f32 %v942, %v1541
        %v1546 = vmul.f32 %v943, %v1542
        %v1547 = vmul.f32 %v944, %v1543
        %v1548 = vmul.f32 %v945, %v1544
        %v1549 = vmul.f32 %v946, %v1541
        %v1550 = vmul.f32 %v947, %v1542
        %v1551 = vmul.f32 %v948, %v1543
        %v1552 = vmul.f32 %v949, %v1544
        %1553 = vst [vmem:[#allocation2 + $0x340] sm:$0xff] %v1545
        %1554 = vst [vmem:[#allocation2 + $0x348] sm:$0xff] %v1546
        %1555 = vst [vmem:[#allocation2 + $0x350] sm:$0xff] %v1547
        %1556 = vst [vmem:[#allocation2 + $0x358] sm:$0xff] %v1548
        %1557 = vst [vmem:[#allocation2 + $0x360] sm:$0xff] %v1549
        %1558 = vst [vmem:[#allocation2 + $0x368] sm:$0xff] %v1550
        %1559 = vst [vmem:[#allocation2 + $0x370] sm:$0xff] %v1551
        %1560 = vst [vmem:[#allocation2 + $0x378] sm:$0xff] %v1552
        %1561 = vrot.lane.b32.xlu0 %v942, 127
        %v1562 = vpop.permute.xlu0 %1561
        %1563 = vrot.lane.b32.xlu0 %v946, 127
        %v1564 = vpop.permute.xlu0 %1563
        %1565 = vrot.lane.b32.xlu0 %v943, 127
        %v1566 = vpop.permute.xlu0 %1565
        %1567 = vrot.lane.b32.xlu0 %v947, 127
        %v1568 = vpop.permute.xlu0 %1567
        %1569 = vrot.lane.b32.xlu0 %v944, 127
        %v1570 = vpop.permute.xlu0 %1569
        %1571 = vrot.lane.b32.xlu0 %v948, 127
        %v1572 = vpop.permute.xlu0 %1571
        %1573 = vrot.lane.b32.xlu0 %v945, 127
        %v1574 = vpop.permute.xlu0 %1573
        %1575 = vrot.lane.b32.xlu0 %v949, 127
        %v1576 = vpop.permute.xlu0 %1575
        %vm1577 = vcmp.lt.s32.totalorder %v971, 127
        %v1578 = vsel %vm1577, %v1570, %v1574
        %v1579 = vsel %vm1577, %v1572, %v1576
        %v1580 = vsel %vm1577, %v1566, %v1570
        %v1581 = vsel %vm1577, %v1568, %v1572
        %v1582 = vsel %vm1577, %v1562, %v1566
        %v1583 = vsel %vm1577, %v1564, %v1568
        %v1584 = vsel %vm1577, %v1574, %v1562
        %v1585 = vsel %vm1577, %v1576, %v1564
        %v1586 = vperm.slane %v550, 6
        %v1587 = vperm.slane %v551, 6
        %v1588 = vperm.slane %v552, 6
        %v1589 = vperm.slane %v553, 6
        %v1590 = vmul.f32 %v1582, %v1586
        %v1591 = vmul.f32 %v1580, %v1587
        %v1592 = vmul.f32 %v1578, %v1588
        %v1593 = vmul.f32 %v1584, %v1589
        %v1594 = vmul.f32 %v1583, %v1586
        %v1595 = vmul.f32 %v1581, %v1587
        %v1596 = vmul.f32 %v1579, %v1588
        %v1597 = vmul.f32 %v1585, %v1589
        %1598 = vst [vmem:[#allocation2 + $0x380] sm:$0xff] %v1590
        %1599 = vst [vmem:[#allocation2 + $0x388] sm:$0xff] %v1591
        %1600 = vst [vmem:[#allocation2 + $0x390] sm:$0xff] %v1592
        %1601 = vst [vmem:[#allocation2 + $0x398] sm:$0xff] %v1593
        %1602 = vst [vmem:[#allocation2 + $0x3a0] sm:$0xff] %v1594
        %1603 = vst [vmem:[#allocation2 + $0x3a8] sm:$0xff] %v1595
        %1604 = vst [vmem:[#allocation2 + $0x3b0] sm:$0xff] %v1596
        %1605 = vst [vmem:[#allocation2 + $0x3b8] sm:$0xff] %v1597
        %1606 = vrot.lane.b32.xlu0 %v942, 121
        %v1607 = vpop.permute.xlu0 %1606
        %1608 = vrot.lane.b32.xlu0 %v946, 121
        %v1609 = vpop.permute.xlu0 %1608
        %1610 = vrot.lane.b32.xlu0 %v943, 121
        %v1611 = vpop.permute.xlu0 %1610
        %1612 = vrot.lane.b32.xlu0 %v947, 121
        %v1613 = vpop.permute.xlu0 %1612
        %1614 = vrot.lane.b32.xlu0 %v944, 121
        %v1615 = vpop.permute.xlu0 %1614
        %1616 = vrot.lane.b32.xlu0 %v948, 121
        %v1617 = vpop.permute.xlu0 %1616
        %1618 = vrot.lane.b32.xlu0 %v945, 121
        %v1619 = vpop.permute.xlu0 %1618
        %1620 = vrot.lane.b32.xlu0 %v949, 121
        %v1621 = vpop.permute.xlu0 %1620
        %vm1622 = vcmp.lt.s32.totalorder %v971, 121
        %v1623 = vsel %vm1622, %v1615, %v1619
        %v1624 = vsel %vm1622, %v1617, %v1621
        %v1625 = vsel %vm1622, %v1611, %v1615
        %v1626 = vsel %vm1622, %v1613, %v1617
        %v1627 = vsel %vm1622, %v1607, %v1611
        %v1628 = vsel %vm1622, %v1609, %v1613
        %v1629 = vsel %vm1622, %v1619, %v1607
        %v1630 = vsel %vm1622, %v1621, %v1609
        %v1631 = vperm.slane %v550, 7
        %v1632 = vperm.slane %v551, 7
        %v1633 = vperm.slane %v552, 7
        %v1634 = vperm.slane %v553, 7
        %v1635 = vmul.f32 %v1627, %v1631
        %v1636 = vmul.f32 %v1625, %v1632
        %v1637 = vmul.f32 %v1623, %v1633
        %v1638 = vmul.f32 %v1629, %v1634
        %v1639 = vmul.f32 %v1628, %v1631
        %v1640 = vmul.f32 %v1626, %v1632
        %v1641 = vmul.f32 %v1624, %v1633
        %v1642 = vmul.f32 %v1630, %v1634
        %1643 = vst [vmem:[#allocation2 + $0x3c0] sm:$0xff] %v1635
        %1644 = vst [vmem:[#allocation2 + $0x3c8] sm:$0xff] %v1636
        %1645 = vst [vmem:[#allocation2 + $0x3d0] sm:$0xff] %v1637
        %1646 = vst [vmem:[#allocation2 + $0x3d8] sm:$0xff] %v1638
        %1647 = vst [vmem:[#allocation2 + $0x3e0] sm:$0xff] %v1639
        %1648 = vst [vmem:[#allocation2 + $0x3e8] sm:$0xff] %v1640
        %1649 = vst [vmem:[#allocation2 + $0x3f0] sm:$0xff] %v1641
        %1650 = vst [vmem:[#allocation2 + $0x3f8] sm:$0xff] %v1642
        %1651 = vrot.lane.b32.xlu0 %v942, 120
        %v1652 = vpop.permute.xlu0 %1651
        %1653 = vrot.lane.b32.xlu0 %v946, 120
        %v1654 = vpop.permute.xlu0 %1653
        %1655 = vrot.lane.b32.xlu0 %v943, 120
        %v1656 = vpop.permute.xlu0 %1655
        %1657 = vrot.lane.b32.xlu0 %v947, 120
        %v1658 = vpop.permute.xlu0 %1657
        %1659 = vrot.lane.b32.xlu0 %v944, 120
        %v1660 = vpop.permute.xlu0 %1659
        %1661 = vrot.lane.b32.xlu0 %v948, 120
        %v1662 = vpop.permute.xlu0 %1661
        %1663 = vrot.lane.b32.xlu0 %v945, 120
        %v1664 = vpop.permute.xlu0 %1663
        %1665 = vrot.lane.b32.xlu0 %v949, 120
        %v1666 = vpop.permute.xlu0 %1665
        %vm1667 = vcmp.lt.s32.totalorder %v971, 120
        %v1668 = vsel %vm1667, %v1660, %v1664
        %v1669 = vsel %vm1667, %v1662, %v1666
        %v1670 = vsel %vm1667, %v1656, %v1660
        %v1671 = vsel %vm1667, %v1658, %v1662
        %v1672 = vsel %vm1667, %v1652, %v1656
        %v1673 = vsel %vm1667, %v1654, %v1658
        %v1674 = vsel %vm1667, %v1664, %v1652
        %v1675 = vsel %vm1667, %v1666, %v1654
        %v1676 = vperm.slane %v554, 0
        %v1677 = vperm.slane %v555, 0
        %v1678 = vperm.slane %v556, 0
        %v1679 = vperm.slane %v557, 0
        %v1680 = vmul.f32 %v1672, %v1676
        %v1681 = vmul.f32 %v1670, %v1677
        %v1682 = vmul.f32 %v1668, %v1678
        %v1683 = vmul.f32 %v1674, %v1679
        %v1684 = vmul.f32 %v1673, %v1676
        %v1685 = vmul.f32 %v1671, %v1677
        %v1686 = vmul.f32 %v1669, %v1678
        %v1687 = vmul.f32 %v1675, %v1679
        %1688 = vst [vmem:[#allocation2 + $0x400] sm:$0xff] %v1680
        %1689 = vst [vmem:[#allocation2 + $0x408] sm:$0xff] %v1681
        %1690 = vst [vmem:[#allocation2 + $0x410] sm:$0xff] %v1682
        %1691 = vst [vmem:[#allocation2 + $0x418] sm:$0xff] %v1683
        %1692 = vst [vmem:[#allocation2 + $0x420] sm:$0xff] %v1684
        %1693 = vst [vmem:[#allocation2 + $0x428] sm:$0xff] %v1685
        %1694 = vst [vmem:[#allocation2 + $0x430] sm:$0xff] %v1686
        %1695 = vst [vmem:[#allocation2 + $0x438] sm:$0xff] %v1687
        %1696 = vrot.lane.b32.xlu0 %v942, 119
        %v1697 = vpop.permute.xlu0 %1696
        %1698 = vrot.lane.b32.xlu0 %v946, 119
        %v1699 = vpop.permute.xlu0 %1698
        %1700 = vrot.lane.b32.xlu0 %v943, 119
        %v1701 = vpop.permute.xlu0 %1700
        %1702 = vrot.lane.b32.xlu0 %v947, 119
        %v1703 = vpop.permute.xlu0 %1702
        %1704 = vrot.lane.b32.xlu0 %v944, 119
        %v1705 = vpop.permute.xlu0 %1704
        %1706 = vrot.lane.b32.xlu0 %v948, 119
        %v1707 = vpop.permute.xlu0 %1706
        %1708 = vrot.lane.b32.xlu0 %v945, 119
        %v1709 = vpop.permute.xlu0 %1708
        %1710 = vrot.lane.b32.xlu0 %v949, 119
        %v1711 = vpop.permute.xlu0 %1710
        %vm1712 = vcmp.lt.s32.totalorder %v971, 119
        %v1713 = vsel %vm1712, %v1705, %v1709
        %v1714 = vsel %vm1712, %v1707, %v1711
        %v1715 = vsel %vm1712, %v1701, %v1705
        %v1716 = vsel %vm1712, %v1703, %v1707
        %v1717 = vsel %vm1712, %v1697, %v1701
        %v1718 = vsel %vm1712, %v1699, %v1703
        %v1719 = vsel %vm1712, %v1709, %v1697
        %v1720 = vsel %vm1712, %v1711, %v1699
        %v1721 = vperm.slane %v554, 1
        %v1722 = vperm.slane %v555, 1
        %v1723 = vperm.slane %v556, 1
        %v1724 = vperm.slane %v557, 1
        %v1725 = vmul.f32 %v1717, %v1721
        %v1726 = vmul.f32 %v1715, %v1722
        %v1727 = vmul.f32 %v1713, %v1723
        %v1728 = vmul.f32 %v1719, %v1724
        %v1729 = vmul.f32 %v1718, %v1721
        %v1730 = vmul.f32 %v1716, %v1722
        %v1731 = vmul.f32 %v1714, %v1723
        %v1732 = vmul.f32 %v1720, %v1724
        %1733 = vst [vmem:[#allocation2 + $0x440] sm:$0xff] %v1725
        %1734 = vst [vmem:[#allocation2 + $0x448] sm:$0xff] %v1726
        %1735 = vst [vmem:[#allocation2 + $0x450] sm:$0xff] %v1727
        %1736 = vst [vmem:[#allocation2 + $0x458] sm:$0xff] %v1728
        %1737 = vst [vmem:[#allocation2 + $0x460] sm:$0xff] %v1729
        %1738 = vst [vmem:[#allocation2 + $0x468] sm:$0xff] %v1730
        %1739 = vst [vmem:[#allocation2 + $0x470] sm:$0xff] %v1731
        %1740 = vst [vmem:[#allocation2 + $0x478] sm:$0xff] %v1732
        %v1741 = vperm.slane %v554, 2
        %v1742 = vperm.slane %v555, 2
        %v1743 = vperm.slane %v556, 2
        %v1744 = vperm.slane %v557, 2
        %v1745 = vmul.f32 %v977, %v1741
        %v1746 = vmul.f32 %v975, %v1742
        %v1747 = vmul.f32 %v973, %v1743
        %v1748 = vmul.f32 %v979, %v1744
        %v1749 = vmul.f32 %v978, %v1741
        %v1750 = vmul.f32 %v976, %v1742
        %v1751 = vmul.f32 %v974, %v1743
        %v1752 = vmul.f32 %v980, %v1744
        %1753 = vst [vmem:[#allocation2 + $0x480] sm:$0xff] %v1745
        %1754 = vst [vmem:[#allocation2 + $0x488] sm:$0xff] %v1746
        %1755 = vst [vmem:[#allocation2 + $0x490] sm:$0xff] %v1747
        %1756 = vst [vmem:[#allocation2 + $0x498] sm:$0xff] %v1748
        %1757 = vst [vmem:[#allocation2 + $0x4a0] sm:$0xff] %v1749
        %1758 = vst [vmem:[#allocation2 + $0x4a8] sm:$0xff] %v1750
        %1759 = vst [vmem:[#allocation2 + $0x4b0] sm:$0xff] %v1751
        %1760 = vst [vmem:[#allocation2 + $0x4b8] sm:$0xff] %v1752
        %v1761 = vperm.slane %v554, 3
        %v1762 = vperm.slane %v555, 3
        %v1763 = vperm.slane %v556, 3
        %v1764 = vperm.slane %v557, 3
        %v1765 = vmul.f32 %v1022, %v1761
        %v1766 = vmul.f32 %v1020, %v1762
        %v1767 = vmul.f32 %v1018, %v1763
        %v1768 = vmul.f32 %v1024, %v1764
        %v1769 = vmul.f32 %v1023, %v1761
        %v1770 = vmul.f32 %v1021, %v1762
        %v1771 = vmul.f32 %v1019, %v1763
        %v1772 = vmul.f32 %v1025, %v1764
        %1773 = vst [vmem:[#allocation2 + $0x4c0] sm:$0xff] %v1765
        %1774 = vst [vmem:[#allocation2 + $0x4c8] sm:$0xff] %v1766
        %1775 = vst [vmem:[#allocation2 + $0x4d0] sm:$0xff] %v1767
        %1776 = vst [vmem:[#allocation2 + $0x4d8] sm:$0xff] %v1768
        %1777 = vst [vmem:[#allocation2 + $0x4e0] sm:$0xff] %v1769
        %1778 = vst [vmem:[#allocation2 + $0x4e8] sm:$0xff] %v1770
        %1779 = vst [vmem:[#allocation2 + $0x4f0] sm:$0xff] %v1771
        %1780 = vst [vmem:[#allocation2 + $0x4f8] sm:$0xff] %v1772
        %v1781 = vperm.slane %v554, 4
        %v1782 = vperm.slane %v555, 4
        %v1783 = vperm.slane %v556, 4
        %v1784 = vperm.slane %v557, 4
        %v1785 = vmul.f32 %v1067, %v1781
        %v1786 = vmul.f32 %v1065, %v1782
        %v1787 = vmul.f32 %v1063, %v1783
        %v1788 = vmul.f32 %v1069, %v1784
        %v1789 = vmul.f32 %v1068, %v1781
        %v1790 = vmul.f32 %v1066, %v1782
        %v1791 = vmul.f32 %v1064, %v1783
        %v1792 = vmul.f32 %v1070, %v1784
        %1793 = vst [vmem:[#allocation2 + $0x500] sm:$0xff] %v1785
        %1794 = vst [vmem:[#allocation2 + $0x508] sm:$0xff] %v1786
        %1795 = vst [vmem:[#allocation2 + $0x510] sm:$0xff] %v1787
        %1796 = vst [vmem:[#allocation2 + $0x518] sm:$0xff] %v1788
        %1797 = vst [vmem:[#allocation2 + $0x520] sm:$0xff] %v1789
        %1798 = vst [vmem:[#allocation2 + $0x528] sm:$0xff] %v1790
        %1799 = vst [vmem:[#allocation2 + $0x530] sm:$0xff] %v1791
        %1800 = vst [vmem:[#allocation2 + $0x538] sm:$0xff] %v1792
        %v1801 = vperm.slane %v554, 5
        %v1802 = vperm.slane %v555, 5
        %v1803 = vperm.slane %v556, 5
        %v1804 = vperm.slane %v557, 5
        %v1805 = vmul.f32 %v1112, %v1801
        %v1806 = vmul.f32 %v1110, %v1802
        %v1807 = vmul.f32 %v1108, %v1803
        %v1808 = vmul.f32 %v1114, %v1804
        %v1809 = vmul.f32 %v1113, %v1801
        %v1810 = vmul.f32 %v1111, %v1802
        %v1811 = vmul.f32 %v1109, %v1803
        %v1812 = vmul.f32 %v1115, %v1804
        %1813 = vst [vmem:[#allocation2 + $0x540] sm:$0xff] %v1805
        %1814 = vst [vmem:[#allocation2 + $0x548] sm:$0xff] %v1806
        %1815 = vst [vmem:[#allocation2 + $0x550] sm:$0xff] %v1807
        %1816 = vst [vmem:[#allocation2 + $0x558] sm:$0xff] %v1808
        %1817 = vst [vmem:[#allocation2 + $0x560] sm:$0xff] %v1809
        %1818 = vst [vmem:[#allocation2 + $0x568] sm:$0xff] %v1810
        %1819 = vst [vmem:[#allocation2 + $0x570] sm:$0xff] %v1811
        %1820 = vst [vmem:[#allocation2 + $0x578] sm:$0xff] %v1812
        %v1821 = vperm.slane %v554, 6
        %v1822 = vperm.slane %v555, 6
        %v1823 = vperm.slane %v556, 6
        %v1824 = vperm.slane %v557, 6
        %v1825 = vmul.f32 %v1157, %v1821
        %v1826 = vmul.f32 %v1155, %v1822
        %v1827 = vmul.f32 %v1153, %v1823
        %v1828 = vmul.f32 %v1159, %v1824
        %v1829 = vmul.f32 %v1158, %v1821
        %v1830 = vmul.f32 %v1156, %v1822
        %v1831 = vmul.f32 %v1154, %v1823
        %v1832 = vmul.f32 %v1160, %v1824
        %1833 = vst [vmem:[#allocation2 + $0x580] sm:$0xff] %v1825
        %1834 = vst [vmem:[#allocation2 + $0x588] sm:$0xff] %v1826
        %1835 = vst [vmem:[#allocation2 + $0x590] sm:$0xff] %v1827
        %1836 = vst [vmem:[#allocation2 + $0x598] sm:$0xff] %v1828
        %1837 = vst [vmem:[#allocation2 + $0x5a0] sm:$0xff] %v1829
        %1838 = vst [vmem:[#allocation2 + $0x5a8] sm:$0xff] %v1830
        %1839 = vst [vmem:[#allocation2 + $0x5b0] sm:$0xff] %v1831
        %1840 = vst [vmem:[#allocation2 + $0x5b8] sm:$0xff] %v1832
        %v1841 = vperm.slane %v554, 7
        %v1842 = vperm.slane %v555, 7
        %v1843 = vperm.slane %v556, 7
        %v1844 = vperm.slane %v557, 7
        %v1845 = vmul.f32 %v1202, %v1841
        %v1846 = vmul.f32 %v1200, %v1842
        %v1847 = vmul.f32 %v1198, %v1843
        %v1848 = vmul.f32 %v1204, %v1844
        %v1849 = vmul.f32 %v1203, %v1841
        %v1850 = vmul.f32 %v1201, %v1842
        %v1851 = vmul.f32 %v1199, %v1843
        %v1852 = vmul.f32 %v1205, %v1844
        %1853 = vst [vmem:[#allocation2 + $0x5c0] sm:$0xff] %v1845
        %1854 = vst [vmem:[#allocation2 + $0x5c8] sm:$0xff] %v1846
        %1855 = vst [vmem:[#allocation2 + $0x5d0] sm:$0xff] %v1847
        %1856 = vst [vmem:[#allocation2 + $0x5d8] sm:$0xff] %v1848
        %1857 = vst [vmem:[#allocation2 + $0x5e0] sm:$0xff] %v1849
        %1858 = vst [vmem:[#allocation2 + $0x5e8] sm:$0xff] %v1850
        %1859 = vst [vmem:[#allocation2 + $0x5f0] sm:$0xff] %v1851
        %1860 = vst [vmem:[#allocation2 + $0x5f8] sm:$0xff] %v1852
        %v1861 = vperm.slane %v558, 0
        %v1862 = vperm.slane %v559, 0
        %v1863 = vperm.slane %v560, 0
        %v1864 = vperm.slane %v561, 0
        %v1865 = vmul.f32 %v1247, %v1861
        %v1866 = vmul.f32 %v1245, %v1862
        %v1867 = vmul.f32 %v1243, %v1863
        %v1868 = vmul.f32 %v1249, %v1864
        %v1869 = vmul.f32 %v1248, %v1861
        %v1870 = vmul.f32 %v1246, %v1862
        %v1871 = vmul.f32 %v1244, %v1863
        %v1872 = vmul.f32 %v1250, %v1864
        %1873 = vst [vmem:[#allocation2 + $0x600] sm:$0xff] %v1865
        %1874 = vst [vmem:[#allocation2 + $0x608] sm:$0xff] %v1866
        %1875 = vst [vmem:[#allocation2 + $0x610] sm:$0xff] %v1867
        %1876 = vst [vmem:[#allocation2 + $0x618] sm:$0xff] %v1868
        %1877 = vst [vmem:[#allocation2 + $0x620] sm:$0xff] %v1869
        %1878 = vst [vmem:[#allocation2 + $0x628] sm:$0xff] %v1870
        %1879 = vst [vmem:[#allocation2 + $0x630] sm:$0xff] %v1871
        %1880 = vst [vmem:[#allocation2 + $0x638] sm:$0xff] %v1872
        %v1881 = vperm.slane %v558, 1
        %v1882 = vperm.slane %v559, 1
        %v1883 = vperm.slane %v560, 1
        %v1884 = vperm.slane %v561, 1
        %v1885 = vmul.f32 %v1292, %v1881
        %v1886 = vmul.f32 %v1290, %v1882
        %v1887 = vmul.f32 %v1288, %v1883
        %v1888 = vmul.f32 %v1294, %v1884
        %v1889 = vmul.f32 %v1293, %v1881
        %v1890 = vmul.f32 %v1291, %v1882
        %v1891 = vmul.f32 %v1289, %v1883
        %v1892 = vmul.f32 %v1295, %v1884
        %1893 = vst [vmem:[#allocation2 + $0x640] sm:$0xff] %v1885
        %1894 = vst [vmem:[#allocation2 + $0x648] sm:$0xff] %v1886
        %1895 = vst [vmem:[#allocation2 + $0x650] sm:$0xff] %v1887
        %1896 = vst [vmem:[#allocation2 + $0x658] sm:$0xff] %v1888
        %1897 = vst [vmem:[#allocation2 + $0x660] sm:$0xff] %v1889
        %1898 = vst [vmem:[#allocation2 + $0x668] sm:$0xff] %v1890
        %1899 = vst [vmem:[#allocation2 + $0x670] sm:$0xff] %v1891
        %1900 = vst [vmem:[#allocation2 + $0x678] sm:$0xff] %v1892
        %v1901 = vperm.slane %v558, 2
        %v1902 = vperm.slane %v559, 2
        %v1903 = vperm.slane %v560, 2
        %v1904 = vperm.slane %v561, 2
        %v1905 = vmul.f32 %v1337, %v1901
        %v1906 = vmul.f32 %v1335, %v1902
        %v1907 = vmul.f32 %v1333, %v1903
        %v1908 = vmul.f32 %v1339, %v1904
        %v1909 = vmul.f32 %v1338, %v1901
        %v1910 = vmul.f32 %v1336, %v1902
        %v1911 = vmul.f32 %v1334, %v1903
        %v1912 = vmul.f32 %v1340, %v1904
        %1913 = vst [vmem:[#allocation2 + $0x680] sm:$0xff] %v1905
        %1914 = vst [vmem:[#allocation2 + $0x688] sm:$0xff] %v1906
        %1915 = vst [vmem:[#allocation2 + $0x690] sm:$0xff] %v1907
        %1916 = vst [vmem:[#allocation2 + $0x698] sm:$0xff] %v1908
        %1917 = vst [vmem:[#allocation2 + $0x6a0] sm:$0xff] %v1909
        %1918 = vst [vmem:[#allocation2 + $0x6a8] sm:$0xff] %v1910
        %1919 = vst [vmem:[#allocation2 + $0x6b0] sm:$0xff] %v1911
        %1920 = vst [vmem:[#allocation2 + $0x6b8] sm:$0xff] %v1912
        %v1921 = vld [vmem:[#allocation2] sm:$0xff]
        %v1922 = vld [vmem:[#allocation2 + $0x8] sm:$0xff]
        %v1923 = vld [vmem:[#allocation2 + $0x10] sm:$0xff]
        %v1924 = vld [vmem:[#allocation2 + $0x18] sm:$0xff]
        %v1925 = vld [vmem:[#allocation2 + $0x20] sm:$0xff]
        %v1926 = vld [vmem:[#allocation2 + $0x28] sm:$0xff]
        %v1927 = vld [vmem:[#allocation2 + $0x30] sm:$0xff]
        %v1928 = vld [vmem:[#allocation2 + $0x38] sm:$0xff]
        %v1929 = vld [vmem:[#allocation2 + $0x40] sm:$0xff]
        %v1930 = vld [vmem:[#allocation2 + $0x48] sm:$0xff]
        %v1931 = vld [vmem:[#allocation2 + $0x50] sm:$0xff]
        %v1932 = vld [vmem:[#allocation2 + $0x58] sm:$0xff]
        %v1933 = vld [vmem:[#allocation2 + $0x60] sm:$0xff]
        %v1934 = vld [vmem:[#allocation2 + $0x68] sm:$0xff]
        %v1935 = vld [vmem:[#allocation2 + $0x70] sm:$0xff]
        %v1936 = vld [vmem:[#allocation2 + $0x78] sm:$0xff]
        %v1937 = vld [vmem:[#allocation2 + $0x80] sm:$0xff]
        %v1938 = vld [vmem:[#allocation2 + $0x88] sm:$0xff]
        %v1939 = vld [vmem:[#allocation2 + $0x90] sm:$0xff]
        %v1940 = vld [vmem:[#allocation2 + $0x98] sm:$0xff]
        %v1941 = vld [vmem:[#allocation2 + $0xa0] sm:$0xff]
        %v1942 = vld [vmem:[#allocation2 + $0xa8] sm:$0xff]
        %v1943 = vld [vmem:[#allocation2 + $0xb0] sm:$0xff]
        %v1944 = vld [vmem:[#allocation2 + $0xb8] sm:$0xff]
        %v1945 = vld [vmem:[#allocation2 + $0xc0] sm:$0xff]
        %v1946 = vld [vmem:[#allocation2 + $0xc8] sm:$0xff]
        %v1947 = vld [vmem:[#allocation2 + $0xd0] sm:$0xff]
        %v1948 = vld [vmem:[#allocation2 + $0xd8] sm:$0xff]
        %v1949 = vld [vmem:[#allocation2 + $0xe0] sm:$0xff]
        %v1950 = vld [vmem:[#allocation2 + $0xe8] sm:$0xff]
        %v1951 = vld [vmem:[#allocation2 + $0xf0] sm:$0xff]
        %v1952 = vld [vmem:[#allocation2 + $0xf8] sm:$0xff]
        %v1953 = vld [vmem:[#allocation2 + $0x100] sm:$0xff]
        %v1954 = vld [vmem:[#allocation2 + $0x108] sm:$0xff]
        %v1955 = vld [vmem:[#allocation2 + $0x110] sm:$0xff]
        %v1956 = vld [vmem:[#allocation2 + $0x118] sm:$0xff]
        %v1957 = vld [vmem:[#allocation2 + $0x120] sm:$0xff]
        %v1958 = vld [vmem:[#allocation2 + $0x128] sm:$0xff]
        %v1959 = vld [vmem:[#allocation2 + $0x130] sm:$0xff]
        %v1960 = vld [vmem:[#allocation2 + $0x138] sm:$0xff]
        %v1961 = vld [vmem:[#allocation2 + $0x140] sm:$0xff]
        %v1962 = vld [vmem:[#allocation2 + $0x148] sm:$0xff]
        %v1963 = vld [vmem:[#allocation2 + $0x150] sm:$0xff]
        %v1964 = vld [vmem:[#allocation2 + $0x158] sm:$0xff]
        %v1965 = vld [vmem:[#allocation2 + $0x160] sm:$0xff]
        %v1966 = vld [vmem:[#allocation2 + $0x168] sm:$0xff]
        %v1967 = vld [vmem:[#allocation2 + $0x170] sm:$0xff]
        %v1968 = vld [vmem:[#allocation2 + $0x178] sm:$0xff]
        %v1969 = vld [vmem:[#allocation2 + $0x180] sm:$0xff]
        %v1970 = vld [vmem:[#allocation2 + $0x188] sm:$0xff]
        %v1971 = vld [vmem:[#allocation2 + $0x190] sm:$0xff]
        %v1972 = vld [vmem:[#allocation2 + $0x198] sm:$0xff]
        %v1973 = vld [vmem:[#allocation2 + $0x1a0] sm:$0xff]
        %v1974 = vld [vmem:[#allocation2 + $0x1a8] sm:$0xff]
        %v1975 = vld [vmem:[#allocation2 + $0x1b0] sm:$0xff]
        %v1976 = vld [vmem:[#allocation2 + $0x1b8] sm:$0xff]
        %v1977 = vld [vmem:[#allocation2 + $0x1c0] sm:$0xff]
        %v1978 = vld [vmem:[#allocation2 + $0x1c8] sm:$0xff]
        %v1979 = vld [vmem:[#allocation2 + $0x1d0] sm:$0xff]
        %v1980 = vld [vmem:[#allocation2 + $0x1d8] sm:$0xff]
        %v1981 = vld [vmem:[#allocation2 + $0x1e0] sm:$0xff]
        %v1982 = vld [vmem:[#allocation2 + $0x1e8] sm:$0xff]
        %v1983 = vld [vmem:[#allocation2 + $0x1f0] sm:$0xff]
        %v1984 = vld [vmem:[#allocation2 + $0x1f8] sm:$0xff]
        %v1985 = vld [vmem:[#allocation2 + $0x200] sm:$0xff]
        %v1986 = vld [vmem:[#allocation2 + $0x208] sm:$0xff]
        %v1987 = vld [vmem:[#allocation2 + $0x210] sm:$0xff]
        %v1988 = vld [vmem:[#allocation2 + $0x218] sm:$0xff]
        %v1989 = vld [vmem:[#allocation2 + $0x220] sm:$0xff]
        %v1990 = vld [vmem:[#allocation2 + $0x228] sm:$0xff]
        %v1991 = vld [vmem:[#allocation2 + $0x230] sm:$0xff]
        %v1992 = vld [vmem:[#allocation2 + $0x238] sm:$0xff]
        %v1993 = vld [vmem:[#allocation2 + $0x240] sm:$0xff]
        %v1994 = vld [vmem:[#allocation2 + $0x248] sm:$0xff]
        %v1995 = vld [vmem:[#allocation2 + $0x250] sm:$0xff]
        %v1996 = vld [vmem:[#allocation2 + $0x258] sm:$0xff]
        %v1997 = vld [vmem:[#allocation2 + $0x260] sm:$0xff]
        %v1998 = vld [vmem:[#allocation2 + $0x268] sm:$0xff]
        %v1999 = vld [vmem:[#allocation2 + $0x270] sm:$0xff]
        %v2000 = vld [vmem:[#allocation2 + $0x278] sm:$0xff]
        %v2001 = vld [vmem:[#allocation2 + $0x280] sm:$0xff]
        %v2002 = vld [vmem:[#allocation2 + $0x288] sm:$0xff]
        %v2003 = vld [vmem:[#allocation2 + $0x290] sm:$0xff]
        %v2004 = vld [vmem:[#allocation2 + $0x298] sm:$0xff]
        %v2005 = vld [vmem:[#allocation2 + $0x2a0] sm:$0xff]
        %v2006 = vld [vmem:[#allocation2 + $0x2a8] sm:$0xff]
        %v2007 = vld [vmem:[#allocation2 + $0x2b0] sm:$0xff]
        %v2008 = vld [vmem:[#allocation2 + $0x2b8] sm:$0xff]
        %v2009 = vld [vmem:[#allocation2 + $0x2c0] sm:$0xff]
        %v2010 = vld [vmem:[#allocation2 + $0x2c8] sm:$0xff]
        %v2011 = vld [vmem:[#allocation2 + $0x2d0] sm:$0xff]
        %v2012 = vld [vmem:[#allocation2 + $0x2d8] sm:$0xff]
        %v2013 = vld [vmem:[#allocation2 + $0x2e0] sm:$0xff]
        %v2014 = vld [vmem:[#allocation2 + $0x2e8] sm:$0xff]
        %v2015 = vld [vmem:[#allocation2 + $0x2f0] sm:$0xff]
        %v2016 = vld [vmem:[#allocation2 + $0x2f8] sm:$0xff]
        %v2017 = vld [vmem:[#allocation2 + $0x300] sm:$0xff]
        %v2018 = vld [vmem:[#allocation2 + $0x308] sm:$0xff]
        %v2019 = vld [vmem:[#allocation2 + $0x310] sm:$0xff]
        %v2020 = vld [vmem:[#allocation2 + $0x318] sm:$0xff]
        %v2021 = vld [vmem:[#allocation2 + $0x320] sm:$0xff]
        %v2022 = vld [vmem:[#allocation2 + $0x328] sm:$0xff]
        %v2023 = vld [vmem:[#allocation2 + $0x330] sm:$0xff]
        %v2024 = vld [vmem:[#allocation2 + $0x338] sm:$0xff]
        %v2025 = vld [vmem:[#allocation2 + $0x340] sm:$0xff]
        %v2026 = vld [vmem:[#allocation2 + $0x348] sm:$0xff]
        %v2027 = vld [vmem:[#allocation2 + $0x350] sm:$0xff]
        %v2028 = vld [vmem:[#allocation2 + $0x358] sm:$0xff]
        %v2029 = vld [vmem:[#allocation2 + $0x360] sm:$0xff]
        %v2030 = vld [vmem:[#allocation2 + $0x368] sm:$0xff]
        %v2031 = vld [vmem:[#allocation2 + $0x370] sm:$0xff]
        %v2032 = vld [vmem:[#allocation2 + $0x378] sm:$0xff]
        %v2033 = vld [vmem:[#allocation2 + $0x380] sm:$0xff]
        %v2034 = vld [vmem:[#allocation2 + $0x388] sm:$0xff]
        %v2035 = vld [vmem:[#allocation2 + $0x390] sm:$0xff]
        %v2036 = vld [vmem:[#allocation2 + $0x398] sm:$0xff]
        %v2037 = vld [vmem:[#allocation2 + $0x3a0] sm:$0xff]
        %v2038 = vld [vmem:[#allocation2 + $0x3a8] sm:$0xff]
        %v2039 = vld [vmem:[#allocation2 + $0x3b0] sm:$0xff]
        %v2040 = vld [vmem:[#allocation2 + $0x3b8] sm:$0xff]
        %v2041 = vld [vmem:[#allocation2 + $0x3c0] sm:$0xff]
        %v2042 = vld [vmem:[#allocation2 + $0x3c8] sm:$0xff]
        %v2043 = vld [vmem:[#allocation2 + $0x3d0] sm:$0xff]
        %v2044 = vld [vmem:[#allocation2 + $0x3d8] sm:$0xff]
        %v2045 = vld [vmem:[#allocation2 + $0x3e0] sm:$0xff]
        %v2046 = vld [vmem:[#allocation2 + $0x3e8] sm:$0xff]
        %v2047 = vld [vmem:[#allocation2 + $0x3f0] sm:$0xff]
        %v2048 = vld [vmem:[#allocation2 + $0x3f8] sm:$0xff]
        %v2049 = vld [vmem:[#allocation2 + $0x400] sm:$0xff]
        %v2050 = vld [vmem:[#allocation2 + $0x408] sm:$0xff]
        %v2051 = vld [vmem:[#allocation2 + $0x410] sm:$0xff]
        %v2052 = vld [vmem:[#allocation2 + $0x418] sm:$0xff]
        %v2053 = vld [vmem:[#allocation2 + $0x420] sm:$0xff]
        %v2054 = vld [vmem:[#allocation2 + $0x428] sm:$0xff]
        %v2055 = vld [vmem:[#allocation2 + $0x430] sm:$0xff]
        %v2056 = vld [vmem:[#allocation2 + $0x438] sm:$0xff]
        %v2057 = vld [vmem:[#allocation2 + $0x440] sm:$0xff]
        %v2058 = vld [vmem:[#allocation2 + $0x448] sm:$0xff]
        %v2059 = vld [vmem:[#allocation2 + $0x450] sm:$0xff]
        %v2060 = vld [vmem:[#allocation2 + $0x458] sm:$0xff]
        %v2061 = vld [vmem:[#allocation2 + $0x460] sm:$0xff]
        %v2062 = vld [vmem:[#allocation2 + $0x468] sm:$0xff]
        %v2063 = vld [vmem:[#allocation2 + $0x470] sm:$0xff]
        %v2064 = vld [vmem:[#allocation2 + $0x478] sm:$0xff]
        %v2065 = vld [vmem:[#allocation2 + $0x480] sm:$0xff]
        %v2066 = vld [vmem:[#allocation2 + $0x488] sm:$0xff]
        %v2067 = vld [vmem:[#allocation2 + $0x490] sm:$0xff]
        %v2068 = vld [vmem:[#allocation2 + $0x498] sm:$0xff]
        %v2069 = vld [vmem:[#allocation2 + $0x4a0] sm:$0xff]
        %v2070 = vld [vmem:[#allocation2 + $0x4a8] sm:$0xff]
        %v2071 = vld [vmem:[#allocation2 + $0x4b0] sm:$0xff]
        %v2072 = vld [vmem:[#allocation2 + $0x4b8] sm:$0xff]
        %v2073 = vld [vmem:[#allocation2 + $0x4c0] sm:$0xff]
        %v2074 = vld [vmem:[#allocation2 + $0x4c8] sm:$0xff]
        %v2075 = vld [vmem:[#allocation2 + $0x4d0] sm:$0xff]
        %v2076 = vld [vmem:[#allocation2 + $0x4d8] sm:$0xff]
        %v2077 = vld [vmem:[#allocation2 + $0x4e0] sm:$0xff]
        %v2078 = vld [vmem:[#allocation2 + $0x4e8] sm:$0xff]
        %v2079 = vld [vmem:[#allocation2 + $0x4f0] sm:$0xff]
        %v2080 = vld [vmem:[#allocation2 + $0x4f8] sm:$0xff]
        %v2081 = vld [vmem:[#allocation2 + $0x500] sm:$0xff]
        %v2082 = vld [vmem:[#allocation2 + $0x508] sm:$0xff]
        %v2083 = vld [vmem:[#allocation2 + $0x510] sm:$0xff]
        %v2084 = vld [vmem:[#allocation2 + $0x518] sm:$0xff]
        %v2085 = vld [vmem:[#allocation2 + $0x520] sm:$0xff]
        %v2086 = vld [vmem:[#allocation2 + $0x528] sm:$0xff]
        %v2087 = vld [vmem:[#allocation2 + $0x530] sm:$0xff]
        %v2088 = vld [vmem:[#allocation2 + $0x538] sm:$0xff]
        %v2089 = vld [vmem:[#allocation2 + $0x540] sm:$0xff]
        %v2090 = vld [vmem:[#allocation2 + $0x548] sm:$0xff]
        %v2091 = vld [vmem:[#allocation2 + $0x550] sm:$0xff]
        %v2092 = vld [vmem:[#allocation2 + $0x558] sm:$0xff]
        %v2093 = vld [vmem:[#allocation2 + $0x560] sm:$0xff]
        %v2094 = vld [vmem:[#allocation2 + $0x568] sm:$0xff]
        %v2095 = vld [vmem:[#allocation2 + $0x570] sm:$0xff]
        %v2096 = vld [vmem:[#allocation2 + $0x578] sm:$0xff]
        %v2097 = vld [vmem:[#allocation2 + $0x580] sm:$0xff]
        %v2098 = vld [vmem:[#allocation2 + $0x588] sm:$0xff]
        %v2099 = vld [vmem:[#allocation2 + $0x590] sm:$0xff]
        %v2100 = vld [vmem:[#allocation2 + $0x598] sm:$0xff]
        %v2101 = vld [vmem:[#allocation2 + $0x5a0] sm:$0xff]
        %v2102 = vld [vmem:[#allocation2 + $0x5a8] sm:$0xff]
        %v2103 = vld [vmem:[#allocation2 + $0x5b0] sm:$0xff]
        %v2104 = vld [vmem:[#allocation2 + $0x5b8] sm:$0xff]
        %v2105 = vld [vmem:[#allocation2 + $0x5c0] sm:$0xff]
        %v2106 = vld [vmem:[#allocation2 + $0x5c8] sm:$0xff]
        %v2107 = vld [vmem:[#allocation2 + $0x5d0] sm:$0xff]
        %v2108 = vld [vmem:[#allocation2 + $0x5d8] sm:$0xff]
        %v2109 = vld [vmem:[#allocation2 + $0x5e0] sm:$0xff]
        %v2110 = vld [vmem:[#allocation2 + $0x5e8] sm:$0xff]
        %v2111 = vld [vmem:[#allocation2 + $0x5f0] sm:$0xff]
        %v2112 = vld [vmem:[#allocation2 + $0x5f8] sm:$0xff]
        %v2113 = vld [vmem:[#allocation2 + $0x600] sm:$0xff]
        %v2114 = vld [vmem:[#allocation2 + $0x608] sm:$0xff]
        %v2115 = vld [vmem:[#allocation2 + $0x610] sm:$0xff]
        %v2116 = vld [vmem:[#allocation2 + $0x618] sm:$0xff]
        %v2117 = vld [vmem:[#allocation2 + $0x620] sm:$0xff]
        %v2118 = vld [vmem:[#allocation2 + $0x628] sm:$0xff]
        %v2119 = vld [vmem:[#allocation2 + $0x630] sm:$0xff]
        %v2120 = vld [vmem:[#allocation2 + $0x638] sm:$0xff]
        %v2121 = vld [vmem:[#allocation2 + $0x640] sm:$0xff]
        %v2122 = vld [vmem:[#allocation2 + $0x648] sm:$0xff]
        %v2123 = vld [vmem:[#allocation2 + $0x650] sm:$0xff]
        %v2124 = vld [vmem:[#allocation2 + $0x658] sm:$0xff]
        %v2125 = vld [vmem:[#allocation2 + $0x660] sm:$0xff]
        %v2126 = vld [vmem:[#allocation2 + $0x668] sm:$0xff]
        %v2127 = vld [vmem:[#allocation2 + $0x670] sm:$0xff]
        %v2128 = vld [vmem:[#allocation2 + $0x678] sm:$0xff]
        %v2129 = vld [vmem:[#allocation2 + $0x680] sm:$0xff]
        %v2130 = vld [vmem:[#allocation2 + $0x688] sm:$0xff]
        %v2131 = vld [vmem:[#allocation2 + $0x690] sm:$0xff]
        %v2132 = vld [vmem:[#allocation2 + $0x698] sm:$0xff]
        %v2133 = vld [vmem:[#allocation2 + $0x6a0] sm:$0xff]
        %v2134 = vld [vmem:[#allocation2 + $0x6a8] sm:$0xff]
        %v2135 = vld [vmem:[#allocation2 + $0x6b0] sm:$0xff]
        %v2136 = vld [vmem:[#allocation2 + $0x6b8] sm:$0xff]
        %v2137 = vld [vmem:[#allocation8] sm:$0xff]
        %v2138 = vld [vmem:[#allocation8 + $0x8] sm:$0xff]
        %v2139 = vld [vmem:[#allocation8 + $0x10] sm:$0xff]
        %v2140 = vld [vmem:[#allocation8 + $0x18] sm:$0xff]
        %v2141 = vld [vmem:[#allocation8 + $0x20] sm:$0xff]
        %v2142 = vld [vmem:[#allocation8 + $0x28] sm:$0xff]
        %v2143 = vld [vmem:[#allocation8 + $0x30] sm:$0xff]
        %v2144 = vld [vmem:[#allocation8 + $0x38] sm:$0xff]
        %v2145 = vld [vmem:[#allocation8 + $0x40] sm:$0xff]
        %v2146 = vld [vmem:[#allocation8 + $0x48] sm:$0xff]
        %v2147 = vld [vmem:[#allocation8 + $0x50] sm:$0xff]
        %v2148 = vld [vmem:[#allocation8 + $0x58] sm:$0xff]
        %v2149 = vld [vmem:[#allocation8 + $0x60] sm:$0xff]
        %v2150 = vld [vmem:[#allocation8 + $0x68] sm:$0xff]
        %v2151 = vld [vmem:[#allocation8 + $0x70] sm:$0xff]
        %v2152 = vld [vmem:[#allocation8 + $0x78] sm:$0xff]
        %2154 = vset.pattern.permute.xlu0 0
        %2155 = vperm.xlu0 %2154, %v950
        %v2156 = vpop.permute.xlu0 %2155
        %2159 = vset.pattern.permute.xlu0 0
        %2160 = vperm.xlu0 %2159, %v951
        %v2161 = vpop.permute.xlu0 %2160
        %2164 = vset.pattern.permute.xlu0 0
        %2165 = vperm.xlu0 %2164, %v952
        %v2166 = vpop.permute.xlu0 %2165
        %2169 = vset.pattern.permute.xlu0 0
        %2170 = vperm.xlu0 %2169, %v953
        %v2171 = vpop.permute.xlu0 %2170
        %vm2173 = vcmask 392192
        %v2175 = vsel %vm2173, %v2140, 0
        %v2178 = vsel %vm2173, %v2144, 0
        %v2181 = vsel %vm2173, %v2148, 0
        %v2184 = vsel %vm2173, %v2152, 0
        %2186 = vmatpush.msra.mxu0 %v1981
        %2187 = vmatpush.msra.mxu0 %v1977
        %2188 = vmatpush.msra.mxu0 %v1973
        %2189 = vmatpush.msra.mxu0 %v1969
        %2190 = vmatpush.msra.mxu0 %v1965
        %2191 = vmatpush.msra.mxu0 %v1961
        %2192 = vmatpush.msra.mxu0 %v1957
        %2193 = vmatpush.msra.mxu0 %v1953
        %2194 = vmatpush.msra.mxu0 %v1949
        %2195 = vmatpush.msra.mxu0 %v1945
        %2196 = vmatpush.msra.mxu0 %v1941
        %2197 = vmatpush.msra.mxu0 %v1937
        %2198 = vmatpush.msra.mxu0 %v1933
        %2199 = vmatpush.msra.mxu0 %v1929
        %2200 = vmatpush.msra.mxu0 %v1925
        %2201 = vmatpush.msra.mxu0 %v1921
        %2202 = vmatmul.f32.gmra.mxu0 %v2137
        %v2203 = vpop.f32.mrf.mxu0
        %v2204 = vadd.f32 %v2156, %v2203
        %2205 = vmatmul.f32.gmra.mxu0 %v2141
        %v2206 = vpop.f32.mrf.mxu0
        %v2207 = vadd.f32 %v2161, %v2206
        %2208 = vmatmul.f32.gmra.mxu0 %v2145
        %v2209 = vpop.f32.mrf.mxu0
        %v2210 = vadd.f32 %v2166, %v2209
        %2211 = vmatmul.f32.gmra.mxu0 %v2149
        %v2212 = vpop.f32.mrf.mxu0
        %v2213 = vadd.f32 %v2171, %v2212
        %2214 = vdwg.mxu0
        %2215 = vmatpush.msra.mxu0 %v2045
        %2216 = vmatpush.msra.mxu0 %v2041
        %2217 = vmatpush.msra.mxu0 %v2037
        %2218 = vmatpush.msra.mxu0 %v2033
        %2219 = vmatpush.msra.mxu0 %v2029
        %2220 = vmatpush.msra.mxu0 %v2025
        %2221 = vmatpush.msra.mxu0 %v2021
        %2222 = vmatpush.msra.mxu0 %v2017
        %2223 = vmatpush.msra.mxu0 %v2013
        %2224 = vmatpush.msra.mxu0 %v2009
        %2225 = vmatpush.msra.mxu0 %v2005
        %2226 = vmatpush.msra.mxu0 %v2001
        %2227 = vmatpush.msra.mxu0 %v1997
        %2228 = vmatpush.msra.mxu0 %v1993
        %2229 = vmatpush.msra.mxu0 %v1989
        %2230 = vmatpush.msra.mxu0 %v1985
        %2231 = vmatmul.f32.gmra.mxu0 %v2138
        %v2232 = vpop.f32.mrf.mxu0
        %v2233 = vadd.f32 %v2204, %v2232
        %2234 = vmatmul.f32.gmra.mxu0 %v2142
        %v2235 = vpop.f32.mrf.mxu0
        %v2236 = vadd.f32 %v2207, %v2235
        %2237 = vmatmul.f32.gmra.mxu0 %v2146
        %v2238 = vpop.f32.mrf.mxu0
        %v2239 = vadd.f32 %v2210, %v2238
        %2240 = vmatmul.f32.gmra.mxu0 %v2150
        %v2241 = vpop.f32.mrf.mxu0
        %v2242 = vadd.f32 %v2213, %v2241
        %2243 = vdwg.mxu0
        %2244 = vmatpush.msra.mxu0 %v2109
        %2245 = vmatpush.msra.mxu0 %v2105
        %2246 = vmatpush.msra.mxu0 %v2101
        %2247 = vmatpush.msra.mxu0 %v2097
        %2248 = vmatpush.msra.mxu0 %v2093
        %2249 = vmatpush.msra.mxu0 %v2089
        %2250 = vmatpush.msra.mxu0 %v2085
        %2251 = vmatpush.msra.mxu0 %v2081
        %2252 = vmatpush.msra.mxu0 %v2077
        %2253 = vmatpush.msra.mxu0 %v2073
        %2254 = vmatpush.msra.mxu0 %v2069
        %2255 = vmatpush.msra.mxu0 %v2065
        %2256 = vmatpush.msra.mxu0 %v2061
        %2257 = vmatpush.msra.mxu0 %v2057
        %2258 = vmatpush.msra.mxu0 %v2053
        %2259 = vmatpush.msra.mxu0 %v2049
        %2260 = vmatmul.f32.gmra.mxu0 %v2139
        %v2261 = vpop.f32.mrf.mxu0
        %v2262 = vadd.f32 %v2233, %v2261
        %2263 = vmatmul.f32.gmra.mxu0 %v2143
        %v2264 = vpop.f32.mrf.mxu0
        %v2265 = vadd.f32 %v2236, %v2264
        %2266 = vmatmul.f32.gmra.mxu0 %v2147
        %v2267 = vpop.f32.mrf.mxu0
        %v2268 = vadd.f32 %v2239, %v2267
        %2269 = vmatmul.f32.gmra.mxu0 %v2151
        %v2270 = vpop.f32.mrf.mxu0
        %v2271 = vadd.f32 %v2242, %v2270
        %2272 = vdwg.mxu0
        %2273 = vmatpush.msra.mxu0 0.0
        %2274 = vmatpush.msra.mxu0 0.0
        %2275 = vmatpush.msra.mxu0 0.0
        %2276 = vmatpush.msra.mxu0 0.0
        %2277 = vmatpush.msra.mxu0 0.0
        %2278 = vmatpush.msra.mxu0 0.0
        %2279 = vmatpush.msra.mxu0 0.0
        %2280 = vmatpush.msra.mxu0 0.0
        %2281 = vmatpush.msra.mxu0 0.0
        %2282 = vmatpush.msra.mxu0 0.0
        %2283 = vmatpush.msra.mxu0 %v2133
        %2284 = vmatpush.msra.mxu0 %v2129
        %2285 = vmatpush.msra.mxu0 %v2125
        %2286 = vmatpush.msra.mxu0 %v2121
        %2287 = vmatpush.msra.mxu0 %v2117
        %2288 = vmatpush.msra.mxu0 %v2113
        %2289 = vmatmul.f32.gmra.mxu0 %v2175
        %v2290 = vpop.f32.mrf.mxu0
        %v2291 = vadd.f32 %v2262, %v2290
        %2292 = vmatmul.f32.gmra.mxu0 %v2178
        %v2293 = vpop.f32.mrf.mxu0
        %v2294 = vadd.f32 %v2265, %v2293
        %2295 = vmatmul.f32.gmra.mxu0 %v2181
        %v2296 = vpop.f32.mrf.mxu0
        %v2297 = vadd.f32 %v2268, %v2296
        %2298 = vmatmul.f32.gmra.mxu0 %v2184
        %v2299 = vpop.f32.mrf.mxu0
        %v2300 = vadd.f32 %v2271, %v2299
        %2301 = vdwg.mxu0
        %2302 = vmatpush.msra.mxu0 %v1982
        %2303 = vmatpush.msra.mxu0 %v1978
        %2304 = vmatpush.msra.mxu0 %v1974
        %2305 = vmatpush.msra.mxu0 %v1970
        %2306 = vmatpush.msra.mxu0 %v1966
        %2307 = vmatpush.msra.mxu0 %v1962
        %2308 = vmatpush.msra.mxu0 %v1958
        %2309 = vmatpush.msra.mxu0 %v1954
        %2310 = vmatpush.msra.mxu0 %v1950
        %2311 = vmatpush.msra.mxu0 %v1946
        %2312 = vmatpush.msra.mxu0 %v1942
        %2313 = vmatpush.msra.mxu0 %v1938
        %2314 = vmatpush.msra.mxu0 %v1934
        %2315 = vmatpush.msra.mxu0 %v1930
        %2316 = vmatpush.msra.mxu0 %v1926
        %2317 = vmatpush.msra.mxu0 %v1922
        %2318 = vmatmul.f32.gmra.mxu0 %v2137
        %v2319 = vpop.f32.mrf.mxu0
        %v2320 = vadd.f32 %v2156, %v2319
        %2321 = vmatmul.f32.gmra.mxu0 %v2141
        %v2322 = vpop.f32.mrf.mxu0
        %v2323 = vadd.f32 %v2161, %v2322
        %2324 = vmatmul.f32.gmra.mxu0 %v2145
        %v2325 = vpop.f32.mrf.mxu0
        %v2326 = vadd.f32 %v2166, %v2325
        %2327 = vmatmul.f32.gmra.mxu0 %v2149
        %v2328 = vpop.f32.mrf.mxu0
        %v2329 = vadd.f32 %v2171, %v2328
        %2330 = vdwg.mxu0
        %2331 = vmatpush.msra.mxu0 %v2046
        %2332 = vmatpush.msra.mxu0 %v2042
        %2333 = vmatpush.msra.mxu0 %v2038
        %2334 = vmatpush.msra.mxu0 %v2034
        %2335 = vmatpush.msra.mxu0 %v2030
        %2336 = vmatpush.msra.mxu0 %v2026
        %2337 = vmatpush.msra.mxu0 %v2022
        %2338 = vmatpush.msra.mxu0 %v2018
        %2339 = vmatpush.msra.mxu0 %v2014
        %2340 = vmatpush.msra.mxu0 %v2010
        %2341 = vmatpush.msra.mxu0 %v2006
        %2342 = vmatpush.msra.mxu0 %v2002
        %2343 = vmatpush.msra.mxu0 %v1998
        %2344 = vmatpush.msra.mxu0 %v1994
        %2345 = vmatpush.msra.mxu0 %v1990
        %2346 = vmatpush.msra.mxu0 %v1986
        %2347 = vmatmul.f32.gmra.mxu0 %v2138
        %v2348 = vpop.f32.mrf.mxu0
        %v2349 = vadd.f32 %v2320, %v2348
        %2350 = vmatmul.f32.gmra.mxu0 %v2142
        %v2351 = vpop.f32.mrf.mxu0
        %v2352 = vadd.f32 %v2323, %v2351
        %2353 = vmatmul.f32.gmra.mxu0 %v2146
        %v2354 = vpop.f32.mrf.mxu0
        %v2355 = vadd.f32 %v2326, %v2354
        %2356 = vmatmul.f32.gmra.mxu0 %v2150
        %v2357 = vpop.f32.mrf.mxu0
        %v2358 = vadd.f32 %v2329, %v2357
        %2359 = vdwg.mxu0
        %2360 = vmatpush.msra.mxu0 %v2110
        %2361 = vmatpush.msra.mxu0 %v2106
        %2362 = vmatpush.msra.mxu0 %v2102
        %2363 = vmatpush.msra.mxu0 %v2098
        %2364 = vmatpush.msra.mxu0 %v2094
        %2365 = vmatpush.msra.mxu0 %v2090
        %2366 = vmatpush.msra.mxu0 %v2086
        %2367 = vmatpush.msra.mxu0 %v2082
        %2368 = vmatpush.msra.mxu0 %v2078
        %2369 = vmatpush.msra.mxu0 %v2074
        %2370 = vmatpush.msra.mxu0 %v2070
        %2371 = vmatpush.msra.mxu0 %v2066
        %2372 = vmatpush.msra.mxu0 %v2062
        %2373 = vmatpush.msra.mxu0 %v2058
        %2374 = vmatpush.msra.mxu0 %v2054
        %2375 = vmatpush.msra.mxu0 %v2050
        %2376 = vmatmul.f32.gmra.mxu0 %v2139
        %v2377 = vpop.f32.mrf.mxu0
        %v2378 = vadd.f32 %v2349, %v2377
        %2379 = vmatmul.f32.gmra.mxu0 %v2143
        %v2380 = vpop.f32.mrf.mxu0
        %v2381 = vadd.f32 %v2352, %v2380
        %2382 = vmatmul.f32.gmra.mxu0 %v2147
        %v2383 = vpop.f32.mrf.mxu0
        %v2384 = vadd.f32 %v2355, %v2383
        %2385 = vmatmul.f32.gmra.mxu0 %v2151
        %v2386 = vpop.f32.mrf.mxu0
        %v2387 = vadd.f32 %v2358, %v2386
        %2388 = vdwg.mxu0
        %2389 = vmatpush.msra.mxu0 0.0
        %2390 = vmatpush.msra.mxu0 0.0
        %2391 = vmatpush.msra.mxu0 0.0
        %2392 = vmatpush.msra.mxu0 0.0
        %2393 = vmatpush.msra.mxu0 0.0
        %2394 = vmatpush.msra.mxu0 0.0
        %2395 = vmatpush.msra.mxu0 0.0
        %2396 = vmatpush.msra.mxu0 0.0
        %2397 = vmatpush.msra.mxu0 0.0
        %2398 = vmatpush.msra.mxu0 0.0
        %2399 = vmatpush.msra.mxu0 %v2134
        %2400 = vmatpush.msra.mxu0 %v2130
        %2401 = vmatpush.msra.mxu0 %v2126
        %2402 = vmatpush.msra.mxu0 %v2122
        %2403 = vmatpush.msra.mxu0 %v2118
        %2404 = vmatpush.msra.mxu0 %v2114
        %2405 = vmatmul.f32.gmra.mxu0 %v2175
        %v2406 = vpop.f32.mrf.mxu0
        %v2407 = vadd.f32 %v2378, %v2406
        %2408 = vmatmul.f32.gmra.mxu0 %v2178
        %v2409 = vpop.f32.mrf.mxu0
        %v2410 = vadd.f32 %v2381, %v2409
        %2411 = vmatmul.f32.gmra.mxu0 %v2181
        %v2412 = vpop.f32.mrf.mxu0
        %v2413 = vadd.f32 %v2384, %v2412
        %2414 = vmatmul.f32.gmra.mxu0 %v2184
        %v2415 = vpop.f32.mrf.mxu0
        %v2416 = vadd.f32 %v2387, %v2415
        %2417 = vdwg.mxu0
        %2418 = vmatpush.msra.mxu0 %v1983
        %2419 = vmatpush.msra.mxu0 %v1979
        %2420 = vmatpush.msra.mxu0 %v1975
        %2421 = vmatpush.msra.mxu0 %v1971
        %2422 = vmatpush.msra.mxu0 %v1967
        %2423 = vmatpush.msra.mxu0 %v1963
        %2424 = vmatpush.msra.mxu0 %v1959
        %2425 = vmatpush.msra.mxu0 %v1955
        %2426 = vmatpush.msra.mxu0 %v1951
        %2427 = vmatpush.msra.mxu0 %v1947
        %2428 = vmatpush.msra.mxu0 %v1943
        %2429 = vmatpush.msra.mxu0 %v1939
        %2430 = vmatpush.msra.mxu0 %v1935
        %2431 = vmatpush.msra.mxu0 %v1931
        %2432 = vmatpush.msra.mxu0 %v1927
        %2433 = vmatpush.msra.mxu0 %v1923
        %2434 = vmatmul.f32.gmra.mxu0 %v2137
        %v2435 = vpop.f32.mrf.mxu0
        %v2436 = vadd.f32 %v2156, %v2435
        %2437 = vmatmul.f32.gmra.mxu0 %v2141
        %v2438 = vpop.f32.mrf.mxu0
        %v2439 = vadd.f32 %v2161, %v2438
        %2440 = vmatmul.f32.gmra.mxu0 %v2145
        %v2441 = vpop.f32.mrf.mxu0
        %v2442 = vadd.f32 %v2166, %v2441
        %2443 = vmatmul.f32.gmra.mxu0 %v2149
        %v2444 = vpop.f32.mrf.mxu0
        %v2445 = vadd.f32 %v2171, %v2444
        %2446 = vdwg.mxu0
        %2447 = vmatpush.msra.mxu0 %v2047
        %2448 = vmatpush.msra.mxu0 %v2043
        %2449 = vmatpush.msra.mxu0 %v2039
        %2450 = vmatpush.msra.mxu0 %v2035
        %2451 = vmatpush.msra.mxu0 %v2031
        %2452 = vmatpush.msra.mxu0 %v2027
        %2453 = vmatpush.msra.mxu0 %v2023
        %2454 = vmatpush.msra.mxu0 %v2019
        %2455 = vmatpush.msra.mxu0 %v2015
        %2456 = vmatpush.msra.mxu0 %v2011
        %2457 = vmatpush.msra.mxu0 %v2007
        %2458 = vmatpush.msra.mxu0 %v2003
        %2459 = vmatpush.msra.mxu0 %v1999
        %2460 = vmatpush.msra.mxu0 %v1995
        %2461 = vmatpush.msra.mxu0 %v1991
        %2462 = vmatpush.msra.mxu0 %v1987
        %2463 = vmatmul.f32.gmra.mxu0 %v2138
        %v2464 = vpop.f32.mrf.mxu0
        %v2465 = vadd.f32 %v2436, %v2464
        %2466 = vmatmul.f32.gmra.mxu0 %v2142
        %v2467 = vpop.f32.mrf.mxu0
        %v2468 = vadd.f32 %v2439, %v2467
        %2469 = vmatmul.f32.gmra.mxu0 %v2146
        %v2470 = vpop.f32.mrf.mxu0
        %v2471 = vadd.f32 %v2442, %v2470
        %2472 = vmatmul.f32.gmra.mxu0 %v2150
        %v2473 = vpop.f32.mrf.mxu0
        %v2474 = vadd.f32 %v2445, %v2473
        %2475 = vdwg.mxu0
        %2476 = vmatpush.msra.mxu0 %v2111
        %2477 = vmatpush.msra.mxu0 %v2107
        %2478 = vmatpush.msra.mxu0 %v2103
        %2479 = vmatpush.msra.mxu0 %v2099
        %2480 = vmatpush.msra.mxu0 %v2095
        %2481 = vmatpush.msra.mxu0 %v2091
        %2482 = vmatpush.msra.mxu0 %v2087
        %2483 = vmatpush.msra.mxu0 %v2083
        %2484 = vmatpush.msra.mxu0 %v2079
        %2485 = vmatpush.msra.mxu0 %v2075
        %2486 = vmatpush.msra.mxu0 %v2071
        %2487 = vmatpush.msra.mxu0 %v2067
        %2488 = vmatpush.msra.mxu0 %v2063
        %2489 = vmatpush.msra.mxu0 %v2059
        %2490 = vmatpush.msra.mxu0 %v2055
        %2491 = vmatpush.msra.mxu0 %v2051
        %2492 = vmatmul.f32.gmra.mxu0 %v2139
        %v2493 = vpop.f32.mrf.mxu0
        %v2494 = vadd.f32 %v2465, %v2493
        %2495 = vmatmul.f32.gmra.mxu0 %v2143
        %v2496 = vpop.f32.mrf.mxu0
        %v2497 = vadd.f32 %v2468, %v2496
        %2498 = vmatmul.f32.gmra.mxu0 %v2147
        %v2499 = vpop.f32.mrf.mxu0
        %v2500 = vadd.f32 %v2471, %v2499
        %2501 = vmatmul.f32.gmra.mxu0 %v2151
        %v2502 = vpop.f32.mrf.mxu0
        %v2503 = vadd.f32 %v2474, %v2502
        %2504 = vdwg.mxu0
        %2505 = vmatpush.msra.mxu0 0.0
        %2506 = vmatpush.msra.mxu0 0.0
        %2507 = vmatpush.msra.mxu0 0.0
        %2508 = vmatpush.msra.mxu0 0.0
        %2509 = vmatpush.msra.mxu0 0.0
        %2510 = vmatpush.msra.mxu0 0.0
        %2511 = vmatpush.msra.mxu0 0.0
        %2512 = vmatpush.msra.mxu0 0.0
        %2513 = vmatpush.msra.mxu0 0.0
        %2514 = vmatpush.msra.mxu0 0.0
        %2515 = vmatpush.msra.mxu0 %v2135
        %2516 = vmatpush.msra.mxu0 %v2131
        %2517 = vmatpush.msra.mxu0 %v2127
        %2518 = vmatpush.msra.mxu0 %v2123
        %2519 = vmatpush.msra.mxu0 %v2119
        %2520 = vmatpush.msra.mxu0 %v2115
        %2521 = vmatmul.f32.gmra.mxu0 %v2175
        %v2522 = vpop.f32.mrf.mxu0
        %v2523 = vadd.f32 %v2494, %v2522
        %2524 = vmatmul.f32.gmra.mxu0 %v2178
        %v2525 = vpop.f32.mrf.mxu0
        %v2526 = vadd.f32 %v2497, %v2525
        %2527 = vmatmul.f32.gmra.mxu0 %v2181
        %v2528 = vpop.f32.mrf.mxu0
        %v2529 = vadd.f32 %v2500, %v2528
        %2530 = vmatmul.f32.gmra.mxu0 %v2184
        %v2531 = vpop.f32.mrf.mxu0
        %v2532 = vadd.f32 %v2503, %v2531
        %2533 = vdwg.mxu0
        %2534 = vmatpush.msra.mxu0 %v1984
        %2535 = vmatpush.msra.mxu0 %v1980
        %2536 = vmatpush.msra.mxu0 %v1976
        %2537 = vmatpush.msra.mxu0 %v1972
        %2538 = vmatpush.msra.mxu0 %v1968
        %2539 = vmatpush.msra.mxu0 %v1964
        %2540 = vmatpush.msra.mxu0 %v1960
        %2541 = vmatpush.msra.mxu0 %v1956
        %2542 = vmatpush.msra.mxu0 %v1952
        %2543 = vmatpush.msra.mxu0 %v1948
        %2544 = vmatpush.msra.mxu0 %v1944
        %2545 = vmatpush.msra.mxu0 %v1940
        %2546 = vmatpush.msra.mxu0 %v1936
        %2547 = vmatpush.msra.mxu0 %v1932
        %2548 = vmatpush.msra.mxu0 %v1928
        %2549 = vmatpush.msra.mxu0 %v1924
        %2550 = vmatmul.f32.gmra.mxu0 %v2137
        %v2551 = vpop.f32.mrf.mxu0
        %v2552 = vadd.f32 %v2156, %v2551
        %2553 = vmatmul.f32.gmra.mxu0 %v2141
        %v2554 = vpop.f32.mrf.mxu0
        %v2555 = vadd.f32 %v2161, %v2554
        %2556 = vmatmul.f32.gmra.mxu0 %v2145
        %v2557 = vpop.f32.mrf.mxu0
        %v2558 = vadd.f32 %v2166, %v2557
        %2559 = vmatmul.f32.gmra.mxu0 %v2149
        %v2560 = vpop.f32.mrf.mxu0
        %v2561 = vadd.f32 %v2171, %v2560
        %2562 = vdwg.mxu0
        %2563 = vmatpush.msra.mxu0 %v2048
        %2564 = vmatpush.msra.mxu0 %v2044
        %2565 = vmatpush.msra.mxu0 %v2040
        %2566 = vmatpush.msra.mxu0 %v2036
        %2567 = vmatpush.msra.mxu0 %v2032
        %2568 = vmatpush.msra.mxu0 %v2028
        %2569 = vmatpush.msra.mxu0 %v2024
        %2570 = vmatpush.msra.mxu0 %v2020
        %2571 = vmatpush.msra.mxu0 %v2016
        %2572 = vmatpush.msra.mxu0 %v2012
        %2573 = vmatpush.msra.mxu0 %v2008
        %2574 = vmatpush.msra.mxu0 %v2004
        %2575 = vmatpush.msra.mxu0 %v2000
        %2576 = vmatpush.msra.mxu0 %v1996
        %2577 = vmatpush.msra.mxu0 %v1992
        %2578 = vmatpush.msra.mxu0 %v1988
        %2579 = vmatmul.f32.gmra.mxu0 %v2138
        %v2580 = vpop.f32.mrf.mxu0
        %v2581 = vadd.f32 %v2552, %v2580
        %2582 = vmatmul.f32.gmra.mxu0 %v2142
        %v2583 = vpop.f32.mrf.mxu0
        %v2584 = vadd.f32 %v2555, %v2583
        %2585 = vmatmul.f32.gmra.mxu0 %v2146
        %v2586 = vpop.f32.mrf.mxu0
        %v2587 = vadd.f32 %v2558, %v2586
        %2588 = vmatmul.f32.gmra.mxu0 %v2150
        %v2589 = vpop.f32.mrf.mxu0
        %v2590 = vadd.f32 %v2561, %v2589
        %2591 = vdwg.mxu0
        %2592 = vmatpush.msra.mxu0 %v2112
        %2593 = vmatpush.msra.mxu0 %v2108
        %2594 = vmatpush.msra.mxu0 %v2104
        %2595 = vmatpush.msra.mxu0 %v2100
        %2596 = vmatpush.msra.mxu0 %v2096
        %2597 = vmatpush.msra.mxu0 %v2092
        %2598 = vmatpush.msra.mxu0 %v2088
        %2599 = vmatpush.msra.mxu0 %v2084
        %2600 = vmatpush.msra.mxu0 %v2080
        %2601 = vmatpush.msra.mxu0 %v2076
        %2602 = vmatpush.msra.mxu0 %v2072
        %2603 = vmatpush.msra.mxu0 %v2068
        %2604 = vmatpush.msra.mxu0 %v2064
        %2605 = vmatpush.msra.mxu0 %v2060
        %2606 = vmatpush.msra.mxu0 %v2056
        %2607 = vmatpush.msra.mxu0 %v2052
        %2608 = vmatmul.f32.gmra.mxu0 %v2139
        %v2609 = vpop.f32.mrf.mxu0
        %v2610 = vadd.f32 %v2581, %v2609
        %2611 = vmatmul.f32.gmra.mxu0 %v2143
        %v2612 = vpop.f32.mrf.mxu0
        %v2613 = vadd.f32 %v2584, %v2612
        %2614 = vmatmul.f32.gmra.mxu0 %v2147
        %v2615 = vpop.f32.mrf.mxu0
        %v2616 = vadd.f32 %v2587, %v2615
        %2617 = vmatmul.f32.gmra.mxu0 %v2151
        %v2618 = vpop.f32.mrf.mxu0
        %v2619 = vadd.f32 %v2590, %v2618
        %2620 = vdwg.mxu0
        %2621 = vmatpush.msra.mxu0 0.0
        %2622 = vmatpush.msra.mxu0 0.0
        %2623 = vmatpush.msra.mxu0 0.0
        %2624 = vmatpush.msra.mxu0 0.0
        %2625 = vmatpush.msra.mxu0 0.0
        %2626 = vmatpush.msra.mxu0 0.0
        %2627 = vmatpush.msra.mxu0 0.0
        %2628 = vmatpush.msra.mxu0 0.0
        %2629 = vmatpush.msra.mxu0 0.0
        %2630 = vmatpush.msra.mxu0 0.0
        %2631 = vmatpush.msra.mxu0 %v2136
        %2632 = vmatpush.msra.mxu0 %v2132
        %2633 = vmatpush.msra.mxu0 %v2128
        %2634 = vmatpush.msra.mxu0 %v2124
        %2635 = vmatpush.msra.mxu0 %v2120
        %2636 = vmatpush.msra.mxu0 %v2116
        %2637 = vmatmul.f32.gmra.mxu0 %v2175
        %v2638 = vpop.f32.mrf.mxu0
        %v2639 = vadd.f32 %v2610, %v2638
        %2640 = vmatmul.f32.gmra.mxu0 %v2178
        %v2641 = vpop.f32.mrf.mxu0
        %v2642 = vadd.f32 %v2613, %v2641
        %2643 = vmatmul.f32.gmra.mxu0 %v2181
        %v2644 = vpop.f32.mrf.mxu0
        %v2645 = vadd.f32 %v2616, %v2644
        %2646 = vmatmul.f32.gmra.mxu0 %v2184
        %v2647 = vpop.f32.mrf.mxu0
        %v2648 = vadd.f32 %v2619, %v2647
        %2649 = vdwg.mxu0
        %v2650 = vld [vmem:[%s9] sm:$0xff]
        %v2651 = vld [vmem:[%s9 + $0x8] sm:$0xff]
        %v2652 = vld [vmem:[%s9 + $0x10] sm:$0xff]
        %v2653 = vld [vmem:[%s9 + $0x18] sm:$0xff]
        %v2654 = vld [vmem:[%s7] sm:$0xff]
        %v2655 = vld [vmem:[%s7 + $0x8] sm:$0xff]
        %v2656 = vld [vmem:[%s7 + $0x10] sm:$0xff]
        %v2657 = vld [vmem:[%s7 + $0x18] sm:$0xff]
        %v2658 = vld [vmem:[%s8] sm:$0xff]
        %v2659 = vld [vmem:[%s8 + $0x8] sm:$0xff]
        %v2660 = vld [vmem:[%s8 + $0x10] sm:$0xff]
        %v2661 = vld [vmem:[%s8 + $0x18] sm:$0xff]
        %v2662 = vadd.f32 %v2291, %v2407
        %v2663 = vadd.f32 %v2662, %v2523
        %v2664 = vadd.f32 %v2663, %v2639
        %2665 = vadd.xlane.f32.xlu0 %v2664
        %v2666 = vpop.xlane.xlu0 %2665
        %v2667 = vadd.f32 %v2294, %v2410
        %v2668 = vadd.f32 %v2667, %v2526
        %v2669 = vadd.f32 %v2668, %v2642
        %2670 = vadd.xlane.f32.xlu0 %v2669
        %v2671 = vpop.xlane.xlu0 %2670
        %v2672 = vadd.f32 %v2297, %v2413
        %v2673 = vadd.f32 %v2672, %v2529
        %v2674 = vadd.f32 %v2673, %v2645
        %2675 = vadd.xlane.f32.xlu0 %v2674
        %v2676 = vpop.xlane.xlu0 %2675
        %v2677 = vadd.f32 %v2300, %v2416
        %v2678 = vadd.f32 %v2677, %v2532
        %v2679 = vadd.f32 %v2678, %v2648
        %2680 = vadd.xlane.f32.xlu0 %v2679
        %v2681 = vpop.xlane.xlu0 %2680
        %v2682 = vmul.f32 %v2291, %v2291
        %v2683 = vmul.f32 %v2407, %v2407
        %v2684 = vmul.f32 %v2523, %v2523
        %v2685 = vmul.f32 %v2639, %v2639
        %v2686 = vmul.f32 %v2294, %v2294
        %v2687 = vmul.f32 %v2410, %v2410
        %v2688 = vmul.f32 %v2526, %v2526
        %v2689 = vmul.f32 %v2642, %v2642
        %v2690 = vmul.f32 %v2297, %v2297
        %v2691 = vmul.f32 %v2413, %v2413
        %v2692 = vmul.f32 %v2529, %v2529
        %v2693 = vmul.f32 %v2645, %v2645
        %v2694 = vmul.f32 %v2300, %v2300
        %v2695 = vmul.f32 %v2416, %v2416
        %v2696 = vmul.f32 %v2532, %v2532
        %v2697 = vmul.f32 %v2648, %v2648
        %v2698 = vadd.f32 %v2682, %v2683
        %v2699 = vadd.f32 %v2698, %v2684
        %v2700 = vadd.f32 %v2699, %v2685
        %2701 = vadd.xlane.f32.xlu0 %v2700
        %v2702 = vpop.xlane.xlu0 %2701
        %v2703 = vadd.f32 %v2686, %v2687
        %v2704 = vadd.f32 %v2703, %v2688
        %v2705 = vadd.f32 %v2704, %v2689
        %2706 = vadd.xlane.f32.xlu0 %v2705
        %v2707 = vpop.xlane.xlu0 %2706
        %v2708 = vadd.f32 %v2690, %v2691
        %v2709 = vadd.f32 %v2708, %v2692
        %v2710 = vadd.f32 %v2709, %v2693
        %2711 = vadd.xlane.f32.xlu0 %v2710
        %v2712 = vpop.xlane.xlu0 %2711
        %v2713 = vadd.f32 %v2694, %v2695
        %v2714 = vadd.f32 %v2713, %v2696
        %v2715 = vadd.f32 %v2714, %v2697
        %2716 = vadd.xlane.f32.xlu0 %v2715
        %v2717 = vpop.xlane.xlu0 %2716
        %vm2718 = vcmask 261120
        %v2720 = vsel %vm2718, %v2650, 0
        %v2723 = vsel %vm2718, %v2651, 0
        %v2726 = vsel %vm2718, %v2652, 0
        %v2729 = vsel %vm2718, %v2653, 0
        %2731 = vmatpush.msra.mxu0 0.0
        %2732 = vmatpush.msra.mxu0 0.0
        %2733 = vmatpush.msra.mxu0 0.0
        %2734 = vmatpush.msra.mxu0 0.0
        %2735 = vmatpush.msra.mxu0 0.0
        %2736 = vmatpush.msra.mxu0 0.0
        %2737 = vmatpush.msra.mxu0 0.0
        %2738 = vmatpush.msra.mxu0 0.0
        %2739 = vmatpush.msra.mxu0 0.0
        %2740 = vmatpush.msra.mxu0 0.0
        %2741 = vmatpush.msra.mxu0 0.0
        %2742 = vmatpush.msra.mxu0 0.0
        %2743 = vmatpush.msra.mxu0 %v2681
        %2744 = vmatpush.msra.mxu0 %v2676
        %2745 = vmatpush.msra.mxu0 %v2671
        %2746 = vmatpush.msra.mxu0 %v2666
        %2747 = vmatmul.f32.gmra.mxu0 %v2720
        %v2748 = vpop.f32.mrf.mxu0
        %v2749 = vadd.f32 0.0, %v2748
        %2750 = vmatmul.f32.gmra.mxu0 %v2723
        %v2751 = vpop.f32.mrf.mxu0
        %v2752 = vadd.f32 0.0, %v2751
        %2753 = vmatmul.f32.gmra.mxu0 %v2726
        %v2754 = vpop.f32.mrf.mxu0
        %v2755 = vadd.f32 0.0, %v2754
        %2756 = vmatmul.f32.gmra.mxu0 %v2729
        %v2757 = vpop.f32.mrf.mxu0
        %v2758 = vadd.f32 0.0, %v2757
        %2759 = vdwg.mxu0
        %v2760 = vmul.f32 %v2749, %v632
        %v2761 = vmul.f32 %v2752, %v632
        %v2762 = vmul.f32 %v2755, %v632
        %v2763 = vmul.f32 %v2758, %v632
        %2764 = vmatpush.msra.mxu0 0.0
        %2765 = vmatpush.msra.mxu0 0.0
        %2766 = vmatpush.msra.mxu0 0.0
        %2767 = vmatpush.msra.mxu0 0.0
        %2768 = vmatpush.msra.mxu0 0.0
        %2769 = vmatpush.msra.mxu0 0.0
        %2770 = vmatpush.msra.mxu0 0.0
        %2771 = vmatpush.msra.mxu0 0.0
        %2772 = vmatpush.msra.mxu0 0.0
        %2773 = vmatpush.msra.mxu0 0.0
        %2774 = vmatpush.msra.mxu0 0.0
        %2775 = vmatpush.msra.mxu0 0.0
        %2776 = vmatpush.msra.mxu0 %v2717
        %2777 = vmatpush.msra.mxu0 %v2712
        %2778 = vmatpush.msra.mxu0 %v2707
        %2779 = vmatpush.msra.mxu0 %v2702
        %2780 = vmatmul.f32.gmra.mxu0 %v2720
        %v2781 = vpop.f32.mrf.mxu0
        %v2782 = vadd.f32 0.0, %v2781
        %2783 = vmatmul.f32.gmra.mxu0 %v2723
        %v2784 = vpop.f32.mrf.mxu0
        %v2785 = vadd.f32 0.0, %v2784
        %2786 = vmatmul.f32.gmra.mxu0 %v2726
        %v2787 = vpop.f32.mrf.mxu0
        %v2788 = vadd.f32 0.0, %v2787
        %2789 = vmatmul.f32.gmra.mxu0 %v2729
        %v2790 = vpop.f32.mrf.mxu0
        %v2791 = vadd.f32 0.0, %v2790
        %2792 = vdwg.mxu0
        %v2793 = vmul.f32 %v2782, %v632
        %v2794 = vmul.f32 %v2785, %v632
        %v2795 = vmul.f32 %v2788, %v632
        %v2796 = vmul.f32 %v2791, %v632
        %v2797 = vmul.f32 %v2760, %v2760
        %v2798 = vmul.f32 %v2761, %v2761
        %v2799 = vmul.f32 %v2762, %v2762
        %v2800 = vmul.f32 %v2763, %v2763
        %v2801 = vsub.f32 %v2793, %v2797
        %v2802 = vsub.f32 %v2794, %v2798
        %v2803 = vsub.f32 %v2795, %v2799
        %v2804 = vsub.f32 %v2796, %v2800
        %2806 = vset.pattern.permute.xlu0 0
        %2807 = vperm.xlu0 %2806, %v2760
        %v2808 = vpop.permute.xlu0 %2807
        %2811 = vset.pattern.permute.xlu0 0
        %2812 = vperm.xlu0 %2811, %v2761
        %v2813 = vpop.permute.xlu0 %2812
        %2816 = vset.pattern.permute.xlu0 0
        %2817 = vperm.xlu0 %2816, %v2762
        %v2818 = vpop.permute.xlu0 %2817
        %2821 = vset.pattern.permute.xlu0 0
        %2822 = vperm.xlu0 %2821, %v2763
        %v2823 = vpop.permute.xlu0 %2822
        %v2825 = vsub.f32 %v2291, %v2808
        %v2826 = vsub.f32 %v2407, %v2808
        %v2827 = vsub.f32 %v2523, %v2808
        %v2828 = vsub.f32 %v2639, %v2808
        %v2829 = vsub.f32 %v2294, %v2813
        %v2830 = vsub.f32 %v2410, %v2813
        %v2831 = vsub.f32 %v2526, %v2813
        %v2832 = vsub.f32 %v2642, %v2813
        %v2833 = vsub.f32 %v2297, %v2818
        %v2834 = vsub.f32 %v2413, %v2818
        %v2835 = vsub.f32 %v2529, %v2818
        %v2836 = vsub.f32 %v2645, %v2818
        %v2837 = vsub.f32 %v2300, %v2823
        %v2838 = vsub.f32 %v2416, %v2823
        %v2839 = vsub.f32 %v2532, %v2823
        %v2840 = vsub.f32 %v2648, %v2823
        %v2841 = vadd.f32 %v2801, 1e-05
        %v2842 = vadd.f32 %v2802, 1e-05
        %v2843 = vadd.f32 %v2803, 1e-05
        %v2844 = vadd.f32 %v2804, 1e-05
        %v2845 = vrsqrt.pop %v2841
        %v2846 = vmul.f32 %v2845, %v2841
        %v2847 = vmul.f32 %v2846, %v2845
        %v2848 = vmul.f32 0.5, %v2847
        %v2849 = vsub.f32 1.5, %v2848
        %v2850 = vmul.f32 %v2845, %v2849
        %vm2851 = vweird.f32 %v2841
        %vm2852 = vweird.f32 %v2845
        %vm2853 = vmor %vm2851, %vm2852
        %v2854 = vsel %vm2853, %v2845, %v2850
        %v2855 = vrsqrt.pop %v2842
        %v2856 = vmul.f32 %v2855, %v2842
        %v2857 = vmul.f32 %v2856, %v2855
        %v2858 = vmul.f32 0.5, %v2857
        %v2859 = vsub.f32 1.5, %v2858
        %v2860 = vmul.f32 %v2855, %v2859
        %vm2861 = vweird.f32 %v2842
        %vm2862 = vweird.f32 %v2855
        %vm2863 = vmor %vm2861, %vm2862
        %v2864 = vsel %vm2863, %v2855, %v2860
        %v2865 = vrsqrt.pop %v2843
        %v2866 = vmul.f32 %v2865, %v2843
        %v2867 = vmul.f32 %v2866, %v2865
        %v2868 = vmul.f32 0.5, %v2867
        %v2869 = vsub.f32 1.5, %v2868
        %v2870 = vmul.f32 %v2865, %v2869
        %vm2871 = vweird.f32 %v2843
        %vm2872 = vweird.f32 %v2865
        %vm2873 = vmor %vm2871, %vm2872
        %v2874 = vsel %vm2873, %v2865, %v2870
        %v2875 = vrsqrt.pop %v2844
        %v2876 = vmul.f32 %v2875, %v2844
        %v2877 = vmul.f32 %v2876, %v2875
        %v2878 = vmul.f32 0.5, %v2877
        %v2879 = vsub.f32 1.5, %v2878
        %v2880 = vmul.f32 %v2875, %v2879
        %vm2881 = vweird.f32 %v2844
        %vm2882 = vweird.f32 %v2875
        %vm2883 = vmor %vm2881, %vm2882
        %v2884 = vsel %vm2883, %v2875, %v2880
        %2886 = vset.pattern.permute.xlu0 0
        %2887 = vperm.xlu0 %2886, %v2854
        %v2888 = vpop.permute.xlu0 %2887
        %2891 = vset.pattern.permute.xlu0 0
        %2892 = vperm.xlu0 %2891, %v2864
        %v2893 = vpop.permute.xlu0 %2892
        %2896 = vset.pattern.permute.xlu0 0
        %2897 = vperm.xlu0 %2896, %v2874
        %v2898 = vpop.permute.xlu0 %2897
        %2901 = vset.pattern.permute.xlu0 0
        %2902 = vperm.xlu0 %2901, %v2884
        %v2903 = vpop.permute.xlu0 %2902
        %v2905 = vmul.f32 %v2825, %v2888
        %v2906 = vmul.f32 %v2826, %v2888
        %v2907 = vmul.f32 %v2827, %v2888
        %v2908 = vmul.f32 %v2828, %v2888
        %v2909 = vmul.f32 %v2829, %v2893
        %v2910 = vmul.f32 %v2830, %v2893
        %v2911 = vmul.f32 %v2831, %v2893
        %v2912 = vmul.f32 %v2832, %v2893
        %v2913 = vmul.f32 %v2833, %v2898
        %v2914 = vmul.f32 %v2834, %v2898
        %v2915 = vmul.f32 %v2835, %v2898
        %v2916 = vmul.f32 %v2836, %v2898
        %v2917 = vmul.f32 %v2837, %v2903
        %v2918 = vmul.f32 %v2838, %v2903
        %v2919 = vmul.f32 %v2839, %v2903
        %v2920 = vmul.f32 %v2840, %v2903
        %2922 = vset.pattern.permute.xlu0 0
        %2923 = vperm.xlu0 %2922, %v2654
        %v2924 = vpop.permute.xlu0 %2923
        %2927 = vset.pattern.permute.xlu0 0
        %2928 = vperm.xlu0 %2927, %v2655
        %v2929 = vpop.permute.xlu0 %2928
        %2932 = vset.pattern.permute.xlu0 0
        %2933 = vperm.xlu0 %2932, %v2656
        %v2934 = vpop.permute.xlu0 %2933
        %2937 = vset.pattern.permute.xlu0 0
        %2938 = vperm.xlu0 %2937, %v2657
        %v2939 = vpop.permute.xlu0 %2938
        %v2941 = vmul.f32 %v2905, %v2924
        %v2942 = vmul.f32 %v2906, %v2924
        %v2943 = vmul.f32 %v2907, %v2924
        %v2944 = vmul.f32 %v2908, %v2924
        %v2945 = vmul.f32 %v2909, %v2929
        %v2946 = vmul.f32 %v2910, %v2929
        %v2947 = vmul.f32 %v2911, %v2929
        %v2948 = vmul.f32 %v2912, %v2929
        %v2949 = vmul.f32 %v2913, %v2934
        %v2950 = vmul.f32 %v2914, %v2934
        %v2951 = vmul.f32 %v2915, %v2934
        %v2952 = vmul.f32 %v2916, %v2934
        %v2953 = vmul.f32 %v2917, %v2939
        %v2954 = vmul.f32 %v2918, %v2939
        %v2955 = vmul.f32 %v2919, %v2939
        %v2956 = vmul.f32 %v2920, %v2939
        %2958 = vset.pattern.permute.xlu0 0
        %2959 = vperm.xlu0 %2958, %v2658
        %v2960 = vpop.permute.xlu0 %2959
        %2963 = vset.pattern.permute.xlu0 0
        %2964 = vperm.xlu0 %2963, %v2659
        %v2965 = vpop.permute.xlu0 %2964
        %2968 = vset.pattern.permute.xlu0 0
        %2969 = vperm.xlu0 %2968, %v2660
        %v2970 = vpop.permute.xlu0 %2969
        %2973 = vset.pattern.permute.xlu0 0
        %2974 = vperm.xlu0 %2973, %v2661
        %v2975 = vpop.permute.xlu0 %2974
        %v2977 = vadd.f32 %v2941, %v2960
        %v2978 = vadd.f32 %v2942, %v2960
        %v2979 = vadd.f32 %v2943, %v2960
        %v2980 = vadd.f32 %v2944, %v2960
        %v2981 = vadd.f32 %v2945, %v2965
        %v2982 = vadd.f32 %v2946, %v2965
        %v2983 = vadd.f32 %v2947, %v2965
        %v2984 = vadd.f32 %v2948, %v2965
        %v2985 = vadd.f32 %v2949, %v2970
        %v2986 = vadd.f32 %v2950, %v2970
        %v2987 = vadd.f32 %v2951, %v2970
        %v2988 = vadd.f32 %v2952, %v2970
        %v2989 = vadd.f32 %v2953, %v2975
        %v2990 = vadd.f32 %v2954, %v2975
        %v2991 = vadd.f32 %v2955, %v2975
        %v2992 = vadd.f32 %v2956, %v2975
        %v2993 = vmin.f32 %v2977, 20.0
        %v2994 = vmin.f32 %v2978, 20.0
        %v2995 = vmin.f32 %v2979, 20.0
        %v2996 = vmin.f32 %v2980, 20.0
        %v2997 = vmin.f32 %v2981, 20.0
        %v2998 = vmin.f32 %v2982, 20.0
        %v2999 = vmin.f32 %v2983, 20.0
        %v3000 = vmin.f32 %v2984, 20.0
        %v3001 = vmin.f32 %v2985, 20.0
        %v3002 = vmin.f32 %v2986, 20.0
        %v3003 = vmin.f32 %v2987, 20.0
        %v3004 = vmin.f32 %v2988, 20.0
        %v3005 = vmin.f32 %v2989, 20.0
        %v3006 = vmin.f32 %v2990, 20.0
        %v3007 = vmin.f32 %v2991, 20.0
        %v3008 = vmin.f32 %v2992, 20.0
        %v3009 = vmul.f32 %v2993, 1.442695
        %v3010 = vpow.pop %v3009
        %v3011 = vmul.f32 %v2994, 1.442695
        %v3012 = vpow.pop %v3011
        %v3013 = vmul.f32 %v2995, 1.442695
        %v3014 = vpow.pop %v3013
        %v3015 = vmul.f32 %v2996, 1.442695
        %v3016 = vpow.pop %v3015
        %v3017 = vmul.f32 %v2997, 1.442695
        %v3018 = vpow.pop %v3017
        %v3019 = vmul.f32 %v2998, 1.442695
        %v3020 = vpow.pop %v3019
        %v3021 = vmul.f32 %v2999, 1.442695
        %v3022 = vpow.pop %v3021
        %v3023 = vmul.f32 %v3000, 1.442695
        %v3024 = vpow.pop %v3023
        %v3025 = vmul.f32 %v3001, 1.442695
        %v3026 = vpow.pop %v3025
        %v3027 = vmul.f32 %v3002, 1.442695
        %v3028 = vpow.pop %v3027
        %v3029 = vmul.f32 %v3003, 1.442695
        %v3030 = vpow.pop %v3029
        %v3031 = vmul.f32 %v3004, 1.442695
        %v3032 = vpow.pop %v3031
        %v3033 = vmul.f32 %v3005, 1.442695
        %v3034 = vpow.pop %v3033
        %v3035 = vmul.f32 %v3006, 1.442695
        %v3036 = vpow.pop %v3035
        %v3037 = vmul.f32 %v3007, 1.442695
        %v3038 = vpow.pop %v3037
        %v3039 = vmul.f32 %v3008, 1.442695
        %v3040 = vpow.pop %v3039
        %v3041 = vadd.f32 %v3010, 2.0
        %v3042 = vadd.f32 %v3012, 2.0
        %v3043 = vadd.f32 %v3014, 2.0
        %v3044 = vadd.f32 %v3016, 2.0
        %v3045 = vadd.f32 %v3018, 2.0
        %v3046 = vadd.f32 %v3020, 2.0
        %v3047 = vadd.f32 %v3022, 2.0
        %v3048 = vadd.f32 %v3024, 2.0
        %v3049 = vadd.f32 %v3026, 2.0
        %v3050 = vadd.f32 %v3028, 2.0
        %v3051 = vadd.f32 %v3030, 2.0
        %v3052 = vadd.f32 %v3032, 2.0
        %v3053 = vadd.f32 %v3034, 2.0
        %v3054 = vadd.f32 %v3036, 2.0
        %v3055 = vadd.f32 %v3038, 2.0
        %v3056 = vadd.f32 %v3040, 2.0
        %v3057 = vmul.f32 %v3010, %v3041
        %v3058 = vmul.f32 %v3012, %v3042
        %v3059 = vmul.f32 %v3014, %v3043
        %v3060 = vmul.f32 %v3016, %v3044
        %v3061 = vmul.f32 %v3018, %v3045
        %v3062 = vmul.f32 %v3020, %v3046
        %v3063 = vmul.f32 %v3022, %v3047
        %v3064 = vmul.f32 %v3024, %v3048
        %v3065 = vmul.f32 %v3026, %v3049
        %v3066 = vmul.f32 %v3028, %v3050
        %v3067 = vmul.f32 %v3030, %v3051
        %v3068 = vmul.f32 %v3032, %v3052
        %v3069 = vmul.f32 %v3034, %v3053
        %v3070 = vmul.f32 %v3036, %v3054
        %v3071 = vmul.f32 %v3038, %v3055
        %v3072 = vmul.f32 %v3040, %v3056
        %v3073 = vmul.f32 %v2977, %v3057
        %v3074 = vmul.f32 %v2978, %v3058
        %v3075 = vmul.f32 %v2979, %v3059
        %v3076 = vmul.f32 %v2980, %v3060
        %v3077 = vmul.f32 %v2981, %v3061
        %v3078 = vmul.f32 %v2982, %v3062
        %v3079 = vmul.f32 %v2983, %v3063
        %v3080 = vmul.f32 %v2984, %v3064
        %v3081 = vmul.f32 %v2985, %v3065
        %v3082 = vmul.f32 %v2986, %v3066
        %v3083 = vmul.f32 %v2987, %v3067
        %v3084 = vmul.f32 %v2988, %v3068
        %v3085 = vmul.f32 %v2989, %v3069
        %v3086 = vmul.f32 %v2990, %v3070
        %v3087 = vmul.f32 %v2991, %v3071
        %v3088 = vmul.f32 %v2992, %v3072
        %v3089 = vadd.f32 %v3057, 2.0
        %v3090 = vadd.f32 %v3058, 2.0
        %v3091 = vadd.f32 %v3059, 2.0
        %v3092 = vadd.f32 %v3060, 2.0
        %v3093 = vadd.f32 %v3061, 2.0
        %v3094 = vadd.f32 %v3062, 2.0
        %v3095 = vadd.f32 %v3063, 2.0
        %v3096 = vadd.f32 %v3064, 2.0
        %v3097 = vadd.f32 %v3065, 2.0
        %v3098 = vadd.f32 %v3066, 2.0
        %v3099 = vadd.f32 %v3067, 2.0
        %v3100 = vadd.f32 %v3068, 2.0
        %v3101 = vadd.f32 %v3069, 2.0
        %v3102 = vadd.f32 %v3070, 2.0
        %v3103 = vadd.f32 %v3071, 2.0
        %v3104 = vadd.f32 %v3072, 2.0
        %v3105 = vrcp.pop %v3089
        %v3106 = vmul.f32 %v3089, %v3105
        %v3107 = vsub.f32 1.0, %v3106
        %v3108 = vmul.f32 %v3105, %v3107
        %v3109 = vadd.f32 %v3105, %v3108
        %vm3110 = vweird.f32 %v3089
        %vm3111 = vweird.f32 %v3105
        %vm3112 = vmor %vm3110, %vm3111
        %v3113 = vsel %vm3112, %v3105, %v3109
        %v3114 = vand.u32 2147483647, %v3089
        %vm3115 = vcmp.eq.f32.partialorder %v3114, 8.507059e+37
        %v3116 = vand.u32 %v3089, 2147483648
        %v3117 = vor.u32 1.1754944e-38, %v3116
        %v3118 = vsel %vm3115, %v3117, %v3113
        %v3119 = vmul.f32 %v3073, %v3118
        %v3120 = vrcp.pop %v3090
        %v3121 = vmul.f32 %v3090, %v3120
        %v3122 = vsub.f32 1.0, %v3121
        %v3123 = vmul.f32 %v3120, %v3122
        %v3124 = vadd.f32 %v3120, %v3123
        %vm3125 = vweird.f32 %v3090
        %vm3126 = vweird.f32 %v3120
        %vm3127 = vmor %vm3125, %vm3126
        %v3128 = vsel %vm3127, %v3120, %v3124
        %v3129 = vand.u32 2147483647, %v3090
        %vm3130 = vcmp.eq.f32.partialorder %v3129, 8.507059e+37
        %v3131 = vand.u32 %v3090, 2147483648
        %v3132 = vor.u32 1.1754944e-38, %v3131
        %v3133 = vsel %vm3130, %v3132, %v3128
        %v3134 = vmul.f32 %v3074, %v3133
        %v3135 = vrcp.pop %v3091
        %v3136 = vmul.f32 %v3091, %v3135
        %v3137 = vsub.f32 1.0, %v3136
        %v3138 = vmul.f32 %v3135, %v3137
        %v3139 = vadd.f32 %v3135, %v3138
        %vm3140 = vweird.f32 %v3091
        %vm3141 = vweird.f32 %v3135
        %vm3142 = vmor %vm3140, %vm3141
        %v3143 = vsel %vm3142, %v3135, %v3139
        %v3144 = vand.u32 2147483647, %v3091
        %vm3145 = vcmp.eq.f32.partialorder %v3144, 8.507059e+37
        %v3146 = vand.u32 %v3091, 2147483648
        %v3147 = vor.u32 1.1754944e-38, %v3146
        %v3148 = vsel %vm3145, %v3147, %v3143
        %v3149 = vmul.f32 %v3075, %v3148
        %v3150 = vrcp.pop %v3092
        %v3151 = vmul.f32 %v3092, %v3150
        %v3152 = vsub.f32 1.0, %v3151
        %v3153 = vmul.f32 %v3150, %v3152
        %v3154 = vadd.f32 %v3150, %v3153
        %vm3155 = vweird.f32 %v3092
        %vm3156 = vweird.f32 %v3150
        %vm3157 = vmor %vm3155, %vm3156
        %v3158 = vsel %vm3157, %v3150, %v3154
        %v3159 = vand.u32 2147483647, %v3092
        %vm3160 = vcmp.eq.f32.partialorder %v3159, 8.507059e+37
        %v3161 = vand.u32 %v3092, 2147483648
        %v3162 = vor.u32 1.1754944e-38, %v3161
        %v3163 = vsel %vm3160, %v3162, %v3158
        %v3164 = vmul.f32 %v3076, %v3163
        %v3165 = vrcp.pop %v3093
        %v3166 = vmul.f32 %v3093, %v3165
        %v3167 = vsub.f32 1.0, %v3166
        %v3168 = vmul.f32 %v3165, %v3167
        %v3169 = vadd.f32 %v3165, %v3168
        %vm3170 = vweird.f32 %v3093
        %vm3171 = vweird.f32 %v3165
        %vm3172 = vmor %vm3170, %vm3171
        %v3173 = vsel %vm3172, %v3165, %v3169
        %v3174 = vand.u32 2147483647, %v3093
        %vm3175 = vcmp.eq.f32.partialorder %v3174, 8.507059e+37
        %v3176 = vand.u32 %v3093, 2147483648
        %v3177 = vor.u32 1.1754944e-38, %v3176
        %v3178 = vsel %vm3175, %v3177, %v3173
        %v3179 = vmul.f32 %v3077, %v3178
        %v3180 = vrcp.pop %v3094
        %v3181 = vmul.f32 %v3094, %v3180
        %v3182 = vsub.f32 1.0, %v3181
        %v3183 = vmul.f32 %v3180, %v3182
        %v3184 = vadd.f32 %v3180, %v3183
        %vm3185 = vweird.f32 %v3094
        %vm3186 = vweird.f32 %v3180
        %vm3187 = vmor %vm3185, %vm3186
        %v3188 = vsel %vm3187, %v3180, %v3184
        %v3189 = vand.u32 2147483647, %v3094
        %vm3190 = vcmp.eq.f32.partialorder %v3189, 8.507059e+37
        %v3191 = vand.u32 %v3094, 2147483648
        %v3192 = vor.u32 1.1754944e-38, %v3191
        %v3193 = vsel %vm3190, %v3192, %v3188
        %v3194 = vmul.f32 %v3078, %v3193
        %v3195 = vrcp.pop %v3095
        %v3196 = vmul.f32 %v3095, %v3195
        %v3197 = vsub.f32 1.0, %v3196
        %v3198 = vmul.f32 %v3195, %v3197
        %v3199 = vadd.f32 %v3195, %v3198
        %vm3200 = vweird.f32 %v3095
        %vm3201 = vweird.f32 %v3195
        %vm3202 = vmor %vm3200, %vm3201
        %v3203 = vsel %vm3202, %v3195, %v3199
        %v3204 = vand.u32 2147483647, %v3095
        %vm3205 = vcmp.eq.f32.partialorder %v3204, 8.507059e+37
        %v3206 = vand.u32 %v3095, 2147483648
        %v3207 = vor.u32 1.1754944e-38, %v3206
        %v3208 = vsel %vm3205, %v3207, %v3203
        %v3209 = vmul.f32 %v3079, %v3208
        %v3210 = vrcp.pop %v3096
        %v3211 = vmul.f32 %v3096, %v3210
        %v3212 = vsub.f32 1.0, %v3211
        %v3213 = vmul.f32 %v3210, %v3212
        %v3214 = vadd.f32 %v3210, %v3213
        %vm3215 = vweird.f32 %v3096
        %vm3216 = vweird.f32 %v3210
        %vm3217 = vmor %vm3215, %vm3216
        %v3218 = vsel %vm3217, %v3210, %v3214
        %v3219 = vand.u32 2147483647, %v3096
        %vm3220 = vcmp.eq.f32.partialorder %v3219, 8.507059e+37
        %v3221 = vand.u32 %v3096, 2147483648
        %v3222 = vor.u32 1.1754944e-38, %v3221
        %v3223 = vsel %vm3220, %v3222, %v3218
        %v3224 = vmul.f32 %v3080, %v3223
        %v3225 = vrcp.pop %v3097
        %v3226 = vmul.f32 %v3097, %v3225
        %v3227 = vsub.f32 1.0, %v3226
        %v3228 = vmul.f32 %v3225, %v3227
        %v3229 = vadd.f32 %v3225, %v3228
        %vm3230 = vweird.f32 %v3097
        %vm3231 = vweird.f32 %v3225
        %vm3232 = vmor %vm3230, %vm3231
        %v3233 = vsel %vm3232, %v3225, %v3229
        %v3234 = vand.u32 2147483647, %v3097
        %vm3235 = vcmp.eq.f32.partialorder %v3234, 8.507059e+37
        %v3236 = vand.u32 %v3097, 2147483648
        %v3237 = vor.u32 1.1754944e-38, %v3236
        %v3238 = vsel %vm3235, %v3237, %v3233
        %v3239 = vmul.f32 %v3081, %v3238
        %v3240 = vrcp.pop %v3098
        %v3241 = vmul.f32 %v3098, %v3240
        %v3242 = vsub.f32 1.0, %v3241
        %v3243 = vmul.f32 %v3240, %v3242
        %v3244 = vadd.f32 %v3240, %v3243
        %vm3245 = vweird.f32 %v3098
        %vm3246 = vweird.f32 %v3240
        %vm3247 = vmor %vm3245, %vm3246
        %v3248 = vsel %vm3247, %v3240, %v3244
        %v3249 = vand.u32 2147483647, %v3098
        %vm3250 = vcmp.eq.f32.partialorder %v3249, 8.507059e+37
        %v3251 = vand.u32 %v3098, 2147483648
        %v3252 = vor.u32 1.1754944e-38, %v3251
        %v3253 = vsel %vm3250, %v3252, %v3248
        %v3254 = vmul.f32 %v3082, %v3253
        %v3255 = vrcp.pop %v3099
        %v3256 = vmul.f32 %v3099, %v3255
        %v3257 = vsub.f32 1.0, %v3256
        %v3258 = vmul.f32 %v3255, %v3257
        %v3259 = vadd.f32 %v3255, %v3258
        %vm3260 = vweird.f32 %v3099
        %vm3261 = vweird.f32 %v3255
        %vm3262 = vmor %vm3260, %vm3261
        %v3263 = vsel %vm3262, %v3255, %v3259
        %v3264 = vand.u32 2147483647, %v3099
        %vm3265 = vcmp.eq.f32.partialorder %v3264, 8.507059e+37
        %v3266 = vand.u32 %v3099, 2147483648
        %v3267 = vor.u32 1.1754944e-38, %v3266
        %v3268 = vsel %vm3265, %v3267, %v3263
        %v3269 = vmul.f32 %v3083, %v3268
        %v3270 = vrcp.pop %v3100
        %v3271 = vmul.f32 %v3100, %v3270
        %v3272 = vsub.f32 1.0, %v3271
        %v3273 = vmul.f32 %v3270, %v3272
        %v3274 = vadd.f32 %v3270, %v3273
        %vm3275 = vweird.f32 %v3100
        %vm3276 = vweird.f32 %v3270
        %vm3277 = vmor %vm3275, %vm3276
        %v3278 = vsel %vm3277, %v3270, %v3274
        %v3279 = vand.u32 2147483647, %v3100
        %vm3280 = vcmp.eq.f32.partialorder %v3279, 8.507059e+37
        %v3281 = vand.u32 %v3100, 2147483648
        %v3282 = vor.u32 1.1754944e-38, %v3281
        %v3283 = vsel %vm3280, %v3282, %v3278
        %v3284 = vmul.f32 %v3084, %v3283
        %v3285 = vrcp.pop %v3101
        %v3286 = vmul.f32 %v3101, %v3285
        %v3287 = vsub.f32 1.0, %v3286
        %v3288 = vmul.f32 %v3285, %v3287
        %v3289 = vadd.f32 %v3285, %v3288
        %vm3290 = vweird.f32 %v3101
        %vm3291 = vweird.f32 %v3285
        %vm3292 = vmor %vm3290, %vm3291
        %v3293 = vsel %vm3292, %v3285, %v3289
        %v3294 = vand.u32 2147483647, %v3101
        %vm3295 = vcmp.eq.f32.partialorder %v3294, 8.507059e+37
        %v3296 = vand.u32 %v3101, 2147483648
        %v3297 = vor.u32 1.1754944e-38, %v3296
        %v3298 = vsel %vm3295, %v3297, %v3293
        %v3299 = vmul.f32 %v3085, %v3298
        %v3300 = vrcp.pop %v3102
        %v3301 = vmul.f32 %v3102, %v3300
        %v3302 = vsub.f32 1.0, %v3301
        %v3303 = vmul.f32 %v3300, %v3302
        %v3304 = vadd.f32 %v3300, %v3303
        %vm3305 = vweird.f32 %v3102
        %vm3306 = vweird.f32 %v3300
        %vm3307 = vmor %vm3305, %vm3306
        %v3308 = vsel %vm3307, %v3300, %v3304
        %v3309 = vand.u32 2147483647, %v3102
        %vm3310 = vcmp.eq.f32.partialorder %v3309, 8.507059e+37
        %v3311 = vand.u32 %v3102, 2147483648
        %v3312 = vor.u32 1.1754944e-38, %v3311
        %v3313 = vsel %vm3310, %v3312, %v3308
        %v3314 = vmul.f32 %v3086, %v3313
        %v3315 = vrcp.pop %v3103
        %v3316 = vmul.f32 %v3103, %v3315
        %v3317 = vsub.f32 1.0, %v3316
        %v3318 = vmul.f32 %v3315, %v3317
        %v3319 = vadd.f32 %v3315, %v3318
        %vm3320 = vweird.f32 %v3103
        %vm3321 = vweird.f32 %v3315
        %vm3322 = vmor %vm3320, %vm3321
        %v3323 = vsel %vm3322, %v3315, %v3319
        %v3324 = vand.u32 2147483647, %v3103
        %vm3325 = vcmp.eq.f32.partialorder %v3324, 8.507059e+37
        %v3326 = vand.u32 %v3103, 2147483648
        %v3327 = vor.u32 1.1754944e-38, %v3326
        %v3328 = vsel %vm3325, %v3327, %v3323
        %v3329 = vmul.f32 %v3087, %v3328
        %v3330 = vrcp.pop %v3104
        %v3331 = vmul.f32 %v3104, %v3330
        %v3332 = vsub.f32 1.0, %v3331
        %v3333 = vmul.f32 %v3330, %v3332
        %v3334 = vadd.f32 %v3330, %v3333
        %vm3335 = vweird.f32 %v3104
        %vm3336 = vweird.f32 %v3330
        %vm3337 = vmor %vm3335, %vm3336
        %v3338 = vsel %vm3337, %v3330, %v3334
        %v3339 = vand.u32 2147483647, %v3104
        %vm3340 = vcmp.eq.f32.partialorder %v3339, 8.507059e+37
        %v3341 = vand.u32 %v3104, 2147483648
        %v3342 = vor.u32 1.1754944e-38, %v3341
        %v3343 = vsel %vm3340, %v3342, %v3338
        %v3344 = vmul.f32 %v3088, %v3343
        %vm3345 = vcmp.gt.f32.partialorder %v2977, 20.0
        %vm3346 = vcmp.gt.f32.partialorder %v2978, 20.0
        %vm3347 = vcmp.gt.f32.partialorder %v2979, 20.0
        %vm3348 = vcmp.gt.f32.partialorder %v2980, 20.0
        %vm3349 = vcmp.gt.f32.partialorder %v2981, 20.0
        %vm3350 = vcmp.gt.f32.partialorder %v2982, 20.0
        %vm3351 = vcmp.gt.f32.partialorder %v2983, 20.0
        %vm3352 = vcmp.gt.f32.partialorder %v2984, 20.0
        %vm3353 = vcmp.gt.f32.partialorder %v2985, 20.0
        %vm3354 = vcmp.gt.f32.partialorder %v2986, 20.0
        %vm3355 = vcmp.gt.f32.partialorder %v2987, 20.0
        %vm3356 = vcmp.gt.f32.partialorder %v2988, 20.0
        %vm3357 = vcmp.gt.f32.partialorder %v2989, 20.0
        %vm3358 = vcmp.gt.f32.partialorder %v2990, 20.0
        %vm3359 = vcmp.gt.f32.partialorder %v2991, 20.0
        %vm3360 = vcmp.gt.f32.partialorder %v2992, 20.0
        %v3361 = vsel %vm3345, %v2977, %v3119
        %v3362 = vsel %vm3346, %v2978, %v3134
        %v3363 = vsel %vm3347, %v2979, %v3149
        %v3364 = vsel %vm3348, %v2980, %v3164
        %v3365 = vsel %vm3349, %v2981, %v3179
        %v3366 = vsel %vm3350, %v2982, %v3194
        %v3367 = vsel %vm3351, %v2983, %v3209
        %v3368 = vsel %vm3352, %v2984, %v3224
        %v3369 = vsel %vm3353, %v2985, %v3239
        %v3370 = vsel %vm3354, %v2986, %v3254
        %v3371 = vsel %vm3355, %v2987, %v3269
        %v3372 = vsel %vm3356, %v2988, %v3284
        %v3373 = vsel %vm3357, %v2989, %v3299
        %v3374 = vsel %vm3358, %v2990, %v3314
        %v3375 = vsel %vm3359, %v2991, %v3329
        %v3376 = vsel %vm3360, %v2992, %v3344
        %v3377 = vld [vmem:[%s11] sm:$0xff]
        %v3378 = vld [vmem:[%s11 + $0x8] sm:$0xff]
        %v3379 = vld [vmem:[%s11 + $0x10] sm:$0xff]
        %v3380 = vld [vmem:[%s11 + $0x18] sm:$0xff]
        %3381 = vrot.lane.b32.xlu0 %v3361, 73
        %v3382 = vpop.permute.xlu0 %3381
        %3383 = vrot.lane.b32.xlu0 %v3365, 73
        %v3384 = vpop.permute.xlu0 %3383
        %3385 = vrot.lane.b32.xlu0 %v3369, 73
        %v3386 = vpop.permute.xlu0 %3385
        %3387 = vrot.lane.b32.xlu0 %v3373, 73
        %v3388 = vpop.permute.xlu0 %3387
        %3389 = vrot.lane.b32.xlu0 %v3362, 73
        %v3390 = vpop.permute.xlu0 %3389
        %3391 = vrot.lane.b32.xlu0 %v3366, 73
        %v3392 = vpop.permute.xlu0 %3391
        %3393 = vrot.lane.b32.xlu0 %v3370, 73
        %v3394 = vpop.permute.xlu0 %3393
        %3395 = vrot.lane.b32.xlu0 %v3374, 73
        %v3396 = vpop.permute.xlu0 %3395
        %3397 = vrot.lane.b32.xlu0 %v3363, 73
        %v3398 = vpop.permute.xlu0 %3397
        %3399 = vrot.lane.b32.xlu0 %v3367, 73
        %v3400 = vpop.permute.xlu0 %3399
        %3401 = vrot.lane.b32.xlu0 %v3371, 73
        %v3402 = vpop.permute.xlu0 %3401
        %3403 = vrot.lane.b32.xlu0 %v3375, 73
        %v3404 = vpop.permute.xlu0 %3403
        %3405 = vrot.lane.b32.xlu0 %v3364, 73
        %v3406 = vpop.permute.xlu0 %3405
        %3407 = vrot.lane.b32.xlu0 %v3368, 73
        %v3408 = vpop.permute.xlu0 %3407
        %3409 = vrot.lane.b32.xlu0 %v3372, 73
        %v3410 = vpop.permute.xlu0 %3409
        %3411 = vrot.lane.b32.xlu0 %v3376, 73
        %v3412 = vpop.permute.xlu0 %3411
        %v3413 = vsel %vm972, %v3398, %v3406
        %v3414 = vsel %vm972, %v3400, %v3408
        %v3415 = vsel %vm972, %v3402, %v3410
        %v3416 = vsel %vm972, %v3404, %v3412
        %v3417 = vsel %vm972, %v3390, %v3398
        %v3418 = vsel %vm972, %v3392, %v3400
        %v3419 = vsel %vm972, %v3394, %v3402
        %v3420 = vsel %vm972, %v3396, %v3404
        %v3421 = vsel %vm972, %v3382, %v3390
        %v3422 = vsel %vm972, %v3384, %v3392
        %v3423 = vsel %vm972, %v3386, %v3394
        %v3424 = vsel %vm972, %v3388, %v3396
        %v3425 = vsel %vm972, %v3406, %v3382
        %v3426 = vsel %vm972, %v3408, %v3384
        %v3427 = vsel %vm972, %v3410, %v3386
        %v3428 = vsel %vm972, %v3412, %v3388
        %v3429 = vmul.f32 %v3425, %v981
        %v3430 = vmul.f32 %v3421, %v982
        %v3431 = vmul.f32 %v3417, %v983
        %v3432 = vmul.f32 %v3413, %v984
        %v3433 = vmul.f32 %v3426, %v981
        %v3434 = vmul.f32 %v3422, %v982
        %v3435 = vmul.f32 %v3418, %v983
        %v3436 = vmul.f32 %v3414, %v984
        %v3437 = vmul.f32 %v3427, %v981
        %v3438 = vmul.f32 %v3423, %v982
        %v3439 = vmul.f32 %v3419, %v983
        %v3440 = vmul.f32 %v3415, %v984
        %v3441 = vmul.f32 %v3428, %v981
        %v3442 = vmul.f32 %v3424, %v982
        %v3443 = vmul.f32 %v3420, %v983
        %v3444 = vmul.f32 %v3416, %v984
        %3445 = vst [vmem:[#allocation2] sm:$0xff] %v3429
        %3446 = vst [vmem:[#allocation2 + $0x8] sm:$0xff] %v3430
        %3447 = vst [vmem:[#allocation2 + $0x10] sm:$0xff] %v3431
        %3448 = vst [vmem:[#allocation2 + $0x18] sm:$0xff] %v3432
        %3449 = vst [vmem:[#allocation2 + $0x20] sm:$0xff] %v3433
        %3450 = vst [vmem:[#allocation2 + $0x28] sm:$0xff] %v3434
        %3451 = vst [vmem:[#allocation2 + $0x30] sm:$0xff] %v3435
        %3452 = vst [vmem:[#allocation2 + $0x38] sm:$0xff] %v3436
        %3453 = vst [vmem:[#allocation2 + $0x40] sm:$0xff] %v3437
        %3454 = vst [vmem:[#allocation2 + $0x48] sm:$0xff] %v3438
        %3455 = vst [vmem:[#allocation2 + $0x50] sm:$0xff] %v3439
        %3456 = vst [vmem:[#allocation2 + $0x58] sm:$0xff] %v3440
        %3457 = vst [vmem:[#allocation2 + $0x60] sm:$0xff] %v3441
        %3458 = vst [vmem:[#allocation2 + $0x68] sm:$0xff] %v3442
        %3459 = vst [vmem:[#allocation2 + $0x70] sm:$0xff] %v3443
        %3460 = vst [vmem:[#allocation2 + $0x78] sm:$0xff] %v3444
        %3461 = vrot.lane.b32.xlu0 %v3361, 72
        %v3462 = vpop.permute.xlu0 %3461
        %3463 = vrot.lane.b32.xlu0 %v3365, 72
        %v3464 = vpop.permute.xlu0 %3463
        %3465 = vrot.lane.b32.xlu0 %v3369, 72
        %v3466 = vpop.permute.xlu0 %3465
        %3467 = vrot.lane.b32.xlu0 %v3373, 72
        %v3468 = vpop.permute.xlu0 %3467
        %3469 = vrot.lane.b32.xlu0 %v3362, 72
        %v3470 = vpop.permute.xlu0 %3469
        %3471 = vrot.lane.b32.xlu0 %v3366, 72
        %v3472 = vpop.permute.xlu0 %3471
        %3473 = vrot.lane.b32.xlu0 %v3370, 72
        %v3474 = vpop.permute.xlu0 %3473
        %3475 = vrot.lane.b32.xlu0 %v3374, 72
        %v3476 = vpop.permute.xlu0 %3475
        %3477 = vrot.lane.b32.xlu0 %v3363, 72
        %v3478 = vpop.permute.xlu0 %3477
        %3479 = vrot.lane.b32.xlu0 %v3367, 72
        %v3480 = vpop.permute.xlu0 %3479
        %3481 = vrot.lane.b32.xlu0 %v3371, 72
        %v3482 = vpop.permute.xlu0 %3481
        %3483 = vrot.lane.b32.xlu0 %v3375, 72
        %v3484 = vpop.permute.xlu0 %3483
        %3485 = vrot.lane.b32.xlu0 %v3364, 72
        %v3486 = vpop.permute.xlu0 %3485
        %3487 = vrot.lane.b32.xlu0 %v3368, 72
        %v3488 = vpop.permute.xlu0 %3487
        %3489 = vrot.lane.b32.xlu0 %v3372, 72
        %v3490 = vpop.permute.xlu0 %3489
        %3491 = vrot.lane.b32.xlu0 %v3376, 72
        %v3492 = vpop.permute.xlu0 %3491
        %v3493 = vsel %vm1017, %v3478, %v3486
        %v3494 = vsel %vm1017, %v3480, %v3488
        %v3495 = vsel %vm1017, %v3482, %v3490
        %v3496 = vsel %vm1017, %v3484, %v3492
        %v3497 = vsel %vm1017, %v3470, %v3478
        %v3498 = vsel %vm1017, %v3472, %v3480
        %v3499 = vsel %vm1017, %v3474, %v3482
        %v3500 = vsel %vm1017, %v3476, %v3484
        %v3501 = vsel %vm1017, %v3462, %v3470
        %v3502 = vsel %vm1017, %v3464, %v3472
        %v3503 = vsel %vm1017, %v3466, %v3474
        %v3504 = vsel %vm1017, %v3468, %v3476
        %v3505 = vsel %vm1017, %v3486, %v3462
        %v3506 = vsel %vm1017, %v3488, %v3464
        %v3507 = vsel %vm1017, %v3490, %v3466
        %v3508 = vsel %vm1017, %v3492, %v3468
        %v3509 = vmul.f32 %v3505, %v1026
        %v3510 = vmul.f32 %v3501, %v1027
        %v3511 = vmul.f32 %v3497, %v1028
        %v3512 = vmul.f32 %v3493, %v1029
        %v3513 = vmul.f32 %v3506, %v1026
        %v3514 = vmul.f32 %v3502, %v1027
        %v3515 = vmul.f32 %v3498, %v1028
        %v3516 = vmul.f32 %v3494, %v1029
        %v3517 = vmul.f32 %v3507, %v1026
        %v3518 = vmul.f32 %v3503, %v1027
        %v3519 = vmul.f32 %v3499, %v1028
        %v3520 = vmul.f32 %v3495, %v1029
        %v3521 = vmul.f32 %v3508, %v1026
        %v3522 = vmul.f32 %v3504, %v1027
        %v3523 = vmul.f32 %v3500, %v1028
        %v3524 = vmul.f32 %v3496, %v1029
        %3525 = vst [vmem:[#allocation2 + $0x80] sm:$0xff] %v3509
        %3526 = vst [vmem:[#allocation2 + $0x88] sm:$0xff] %v3510
        %3527 = vst [vmem:[#allocation2 + $0x90] sm:$0xff] %v3511
        %3528 = vst [vmem:[#allocation2 + $0x98] sm:$0xff] %v3512
        %3529 = vst [vmem:[#allocation2 + $0xa0] sm:$0xff] %v3513
        %3530 = vst [vmem:[#allocation2 + $0xa8] sm:$0xff] %v3514
        %3531 = vst [vmem:[#allocation2 + $0xb0] sm:$0xff] %v3515
        %3532 = vst [vmem:[#allocation2 + $0xb8] sm:$0xff] %v3516
        %3533 = vst [vmem:[#allocation2 + $0xc0] sm:$0xff] %v3517
        %3534 = vst [vmem:[#allocation2 + $0xc8] sm:$0xff] %v3518
        %3535 = vst [vmem:[#allocation2 + $0xd0] sm:$0xff] %v3519
        %3536 = vst [vmem:[#allocation2 + $0xd8] sm:$0xff] %v3520
        %3537 = vst [vmem:[#allocation2 + $0xe0] sm:$0xff] %v3521
        %3538 = vst [vmem:[#allocation2 + $0xe8] sm:$0xff] %v3522
        %3539 = vst [vmem:[#allocation2 + $0xf0] sm:$0xff] %v3523
        %3540 = vst [vmem:[#allocation2 + $0xf8] sm:$0xff] %v3524
        %3541 = vrot.lane.b32.xlu0 %v3361, 71
        %v3542 = vpop.permute.xlu0 %3541
        %3543 = vrot.lane.b32.xlu0 %v3365, 71
        %v3544 = vpop.permute.xlu0 %3543
        %3545 = vrot.lane.b32.xlu0 %v3369, 71
        %v3546 = vpop.permute.xlu0 %3545
        %3547 = vrot.lane.b32.xlu0 %v3373, 71
        %v3548 = vpop.permute.xlu0 %3547
        %3549 = vrot.lane.b32.xlu0 %v3362, 71
        %v3550 = vpop.permute.xlu0 %3549
        %3551 = vrot.lane.b32.xlu0 %v3366, 71
        %v3552 = vpop.permute.xlu0 %3551
        %3553 = vrot.lane.b32.xlu0 %v3370, 71
        %v3554 = vpop.permute.xlu0 %3553
        %3555 = vrot.lane.b32.xlu0 %v3374, 71
        %v3556 = vpop.permute.xlu0 %3555
        %3557 = vrot.lane.b32.xlu0 %v3363, 71
        %v3558 = vpop.permute.xlu0 %3557
        %3559 = vrot.lane.b32.xlu0 %v3367, 71
        %v3560 = vpop.permute.xlu0 %3559
        %3561 = vrot.lane.b32.xlu0 %v3371, 71
        %v3562 = vpop.permute.xlu0 %3561
        %3563 = vrot.lane.b32.xlu0 %v3375, 71
        %v3564 = vpop.permute.xlu0 %3563
        %3565 = vrot.lane.b32.xlu0 %v3364, 71
        %v3566 = vpop.permute.xlu0 %3565
        %3567 = vrot.lane.b32.xlu0 %v3368, 71
        %v3568 = vpop.permute.xlu0 %3567
        %3569 = vrot.lane.b32.xlu0 %v3372, 71
        %v3570 = vpop.permute.xlu0 %3569
        %3571 = vrot.lane.b32.xlu0 %v3376, 71
        %v3572 = vpop.permute.xlu0 %3571
        %v3573 = vsel %vm1062, %v3558, %v3566
        %v3574 = vsel %vm1062, %v3560, %v3568
        %v3575 = vsel %vm1062, %v3562, %v3570
        %v3576 = vsel %vm1062, %v3564, %v3572
        %v3577 = vsel %vm1062, %v3550, %v3558
        %v3578 = vsel %vm1062, %v3552, %v3560
        %v3579 = vsel %vm1062, %v3554, %v3562
        %v3580 = vsel %vm1062, %v3556, %v3564
        %v3581 = vsel %vm1062, %v3542, %v3550
        %v3582 = vsel %vm1062, %v3544, %v3552
        %v3583 = vsel %vm1062, %v3546, %v3554
        %v3584 = vsel %vm1062, %v3548, %v3556
        %v3585 = vsel %vm1062, %v3566, %v3542
        %v3586 = vsel %vm1062, %v3568, %v3544
        %v3587 = vsel %vm1062, %v3570, %v3546
        %v3588 = vsel %vm1062, %v3572, %v3548
        %v3589 = vmul.f32 %v3585, %v1071
        %v3590 = vmul.f32 %v3581, %v1072
        %v3591 = vmul.f32 %v3577, %v1073
        %v3592 = vmul.f32 %v3573, %v1074
        %v3593 = vmul.f32 %v3586, %v1071
        %v3594 = vmul.f32 %v3582, %v1072
        %v3595 = vmul.f32 %v3578, %v1073
        %v3596 = vmul.f32 %v3574, %v1074
        %v3597 = vmul.f32 %v3587, %v1071
        %v3598 = vmul.f32 %v3583, %v1072
        %v3599 = vmul.f32 %v3579, %v1073
        %v3600 = vmul.f32 %v3575, %v1074
        %v3601 = vmul.f32 %v3588, %v1071
        %v3602 = vmul.f32 %v3584, %v1072
        %v3603 = vmul.f32 %v3580, %v1073
        %v3604 = vmul.f32 %v3576, %v1074
        %3605 = vst [vmem:[#allocation2 + $0x100] sm:$0xff] %v3589
        %3606 = vst [vmem:[#allocation2 + $0x108] sm:$0xff] %v3590
        %3607 = vst [vmem:[#allocation2 + $0x110] sm:$0xff] %v3591
        %3608 = vst [vmem:[#allocation2 + $0x118] sm:$0xff] %v3592
        %3609 = vst [vmem:[#allocation2 + $0x120] sm:$0xff] %v3593
        %3610 = vst [vmem:[#allocation2 + $0x128] sm:$0xff] %v3594
        %3611 = vst [vmem:[#allocation2 + $0x130] sm:$0xff] %v3595
        %3612 = vst [vmem:[#allocation2 + $0x138] sm:$0xff] %v3596
        %3613 = vst [vmem:[#allocation2 + $0x140] sm:$0xff] %v3597
        %3614 = vst [vmem:[#allocation2 + $0x148] sm:$0xff] %v3598
        %3615 = vst [vmem:[#allocation2 + $0x150] sm:$0xff] %v3599
        %3616 = vst [vmem:[#allocation2 + $0x158] sm:$0xff] %v3600
        %3617 = vst [vmem:[#allocation2 + $0x160] sm:$0xff] %v3601
        %3618 = vst [vmem:[#allocation2 + $0x168] sm:$0xff] %v3602
        %3619 = vst [vmem:[#allocation2 + $0x170] sm:$0xff] %v3603
        %3620 = vst [vmem:[#allocation2 + $0x178] sm:$0xff] %v3604
        %3621 = vrot.lane.b32.xlu0 %v3361, 65
        %v3622 = vpop.permute.xlu0 %3621
        %3623 = vrot.lane.b32.xlu0 %v3365, 65
        %v3624 = vpop.permute.xlu0 %3623
        %3625 = vrot.lane.b32.xlu0 %v3369, 65
        %v3626 = vpop.permute.xlu0 %3625
        %3627 = vrot.lane.b32.xlu0 %v3373, 65
        %v3628 = vpop.permute.xlu0 %3627
        %3629 = vrot.lane.b32.xlu0 %v3362, 65
        %v3630 = vpop.permute.xlu0 %3629
        %3631 = vrot.lane.b32.xlu0 %v3366, 65
        %v3632 = vpop.permute.xlu0 %3631
        %3633 = vrot.lane.b32.xlu0 %v3370, 65
        %v3634 = vpop.permute.xlu0 %3633
        %3635 = vrot.lane.b32.xlu0 %v3374, 65
        %v3636 = vpop.permute.xlu0 %3635
        %3637 = vrot.lane.b32.xlu0 %v3363, 65
        %v3638 = vpop.permute.xlu0 %3637
        %3639 = vrot.lane.b32.xlu0 %v3367, 65
        %v3640 = vpop.permute.xlu0 %3639
        %3641 = vrot.lane.b32.xlu0 %v3371, 65
        %v3642 = vpop.permute.xlu0 %3641
        %3643 = vrot.lane.b32.xlu0 %v3375, 65
        %v3644 = vpop.permute.xlu0 %3643
        %3645 = vrot.lane.b32.xlu0 %v3364, 65
        %v3646 = vpop.permute.xlu0 %3645
        %3647 = vrot.lane.b32.xlu0 %v3368, 65
        %v3648 = vpop.permute.xlu0 %3647
        %3649 = vrot.lane.b32.xlu0 %v3372, 65
        %v3650 = vpop.permute.xlu0 %3649
        %3651 = vrot.lane.b32.xlu0 %v3376, 65
        %v3652 = vpop.permute.xlu0 %3651
        %v3653 = vsel %vm1107, %v3638, %v3646
        %v3654 = vsel %vm1107, %v3640, %v3648
        %v3655 = vsel %vm1107, %v3642, %v3650
        %v3656 = vsel %vm1107, %v3644, %v3652
        %v3657 = vsel %vm1107, %v3630, %v3638
        %v3658 = vsel %vm1107, %v3632, %v3640
        %v3659 = vsel %vm1107, %v3634, %v3642
        %v3660 = vsel %vm1107, %v3636, %v3644
        %v3661 = vsel %vm1107, %v3622, %v3630
        %v3662 = vsel %vm1107, %v3624, %v3632
        %v3663 = vsel %vm1107, %v3626, %v3634
        %v3664 = vsel %vm1107, %v3628, %v3636
        %v3665 = vsel %vm1107, %v3646, %v3622
        %v3666 = vsel %vm1107, %v3648, %v3624
        %v3667 = vsel %vm1107, %v3650, %v3626
        %v3668 = vsel %vm1107, %v3652, %v3628
        %v3669 = vmul.f32 %v3665, %v1116
        %v3670 = vmul.f32 %v3661, %v1117
        %v3671 = vmul.f32 %v3657, %v1118
        %v3672 = vmul.f32 %v3653, %v1119
        %v3673 = vmul.f32 %v3666, %v1116
        %v3674 = vmul.f32 %v3662, %v1117
        %v3675 = vmul.f32 %v3658, %v1118
        %v3676 = vmul.f32 %v3654, %v1119
        %v3677 = vmul.f32 %v3667, %v1116
        %v3678 = vmul.f32 %v3663, %v1117
        %v3679 = vmul.f32 %v3659, %v1118
        %v3680 = vmul.f32 %v3655, %v1119
        %v3681 = vmul.f32 %v3668, %v1116
        %v3682 = vmul.f32 %v3664, %v1117
        %v3683 = vmul.f32 %v3660, %v1118
        %v3684 = vmul.f32 %v3656, %v1119
        %3685 = vst [vmem:[#allocation2 + $0x180] sm:$0xff] %v3669
        %3686 = vst [vmem:[#allocation2 + $0x188] sm:$0xff] %v3670
        %3687 = vst [vmem:[#allocation2 + $0x190] sm:$0xff] %v3671
        %3688 = vst [vmem:[#allocation2 + $0x198] sm:$0xff] %v3672
        %3689 = vst [vmem:[#allocation2 + $0x1a0] sm:$0xff] %v3673
        %3690 = vst [vmem:[#allocation2 + $0x1a8] sm:$0xff] %v3674
        %3691 = vst [vmem:[#allocation2 + $0x1b0] sm:$0xff] %v3675
        %3692 = vst [vmem:[#allocation2 + $0x1b8] sm:$0xff] %v3676
        %3693 = vst [vmem:[#allocation2 + $0x1c0] sm:$0xff] %v3677
        %3694 = vst [vmem:[#allocation2 + $0x1c8] sm:$0xff] %v3678
        %3695 = vst [vmem:[#allocation2 + $0x1d0] sm:$0xff] %v3679
        %3696 = vst [vmem:[#allocation2 + $0x1d8] sm:$0xff] %v3680
        %3697 = vst [vmem:[#allocation2 + $0x1e0] sm:$0xff] %v3681
        %3698 = vst [vmem:[#allocation2 + $0x1e8] sm:$0xff] %v3682
        %3699 = vst [vmem:[#allocation2 + $0x1f0] sm:$0xff] %v3683
        %3700 = vst [vmem:[#allocation2 + $0x1f8] sm:$0xff] %v3684
        %3701 = vrot.lane.b32.xlu0 %v3361, 64
        %v3702 = vpop.permute.xlu0 %3701
        %3703 = vrot.lane.b32.xlu0 %v3365, 64
        %v3704 = vpop.permute.xlu0 %3703
        %3705 = vrot.lane.b32.xlu0 %v3369, 64
        %v3706 = vpop.permute.xlu0 %3705
        %3707 = vrot.lane.b32.xlu0 %v3373, 64
        %v3708 = vpop.permute.xlu0 %3707
        %3709 = vrot.lane.b32.xlu0 %v3362, 64
        %v3710 = vpop.permute.xlu0 %3709
        %3711 = vrot.lane.b32.xlu0 %v3366, 64
        %v3712 = vpop.permute.xlu0 %3711
        %3713 = vrot.lane.b32.xlu0 %v3370, 64
        %v3714 = vpop.permute.xlu0 %3713
        %3715 = vrot.lane.b32.xlu0 %v3374, 64
        %v3716 = vpop.permute.xlu0 %3715
        %3717 = vrot.lane.b32.xlu0 %v3363, 64
        %v3718 = vpop.permute.xlu0 %3717
        %3719 = vrot.lane.b32.xlu0 %v3367, 64
        %v3720 = vpop.permute.xlu0 %3719
        %3721 = vrot.lane.b32.xlu0 %v3371, 64
        %v3722 = vpop.permute.xlu0 %3721
        %3723 = vrot.lane.b32.xlu0 %v3375, 64
        %v3724 = vpop.permute.xlu0 %3723
        %3725 = vrot.lane.b32.xlu0 %v3364, 64
        %v3726 = vpop.permute.xlu0 %3725
        %3727 = vrot.lane.b32.xlu0 %v3368, 64
        %v3728 = vpop.permute.xlu0 %3727
        %3729 = vrot.lane.b32.xlu0 %v3372, 64
        %v3730 = vpop.permute.xlu0 %3729
        %3731 = vrot.lane.b32.xlu0 %v3376, 64
        %v3732 = vpop.permute.xlu0 %3731
        %v3733 = vsel %vm1152, %v3718, %v3726
        %v3734 = vsel %vm1152, %v3720, %v3728
        %v3735 = vsel %vm1152, %v3722, %v3730
        %v3736 = vsel %vm1152, %v3724, %v3732
        %v3737 = vsel %vm1152, %v3710, %v3718
        %v3738 = vsel %vm1152, %v3712, %v3720
        %v3739 = vsel %vm1152, %v3714, %v3722
        %v3740 = vsel %vm1152, %v3716, %v3724
        %v3741 = vsel %vm1152, %v3702, %v3710
        %v3742 = vsel %vm1152, %v3704, %v3712
        %v3743 = vsel %vm1152, %v3706, %v3714
        %v3744 = vsel %vm1152, %v3708, %v3716
        %v3745 = vsel %vm1152, %v3726, %v3702
        %v3746 = vsel %vm1152, %v3728, %v3704
        %v3747 = vsel %vm1152, %v3730, %v3706
        %v3748 = vsel %vm1152, %v3732, %v3708
        %v3749 = vmul.f32 %v3745, %v1161
        %v3750 = vmul.f32 %v3741, %v1162
        %v3751 = vmul.f32 %v3737, %v1163
        %v3752 = vmul.f32 %v3733, %v1164
        %v3753 = vmul.f32 %v3746, %v1161
        %v3754 = vmul.f32 %v3742, %v1162
        %v3755 = vmul.f32 %v3738, %v1163
        %v3756 = vmul.f32 %v3734, %v1164
        %v3757 = vmul.f32 %v3747, %v1161
        %v3758 = vmul.f32 %v3743, %v1162
        %v3759 = vmul.f32 %v3739, %v1163
        %v3760 = vmul.f32 %v3735, %v1164
        %v3761 = vmul.f32 %v3748, %v1161
        %v3762 = vmul.f32 %v3744, %v1162
        %v3763 = vmul.f32 %v3740, %v1163
        %v3764 = vmul.f32 %v3736, %v1164
        %3765 = vst [vmem:[#allocation2 + $0x200] sm:$0xff] %v3749
        %3766 = vst [vmem:[#allocation2 + $0x208] sm:$0xff] %v3750
        %3767 = vst [vmem:[#allocation2 + $0x210] sm:$0xff] %v3751
        %3768 = vst [vmem:[#allocation2 + $0x218] sm:$0xff] %v3752
        %3769 = vst [vmem:[#allocation2 + $0x220] sm:$0xff] %v3753
        %3770 = vst [vmem:[#allocation2 + $0x228] sm:$0xff] %v3754
        %3771 = vst [vmem:[#allocation2 + $0x230] sm:$0xff] %v3755
        %3772 = vst [vmem:[#allocation2 + $0x238] sm:$0xff] %v3756
        %3773 = vst [vmem:[#allocation2 + $0x240] sm:$0xff] %v3757
        %3774 = vst [vmem:[#allocation2 + $0x248] sm:$0xff] %v3758
        %3775 = vst [vmem:[#allocation2 + $0x250] sm:$0xff] %v3759
        %3776 = vst [vmem:[#allocation2 + $0x258] sm:$0xff] %v3760
        %3777 = vst [vmem:[#allocation2 + $0x260] sm:$0xff] %v3761
        %3778 = vst [vmem:[#allocation2 + $0x268] sm:$0xff] %v3762
        %3779 = vst [vmem:[#allocation2 + $0x270] sm:$0xff] %v3763
        %3780 = vst [vmem:[#allocation2 + $0x278] sm:$0xff] %v3764
        %3781 = vrot.lane.b32.xlu0 %v3361, 63
        %v3782 = vpop.permute.xlu0 %3781
        %3783 = vrot.lane.b32.xlu0 %v3365, 63
        %v3784 = vpop.permute.xlu0 %3783
        %3785 = vrot.lane.b32.xlu0 %v3369, 63
        %v3786 = vpop.permute.xlu0 %3785
        %3787 = vrot.lane.b32.xlu0 %v3373, 63
        %v3788 = vpop.permute.xlu0 %3787
        %3789 = vrot.lane.b32.xlu0 %v3362, 63
        %v3790 = vpop.permute.xlu0 %3789
        %3791 = vrot.lane.b32.xlu0 %v3366, 63
        %v3792 = vpop.permute.xlu0 %3791
        %3793 = vrot.lane.b32.xlu0 %v3370, 63
        %v3794 = vpop.permute.xlu0 %3793
        %3795 = vrot.lane.b32.xlu0 %v3374, 63
        %v3796 = vpop.permute.xlu0 %3795
        %3797 = vrot.lane.b32.xlu0 %v3363, 63
        %v3798 = vpop.permute.xlu0 %3797
        %3799 = vrot.lane.b32.xlu0 %v3367, 63
        %v3800 = vpop.permute.xlu0 %3799
        %3801 = vrot.lane.b32.xlu0 %v3371, 63
        %v3802 = vpop.permute.xlu0 %3801
        %3803 = vrot.lane.b32.xlu0 %v3375, 63
        %v3804 = vpop.permute.xlu0 %3803
        %3805 = vrot.lane.b32.xlu0 %v3364, 63
        %v3806 = vpop.permute.xlu0 %3805
        %3807 = vrot.lane.b32.xlu0 %v3368, 63
        %v3808 = vpop.permute.xlu0 %3807
        %3809 = vrot.lane.b32.xlu0 %v3372, 63
        %v3810 = vpop.permute.xlu0 %3809
        %3811 = vrot.lane.b32.xlu0 %v3376, 63
        %v3812 = vpop.permute.xlu0 %3811
        %v3813 = vsel %vm1197, %v3798, %v3806
        %v3814 = vsel %vm1197, %v3800, %v3808
        %v3815 = vsel %vm1197, %v3802, %v3810
        %v3816 = vsel %vm1197, %v3804, %v3812
        %v3817 = vsel %vm1197, %v3790, %v3798
        %v3818 = vsel %vm1197, %v3792, %v3800
        %v3819 = vsel %vm1197, %v3794, %v3802
        %v3820 = vsel %vm1197, %v3796, %v3804
        %v3821 = vsel %vm1197, %v3782, %v3790
        %v3822 = vsel %vm1197, %v3784, %v3792
        %v3823 = vsel %vm1197, %v3786, %v3794
        %v3824 = vsel %vm1197, %v3788, %v3796
        %v3825 = vsel %vm1197, %v3806, %v3782
        %v3826 = vsel %vm1197, %v3808, %v3784
        %v3827 = vsel %vm1197, %v3810, %v3786
        %v3828 = vsel %vm1197, %v3812, %v3788
        %v3829 = vmul.f32 %v3825, %v1206
        %v3830 = vmul.f32 %v3821, %v1207
        %v3831 = vmul.f32 %v3817, %v1208
        %v3832 = vmul.f32 %v3813, %v1209
        %v3833 = vmul.f32 %v3826, %v1206
        %v3834 = vmul.f32 %v3822, %v1207
        %v3835 = vmul.f32 %v3818, %v1208
        %v3836 = vmul.f32 %v3814, %v1209
        %v3837 = vmul.f32 %v3827, %v1206
        %v3838 = vmul.f32 %v3823, %v1207
        %v3839 = vmul.f32 %v3819, %v1208
        %v3840 = vmul.f32 %v3815, %v1209
        %v3841 = vmul.f32 %v3828, %v1206
        %v3842 = vmul.f32 %v3824, %v1207
        %v3843 = vmul.f32 %v3820, %v1208
        %v3844 = vmul.f32 %v3816, %v1209
        %3845 = vst [vmem:[#allocation2 + $0x280] sm:$0xff] %v3829
        %3846 = vst [vmem:[#allocation2 + $0x288] sm:$0xff] %v3830
        %3847 = vst [vmem:[#allocation2 + $0x290] sm:$0xff] %v3831
        %3848 = vst [vmem:[#allocation2 + $0x298] sm:$0xff] %v3832
        %3849 = vst [vmem:[#allocation2 + $0x2a0] sm:$0xff] %v3833
        %3850 = vst [vmem:[#allocation2 + $0x2a8] sm:$0xff] %v3834
        %3851 = vst [vmem:[#allocation2 + $0x2b0] sm:$0xff] %v3835
        %3852 = vst [vmem:[#allocation2 + $0x2b8] sm:$0xff] %v3836
        %3853 = vst [vmem:[#allocation2 + $0x2c0] sm:$0xff] %v3837
        %3854 = vst [vmem:[#allocation2 + $0x2c8] sm:$0xff] %v3838
        %3855 = vst [vmem:[#allocation2 + $0x2d0] sm:$0xff] %v3839
        %3856 = vst [vmem:[#allocation2 + $0x2d8] sm:$0xff] %v3840
        %3857 = vst [vmem:[#allocation2 + $0x2e0] sm:$0xff] %v3841
        %3858 = vst [vmem:[#allocation2 + $0x2e8] sm:$0xff] %v3842
        %3859 = vst [vmem:[#allocation2 + $0x2f0] sm:$0xff] %v3843
        %3860 = vst [vmem:[#allocation2 + $0x2f8] sm:$0xff] %v3844
        %3861 = vrot.lane.b32.xlu0 %v3361, 57
        %v3862 = vpop.permute.xlu0 %3861
        %3863 = vrot.lane.b32.xlu0 %v3365, 57
        %v3864 = vpop.permute.xlu0 %3863
        %3865 = vrot.lane.b32.xlu0 %v3369, 57
        %v3866 = vpop.permute.xlu0 %3865
        %3867 = vrot.lane.b32.xlu0 %v3373, 57
        %v3868 = vpop.permute.xlu0 %3867
        %3869 = vrot.lane.b32.xlu0 %v3362, 57
        %v3870 = vpop.permute.xlu0 %3869
        %3871 = vrot.lane.b32.xlu0 %v3366, 57
        %v3872 = vpop.permute.xlu0 %3871
        %3873 = vrot.lane.b32.xlu0 %v3370, 57
        %v3874 = vpop.permute.xlu0 %3873
        %3875 = vrot.lane.b32.xlu0 %v3374, 57
        %v3876 = vpop.permute.xlu0 %3875
        %3877 = vrot.lane.b32.xlu0 %v3363, 57
        %v3878 = vpop.permute.xlu0 %3877
        %3879 = vrot.lane.b32.xlu0 %v3367, 57
        %v3880 = vpop.permute.xlu0 %3879
        %3881 = vrot.lane.b32.xlu0 %v3371, 57
        %v3882 = vpop.permute.xlu0 %3881
        %3883 = vrot.lane.b32.xlu0 %v3375, 57
        %v3884 = vpop.permute.xlu0 %3883
        %3885 = vrot.lane.b32.xlu0 %v3364, 57
        %v3886 = vpop.permute.xlu0 %3885
        %3887 = vrot.lane.b32.xlu0 %v3368, 57
        %v3888 = vpop.permute.xlu0 %3887
        %3889 = vrot.lane.b32.xlu0 %v3372, 57
        %v3890 = vpop.permute.xlu0 %3889
        %3891 = vrot.lane.b32.xlu0 %v3376, 57
        %v3892 = vpop.permute.xlu0 %3891
        %v3893 = vsel %vm1242, %v3878, %v3886
        %v3894 = vsel %vm1242, %v3880, %v3888
        %v3895 = vsel %vm1242, %v3882, %v3890
        %v3896 = vsel %vm1242, %v3884, %v3892
        %v3897 = vsel %vm1242, %v3870, %v3878
        %v3898 = vsel %vm1242, %v3872, %v3880
        %v3899 = vsel %vm1242, %v3874, %v3882
        %v3900 = vsel %vm1242, %v3876, %v3884
        %v3901 = vsel %vm1242, %v3862, %v3870
        %v3902 = vsel %vm1242, %v3864, %v3872
        %v3903 = vsel %vm1242, %v3866, %v3874
        %v3904 = vsel %vm1242, %v3868, %v3876
        %v3905 = vsel %vm1242, %v3886, %v3862
        %v3906 = vsel %vm1242, %v3888, %v3864
        %v3907 = vsel %vm1242, %v3890, %v3866
        %v3908 = vsel %vm1242, %v3892, %v3868
        %v3909 = vmul.f32 %v3905, %v1251
        %v3910 = vmul.f32 %v3901, %v1252
        %v3911 = vmul.f32 %v3897, %v1253
        %v3912 = vmul.f32 %v3893, %v1254
        %v3913 = vmul.f32 %v3906, %v1251
        %v3914 = vmul.f32 %v3902, %v1252
        %v3915 = vmul.f32 %v3898, %v1253
        %v3916 = vmul.f32 %v3894, %v1254
        %v3917 = vmul.f32 %v3907, %v1251
        %v3918 = vmul.f32 %v3903, %v1252
        %v3919 = vmul.f32 %v3899, %v1253
        %v3920 = vmul.f32 %v3895, %v1254
        %v3921 = vmul.f32 %v3908, %v1251
        %v3922 = vmul.f32 %v3904, %v1252
        %v3923 = vmul.f32 %v3900, %v1253
        %v3924 = vmul.f32 %v3896, %v1254
        %3925 = vst [vmem:[#allocation2 + $0x300] sm:$0xff] %v3909
        %3926 = vst [vmem:[#allocation2 + $0x308] sm:$0xff] %v3910
        %3927 = vst [vmem:[#allocation2 + $0x310] sm:$0xff] %v3911
        %3928 = vst [vmem:[#allocation2 + $0x318] sm:$0xff] %v3912
        %3929 = vst [vmem:[#allocation2 + $0x320] sm:$0xff] %v3913
        %3930 = vst [vmem:[#allocation2 + $0x328] sm:$0xff] %v3914
        %3931 = vst [vmem:[#allocation2 + $0x330] sm:$0xff] %v3915
        %3932 = vst [vmem:[#allocation2 + $0x338] sm:$0xff] %v3916
        %3933 = vst [vmem:[#allocation2 + $0x340] sm:$0xff] %v3917
        %3934 = vst [vmem:[#allocation2 + $0x348] sm:$0xff] %v3918
        %3935 = vst [vmem:[#allocation2 + $0x350] sm:$0xff] %v3919
        %3936 = vst [vmem:[#allocation2 + $0x358] sm:$0xff] %v3920
        %3937 = vst [vmem:[#allocation2 + $0x360] sm:$0xff] %v3921
        %3938 = vst [vmem:[#allocation2 + $0x368] sm:$0xff] %v3922
        %3939 = vst [vmem:[#allocation2 + $0x370] sm:$0xff] %v3923
        %3940 = vst [vmem:[#allocation2 + $0x378] sm:$0xff] %v3924
        %3941 = vrot.lane.b32.xlu0 %v3361, 56
        %v3942 = vpop.permute.xlu0 %3941
        %3943 = vrot.lane.b32.xlu0 %v3365, 56
        %v3944 = vpop.permute.xlu0 %3943
        %3945 = vrot.lane.b32.xlu0 %v3369, 56
        %v3946 = vpop.permute.xlu0 %3945
        %3947 = vrot.lane.b32.xlu0 %v3373, 56
        %v3948 = vpop.permute.xlu0 %3947
        %3949 = vrot.lane.b32.xlu0 %v3362, 56
        %v3950 = vpop.permute.xlu0 %3949
        %3951 = vrot.lane.b32.xlu0 %v3366, 56
        %v3952 = vpop.permute.xlu0 %3951
        %3953 = vrot.lane.b32.xlu0 %v3370, 56
        %v3954 = vpop.permute.xlu0 %3953
        %3955 = vrot.lane.b32.xlu0 %v3374, 56
        %v3956 = vpop.permute.xlu0 %3955
        %3957 = vrot.lane.b32.xlu0 %v3363, 56
        %v3958 = vpop.permute.xlu0 %3957
        %3959 = vrot.lane.b32.xlu0 %v3367, 56
        %v3960 = vpop.permute.xlu0 %3959
        %3961 = vrot.lane.b32.xlu0 %v3371, 56
        %v3962 = vpop.permute.xlu0 %3961
        %3963 = vrot.lane.b32.xlu0 %v3375, 56
        %v3964 = vpop.permute.xlu0 %3963
        %3965 = vrot.lane.b32.xlu0 %v3364, 56
        %v3966 = vpop.permute.xlu0 %3965
        %3967 = vrot.lane.b32.xlu0 %v3368, 56
        %v3968 = vpop.permute.xlu0 %3967
        %3969 = vrot.lane.b32.xlu0 %v3372, 56
        %v3970 = vpop.permute.xlu0 %3969
        %3971 = vrot.lane.b32.xlu0 %v3376, 56
        %v3972 = vpop.permute.xlu0 %3971
        %v3973 = vsel %vm1287, %v3958, %v3966
        %v3974 = vsel %vm1287, %v3960, %v3968
        %v3975 = vsel %vm1287, %v3962, %v3970
        %v3976 = vsel %vm1287, %v3964, %v3972
        %v3977 = vsel %vm1287, %v3950, %v3958
        %v3978 = vsel %vm1287, %v3952, %v3960
        %v3979 = vsel %vm1287, %v3954, %v3962
        %v3980 = vsel %vm1287, %v3956, %v3964
        %v3981 = vsel %vm1287, %v3942, %v3950
        %v3982 = vsel %vm1287, %v3944, %v3952
        %v3983 = vsel %vm1287, %v3946, %v3954
        %v3984 = vsel %vm1287, %v3948, %v3956
        %v3985 = vsel %vm1287, %v3966, %v3942
        %v3986 = vsel %vm1287, %v3968, %v3944
        %v3987 = vsel %vm1287, %v3970, %v3946
        %v3988 = vsel %vm1287, %v3972, %v3948
        %v3989 = vmul.f32 %v3985, %v1296
        %v3990 = vmul.f32 %v3981, %v1297
        %v3991 = vmul.f32 %v3977, %v1298
        %v3992 = vmul.f32 %v3973, %v1299
        %v3993 = vmul.f32 %v3986, %v1296
        %v3994 = vmul.f32 %v3982, %v1297
        %v3995 = vmul.f32 %v3978, %v1298
        %v3996 = vmul.f32 %v3974, %v1299
        %v3997 = vmul.f32 %v3987, %v1296
        %v3998 = vmul.f32 %v3983, %v1297
        %v3999 = vmul.f32 %v3979, %v1298
        %v4000 = vmul.f32 %v3975, %v1299
        %v4001 = vmul.f32 %v3988, %v1296
        %v4002 = vmul.f32 %v3984, %v1297
        %v4003 = vmul.f32 %v3980, %v1298
        %v4004 = vmul.f32 %v3976, %v1299
        %4005 = vst [vmem:[#allocation2 + $0x380] sm:$0xff] %v3989
        %4006 = vst [vmem:[#allocation2 + $0x388] sm:$0xff] %v3990
        %4007 = vst [vmem:[#allocation2 + $0x390] sm:$0xff] %v3991
        %4008 = vst [vmem:[#allocation2 + $0x398] sm:$0xff] %v3992
        %4009 = vst [vmem:[#allocation2 + $0x3a0] sm:$0xff] %v3993
        %4010 = vst [vmem:[#allocation2 + $0x3a8] sm:$0xff] %v3994
        %4011 = vst [vmem:[#allocation2 + $0x3b0] sm:$0xff] %v3995
        %4012 = vst [vmem:[#allocation2 + $0x3b8] sm:$0xff] %v3996
        %4013 = vst [vmem:[#allocation2 + $0x3c0] sm:$0xff] %v3997
        %4014 = vst [vmem:[#allocation2 + $0x3c8] sm:$0xff] %v3998
        %4015 = vst [vmem:[#allocation2 + $0x3d0] sm:$0xff] %v3999
        %4016 = vst [vmem:[#allocation2 + $0x3d8] sm:$0xff] %v4000
        %4017 = vst [vmem:[#allocation2 + $0x3e0] sm:$0xff] %v4001
        %4018 = vst [vmem:[#allocation2 + $0x3e8] sm:$0xff] %v4002
        %4019 = vst [vmem:[#allocation2 + $0x3f0] sm:$0xff] %v4003
        %4020 = vst [vmem:[#allocation2 + $0x3f8] sm:$0xff] %v4004
        %4021 = vrot.lane.b32.xlu0 %v3361, 55
        %v4022 = vpop.permute.xlu0 %4021
        %4023 = vrot.lane.b32.xlu0 %v3365, 55
        %v4024 = vpop.permute.xlu0 %4023
        %4025 = vrot.lane.b32.xlu0 %v3369, 55
        %v4026 = vpop.permute.xlu0 %4025
        %4027 = vrot.lane.b32.xlu0 %v3373, 55
        %v4028 = vpop.permute.xlu0 %4027
        %4029 = vrot.lane.b32.xlu0 %v3362, 55
        %v4030 = vpop.permute.xlu0 %4029
        %4031 = vrot.lane.b32.xlu0 %v3366, 55
        %v4032 = vpop.permute.xlu0 %4031
        %4033 = vrot.lane.b32.xlu0 %v3370, 55
        %v4034 = vpop.permute.xlu0 %4033
        %4035 = vrot.lane.b32.xlu0 %v3374, 55
        %v4036 = vpop.permute.xlu0 %4035
        %4037 = vrot.lane.b32.xlu0 %v3363, 55
        %v4038 = vpop.permute.xlu0 %4037
        %4039 = vrot.lane.b32.xlu0 %v3367, 55
        %v4040 = vpop.permute.xlu0 %4039
        %4041 = vrot.lane.b32.xlu0 %v3371, 55
        %v4042 = vpop.permute.xlu0 %4041
        %4043 = vrot.lane.b32.xlu0 %v3375, 55
        %v4044 = vpop.permute.xlu0 %4043
        %4045 = vrot.lane.b32.xlu0 %v3364, 55
        %v4046 = vpop.permute.xlu0 %4045
        %4047 = vrot.lane.b32.xlu0 %v3368, 55
        %v4048 = vpop.permute.xlu0 %4047
        %4049 = vrot.lane.b32.xlu0 %v3372, 55
        %v4050 = vpop.permute.xlu0 %4049
        %4051 = vrot.lane.b32.xlu0 %v3376, 55
        %v4052 = vpop.permute.xlu0 %4051
        %v4053 = vsel %vm1332, %v4038, %v4046
        %v4054 = vsel %vm1332, %v4040, %v4048
        %v4055 = vsel %vm1332, %v4042, %v4050
        %v4056 = vsel %vm1332, %v4044, %v4052
        %v4057 = vsel %vm1332, %v4030, %v4038
        %v4058 = vsel %vm1332, %v4032, %v4040
        %v4059 = vsel %vm1332, %v4034, %v4042
        %v4060 = vsel %vm1332, %v4036, %v4044
        %v4061 = vsel %vm1332, %v4022, %v4030
        %v4062 = vsel %vm1332, %v4024, %v4032
        %v4063 = vsel %vm1332, %v4026, %v4034
        %v4064 = vsel %vm1332, %v4028, %v4036
        %v4065 = vsel %vm1332, %v4046, %v4022
        %v4066 = vsel %vm1332, %v4048, %v4024
        %v4067 = vsel %vm1332, %v4050, %v4026
        %v4068 = vsel %vm1332, %v4052, %v4028
        %v4069 = vmul.f32 %v4065, %v1341
        %v4070 = vmul.f32 %v4061, %v1342
        %v4071 = vmul.f32 %v4057, %v1343
        %v4072 = vmul.f32 %v4053, %v1344
        %v4073 = vmul.f32 %v4066, %v1341
        %v4074 = vmul.f32 %v4062, %v1342
        %v4075 = vmul.f32 %v4058, %v1343
        %v4076 = vmul.f32 %v4054, %v1344
        %v4077 = vmul.f32 %v4067, %v1341
        %v4078 = vmul.f32 %v4063, %v1342
        %v4079 = vmul.f32 %v4059, %v1343
        %v4080 = vmul.f32 %v4055, %v1344
        %v4081 = vmul.f32 %v4068, %v1341
        %v4082 = vmul.f32 %v4064, %v1342
        %v4083 = vmul.f32 %v4060, %v1343
        %v4084 = vmul.f32 %v4056, %v1344
        %4085 = vst [vmem:[#allocation2 + $0x400] sm:$0xff] %v4069
        %4086 = vst [vmem:[#allocation2 + $0x408] sm:$0xff] %v4070
        %4087 = vst [vmem:[#allocation2 + $0x410] sm:$0xff] %v4071
        %4088 = vst [vmem:[#allocation2 + $0x418] sm:$0xff] %v4072
        %4089 = vst [vmem:[#allocation2 + $0x420] sm:$0xff] %v4073
        %4090 = vst [vmem:[#allocation2 + $0x428] sm:$0xff] %v4074
        %4091 = vst [vmem:[#allocation2 + $0x430] sm:$0xff] %v4075
        %4092 = vst [vmem:[#allocation2 + $0x438] sm:$0xff] %v4076
        %4093 = vst [vmem:[#allocation2 + $0x440] sm:$0xff] %v4077
        %4094 = vst [vmem:[#allocation2 + $0x448] sm:$0xff] %v4078
        %4095 = vst [vmem:[#allocation2 + $0x450] sm:$0xff] %v4079
        %4096 = vst [vmem:[#allocation2 + $0x458] sm:$0xff] %v4080
        %4097 = vst [vmem:[#allocation2 + $0x460] sm:$0xff] %v4081
        %4098 = vst [vmem:[#allocation2 + $0x468] sm:$0xff] %v4082
        %4099 = vst [vmem:[#allocation2 + $0x470] sm:$0xff] %v4083
        %4100 = vst [vmem:[#allocation2 + $0x478] sm:$0xff] %v4084
        %4101 = vrot.lane.b32.xlu0 %v3361, 9
        %v4102 = vpop.permute.xlu0 %4101
        %4103 = vrot.lane.b32.xlu0 %v3365, 9
        %v4104 = vpop.permute.xlu0 %4103
        %4105 = vrot.lane.b32.xlu0 %v3369, 9
        %v4106 = vpop.permute.xlu0 %4105
        %4107 = vrot.lane.b32.xlu0 %v3373, 9
        %v4108 = vpop.permute.xlu0 %4107
        %4109 = vrot.lane.b32.xlu0 %v3362, 9
        %v4110 = vpop.permute.xlu0 %4109
        %4111 = vrot.lane.b32.xlu0 %v3366, 9
        %v4112 = vpop.permute.xlu0 %4111
        %4113 = vrot.lane.b32.xlu0 %v3370, 9
        %v4114 = vpop.permute.xlu0 %4113
        %4115 = vrot.lane.b32.xlu0 %v3374, 9
        %v4116 = vpop.permute.xlu0 %4115
        %4117 = vrot.lane.b32.xlu0 %v3363, 9
        %v4118 = vpop.permute.xlu0 %4117
        %4119 = vrot.lane.b32.xlu0 %v3367, 9
        %v4120 = vpop.permute.xlu0 %4119
        %4121 = vrot.lane.b32.xlu0 %v3371, 9
        %v4122 = vpop.permute.xlu0 %4121
        %4123 = vrot.lane.b32.xlu0 %v3375, 9
        %v4124 = vpop.permute.xlu0 %4123
        %4125 = vrot.lane.b32.xlu0 %v3364, 9
        %v4126 = vpop.permute.xlu0 %4125
        %4127 = vrot.lane.b32.xlu0 %v3368, 9
        %v4128 = vpop.permute.xlu0 %4127
        %4129 = vrot.lane.b32.xlu0 %v3372, 9
        %v4130 = vpop.permute.xlu0 %4129
        %4131 = vrot.lane.b32.xlu0 %v3376, 9
        %v4132 = vpop.permute.xlu0 %4131
        %v4133 = vsel %vm1377, %v4118, %v4126
        %v4134 = vsel %vm1377, %v4120, %v4128
        %v4135 = vsel %vm1377, %v4122, %v4130
        %v4136 = vsel %vm1377, %v4124, %v4132
        %v4137 = vsel %vm1377, %v4110, %v4118
        %v4138 = vsel %vm1377, %v4112, %v4120
        %v4139 = vsel %vm1377, %v4114, %v4122
        %v4140 = vsel %vm1377, %v4116, %v4124
        %v4141 = vsel %vm1377, %v4102, %v4110
        %v4142 = vsel %vm1377, %v4104, %v4112
        %v4143 = vsel %vm1377, %v4106, %v4114
        %v4144 = vsel %vm1377, %v4108, %v4116
        %v4145 = vsel %vm1377, %v4126, %v4102
        %v4146 = vsel %vm1377, %v4128, %v4104
        %v4147 = vsel %vm1377, %v4130, %v4106
        %v4148 = vsel %vm1377, %v4132, %v4108
        %v4149 = vmul.f32 %v4145, %v1386
        %v4150 = vmul.f32 %v4141, %v1387
        %v4151 = vmul.f32 %v4137, %v1388
        %v4152 = vmul.f32 %v4133, %v1389
        %v4153 = vmul.f32 %v4146, %v1386
        %v4154 = vmul.f32 %v4142, %v1387
        %v4155 = vmul.f32 %v4138, %v1388
        %v4156 = vmul.f32 %v4134, %v1389
        %v4157 = vmul.f32 %v4147, %v1386
        %v4158 = vmul.f32 %v4143, %v1387
        %v4159 = vmul.f32 %v4139, %v1388
        %v4160 = vmul.f32 %v4135, %v1389
        %v4161 = vmul.f32 %v4148, %v1386
        %v4162 = vmul.f32 %v4144, %v1387
        %v4163 = vmul.f32 %v4140, %v1388
        %v4164 = vmul.f32 %v4136, %v1389
        %4165 = vst [vmem:[#allocation2 + $0x480] sm:$0xff] %v4149
        %4166 = vst [vmem:[#allocation2 + $0x488] sm:$0xff] %v4150
        %4167 = vst [vmem:[#allocation2 + $0x490] sm:$0xff] %v4151
        %4168 = vst [vmem:[#allocation2 + $0x498] sm:$0xff] %v4152
        %4169 = vst [vmem:[#allocation2 + $0x4a0] sm:$0xff] %v4153
        %4170 = vst [vmem:[#allocation2 + $0x4a8] sm:$0xff] %v4154
        %4171 = vst [vmem:[#allocation2 + $0x4b0] sm:$0xff] %v4155
        %4172 = vst [vmem:[#allocation2 + $0x4b8] sm:$0xff] %v4156
        %4173 = vst [vmem:[#allocation2 + $0x4c0] sm:$0xff] %v4157
        %4174 = vst [vmem:[#allocation2 + $0x4c8] sm:$0xff] %v4158
        %4175 = vst [vmem:[#allocation2 + $0x4d0] sm:$0xff] %v4159
        %4176 = vst [vmem:[#allocation2 + $0x4d8] sm:$0xff] %v4160
        %4177 = vst [vmem:[#allocation2 + $0x4e0] sm:$0xff] %v4161
        %4178 = vst [vmem:[#allocation2 + $0x4e8] sm:$0xff] %v4162
        %4179 = vst [vmem:[#allocation2 + $0x4f0] sm:$0xff] %v4163
        %4180 = vst [vmem:[#allocation2 + $0x4f8] sm:$0xff] %v4164
        %4181 = vrot.lane.b32.xlu0 %v3361, 8
        %v4182 = vpop.permute.xlu0 %4181
        %4183 = vrot.lane.b32.xlu0 %v3365, 8
        %v4184 = vpop.permute.xlu0 %4183
        %4185 = vrot.lane.b32.xlu0 %v3369, 8
        %v4186 = vpop.permute.xlu0 %4185
        %4187 = vrot.lane.b32.xlu0 %v3373, 8
        %v4188 = vpop.permute.xlu0 %4187
        %4189 = vrot.lane.b32.xlu0 %v3362, 8
        %v4190 = vpop.permute.xlu0 %4189
        %4191 = vrot.lane.b32.xlu0 %v3366, 8
        %v4192 = vpop.permute.xlu0 %4191
        %4193 = vrot.lane.b32.xlu0 %v3370, 8
        %v4194 = vpop.permute.xlu0 %4193
        %4195 = vrot.lane.b32.xlu0 %v3374, 8
        %v4196 = vpop.permute.xlu0 %4195
        %4197 = vrot.lane.b32.xlu0 %v3363, 8
        %v4198 = vpop.permute.xlu0 %4197
        %4199 = vrot.lane.b32.xlu0 %v3367, 8
        %v4200 = vpop.permute.xlu0 %4199
        %4201 = vrot.lane.b32.xlu0 %v3371, 8
        %v4202 = vpop.permute.xlu0 %4201
        %4203 = vrot.lane.b32.xlu0 %v3375, 8
        %v4204 = vpop.permute.xlu0 %4203
        %4205 = vrot.lane.b32.xlu0 %v3364, 8
        %v4206 = vpop.permute.xlu0 %4205
        %4207 = vrot.lane.b32.xlu0 %v3368, 8
        %v4208 = vpop.permute.xlu0 %4207
        %4209 = vrot.lane.b32.xlu0 %v3372, 8
        %v4210 = vpop.permute.xlu0 %4209
        %4211 = vrot.lane.b32.xlu0 %v3376, 8
        %v4212 = vpop.permute.xlu0 %4211
        %v4213 = vsel %vm1422, %v4198, %v4206
        %v4214 = vsel %vm1422, %v4200, %v4208
        %v4215 = vsel %vm1422, %v4202, %v4210
        %v4216 = vsel %vm1422, %v4204, %v4212
        %v4217 = vsel %vm1422, %v4190, %v4198
        %v4218 = vsel %vm1422, %v4192, %v4200
        %v4219 = vsel %vm1422, %v4194, %v4202
        %v4220 = vsel %vm1422, %v4196, %v4204
        %v4221 = vsel %vm1422, %v4182, %v4190
        %v4222 = vsel %vm1422, %v4184, %v4192
        %v4223 = vsel %vm1422, %v4186, %v4194
        %v4224 = vsel %vm1422, %v4188, %v4196
        %v4225 = vsel %vm1422, %v4206, %v4182
        %v4226 = vsel %vm1422, %v4208, %v4184
        %v4227 = vsel %vm1422, %v4210, %v4186
        %v4228 = vsel %vm1422, %v4212, %v4188
        %v4229 = vmul.f32 %v4225, %v1431
        %v4230 = vmul.f32 %v4221, %v1432
        %v4231 = vmul.f32 %v4217, %v1433
        %v4232 = vmul.f32 %v4213, %v1434
        %v4233 = vmul.f32 %v4226, %v1431
        %v4234 = vmul.f32 %v4222, %v1432
        %v4235 = vmul.f32 %v4218, %v1433
        %v4236 = vmul.f32 %v4214, %v1434
        %v4237 = vmul.f32 %v4227, %v1431
        %v4238 = vmul.f32 %v4223, %v1432
        %v4239 = vmul.f32 %v4219, %v1433
        %v4240 = vmul.f32 %v4215, %v1434
        %v4241 = vmul.f32 %v4228, %v1431
        %v4242 = vmul.f32 %v4224, %v1432
        %v4243 = vmul.f32 %v4220, %v1433
        %v4244 = vmul.f32 %v4216, %v1434
        %4245 = vst [vmem:[#allocation2 + $0x500] sm:$0xff] %v4229
        %4246 = vst [vmem:[#allocation2 + $0x508] sm:$0xff] %v4230
        %4247 = vst [vmem:[#allocation2 + $0x510] sm:$0xff] %v4231
        %4248 = vst [vmem:[#allocation2 + $0x518] sm:$0xff] %v4232
        %4249 = vst [vmem:[#allocation2 + $0x520] sm:$0xff] %v4233
        %4250 = vst [vmem:[#allocation2 + $0x528] sm:$0xff] %v4234
        %4251 = vst [vmem:[#allocation2 + $0x530] sm:$0xff] %v4235
        %4252 = vst [vmem:[#allocation2 + $0x538] sm:$0xff] %v4236
        %4253 = vst [vmem:[#allocation2 + $0x540] sm:$0xff] %v4237
        %4254 = vst [vmem:[#allocation2 + $0x548] sm:$0xff] %v4238
        %4255 = vst [vmem:[#allocation2 + $0x550] sm:$0xff] %v4239
        %4256 = vst [vmem:[#allocation2 + $0x558] sm:$0xff] %v4240
        %4257 = vst [vmem:[#allocation2 + $0x560] sm:$0xff] %v4241
        %4258 = vst [vmem:[#allocation2 + $0x568] sm:$0xff] %v4242
        %4259 = vst [vmem:[#allocation2 + $0x570] sm:$0xff] %v4243
        %4260 = vst [vmem:[#allocation2 + $0x578] sm:$0xff] %v4244
        %4261 = vrot.lane.b32.xlu0 %v3361, 7
        %v4262 = vpop.permute.xlu0 %4261
        %4263 = vrot.lane.b32.xlu0 %v3365, 7
        %v4264 = vpop.permute.xlu0 %4263
        %4265 = vrot.lane.b32.xlu0 %v3369, 7
        %v4266 = vpop.permute.xlu0 %4265
        %4267 = vrot.lane.b32.xlu0 %v3373, 7
        %v4268 = vpop.permute.xlu0 %4267
        %4269 = vrot.lane.b32.xlu0 %v3362, 7
        %v4270 = vpop.permute.xlu0 %4269
        %4271 = vrot.lane.b32.xlu0 %v3366, 7
        %v4272 = vpop.permute.xlu0 %4271
        %4273 = vrot.lane.b32.xlu0 %v3370, 7
        %v4274 = vpop.permute.xlu0 %4273
        %4275 = vrot.lane.b32.xlu0 %v3374, 7
        %v4276 = vpop.permute.xlu0 %4275
        %4277 = vrot.lane.b32.xlu0 %v3363, 7
        %v4278 = vpop.permute.xlu0 %4277
        %4279 = vrot.lane.b32.xlu0 %v3367, 7
        %v4280 = vpop.permute.xlu0 %4279
        %4281 = vrot.lane.b32.xlu0 %v3371, 7
        %v4282 = vpop.permute.xlu0 %4281
        %4283 = vrot.lane.b32.xlu0 %v3375, 7
        %v4284 = vpop.permute.xlu0 %4283
        %4285 = vrot.lane.b32.xlu0 %v3364, 7
        %v4286 = vpop.permute.xlu0 %4285
        %4287 = vrot.lane.b32.xlu0 %v3368, 7
        %v4288 = vpop.permute.xlu0 %4287
        %4289 = vrot.lane.b32.xlu0 %v3372, 7
        %v4290 = vpop.permute.xlu0 %4289
        %4291 = vrot.lane.b32.xlu0 %v3376, 7
        %v4292 = vpop.permute.xlu0 %4291
        %v4293 = vsel %vm1467, %v4278, %v4286
        %v4294 = vsel %vm1467, %v4280, %v4288
        %v4295 = vsel %vm1467, %v4282, %v4290
        %v4296 = vsel %vm1467, %v4284, %v4292
        %v4297 = vsel %vm1467, %v4270, %v4278
        %v4298 = vsel %vm1467, %v4272, %v4280
        %v4299 = vsel %vm1467, %v4274, %v4282
        %v4300 = vsel %vm1467, %v4276, %v4284
        %v4301 = vsel %vm1467, %v4262, %v4270
        %v4302 = vsel %vm1467, %v4264, %v4272
        %v4303 = vsel %vm1467, %v4266, %v4274
        %v4304 = vsel %vm1467, %v4268, %v4276
        %v4305 = vsel %vm1467, %v4286, %v4262
        %v4306 = vsel %vm1467, %v4288, %v4264
        %v4307 = vsel %vm1467, %v4290, %v4266
        %v4308 = vsel %vm1467, %v4292, %v4268
        %v4309 = vmul.f32 %v4305, %v1476
        %v4310 = vmul.f32 %v4301, %v1477
        %v4311 = vmul.f32 %v4297, %v1478
        %v4312 = vmul.f32 %v4293, %v1479
        %v4313 = vmul.f32 %v4306, %v1476
        %v4314 = vmul.f32 %v4302, %v1477
        %v4315 = vmul.f32 %v4298, %v1478
        %v4316 = vmul.f32 %v4294, %v1479
        %v4317 = vmul.f32 %v4307, %v1476
        %v4318 = vmul.f32 %v4303, %v1477
        %v4319 = vmul.f32 %v4299, %v1478
        %v4320 = vmul.f32 %v4295, %v1479
        %v4321 = vmul.f32 %v4308, %v1476
        %v4322 = vmul.f32 %v4304, %v1477
        %v4323 = vmul.f32 %v4300, %v1478
        %v4324 = vmul.f32 %v4296, %v1479
        %4325 = vst [vmem:[#allocation2 + $0x580] sm:$0xff] %v4309
        %4326 = vst [vmem:[#allocation2 + $0x588] sm:$0xff] %v4310
        %4327 = vst [vmem:[#allocation2 + $0x590] sm:$0xff] %v4311
        %4328 = vst [vmem:[#allocation2 + $0x598] sm:$0xff] %v4312
        %4329 = vst [vmem:[#allocation2 + $0x5a0] sm:$0xff] %v4313
        %4330 = vst [vmem:[#allocation2 + $0x5a8] sm:$0xff] %v4314
        %4331 = vst [vmem:[#allocation2 + $0x5b0] sm:$0xff] %v4315
        %4332 = vst [vmem:[#allocation2 + $0x5b8] sm:$0xff] %v4316
        %4333 = vst [vmem:[#allocation2 + $0x5c0] sm:$0xff] %v4317
        %4334 = vst [vmem:[#allocation2 + $0x5c8] sm:$0xff] %v4318
        %4335 = vst [vmem:[#allocation2 + $0x5d0] sm:$0xff] %v4319
        %4336 = vst [vmem:[#allocation2 + $0x5d8] sm:$0xff] %v4320
        %4337 = vst [vmem:[#allocation2 + $0x5e0] sm:$0xff] %v4321
        %4338 = vst [vmem:[#allocation2 + $0x5e8] sm:$0xff] %v4322
        %4339 = vst [vmem:[#allocation2 + $0x5f0] sm:$0xff] %v4323
        %4340 = vst [vmem:[#allocation2 + $0x5f8] sm:$0xff] %v4324
        %4341 = vrot.lane.b32.xlu0 %v3361, 1
        %v4342 = vpop.permute.xlu0 %4341
        %4343 = vrot.lane.b32.xlu0 %v3365, 1
        %v4344 = vpop.permute.xlu0 %4343
        %4345 = vrot.lane.b32.xlu0 %v3369, 1
        %v4346 = vpop.permute.xlu0 %4345
        %4347 = vrot.lane.b32.xlu0 %v3373, 1
        %v4348 = vpop.permute.xlu0 %4347
        %4349 = vrot.lane.b32.xlu0 %v3362, 1
        %v4350 = vpop.permute.xlu0 %4349
        %4351 = vrot.lane.b32.xlu0 %v3366, 1
        %v4352 = vpop.permute.xlu0 %4351
        %4353 = vrot.lane.b32.xlu0 %v3370, 1
        %v4354 = vpop.permute.xlu0 %4353
        %4355 = vrot.lane.b32.xlu0 %v3374, 1
        %v4356 = vpop.permute.xlu0 %4355
        %4357 = vrot.lane.b32.xlu0 %v3363, 1
        %v4358 = vpop.permute.xlu0 %4357
        %4359 = vrot.lane.b32.xlu0 %v3367, 1
        %v4360 = vpop.permute.xlu0 %4359
        %4361 = vrot.lane.b32.xlu0 %v3371, 1
        %v4362 = vpop.permute.xlu0 %4361
        %4363 = vrot.lane.b32.xlu0 %v3375, 1
        %v4364 = vpop.permute.xlu0 %4363
        %4365 = vrot.lane.b32.xlu0 %v3364, 1
        %v4366 = vpop.permute.xlu0 %4365
        %4367 = vrot.lane.b32.xlu0 %v3368, 1
        %v4368 = vpop.permute.xlu0 %4367
        %4369 = vrot.lane.b32.xlu0 %v3372, 1
        %v4370 = vpop.permute.xlu0 %4369
        %4371 = vrot.lane.b32.xlu0 %v3376, 1
        %v4372 = vpop.permute.xlu0 %4371
        %v4373 = vsel %vm1512, %v4358, %v4366
        %v4374 = vsel %vm1512, %v4360, %v4368
        %v4375 = vsel %vm1512, %v4362, %v4370
        %v4376 = vsel %vm1512, %v4364, %v4372
        %v4377 = vsel %vm1512, %v4350, %v4358
        %v4378 = vsel %vm1512, %v4352, %v4360
        %v4379 = vsel %vm1512, %v4354, %v4362
        %v4380 = vsel %vm1512, %v4356, %v4364
        %v4381 = vsel %vm1512, %v4342, %v4350
        %v4382 = vsel %vm1512, %v4344, %v4352
        %v4383 = vsel %vm1512, %v4346, %v4354
        %v4384 = vsel %vm1512, %v4348, %v4356
        %v4385 = vsel %vm1512, %v4366, %v4342
        %v4386 = vsel %vm1512, %v4368, %v4344
        %v4387 = vsel %vm1512, %v4370, %v4346
        %v4388 = vsel %vm1512, %v4372, %v4348
        %v4389 = vmul.f32 %v4385, %v1521
        %v4390 = vmul.f32 %v4381, %v1522
        %v4391 = vmul.f32 %v4377, %v1523
        %v4392 = vmul.f32 %v4373, %v1524
        %v4393 = vmul.f32 %v4386, %v1521
        %v4394 = vmul.f32 %v4382, %v1522
        %v4395 = vmul.f32 %v4378, %v1523
        %v4396 = vmul.f32 %v4374, %v1524
        %v4397 = vmul.f32 %v4387, %v1521
        %v4398 = vmul.f32 %v4383, %v1522
        %v4399 = vmul.f32 %v4379, %v1523
        %v4400 = vmul.f32 %v4375, %v1524
        %v4401 = vmul.f32 %v4388, %v1521
        %v4402 = vmul.f32 %v4384, %v1522
        %v4403 = vmul.f32 %v4380, %v1523
        %v4404 = vmul.f32 %v4376, %v1524
        %4405 = vst [vmem:[#allocation2 + $0x600] sm:$0xff] %v4389
        %4406 = vst [vmem:[#allocation2 + $0x608] sm:$0xff] %v4390
        %4407 = vst [vmem:[#allocation2 + $0x610] sm:$0xff] %v4391
        %4408 = vst [vmem:[#allocation2 + $0x618] sm:$0xff] %v4392
        %4409 = vst [vmem:[#allocation2 + $0x620] sm:$0xff] %v4393
        %4410 = vst [vmem:[#allocation2 + $0x628] sm:$0xff] %v4394
        %4411 = vst [vmem:[#allocation2 + $0x630] sm:$0xff] %v4395
        %4412 = vst [vmem:[#allocation2 + $0x638] sm:$0xff] %v4396
        %4413 = vst [vmem:[#allocation2 + $0x640] sm:$0xff] %v4397
        %4414 = vst [vmem:[#allocation2 + $0x648] sm:$0xff] %v4398
        %4415 = vst [vmem:[#allocation2 + $0x650] sm:$0xff] %v4399
        %4416 = vst [vmem:[#allocation2 + $0x658] sm:$0xff] %v4400
        %4417 = vst [vmem:[#allocation2 + $0x660] sm:$0xff] %v4401
        %4418 = vst [vmem:[#allocation2 + $0x668] sm:$0xff] %v4402
        %4419 = vst [vmem:[#allocation2 + $0x670] sm:$0xff] %v4403
        %4420 = vst [vmem:[#allocation2 + $0x678] sm:$0xff] %v4404
        %v4421 = vmul.f32 %v3361, %v1541
        %v4422 = vmul.f32 %v3362, %v1542
        %v4423 = vmul.f32 %v3363, %v1543
        %v4424 = vmul.f32 %v3364, %v1544
        %v4425 = vmul.f32 %v3365, %v1541
        %v4426 = vmul.f32 %v3366, %v1542
        %v4427 = vmul.f32 %v3367, %v1543
        %v4428 = vmul.f32 %v3368, %v1544
        %v4429 = vmul.f32 %v3369, %v1541
        %v4430 = vmul.f32 %v3370, %v1542
        %v4431 = vmul.f32 %v3371, %v1543
        %v4432 = vmul.f32 %v3372, %v1544
        %v4433 = vmul.f32 %v3373, %v1541
        %v4434 = vmul.f32 %v3374, %v1542
        %v4435 = vmul.f32 %v3375, %v1543
        %v4436 = vmul.f32 %v3376, %v1544
        %4437 = vst [vmem:[#allocation2 + $0x680] sm:$0xff] %v4421
        %4438 = vst [vmem:[#allocation2 + $0x688] sm:$0xff] %v4422
        %4439 = vst [vmem:[#allocation2 + $0x690] sm:$0xff] %v4423
        %4440 = vst [vmem:[#allocation2 + $0x698] sm:$0xff] %v4424
        %4441 = vst [vmem:[#allocation2 + $0x6a0] sm:$0xff] %v4425
        %4442 = vst [vmem:[#allocation2 + $0x6a8] sm:$0xff] %v4426
        %4443 = vst [vmem:[#allocation2 + $0x6b0] sm:$0xff] %v4427
        %4444 = vst [vmem:[#allocation2 + $0x6b8] sm:$0xff] %v4428
        %4445 = vst [vmem:[#allocation2 + $0x6c0] sm:$0xff] %v4429
        %4446 = vst [vmem:[#allocation2 + $0x6c8] sm:$0xff] %v4430
        %4447 = vst [vmem:[#allocation2 + $0x6d0] sm:$0xff] %v4431
        %4448 = vst [vmem:[#allocation2 + $0x6d8] sm:$0xff] %v4432
        %4449 = vst [vmem:[#allocation2 + $0x6e0] sm:$0xff] %v4433
        %4450 = vst [vmem:[#allocation2 + $0x6e8] sm:$0xff] %v4434
        %4451 = vst [vmem:[#allocation2 + $0x6f0] sm:$0xff] %v4435
        %4452 = vst [vmem:[#allocation2 + $0x6f8] sm:$0xff] %v4436
        %4453 = vrot.lane.b32.xlu0 %v3361, 127
        %v4454 = vpop.permute.xlu0 %4453
        %4455 = vrot.lane.b32.xlu0 %v3365, 127
        %v4456 = vpop.permute.xlu0 %4455
        %4457 = vrot.lane.b32.xlu0 %v3369, 127
        %v4458 = vpop.permute.xlu0 %4457
        %4459 = vrot.lane.b32.xlu0 %v3373, 127
        %v4460 = vpop.permute.xlu0 %4459
        %4461 = vrot.lane.b32.xlu0 %v3362, 127
        %v4462 = vpop.permute.xlu0 %4461
        %4463 = vrot.lane.b32.xlu0 %v3366, 127
        %v4464 = vpop.permute.xlu0 %4463
        %4465 = vrot.lane.b32.xlu0 %v3370, 127
        %v4466 = vpop.permute.xlu0 %4465
        %4467 = vrot.lane.b32.xlu0 %v3374, 127
        %v4468 = vpop.permute.xlu0 %4467
        %4469 = vrot.lane.b32.xlu0 %v3363, 127
        %v4470 = vpop.permute.xlu0 %4469
        %4471 = vrot.lane.b32.xlu0 %v3367, 127
        %v4472 = vpop.permute.xlu0 %4471
        %4473 = vrot.lane.b32.xlu0 %v3371, 127
        %v4474 = vpop.permute.xlu0 %4473
        %4475 = vrot.lane.b32.xlu0 %v3375, 127
        %v4476 = vpop.permute.xlu0 %4475
        %4477 = vrot.lane.b32.xlu0 %v3364, 127
        %v4478 = vpop.permute.xlu0 %4477
        %4479 = vrot.lane.b32.xlu0 %v3368, 127
        %v4480 = vpop.permute.xlu0 %4479
        %4481 = vrot.lane.b32.xlu0 %v3372, 127
        %v4482 = vpop.permute.xlu0 %4481
        %4483 = vrot.lane.b32.xlu0 %v3376, 127
        %v4484 = vpop.permute.xlu0 %4483
        %v4485 = vsel %vm1577, %v4470, %v4478
        %v4486 = vsel %vm1577, %v4472, %v4480
        %v4487 = vsel %vm1577, %v4474, %v4482
        %v4488 = vsel %vm1577, %v4476, %v4484
        %v4489 = vsel %vm1577, %v4462, %v4470
        %v4490 = vsel %vm1577, %v4464, %v4472
        %v4491 = vsel %vm1577, %v4466, %v4474
        %v4492 = vsel %vm1577, %v4468, %v4476
        %v4493 = vsel %vm1577, %v4454, %v4462
        %v4494 = vsel %vm1577, %v4456, %v4464
        %v4495 = vsel %vm1577, %v4458, %v4466
        %v4496 = vsel %vm1577, %v4460, %v4468
        %v4497 = vsel %vm1577, %v4478, %v4454
        %v4498 = vsel %vm1577, %v4480, %v4456
        %v4499 = vsel %vm1577, %v4482, %v4458
        %v4500 = vsel %vm1577, %v4484, %v4460
        %v4501 = vmul.f32 %v4493, %v1586
        %v4502 = vmul.f32 %v4489, %v1587
        %v4503 = vmul.f32 %v4485, %v1588
        %v4504 = vmul.f32 %v4497, %v1589
        %v4505 = vmul.f32 %v4494, %v1586
        %v4506 = vmul.f32 %v4490, %v1587
        %v4507 = vmul.f32 %v4486, %v1588
        %v4508 = vmul.f32 %v4498, %v1589
        %v4509 = vmul.f32 %v4495, %v1586
        %v4510 = vmul.f32 %v4491, %v1587
        %v4511 = vmul.f32 %v4487, %v1588
        %v4512 = vmul.f32 %v4499, %v1589
        %v4513 = vmul.f32 %v4496, %v1586
        %v4514 = vmul.f32 %v4492, %v1587
        %v4515 = vmul.f32 %v4488, %v1588
        %v4516 = vmul.f32 %v4500, %v1589
        %4517 = vst [vmem:[#allocation2 + $0x700] sm:$0xff] %v4501
        %4518 = vst [vmem:[#allocation2 + $0x708] sm:$0xff] %v4502
        %4519 = vst [vmem:[#allocation2 + $0x710] sm:$0xff] %v4503
        %4520 = vst [vmem:[#allocation2 + $0x718] sm:$0xff] %v4504
        %4521 = vst [vmem:[#allocation2 + $0x720] sm:$0xff] %v4505
        %4522 = vst [vmem:[#allocation2 + $0x728] sm:$0xff] %v4506
        %4523 = vst [vmem:[#allocation2 + $0x730] sm:$0xff] %v4507
        %4524 = vst [vmem:[#allocation2 + $0x738] sm:$0xff] %v4508
        %4525 = vst [vmem:[#allocation2 + $0x740] sm:$0xff] %v4509
        %4526 = vst [vmem:[#allocation2 + $0x748] sm:$0xff] %v4510
        %4527 = vst [vmem:[#allocation2 + $0x750] sm:$0xff] %v4511
        %4528 = vst [vmem:[#allocation2 + $0x758] sm:$0xff] %v4512
        %4529 = vst [vmem:[#allocation2 + $0x760] sm:$0xff] %v4513
        %4530 = vst [vmem:[#allocation2 + $0x768] sm:$0xff] %v4514
        %4531 = vst [vmem:[#allocation2 + $0x770] sm:$0xff] %v4515
        %4532 = vst [vmem:[#allocation2 + $0x778] sm:$0xff] %v4516
        %4533 = vrot.lane.b32.xlu0 %v3361, 121
        %v4534 = vpop.permute.xlu0 %4533
        %4535 = vrot.lane.b32.xlu0 %v3365, 121
        %v4536 = vpop.permute.xlu0 %4535
        %4537 = vrot.lane.b32.xlu0 %v3369, 121
        %v4538 = vpop.permute.xlu0 %4537
        %4539 = vrot.lane.b32.xlu0 %v3373, 121
        %v4540 = vpop.permute.xlu0 %4539
        %4541 = vrot.lane.b32.xlu0 %v3362, 121
        %v4542 = vpop.permute.xlu0 %4541
        %4543 = vrot.lane.b32.xlu0 %v3366, 121
        %v4544 = vpop.permute.xlu0 %4543
        %4545 = vrot.lane.b32.xlu0 %v3370, 121
        %v4546 = vpop.permute.xlu0 %4545
        %4547 = vrot.lane.b32.xlu0 %v3374, 121
        %v4548 = vpop.permute.xlu0 %4547
        %4549 = vrot.lane.b32.xlu0 %v3363, 121
        %v4550 = vpop.permute.xlu0 %4549
        %4551 = vrot.lane.b32.xlu0 %v3367, 121
        %v4552 = vpop.permute.xlu0 %4551
        %4553 = vrot.lane.b32.xlu0 %v3371, 121
        %v4554 = vpop.permute.xlu0 %4553
        %4555 = vrot.lane.b32.xlu0 %v3375, 121
        %v4556 = vpop.permute.xlu0 %4555
        %4557 = vrot.lane.b32.xlu0 %v3364, 121
        %v4558 = vpop.permute.xlu0 %4557
        %4559 = vrot.lane.b32.xlu0 %v3368, 121
        %v4560 = vpop.permute.xlu0 %4559
        %4561 = vrot.lane.b32.xlu0 %v3372, 121
        %v4562 = vpop.permute.xlu0 %4561
        %4563 = vrot.lane.b32.xlu0 %v3376, 121
        %v4564 = vpop.permute.xlu0 %4563
        %v4565 = vsel %vm1622, %v4550, %v4558
        %v4566 = vsel %vm1622, %v4552, %v4560
        %v4567 = vsel %vm1622, %v4554, %v4562
        %v4568 = vsel %vm1622, %v4556, %v4564
        %v4569 = vsel %vm1622, %v4542, %v4550
        %v4570 = vsel %vm1622, %v4544, %v4552
        %v4571 = vsel %vm1622, %v4546, %v4554
        %v4572 = vsel %vm1622, %v4548, %v4556
        %v4573 = vsel %vm1622, %v4534, %v4542
        %v4574 = vsel %vm1622, %v4536, %v4544
        %v4575 = vsel %vm1622, %v4538, %v4546
        %v4576 = vsel %vm1622, %v4540, %v4548
        %v4577 = vsel %vm1622, %v4558, %v4534
        %v4578 = vsel %vm1622, %v4560, %v4536
        %v4579 = vsel %vm1622, %v4562, %v4538
        %v4580 = vsel %vm1622, %v4564, %v4540
        %v4581 = vmul.f32 %v4573, %v1631
        %v4582 = vmul.f32 %v4569, %v1632
        %v4583 = vmul.f32 %v4565, %v1633
        %v4584 = vmul.f32 %v4577, %v1634
        %v4585 = vmul.f32 %v4574, %v1631
        %v4586 = vmul.f32 %v4570, %v1632
        %v4587 = vmul.f32 %v4566, %v1633
        %v4588 = vmul.f32 %v4578, %v1634
        %v4589 = vmul.f32 %v4575, %v1631
        %v4590 = vmul.f32 %v4571, %v1632
        %v4591 = vmul.f32 %v4567, %v1633
        %v4592 = vmul.f32 %v4579, %v1634
        %v4593 = vmul.f32 %v4576, %v1631
        %v4594 = vmul.f32 %v4572, %v1632
        %v4595 = vmul.f32 %v4568, %v1633
        %v4596 = vmul.f32 %v4580, %v1634
        %4597 = vst [vmem:[#allocation2 + $0x780] sm:$0xff] %v4581
        %4598 = vst [vmem:[#allocation2 + $0x788] sm:$0xff] %v4582
        %4599 = vst [vmem:[#allocation2 + $0x790] sm:$0xff] %v4583
        %4600 = vst [vmem:[#allocation2 + $0x798] sm:$0xff] %v4584
        %4601 = vst [vmem:[#allocation2 + $0x7a0] sm:$0xff] %v4585
        %4602 = vst [vmem:[#allocation2 + $0x7a8] sm:$0xff] %v4586
        %4603 = vst [vmem:[#allocation2 + $0x7b0] sm:$0xff] %v4587
        %4604 = vst [vmem:[#allocation2 + $0x7b8] sm:$0xff] %v4588
        %4605 = vst [vmem:[#allocation2 + $0x7c0] sm:$0xff] %v4589
        %4606 = vst [vmem:[#allocation2 + $0x7c8] sm:$0xff] %v4590
        %4607 = vst [vmem:[#allocation2 + $0x7d0] sm:$0xff] %v4591
        %4608 = vst [vmem:[#allocation2 + $0x7d8] sm:$0xff] %v4592
        %4609 = vst [vmem:[#allocation2 + $0x7e0] sm:$0xff] %v4593
        %4610 = vst [vmem:[#allocation2 + $0x7e8] sm:$0xff] %v4594
        %4611 = vst [vmem:[#allocation2 + $0x7f0] sm:$0xff] %v4595
        %4612 = vst [vmem:[#allocation2 + $0x7f8] sm:$0xff] %v4596
        %4613 = vrot.lane.b32.xlu0 %v3361, 120
        %v4614 = vpop.permute.xlu0 %4613
        %4615 = vrot.lane.b32.xlu0 %v3365, 120
        %v4616 = vpop.permute.xlu0 %4615
        %4617 = vrot.lane.b32.xlu0 %v3369, 120
        %v4618 = vpop.permute.xlu0 %4617
        %4619 = vrot.lane.b32.xlu0 %v3373, 120
        %v4620 = vpop.permute.xlu0 %4619
        %4621 = vrot.lane.b32.xlu0 %v3362, 120
        %v4622 = vpop.permute.xlu0 %4621
        %4623 = vrot.lane.b32.xlu0 %v3366, 120
        %v4624 = vpop.permute.xlu0 %4623
        %4625 = vrot.lane.b32.xlu0 %v3370, 120
        %v4626 = vpop.permute.xlu0 %4625
        %4627 = vrot.lane.b32.xlu0 %v3374, 120
        %v4628 = vpop.permute.xlu0 %4627
        %4629 = vrot.lane.b32.xlu0 %v3363, 120
        %v4630 = vpop.permute.xlu0 %4629
        %4631 = vrot.lane.b32.xlu0 %v3367, 120
        %v4632 = vpop.permute.xlu0 %4631
        %4633 = vrot.lane.b32.xlu0 %v3371, 120
        %v4634 = vpop.permute.xlu0 %4633
        %4635 = vrot.lane.b32.xlu0 %v3375, 120
        %v4636 = vpop.permute.xlu0 %4635
        %4637 = vrot.lane.b32.xlu0 %v3364, 120
        %v4638 = vpop.permute.xlu0 %4637
        %4639 = vrot.lane.b32.xlu0 %v3368, 120
        %v4640 = vpop.permute.xlu0 %4639
        %4641 = vrot.lane.b32.xlu0 %v3372, 120
        %v4642 = vpop.permute.xlu0 %4641
        %4643 = vrot.lane.b32.xlu0 %v3376, 120
        %v4644 = vpop.permute.xlu0 %4643
        %v4645 = vsel %vm1667, %v4630, %v4638
        %v4646 = vsel %vm1667, %v4632, %v4640
        %v4647 = vsel %vm1667, %v4634, %v4642
        %v4648 = vsel %vm1667, %v4636, %v4644
        %v4649 = vsel %vm1667, %v4622, %v4630
        %v4650 = vsel %vm1667, %v4624, %v4632
        %v4651 = vsel %vm1667, %v4626, %v4634
        %v4652 = vsel %vm1667, %v4628, %v4636
        %v4653 = vsel %vm1667, %v4614, %v4622
        %v4654 = vsel %vm1667, %v4616, %v4624
        %v4655 = vsel %vm1667, %v4618, %v4626
        %v4656 = vsel %vm1667, %v4620, %v4628
        %v4657 = vsel %vm1667, %v4638, %v4614
        %v4658 = vsel %vm1667, %v4640, %v4616
        %v4659 = vsel %vm1667, %v4642, %v4618
        %v4660 = vsel %vm1667, %v4644, %v4620
        %v4661 = vmul.f32 %v4653, %v1676
        %v4662 = vmul.f32 %v4649, %v1677
        %v4663 = vmul.f32 %v4645, %v1678
        %v4664 = vmul.f32 %v4657, %v1679
        %v4665 = vmul.f32 %v4654, %v1676
        %v4666 = vmul.f32 %v4650, %v1677
        %v4667 = vmul.f32 %v4646, %v1678
        %v4668 = vmul.f32 %v4658, %v1679
        %v4669 = vmul.f32 %v4655, %v1676
        %v4670 = vmul.f32 %v4651, %v1677
        %v4671 = vmul.f32 %v4647, %v1678
        %v4672 = vmul.f32 %v4659, %v1679
        %v4673 = vmul.f32 %v4656, %v1676
        %v4674 = vmul.f32 %v4652, %v1677
        %v4675 = vmul.f32 %v4648, %v1678
        %v4676 = vmul.f32 %v4660, %v1679
        %4677 = vst [vmem:[#allocation2 + $0x800] sm:$0xff] %v4661
        %4678 = vst [vmem:[#allocation2 + $0x808] sm:$0xff] %v4662
        %4679 = vst [vmem:[#allocation2 + $0x810] sm:$0xff] %v4663
        %4680 = vst [vmem:[#allocation2 + $0x818] sm:$0xff] %v4664
        %4681 = vst [vmem:[#allocation2 + $0x820] sm:$0xff] %v4665
        %4682 = vst [vmem:[#allocation2 + $0x828] sm:$0xff] %v4666
        %4683 = vst [vmem:[#allocation2 + $0x830] sm:$0xff] %v4667
        %4684 = vst [vmem:[#allocation2 + $0x838] sm:$0xff] %v4668
        %4685 = vst [vmem:[#allocation2 + $0x840] sm:$0xff] %v4669
        %4686 = vst [vmem:[#allocation2 + $0x848] sm:$0xff] %v4670
        %4687 = vst [vmem:[#allocation2 + $0x850] sm:$0xff] %v4671
        %4688 = vst [vmem:[#allocation2 + $0x858] sm:$0xff] %v4672
        %4689 = vst [vmem:[#allocation2 + $0x860] sm:$0xff] %v4673
        %4690 = vst [vmem:[#allocation2 + $0x868] sm:$0xff] %v4674
        %4691 = vst [vmem:[#allocation2 + $0x870] sm:$0xff] %v4675
        %4692 = vst [vmem:[#allocation2 + $0x878] sm:$0xff] %v4676
        %4693 = vrot.lane.b32.xlu0 %v3361, 119
        %v4694 = vpop.permute.xlu0 %4693
        %4695 = vrot.lane.b32.xlu0 %v3365, 119
        %v4696 = vpop.permute.xlu0 %4695
        %4697 = vrot.lane.b32.xlu0 %v3369, 119
        %v4698 = vpop.permute.xlu0 %4697
        %4699 = vrot.lane.b32.xlu0 %v3373, 119
        %v4700 = vpop.permute.xlu0 %4699
        %4701 = vrot.lane.b32.xlu0 %v3362, 119
        %v4702 = vpop.permute.xlu0 %4701
        %4703 = vrot.lane.b32.xlu0 %v3366, 119
        %v4704 = vpop.permute.xlu0 %4703
        %4705 = vrot.lane.b32.xlu0 %v3370, 119
        %v4706 = vpop.permute.xlu0 %4705
        %4707 = vrot.lane.b32.xlu0 %v3374, 119
        %v4708 = vpop.permute.xlu0 %4707
        %4709 = vrot.lane.b32.xlu0 %v3363, 119
        %v4710 = vpop.permute.xlu0 %4709
        %4711 = vrot.lane.b32.xlu0 %v3367, 119
        %v4712 = vpop.permute.xlu0 %4711
        %4713 = vrot.lane.b32.xlu0 %v3371, 119
        %v4714 = vpop.permute.xlu0 %4713
        %4715 = vrot.lane.b32.xlu0 %v3375, 119
        %v4716 = vpop.permute.xlu0 %4715
        %4717 = vrot.lane.b32.xlu0 %v3364, 119
        %v4718 = vpop.permute.xlu0 %4717
        %4719 = vrot.lane.b32.xlu0 %v3368, 119
        %v4720 = vpop.permute.xlu0 %4719
        %4721 = vrot.lane.b32.xlu0 %v3372, 119
        %v4722 = vpop.permute.xlu0 %4721
        %4723 = vrot.lane.b32.xlu0 %v3376, 119
        %v4724 = vpop.permute.xlu0 %4723
        %v4725 = vsel %vm1712, %v4710, %v4718
        %v4726 = vsel %vm1712, %v4712, %v4720
        %v4727 = vsel %vm1712, %v4714, %v4722
        %v4728 = vsel %vm1712, %v4716, %v4724
        %v4729 = vsel %vm1712, %v4702, %v4710
        %v4730 = vsel %vm1712, %v4704, %v4712
        %v4731 = vsel %vm1712, %v4706, %v4714
        %v4732 = vsel %vm1712, %v4708, %v4716
        %v4733 = vsel %vm1712, %v4694, %v4702
        %v4734 = vsel %vm1712, %v4696, %v4704
        %v4735 = vsel %vm1712, %v4698, %v4706
        %v4736 = vsel %vm1712, %v4700, %v4708
        %v4737 = vsel %vm1712, %v4718, %v4694
        %v4738 = vsel %vm1712, %v4720, %v4696
        %v4739 = vsel %vm1712, %v4722, %v4698
        %v4740 = vsel %vm1712, %v4724, %v4700
        %v4741 = vmul.f32 %v4733, %v1721
        %v4742 = vmul.f32 %v4729, %v1722
        %v4743 = vmul.f32 %v4725, %v1723
        %v4744 = vmul.f32 %v4737, %v1724
        %v4745 = vmul.f32 %v4734, %v1721
        %v4746 = vmul.f32 %v4730, %v1722
        %v4747 = vmul.f32 %v4726, %v1723
        %v4748 = vmul.f32 %v4738, %v1724
        %v4749 = vmul.f32 %v4735, %v1721
        %v4750 = vmul.f32 %v4731, %v1722
        %v4751 = vmul.f32 %v4727, %v1723
        %v4752 = vmul.f32 %v4739, %v1724
        %v4753 = vmul.f32 %v4736, %v1721
        %v4754 = vmul.f32 %v4732, %v1722
        %v4755 = vmul.f32 %v4728, %v1723
        %v4756 = vmul.f32 %v4740, %v1724
        %4757 = vst [vmem:[#allocation2 + $0x880] sm:$0xff] %v4741
        %4758 = vst [vmem:[#allocation2 + $0x888] sm:$0xff] %v4742
        %4759 = vst [vmem:[#allocation2 + $0x890] sm:$0xff] %v4743
        %4760 = vst [vmem:[#allocation2 + $0x898] sm:$0xff] %v4744
        %4761 = vst [vmem:[#allocation2 + $0x8a0] sm:$0xff] %v4745
        %4762 = vst [vmem:[#allocation2 + $0x8a8] sm:$0xff] %v4746
        %4763 = vst [vmem:[#allocation2 + $0x8b0] sm:$0xff] %v4747
        %4764 = vst [vmem:[#allocation2 + $0x8b8] sm:$0xff] %v4748
        %4765 = vst [vmem:[#allocation2 + $0x8c0] sm:$0xff] %v4749
        %4766 = vst [vmem:[#allocation2 + $0x8c8] sm:$0xff] %v4750
        %4767 = vst [vmem:[#allocation2 + $0x8d0] sm:$0xff] %v4751
        %4768 = vst [vmem:[#allocation2 + $0x8d8] sm:$0xff] %v4752
        %4769 = vst [vmem:[#allocation2 + $0x8e0] sm:$0xff] %v4753
        %4770 = vst [vmem:[#allocation2 + $0x8e8] sm:$0xff] %v4754
        %4771 = vst [vmem:[#allocation2 + $0x8f0] sm:$0xff] %v4755
        %4772 = vst [vmem:[#allocation2 + $0x8f8] sm:$0xff] %v4756
        %v4773 = vmul.f32 %v3421, %v1741
        %v4774 = vmul.f32 %v3417, %v1742
        %v4775 = vmul.f32 %v3413, %v1743
        %v4776 = vmul.f32 %v3425, %v1744
        %v4777 = vmul.f32 %v3422, %v1741
        %v4778 = vmul.f32 %v3418, %v1742
        %v4779 = vmul.f32 %v3414, %v1743
        %v4780 = vmul.f32 %v3426, %v1744
        %v4781 = vmul.f32 %v3423, %v1741
        %v4782 = vmul.f32 %v3419, %v1742
        %v4783 = vmul.f32 %v3415, %v1743
        %v4784 = vmul.f32 %v3427, %v1744
        %v4785 = vmul.f32 %v3424, %v1741
        %v4786 = vmul.f32 %v3420, %v1742
        %v4787 = vmul.f32 %v3416, %v1743
        %v4788 = vmul.f32 %v3428, %v1744
        %4789 = vst [vmem:[#allocation2 + $0x900] sm:$0xff] %v4773
        %4790 = vst [vmem:[#allocation2 + $0x908] sm:$0xff] %v4774
        %4791 = vst [vmem:[#allocation2 + $0x910] sm:$0xff] %v4775
        %4792 = vst [vmem:[#allocation2 + $0x918] sm:$0xff] %v4776
        %4793 = vst [vmem:[#allocation2 + $0x920] sm:$0xff] %v4777
        %4794 = vst [vmem:[#allocation2 + $0x928] sm:$0xff] %v4778
        %4795 = vst [vmem:[#allocation2 + $0x930] sm:$0xff] %v4779
        %4796 = vst [vmem:[#allocation2 + $0x938] sm:$0xff] %v4780
        %4797 = vst [vmem:[#allocation2 + $0x940] sm:$0xff] %v4781
        %4798 = vst [vmem:[#allocation2 + $0x948] sm:$0xff] %v4782
        %4799 = vst [vmem:[#allocation2 + $0x950] sm:$0xff] %v4783
        %4800 = vst [vmem:[#allocation2 + $0x958] sm:$0xff] %v4784
        %4801 = vst [vmem:[#allocation2 + $0x960] sm:$0xff] %v4785
        %4802 = vst [vmem:[#allocation2 + $0x968] sm:$0xff] %v4786
        %4803 = vst [vmem:[#allocation2 + $0x970] sm:$0xff] %v4787
        %4804 = vst [vmem:[#allocation2 + $0x978] sm:$0xff] %v4788
        %v4805 = vmul.f32 %v3501, %v1761
        %v4806 = vmul.f32 %v3497, %v1762
        %v4807 = vmul.f32 %v3493, %v1763
        %v4808 = vmul.f32 %v3505, %v1764
        %v4809 = vmul.f32 %v3502, %v1761
        %v4810 = vmul.f32 %v3498, %v1762
        %v4811 = vmul.f32 %v3494, %v1763
        %v4812 = vmul.f32 %v3506, %v1764
        %v4813 = vmul.f32 %v3503, %v1761
        %v4814 = vmul.f32 %v3499, %v1762
        %v4815 = vmul.f32 %v3495, %v1763
        %v4816 = vmul.f32 %v3507, %v1764
        %v4817 = vmul.f32 %v3504, %v1761
        %v4818 = vmul.f32 %v3500, %v1762
        %v4819 = vmul.f32 %v3496, %v1763
        %v4820 = vmul.f32 %v3508, %v1764
        %4821 = vst [vmem:[#allocation2 + $0x980] sm:$0xff] %v4805
        %4822 = vst [vmem:[#allocation2 + $0x988] sm:$0xff] %v4806
        %4823 = vst [vmem:[#allocation2 + $0x990] sm:$0xff] %v4807
        %4824 = vst [vmem:[#allocation2 + $0x998] sm:$0xff] %v4808
        %4825 = vst [vmem:[#allocation2 + $0x9a0] sm:$0xff] %v4809
        %4826 = vst [vmem:[#allocation2 + $0x9a8] sm:$0xff] %v4810
        %4827 = vst [vmem:[#allocation2 + $0x9b0] sm:$0xff] %v4811
        %4828 = vst [vmem:[#allocation2 + $0x9b8] sm:$0xff] %v4812
        %4829 = vst [vmem:[#allocation2 + $0x9c0] sm:$0xff] %v4813
        %4830 = vst [vmem:[#allocation2 + $0x9c8] sm:$0xff] %v4814
        %4831 = vst [vmem:[#allocation2 + $0x9d0] sm:$0xff] %v4815
        %4832 = vst [vmem:[#allocation2 + $0x9d8] sm:$0xff] %v4816
        %4833 = vst [vmem:[#allocation2 + $0x9e0] sm:$0xff] %v4817
        %4834 = vst [vmem:[#allocation2 + $0x9e8] sm:$0xff] %v4818
        %4835 = vst [vmem:[#allocation2 + $0x9f0] sm:$0xff] %v4819
        %4836 = vst [vmem:[#allocation2 + $0x9f8] sm:$0xff] %v4820
        %v4837 = vmul.f32 %v3581, %v1781
        %v4838 = vmul.f32 %v3577, %v1782
        %v4839 = vmul.f32 %v3573, %v1783
        %v4840 = vmul.f32 %v3585, %v1784
        %v4841 = vmul.f32 %v3582, %v1781
        %v4842 = vmul.f32 %v3578, %v1782
        %v4843 = vmul.f32 %v3574, %v1783
        %v4844 = vmul.f32 %v3586, %v1784
        %v4845 = vmul.f32 %v3583, %v1781
        %v4846 = vmul.f32 %v3579, %v1782
        %v4847 = vmul.f32 %v3575, %v1783
        %v4848 = vmul.f32 %v3587, %v1784
        %v4849 = vmul.f32 %v3584, %v1781
        %v4850 = vmul.f32 %v3580, %v1782
        %v4851 = vmul.f32 %v3576, %v1783
        %v4852 = vmul.f32 %v3588, %v1784
        %4853 = vst [vmem:[#allocation2 + $0xa00] sm:$0xff] %v4837
        %4854 = vst [vmem:[#allocation2 + $0xa08] sm:$0xff] %v4838
        %4855 = vst [vmem:[#allocation2 + $0xa10] sm:$0xff] %v4839
        %4856 = vst [vmem:[#allocation2 + $0xa18] sm:$0xff] %v4840
        %4857 = vst [vmem:[#allocation2 + $0xa20] sm:$0xff] %v4841
        %4858 = vst [vmem:[#allocation2 + $0xa28] sm:$0xff] %v4842
        %4859 = vst [vmem:[#allocation2 + $0xa30] sm:$0xff] %v4843
        %4860 = vst [vmem:[#allocation2 + $0xa38] sm:$0xff] %v4844
        %4861 = vst [vmem:[#allocation2 + $0xa40] sm:$0xff] %v4845
        %4862 = vst [vmem:[#allocation2 + $0xa48] sm:$0xff] %v4846
        %4863 = vst [vmem:[#allocation2 + $0xa50] sm:$0xff] %v4847
        %4864 = vst [vmem:[#allocation2 + $0xa58] sm:$0xff] %v4848
        %4865 = vst [vmem:[#allocation2 + $0xa60] sm:$0xff] %v4849
        %4866 = vst [vmem:[#allocation2 + $0xa68] sm:$0xff] %v4850
        %4867 = vst [vmem:[#allocation2 + $0xa70] sm:$0xff] %v4851
        %4868 = vst [vmem:[#allocation2 + $0xa78] sm:$0xff] %v4852
        %v4869 = vmul.f32 %v3661, %v1801
        %v4870 = vmul.f32 %v3657, %v1802
        %v4871 = vmul.f32 %v3653, %v1803
        %v4872 = vmul.f32 %v3665, %v1804
        %v4873 = vmul.f32 %v3662, %v1801
        %v4874 = vmul.f32 %v3658, %v1802
        %v4875 = vmul.f32 %v3654, %v1803
        %v4876 = vmul.f32 %v3666, %v1804
        %v4877 = vmul.f32 %v3663, %v1801
        %v4878 = vmul.f32 %v3659, %v1802
        %v4879 = vmul.f32 %v3655, %v1803
        %v4880 = vmul.f32 %v3667, %v1804
        %v4881 = vmul.f32 %v3664, %v1801
        %v4882 = vmul.f32 %v3660, %v1802
        %v4883 = vmul.f32 %v3656, %v1803
        %v4884 = vmul.f32 %v3668, %v1804
        %4885 = vst [vmem:[#allocation2 + $0xa80] sm:$0xff] %v4869
        %4886 = vst [vmem:[#allocation2 + $0xa88] sm:$0xff] %v4870
        %4887 = vst [vmem:[#allocation2 + $0xa90] sm:$0xff] %v4871
        %4888 = vst [vmem:[#allocation2 + $0xa98] sm:$0xff] %v4872
        %4889 = vst [vmem:[#allocation2 + $0xaa0] sm:$0xff] %v4873
        %4890 = vst [vmem:[#allocation2 + $0xaa8] sm:$0xff] %v4874
        %4891 = vst [vmem:[#allocation2 + $0xab0] sm:$0xff] %v4875
        %4892 = vst [vmem:[#allocation2 + $0xab8] sm:$0xff] %v4876
        %4893 = vst [vmem:[#allocation2 + $0xac0] sm:$0xff] %v4877
        %4894 = vst [vmem:[#allocation2 + $0xac8] sm:$0xff] %v4878
        %4895 = vst [vmem:[#allocation2 + $0xad0] sm:$0xff] %v4879
        %4896 = vst [vmem:[#allocation2 + $0xad8] sm:$0xff] %v4880
        %4897 = vst [vmem:[#allocation2 + $0xae0] sm:$0xff] %v4881
        %4898 = vst [vmem:[#allocation2 + $0xae8] sm:$0xff] %v4882
        %4899 = vst [vmem:[#allocation2 + $0xaf0] sm:$0xff] %v4883
        %4900 = vst [vmem:[#allocation2 + $0xaf8] sm:$0xff] %v4884
        %v4901 = vmul.f32 %v3741, %v1821
        %v4902 = vmul.f32 %v3737, %v1822
        %v4903 = vmul.f32 %v3733, %v1823
        %v4904 = vmul.f32 %v3745, %v1824
        %v4905 = vmul.f32 %v3742, %v1821
        %v4906 = vmul.f32 %v3738, %v1822
        %v4907 = vmul.f32 %v3734, %v1823
        %v4908 = vmul.f32 %v3746, %v1824
        %v4909 = vmul.f32 %v3743, %v1821
        %v4910 = vmul.f32 %v3739, %v1822
        %v4911 = vmul.f32 %v3735, %v1823
        %v4912 = vmul.f32 %v3747, %v1824
        %v4913 = vmul.f32 %v3744, %v1821
        %v4914 = vmul.f32 %v3740, %v1822
        %v4915 = vmul.f32 %v3736, %v1823
        %v4916 = vmul.f32 %v3748, %v1824
        %4917 = vst [vmem:[#allocation2 + $0xb00] sm:$0xff] %v4901
        %4918 = vst [vmem:[#allocation2 + $0xb08] sm:$0xff] %v4902
        %4919 = vst [vmem:[#allocation2 + $0xb10] sm:$0xff] %v4903
        %4920 = vst [vmem:[#allocation2 + $0xb18] sm:$0xff] %v4904
        %4921 = vst [vmem:[#allocation2 + $0xb20] sm:$0xff] %v4905
        %4922 = vst [vmem:[#allocation2 + $0xb28] sm:$0xff] %v4906
        %4923 = vst [vmem:[#allocation2 + $0xb30] sm:$0xff] %v4907
        %4924 = vst [vmem:[#allocation2 + $0xb38] sm:$0xff] %v4908
        %4925 = vst [vmem:[#allocation2 + $0xb40] sm:$0xff] %v4909
        %4926 = vst [vmem:[#allocation2 + $0xb48] sm:$0xff] %v4910
        %4927 = vst [vmem:[#allocation2 + $0xb50] sm:$0xff] %v4911
        %4928 = vst [vmem:[#allocation2 + $0xb58] sm:$0xff] %v4912
        %4929 = vst [vmem:[#allocation2 + $0xb60] sm:$0xff] %v4913
        %4930 = vst [vmem:[#allocation2 + $0xb68] sm:$0xff] %v4914
        %4931 = vst [vmem:[#allocation2 + $0xb70] sm:$0xff] %v4915
        %4932 = vst [vmem:[#allocation2 + $0xb78] sm:$0xff] %v4916
        %v4933 = vmul.f32 %v3821, %v1841
        %v4934 = vmul.f32 %v3817, %v1842
        %v4935 = vmul.f32 %v3813, %v1843
        %v4936 = vmul.f32 %v3825, %v1844
        %v4937 = vmul.f32 %v3822, %v1841
        %v4938 = vmul.f32 %v3818, %v1842
        %v4939 = vmul.f32 %v3814, %v1843
        %v4940 = vmul.f32 %v3826, %v1844
        %v4941 = vmul.f32 %v3823, %v1841
        %v4942 = vmul.f32 %v3819, %v1842
        %v4943 = vmul.f32 %v3815, %v1843
        %v4944 = vmul.f32 %v3827, %v1844
        %v4945 = vmul.f32 %v3824, %v1841
        %v4946 = vmul.f32 %v3820, %v1842
        %v4947 = vmul.f32 %v3816, %v1843
        %v4948 = vmul.f32 %v3828, %v1844
        %4949 = vst [vmem:[#allocation2 + $0xb80] sm:$0xff] %v4933
        %4950 = vst [vmem:[#allocation2 + $0xb88] sm:$0xff] %v4934
        %4951 = vst [vmem:[#allocation2 + $0xb90] sm:$0xff] %v4935
        %4952 = vst [vmem:[#allocation2 + $0xb98] sm:$0xff] %v4936
        %4953 = vst [vmem:[#allocation2 + $0xba0] sm:$0xff] %v4937
        %4954 = vst [vmem:[#allocation2 + $0xba8] sm:$0xff] %v4938
        %4955 = vst [vmem:[#allocation2 + $0xbb0] sm:$0xff] %v4939
        %4956 = vst [vmem:[#allocation2 + $0xbb8] sm:$0xff] %v4940
        %4957 = vst [vmem:[#allocation2 + $0xbc0] sm:$0xff] %v4941
        %4958 = vst [vmem:[#allocation2 + $0xbc8] sm:$0xff] %v4942
        %4959 = vst [vmem:[#allocation2 + $0xbd0] sm:$0xff] %v4943
        %4960 = vst [vmem:[#allocation2 + $0xbd8] sm:$0xff] %v4944
        %4961 = vst [vmem:[#allocation2 + $0xbe0] sm:$0xff] %v4945
        %4962 = vst [vmem:[#allocation2 + $0xbe8] sm:$0xff] %v4946
        %4963 = vst [vmem:[#allocation2 + $0xbf0] sm:$0xff] %v4947
        %4964 = vst [vmem:[#allocation2 + $0xbf8] sm:$0xff] %v4948
        %v4965 = vmul.f32 %v3901, %v1861
        %v4966 = vmul.f32 %v3897, %v1862
        %v4967 = vmul.f32 %v3893, %v1863
        %v4968 = vmul.f32 %v3905, %v1864
        %v4969 = vmul.f32 %v3902, %v1861
        %v4970 = vmul.f32 %v3898, %v1862
        %v4971 = vmul.f32 %v3894, %v1863
        %v4972 = vmul.f32 %v3906, %v1864
        %v4973 = vmul.f32 %v3903, %v1861
        %v4974 = vmul.f32 %v3899, %v1862
        %v4975 = vmul.f32 %v3895, %v1863
        %v4976 = vmul.f32 %v3907, %v1864
        %v4977 = vmul.f32 %v3904, %v1861
        %v4978 = vmul.f32 %v3900, %v1862
        %v4979 = vmul.f32 %v3896, %v1863
        %v4980 = vmul.f32 %v3908, %v1864
        %4981 = vst [vmem:[#allocation2 + $0xc00] sm:$0xff] %v4965
        %4982 = vst [vmem:[#allocation2 + $0xc08] sm:$0xff] %v4966
        %4983 = vst [vmem:[#allocation2 + $0xc10] sm:$0xff] %v4967
        %4984 = vst [vmem:[#allocation2 + $0xc18] sm:$0xff] %v4968
        %4985 = vst [vmem:[#allocation2 + $0xc20] sm:$0xff] %v4969
        %4986 = vst [vmem:[#allocation2 + $0xc28] sm:$0xff] %v4970
        %4987 = vst [vmem:[#allocation2 + $0xc30] sm:$0xff] %v4971
        %4988 = vst [vmem:[#allocation2 + $0xc38] sm:$0xff] %v4972
        %4989 = vst [vmem:[#allocation2 + $0xc40] sm:$0xff] %v4973
        %4990 = vst [vmem:[#allocation2 + $0xc48] sm:$0xff] %v4974
        %4991 = vst [vmem:[#allocation2 + $0xc50] sm:$0xff] %v4975
        %4992 = vst [vmem:[#allocation2 + $0xc58] sm:$0xff] %v4976
        %4993 = vst [vmem:[#allocation2 + $0xc60] sm:$0xff] %v4977
        %4994 = vst [vmem:[#allocation2 + $0xc68] sm:$0xff] %v4978
        %4995 = vst [vmem:[#allocation2 + $0xc70] sm:$0xff] %v4979
        %4996 = vst [vmem:[#allocation2 + $0xc78] sm:$0xff] %v4980
        %v4997 = vmul.f32 %v3981, %v1881
        %v4998 = vmul.f32 %v3977, %v1882
        %v4999 = vmul.f32 %v3973, %v1883
        %v5000 = vmul.f32 %v3985, %v1884
        %v5001 = vmul.f32 %v3982, %v1881
        %v5002 = vmul.f32 %v3978, %v1882
        %v5003 = vmul.f32 %v3974, %v1883
        %v5004 = vmul.f32 %v3986, %v1884
        %v5005 = vmul.f32 %v3983, %v1881
        %v5006 = vmul.f32 %v3979, %v1882
        %v5007 = vmul.f32 %v3975, %v1883
        %v5008 = vmul.f32 %v3987, %v1884
        %v5009 = vmul.f32 %v3984, %v1881
        %v5010 = vmul.f32 %v3980, %v1882
        %v5011 = vmul.f32 %v3976, %v1883
        %v5012 = vmul.f32 %v3988, %v1884
        %5013 = vst [vmem:[#allocation2 + $0xc80] sm:$0xff] %v4997
        %5014 = vst [vmem:[#allocation2 + $0xc88] sm:$0xff] %v4998
        %5015 = vst [vmem:[#allocation2 + $0xc90] sm:$0xff] %v4999
        %5016 = vst [vmem:[#allocation2 + $0xc98] sm:$0xff] %v5000
        %5017 = vst [vmem:[#allocation2 + $0xca0] sm:$0xff] %v5001
        %5018 = vst [vmem:[#allocation2 + $0xca8] sm:$0xff] %v5002
        %5019 = vst [vmem:[#allocation2 + $0xcb0] sm:$0xff] %v5003
        %5020 = vst [vmem:[#allocation2 + $0xcb8] sm:$0xff] %v5004
        %5021 = vst [vmem:[#allocation2 + $0xcc0] sm:$0xff] %v5005
        %5022 = vst [vmem:[#allocation2 + $0xcc8] sm:$0xff] %v5006
        %5023 = vst [vmem:[#allocation2 + $0xcd0] sm:$0xff] %v5007
        %5024 = vst [vmem:[#allocation2 + $0xcd8] sm:$0xff] %v5008
        %5025 = vst [vmem:[#allocation2 + $0xce0] sm:$0xff] %v5009
        %5026 = vst [vmem:[#allocation2 + $0xce8] sm:$0xff] %v5010
        %5027 = vst [vmem:[#allocation2 + $0xcf0] sm:$0xff] %v5011
        %5028 = vst [vmem:[#allocation2 + $0xcf8] sm:$0xff] %v5012
        %v5029 = vmul.f32 %v4061, %v1901
        %v5030 = vmul.f32 %v4057, %v1902
        %v5031 = vmul.f32 %v4053, %v1903
        %v5032 = vmul.f32 %v4065, %v1904
        %v5033 = vmul.f32 %v4062, %v1901
        %v5034 = vmul.f32 %v4058, %v1902
        %v5035 = vmul.f32 %v4054, %v1903
        %v5036 = vmul.f32 %v4066, %v1904
        %v5037 = vmul.f32 %v4063, %v1901
        %v5038 = vmul.f32 %v4059, %v1902
        %v5039 = vmul.f32 %v4055, %v1903
        %v5040 = vmul.f32 %v4067, %v1904
        %v5041 = vmul.f32 %v4064, %v1901
        %v5042 = vmul.f32 %v4060, %v1902
        %v5043 = vmul.f32 %v4056, %v1903
        %v5044 = vmul.f32 %v4068, %v1904
        %5045 = vst [vmem:[#allocation2 + $0xd00] sm:$0xff] %v5029
        %5046 = vst [vmem:[#allocation2 + $0xd08] sm:$0xff] %v5030
        %5047 = vst [vmem:[#allocation2 + $0xd10] sm:$0xff] %v5031
        %5048 = vst [vmem:[#allocation2 + $0xd18] sm:$0xff] %v5032
        %5049 = vst [vmem:[#allocation2 + $0xd20] sm:$0xff] %v5033
        %5050 = vst [vmem:[#allocation2 + $0xd28] sm:$0xff] %v5034
        %5051 = vst [vmem:[#allocation2 + $0xd30] sm:$0xff] %v5035
        %5052 = vst [vmem:[#allocation2 + $0xd38] sm:$0xff] %v5036
        %5053 = vst [vmem:[#allocation2 + $0xd40] sm:$0xff] %v5037
        %5054 = vst [vmem:[#allocation2 + $0xd48] sm:$0xff] %v5038
        %5055 = vst [vmem:[#allocation2 + $0xd50] sm:$0xff] %v5039
        %5056 = vst [vmem:[#allocation2 + $0xd58] sm:$0xff] %v5040
        %5057 = vst [vmem:[#allocation2 + $0xd60] sm:$0xff] %v5041
        %5058 = vst [vmem:[#allocation2 + $0xd68] sm:$0xff] %v5042
        %5059 = vst [vmem:[#allocation2 + $0xd70] sm:$0xff] %v5043
        %5060 = vst [vmem:[#allocation2 + $0xd78] sm:$0xff] %v5044
        %v5061 = vld [vmem:[#allocation2] sm:$0xff]
        %v5062 = vld [vmem:[#allocation2 + $0x8] sm:$0xff]
        %v5063 = vld [vmem:[#allocation2 + $0x10] sm:$0xff]
        %v5064 = vld [vmem:[#allocation2 + $0x18] sm:$0xff]
        %v5065 = vld [vmem:[#allocation2 + $0x20] sm:$0xff]
        %v5066 = vld [vmem:[#allocation2 + $0x28] sm:$0xff]
        %v5067 = vld [vmem:[#allocation2 + $0x30] sm:$0xff]
        %v5068 = vld [vmem:[#allocation2 + $0x38] sm:$0xff]
        %v5069 = vld [vmem:[#allocation2 + $0x40] sm:$0xff]
        %v5070 = vld [vmem:[#allocation2 + $0x48] sm:$0xff]
        %v5071 = vld [vmem:[#allocation2 + $0x50] sm:$0xff]
        %v5072 = vld [vmem:[#allocation2 + $0x58] sm:$0xff]
        %v5073 = vld [vmem:[#allocation2 + $0x60] sm:$0xff]
        %v5074 = vld [vmem:[#allocation2 + $0x68] sm:$0xff]
        %v5075 = vld [vmem:[#allocation2 + $0x70] sm:$0xff]
        %v5076 = vld [vmem:[#allocation2 + $0x78] sm:$0xff]
        %v5077 = vld [vmem:[#allocation2 + $0x80] sm:$0xff]
        %v5078 = vld [vmem:[#allocation2 + $0x88] sm:$0xff]
        %v5079 = vld [vmem:[#allocation2 + $0x90] sm:$0xff]
        %v5080 = vld [vmem:[#allocation2 + $0x98] sm:$0xff]
        %v5081 = vld [vmem:[#allocation2 + $0xa0] sm:$0xff]
        %v5082 = vld [vmem:[#allocation2 + $0xa8] sm:$0xff]
        %v5083 = vld [vmem:[#allocation2 + $0xb0] sm:$0xff]
        %v5084 = vld [vmem:[#allocation2 + $0xb8] sm:$0xff]
        %v5085 = vld [vmem:[#allocation2 + $0xc0] sm:$0xff]
        %v5086 = vld [vmem:[#allocation2 + $0xc8] sm:$0xff]
        %v5087 = vld [vmem:[#allocation2 + $0xd0] sm:$0xff]
        %v5088 = vld [vmem:[#allocation2 + $0xd8] sm:$0xff]
        %v5089 = vld [vmem:[#allocation2 + $0xe0] sm:$0xff]
        %v5090 = vld [vmem:[#allocation2 + $0xe8] sm:$0xff]
        %v5091 = vld [vmem:[#allocation2 + $0xf0] sm:$0xff]
        %v5092 = vld [vmem:[#allocation2 + $0xf8] sm:$0xff]
        %v5093 = vld [vmem:[#allocation2 + $0x100] sm:$0xff]
        %v5094 = vld [vmem:[#allocation2 + $0x108] sm:$0xff]
        %v5095 = vld [vmem:[#allocation2 + $0x110] sm:$0xff]
        %v5096 = vld [vmem:[#allocation2 + $0x118] sm:$0xff]
        %v5097 = vld [vmem:[#allocation2 + $0x120] sm:$0xff]
        %v5098 = vld [vmem:[#allocation2 + $0x128] sm:$0xff]
        %v5099 = vld [vmem:[#allocation2 + $0x130] sm:$0xff]
        %v5100 = vld [vmem:[#allocation2 + $0x138] sm:$0xff]
        %v5101 = vld [vmem:[#allocation2 + $0x140] sm:$0xff]
        %v5102 = vld [vmem:[#allocation2 + $0x148] sm:$0xff]
        %v5103 = vld [vmem:[#allocation2 + $0x150] sm:$0xff]
        %v5104 = vld [vmem:[#allocation2 + $0x158] sm:$0xff]
        %v5105 = vld [vmem:[#allocation2 + $0x160] sm:$0xff]
        %v5106 = vld [vmem:[#allocation2 + $0x168] sm:$0xff]
        %v5107 = vld [vmem:[#allocation2 + $0x170] sm:$0xff]
        %v5108 = vld [vmem:[#allocation2 + $0x178] sm:$0xff]
        %v5109 = vld [vmem:[#allocation2 + $0x180] sm:$0xff]
        %v5110 = vld [vmem:[#allocation2 + $0x188] sm:$0xff]
        %v5111 = vld [vmem:[#allocation2 + $0x190] sm:$0xff]
        %v5112 = vld [vmem:[#allocation2 + $0x198] sm:$0xff]
        %v5113 = vld [vmem:[#allocation2 + $0x1a0] sm:$0xff]
        %v5114 = vld [vmem:[#allocation2 + $0x1a8] sm:$0xff]
        %v5115 = vld [vmem:[#allocation2 + $0x1b0] sm:$0xff]
        %v5116 = vld [vmem:[#allocation2 + $0x1b8] sm:$0xff]
        %v5117 = vld [vmem:[#allocation2 + $0x1c0] sm:$0xff]
        %v5118 = vld [vmem:[#allocation2 + $0x1c8] sm:$0xff]
        %v5119 = vld [vmem:[#allocation2 + $0x1d0] sm:$0xff]
        %v5120 = vld [vmem:[#allocation2 + $0x1d8] sm:$0xff]
        %v5121 = vld [vmem:[#allocation2 + $0x1e0] sm:$0xff]
        %v5122 = vld [vmem:[#allocation2 + $0x1e8] sm:$0xff]
        %v5123 = vld [vmem:[#allocation2 + $0x1f0] sm:$0xff]
        %v5124 = vld [vmem:[#allocation2 + $0x1f8] sm:$0xff]
        %v5125 = vld [vmem:[#allocation2 + $0x200] sm:$0xff]
        %v5126 = vld [vmem:[#allocation2 + $0x208] sm:$0xff]
        %v5127 = vld [vmem:[#allocation2 + $0x210] sm:$0xff]
        %v5128 = vld [vmem:[#allocation2 + $0x218] sm:$0xff]
        %v5129 = vld [vmem:[#allocation2 + $0x220] sm:$0xff]
        %v5130 = vld [vmem:[#allocation2 + $0x228] sm:$0xff]
        %v5131 = vld [vmem:[#allocation2 + $0x230] sm:$0xff]
        %v5132 = vld [vmem:[#allocation2 + $0x238] sm:$0xff]
        %v5133 = vld [vmem:[#allocation2 + $0x240] sm:$0xff]
        %v5134 = vld [vmem:[#allocation2 + $0x248] sm:$0xff]
        %v5135 = vld [vmem:[#allocation2 + $0x250] sm:$0xff]
        %v5136 = vld [vmem:[#allocation2 + $0x258] sm:$0xff]
        %v5137 = vld [vmem:[#allocation2 + $0x260] sm:$0xff]
        %v5138 = vld [vmem:[#allocation2 + $0x268] sm:$0xff]
        %v5139 = vld [vmem:[#allocation2 + $0x270] sm:$0xff]
        %v5140 = vld [vmem:[#allocation2 + $0x278] sm:$0xff]
        %v5141 = vld [vmem:[#allocation2 + $0x280] sm:$0xff]
        %v5142 = vld [vmem:[#allocation2 + $0x288] sm:$0xff]
        %v5143 = vld [vmem:[#allocation2 + $0x290] sm:$0xff]
        %v5144 = vld [vmem:[#allocation2 + $0x298] sm:$0xff]
        %v5145 = vld [vmem:[#allocation2 + $0x2a0] sm:$0xff]
        %v5146 = vld [vmem:[#allocation2 + $0x2a8] sm:$0xff]
        %v5147 = vld [vmem:[#allocation2 + $0x2b0] sm:$0xff]
        %v5148 = vld [vmem:[#allocation2 + $0x2b8] sm:$0xff]
        %v5149 = vld [vmem:[#allocation2 + $0x2c0] sm:$0xff]
        %v5150 = vld [vmem:[#allocation2 + $0x2c8] sm:$0xff]
        %v5151 = vld [vmem:[#allocation2 + $0x2d0] sm:$0xff]
        %v5152 = vld [vmem:[#allocation2 + $0x2d8] sm:$0xff]
        %v5153 = vld [vmem:[#allocation2 + $0x2e0] sm:$0xff]
        %v5154 = vld [vmem:[#allocation2 + $0x2e8] sm:$0xff]
        %v5155 = vld [vmem:[#allocation2 + $0x2f0] sm:$0xff]
        %v5156 = vld [vmem:[#allocation2 + $0x2f8] sm:$0xff]
        %v5157 = vld [vmem:[#allocation2 + $0x300] sm:$0xff]
        %v5158 = vld [vmem:[#allocation2 + $0x308] sm:$0xff]
        %v5159 = vld [vmem:[#allocation2 + $0x310] sm:$0xff]
        %v5160 = vld [vmem:[#allocation2 + $0x318] sm:$0xff]
        %v5161 = vld [vmem:[#allocation2 + $0x320] sm:$0xff]
        %v5162 = vld [vmem:[#allocation2 + $0x328] sm:$0xff]
        %v5163 = vld [vmem:[#allocation2 + $0x330] sm:$0xff]
        %v5164 = vld [vmem:[#allocation2 + $0x338] sm:$0xff]
        %v5165 = vld [vmem:[#allocation2 + $0x340] sm:$0xff]
        %v5166 = vld [vmem:[#allocation2 + $0x348] sm:$0xff]
        %v5167 = vld [vmem:[#allocation2 + $0x350] sm:$0xff]
        %v5168 = vld [vmem:[#allocation2 + $0x358] sm:$0xff]
        %v5169 = vld [vmem:[#allocation2 + $0x360] sm:$0xff]
        %v5170 = vld [vmem:[#allocation2 + $0x368] sm:$0xff]
        %v5171 = vld [vmem:[#allocation2 + $0x370] sm:$0xff]
        %v5172 = vld [vmem:[#allocation2 + $0x378] sm:$0xff]
        %v5173 = vld [vmem:[#allocation2 + $0x380] sm:$0xff]
        %v5174 = vld [vmem:[#allocation2 + $0x388] sm:$0xff]
        %v5175 = vld [vmem:[#allocation2 + $0x390] sm:$0xff]
        %v5176 = vld [vmem:[#allocation2 + $0x398] sm:$0xff]
        %v5177 = vld [vmem:[#allocation2 + $0x3a0] sm:$0xff]
        %v5178 = vld [vmem:[#allocation2 + $0x3a8] sm:$0xff]
        %v5179 = vld [vmem:[#allocation2 + $0x3b0] sm:$0xff]
        %v5180 = vld [vmem:[#allocation2 + $0x3b8] sm:$0xff]
        %v5181 = vld [vmem:[#allocation2 + $0x3c0] sm:$0xff]
        %v5182 = vld [vmem:[#allocation2 + $0x3c8] sm:$0xff]
        %v5183 = vld [vmem:[#allocation2 + $0x3d0] sm:$0xff]
        %v5184 = vld [vmem:[#allocation2 + $0x3d8] sm:$0xff]
        %v5185 = vld [vmem:[#allocation2 + $0x3e0] sm:$0xff]
        %v5186 = vld [vmem:[#allocation2 + $0x3e8] sm:$0xff]
        %v5187 = vld [vmem:[#allocation2 + $0x3f0] sm:$0xff]
        %v5188 = vld [vmem:[#allocation2 + $0x3f8] sm:$0xff]
        %v5189 = vld [vmem:[#allocation2 + $0x400] sm:$0xff]
        %v5190 = vld [vmem:[#allocation2 + $0x408] sm:$0xff]
        %v5191 = vld [vmem:[#allocation2 + $0x410] sm:$0xff]
        %v5192 = vld [vmem:[#allocation2 + $0x418] sm:$0xff]
        %v5193 = vld [vmem:[#allocation2 + $0x420] sm:$0xff]
        %v5194 = vld [vmem:[#allocation2 + $0x428] sm:$0xff]
        %v5195 = vld [vmem:[#allocation2 + $0x430] sm:$0xff]
        %v5196 = vld [vmem:[#allocation2 + $0x438] sm:$0xff]
        %v5197 = vld [vmem:[#allocation2 + $0x440] sm:$0xff]
        %v5198 = vld [vmem:[#allocation2 + $0x448] sm:$0xff]
        %v5199 = vld [vmem:[#allocation2 + $0x450] sm:$0xff]
        %v5200 = vld [vmem:[#allocation2 + $0x458] sm:$0xff]
        %v5201 = vld [vmem:[#allocation2 + $0x460] sm:$0xff]
        %v5202 = vld [vmem:[#allocation2 + $0x468] sm:$0xff]
        %v5203 = vld [vmem:[#allocation2 + $0x470] sm:$0xff]
        %v5204 = vld [vmem:[#allocation2 + $0x478] sm:$0xff]
        %v5205 = vld [vmem:[#allocation2 + $0x480] sm:$0xff]
        %v5206 = vld [vmem:[#allocation2 + $0x488] sm:$0xff]
        %v5207 = vld [vmem:[#allocation2 + $0x490] sm:$0xff]
        %v5208 = vld [vmem:[#allocation2 + $0x498] sm:$0xff]
        %v5209 = vld [vmem:[#allocation2 + $0x4a0] sm:$0xff]
        %v5210 = vld [vmem:[#allocation2 + $0x4a8] sm:$0xff]
        %v5211 = vld [vmem:[#allocation2 + $0x4b0] sm:$0xff]
        %v5212 = vld [vmem:[#allocation2 + $0x4b8] sm:$0xff]
        %v5213 = vld [vmem:[#allocation2 + $0x4c0] sm:$0xff]
        %v5214 = vld [vmem:[#allocation2 + $0x4c8] sm:$0xff]
        %v5215 = vld [vmem:[#allocation2 + $0x4d0] sm:$0xff]
        %v5216 = vld [vmem:[#allocation2 + $0x4d8] sm:$0xff]
        %v5217 = vld [vmem:[#allocation2 + $0x4e0] sm:$0xff]
        %v5218 = vld [vmem:[#allocation2 + $0x4e8] sm:$0xff]
        %v5219 = vld [vmem:[#allocation2 + $0x4f0] sm:$0xff]
        %v5220 = vld [vmem:[#allocation2 + $0x4f8] sm:$0xff]
        %v5221 = vld [vmem:[#allocation2 + $0x500] sm:$0xff]
        %v5222 = vld [vmem:[#allocation2 + $0x508] sm:$0xff]
        %v5223 = vld [vmem:[#allocation2 + $0x510] sm:$0xff]
        %v5224 = vld [vmem:[#allocation2 + $0x518] sm:$0xff]
        %v5225 = vld [vmem:[#allocation2 + $0x520] sm:$0xff]
        %v5226 = vld [vmem:[#allocation2 + $0x528] sm:$0xff]
        %v5227 = vld [vmem:[#allocation2 + $0x530] sm:$0xff]
        %v5228 = vld [vmem:[#allocation2 + $0x538] sm:$0xff]
        %v5229 = vld [vmem:[#allocation2 + $0x540] sm:$0xff]
        %v5230 = vld [vmem:[#allocation2 + $0x548] sm:$0xff]
        %v5231 = vld [vmem:[#allocation2 + $0x550] sm:$0xff]
        %v5232 = vld [vmem:[#allocation2 + $0x558] sm:$0xff]
        %v5233 = vld [vmem:[#allocation2 + $0x560] sm:$0xff]
        %v5234 = vld [vmem:[#allocation2 + $0x568] sm:$0xff]
        %v5235 = vld [vmem:[#allocation2 + $0x570] sm:$0xff]
        %v5236 = vld [vmem:[#allocation2 + $0x578] sm:$0xff]
        %v5237 = vld [vmem:[#allocation2 + $0x580] sm:$0xff]
        %v5238 = vld [vmem:[#allocation2 + $0x588] sm:$0xff]
        %v5239 = vld [vmem:[#allocation2 + $0x590] sm:$0xff]
        %v5240 = vld [vmem:[#allocation2 + $0x598] sm:$0xff]
        %v5241 = vld [vmem:[#allocation2 + $0x5a0] sm:$0xff]
        %v5242 = vld [vmem:[#allocation2 + $0x5a8] sm:$0xff]
        %v5243 = vld [vmem:[#allocation2 + $0x5b0] sm:$0xff]
        %v5244 = vld [vmem:[#allocation2 + $0x5b8] sm:$0xff]
        %v5245 = vld [vmem:[#allocation2 + $0x5c0] sm:$0xff]
        %v5246 = vld [vmem:[#allocation2 + $0x5c8] sm:$0xff]
        %v5247 = vld [vmem:[#allocation2 + $0x5d0] sm:$0xff]
        %v5248 = vld [vmem:[#allocation2 + $0x5d8] sm:$0xff]
        %v5249 = vld [vmem:[#allocation2 + $0x5e0] sm:$0xff]
        %v5250 = vld [vmem:[#allocation2 + $0x5e8] sm:$0xff]
        %v5251 = vld [vmem:[#allocation2 + $0x5f0] sm:$0xff]
        %v5252 = vld [vmem:[#allocation2 + $0x5f8] sm:$0xff]
        %v5253 = vld [vmem:[#allocation2 + $0x600] sm:$0xff]
        %v5254 = vld [vmem:[#allocation2 + $0x608] sm:$0xff]
        %v5255 = vld [vmem:[#allocation2 + $0x610] sm:$0xff]
        %v5256 = vld [vmem:[#allocation2 + $0x618] sm:$0xff]
        %v5257 = vld [vmem:[#allocation2 + $0x620] sm:$0xff]
        %v5258 = vld [vmem:[#allocation2 + $0x628] sm:$0xff]
        %v5259 = vld [vmem:[#allocation2 + $0x630] sm:$0xff]
        %v5260 = vld [vmem:[#allocation2 + $0x638] sm:$0xff]
        %v5261 = vld [vmem:[#allocation2 + $0x640] sm:$0xff]
        %v5262 = vld [vmem:[#allocation2 + $0x648] sm:$0xff]
        %v5263 = vld [vmem:[#allocation2 + $0x650] sm:$0xff]
        %v5264 = vld [vmem:[#allocation2 + $0x658] sm:$0xff]
        %v5265 = vld [vmem:[#allocation2 + $0x660] sm:$0xff]
        %v5266 = vld [vmem:[#allocation2 + $0x668] sm:$0xff]
        %v5267 = vld [vmem:[#allocation2 + $0x670] sm:$0xff]
        %v5268 = vld [vmem:[#allocation2 + $0x678] sm:$0xff]
        %v5269 = vld [vmem:[#allocation2 + $0x680] sm:$0xff]
        %v5270 = vld [vmem:[#allocation2 + $0x688] sm:$0xff]
        %v5271 = vld [vmem:[#allocation2 + $0x690] sm:$0xff]
        %v5272 = vld [vmem:[#allocation2 + $0x698] sm:$0xff]
        %v5273 = vld [vmem:[#allocation2 + $0x6a0] sm:$0xff]
        %v5274 = vld [vmem:[#allocation2 + $0x6a8] sm:$0xff]
        %v5275 = vld [vmem:[#allocation2 + $0x6b0] sm:$0xff]
        %v5276 = vld [vmem:[#allocation2 + $0x6b8] sm:$0xff]
        %v5277 = vld [vmem:[#allocation2 + $0x6c0] sm:$0xff]
        %v5278 = vld [vmem:[#allocation2 + $0x6c8] sm:$0xff]
        %v5279 = vld [vmem:[#allocation2 + $0x6d0] sm:$0xff]
        %v5280 = vld [vmem:[#allocation2 + $0x6d8] sm:$0xff]
        %v5281 = vld [vmem:[#allocation2 + $0x6e0] sm:$0xff]
        %v5282 = vld [vmem:[#allocation2 + $0x6e8] sm:$0xff]
        %v5283 = vld [vmem:[#allocation2 + $0x6f0] sm:$0xff]
        %v5284 = vld [vmem:[#allocation2 + $0x6f8] sm:$0xff]
        %v5285 = vld [vmem:[#allocation2 + $0x700] sm:$0xff]
        %v5286 = vld [vmem:[#allocation2 + $0x708] sm:$0xff]
        %v5287 = vld [vmem:[#allocation2 + $0x710] sm:$0xff]
        %v5288 = vld [vmem:[#allocation2 + $0x718] sm:$0xff]
        %v5289 = vld [vmem:[#allocation2 + $0x720] sm:$0xff]
        %v5290 = vld [vmem:[#allocation2 + $0x728] sm:$0xff]
        %v5291 = vld [vmem:[#allocation2 + $0x730] sm:$0xff]
        %v5292 = vld [vmem:[#allocation2 + $0x738] sm:$0xff]
        %v5293 = vld [vmem:[#allocation2 + $0x740] sm:$0xff]
        %v5294 = vld [vmem:[#allocation2 + $0x748] sm:$0xff]
        %v5295 = vld [vmem:[#allocation2 + $0x750] sm:$0xff]
        %v5296 = vld [vmem:[#allocation2 + $0x758] sm:$0xff]
        %v5297 = vld [vmem:[#allocation2 + $0x760] sm:$0xff]
        %v5298 = vld [vmem:[#allocation2 + $0x768] sm:$0xff]
        %v5299 = vld [vmem:[#allocation2 + $0x770] sm:$0xff]
        %v5300 = vld [vmem:[#allocation2 + $0x778] sm:$0xff]
        %v5301 = vld [vmem:[#allocation2 + $0x780] sm:$0xff]
        %v5302 = vld [vmem:[#allocation2 + $0x788] sm:$0xff]
        %v5303 = vld [vmem:[#allocation2 + $0x790] sm:$0xff]
        %v5304 = vld [vmem:[#allocation2 + $0x798] sm:$0xff]
        %v5305 = vld [vmem:[#allocation2 + $0x7a0] sm:$0xff]
        %v5306 = vld [vmem:[#allocation2 + $0x7a8] sm:$0xff]
        %v5307 = vld [vmem:[#allocation2 + $0x7b0] sm:$0xff]
        %v5308 = vld [vmem:[#allocation2 + $0x7b8] sm:$0xff]
        %v5309 = vld [vmem:[#allocation2 + $0x7c0] sm:$0xff]
        %v5310 = vld [vmem:[#allocation2 + $0x7c8] sm:$0xff]
        %v5311 = vld [vmem:[#allocation2 + $0x7d0] sm:$0xff]
        %v5312 = vld [vmem:[#allocation2 + $0x7d8] sm:$0xff]
        %v5313 = vld [vmem:[#allocation2 + $0x7e0] sm:$0xff]
        %v5314 = vld [vmem:[#allocation2 + $0x7e8] sm:$0xff]
        %v5315 = vld [vmem:[#allocation2 + $0x7f0] sm:$0xff]
        %v5316 = vld [vmem:[#allocation2 + $0x7f8] sm:$0xff]
        %v5317 = vld [vmem:[#allocation2 + $0x800] sm:$0xff]
        %v5318 = vld [vmem:[#allocation2 + $0x808] sm:$0xff]
        %v5319 = vld [vmem:[#allocation2 + $0x810] sm:$0xff]
        %v5320 = vld [vmem:[#allocation2 + $0x818] sm:$0xff]
        %v5321 = vld [vmem:[#allocation2 + $0x820] sm:$0xff]
        %v5322 = vld [vmem:[#allocation2 + $0x828] sm:$0xff]
        %v5323 = vld [vmem:[#allocation2 + $0x830] sm:$0xff]
        %v5324 = vld [vmem:[#allocation2 + $0x838] sm:$0xff]
        %v5325 = vld [vmem:[#allocation2 + $0x840] sm:$0xff]
        %v5326 = vld [vmem:[#allocation2 + $0x848] sm:$0xff]
        %v5327 = vld [vmem:[#allocation2 + $0x850] sm:$0xff]
        %v5328 = vld [vmem:[#allocation2 + $0x858] sm:$0xff]
        %v5329 = vld [vmem:[#allocation2 + $0x860] sm:$0xff]
        %v5330 = vld [vmem:[#allocation2 + $0x868] sm:$0xff]
        %v5331 = vld [vmem:[#allocation2 + $0x870] sm:$0xff]
        %v5332 = vld [vmem:[#allocation2 + $0x878] sm:$0xff]
        %v5333 = vld [vmem:[#allocation2 + $0x880] sm:$0xff]
        %v5334 = vld [vmem:[#allocation2 + $0x888] sm:$0xff]
        %v5335 = vld [vmem:[#allocation2 + $0x890] sm:$0xff]
        %v5336 = vld [vmem:[#allocation2 + $0x898] sm:$0xff]
        %v5337 = vld [vmem:[#allocation2 + $0x8a0] sm:$0xff]
        %v5338 = vld [vmem:[#allocation2 + $0x8a8] sm:$0xff]
        %v5339 = vld [vmem:[#allocation2 + $0x8b0] sm:$0xff]
        %v5340 = vld [vmem:[#allocation2 + $0x8b8] sm:$0xff]
        %v5341 = vld [vmem:[#allocation2 + $0x8c0] sm:$0xff]
        %v5342 = vld [vmem:[#allocation2 + $0x8c8] sm:$0xff]
        %v5343 = vld [vmem:[#allocation2 + $0x8d0] sm:$0xff]
        %v5344 = vld [vmem:[#allocation2 + $0x8d8] sm:$0xff]
        %v5345 = vld [vmem:[#allocation2 + $0x8e0] sm:$0xff]
        %v5346 = vld [vmem:[#allocation2 + $0x8e8] sm:$0xff]
        %v5347 = vld [vmem:[#allocation2 + $0x8f0] sm:$0xff]
        %v5348 = vld [vmem:[#allocation2 + $0x8f8] sm:$0xff]
        %v5349 = vld [vmem:[#allocation2 + $0x900] sm:$0xff]
        %v5350 = vld [vmem:[#allocation2 + $0x908] sm:$0xff]
        %v5351 = vld [vmem:[#allocation2 + $0x910] sm:$0xff]
        %v5352 = vld [vmem:[#allocation2 + $0x918] sm:$0xff]
        %v5353 = vld [vmem:[#allocation2 + $0x920] sm:$0xff]
        %v5354 = vld [vmem:[#allocation2 + $0x928] sm:$0xff]
        %v5355 = vld [vmem:[#allocation2 + $0x930] sm:$0xff]
        %v5356 = vld [vmem:[#allocation2 + $0x938] sm:$0xff]
        %v5357 = vld [vmem:[#allocation2 + $0x940] sm:$0xff]
        %v5358 = vld [vmem:[#allocation2 + $0x948] sm:$0xff]
        %v5359 = vld [vmem:[#allocation2 + $0x950] sm:$0xff]
        %v5360 = vld [vmem:[#allocation2 + $0x958] sm:$0xff]
        %v5361 = vld [vmem:[#allocation2 + $0x960] sm:$0xff]
        %v5362 = vld [vmem:[#allocation2 + $0x968] sm:$0xff]
        %v5363 = vld [vmem:[#allocation2 + $0x970] sm:$0xff]
        %v5364 = vld [vmem:[#allocation2 + $0x978] sm:$0xff]
        %v5365 = vld [vmem:[#allocation2 + $0x980] sm:$0xff]
        %v5366 = vld [vmem:[#allocation2 + $0x988] sm:$0xff]
        %v5367 = vld [vmem:[#allocation2 + $0x990] sm:$0xff]
        %v5368 = vld [vmem:[#allocation2 + $0x998] sm:$0xff]
        %v5369 = vld [vmem:[#allocation2 + $0x9a0] sm:$0xff]
        %v5370 = vld [vmem:[#allocation2 + $0x9a8] sm:$0xff]
        %v5371 = vld [vmem:[#allocation2 + $0x9b0] sm:$0xff]
        %v5372 = vld [vmem:[#allocation2 + $0x9b8] sm:$0xff]
        %v5373 = vld [vmem:[#allocation2 + $0x9c0] sm:$0xff]
        %v5374 = vld [vmem:[#allocation2 + $0x9c8] sm:$0xff]
        %v5375 = vld [vmem:[#allocation2 + $0x9d0] sm:$0xff]
        %v5376 = vld [vmem:[#allocation2 + $0x9d8] sm:$0xff]
        %v5377 = vld [vmem:[#allocation2 + $0x9e0] sm:$0xff]
        %v5378 = vld [vmem:[#allocation2 + $0x9e8] sm:$0xff]
        %v5379 = vld [vmem:[#allocation2 + $0x9f0] sm:$0xff]
        %v5380 = vld [vmem:[#allocation2 + $0x9f8] sm:$0xff]
        %v5381 = vld [vmem:[#allocation2 + $0xa00] sm:$0xff]
        %v5382 = vld [vmem:[#allocation2 + $0xa08] sm:$0xff]
        %v5383 = vld [vmem:[#allocation2 + $0xa10] sm:$0xff]
        %v5384 = vld [vmem:[#allocation2 + $0xa18] sm:$0xff]
        %v5385 = vld [vmem:[#allocation2 + $0xa20] sm:$0xff]
        %v5386 = vld [vmem:[#allocation2 + $0xa28] sm:$0xff]
        %v5387 = vld [vmem:[#allocation2 + $0xa30] sm:$0xff]
        %v5388 = vld [vmem:[#allocation2 + $0xa38] sm:$0xff]
        %v5389 = vld [vmem:[#allocation2 + $0xa40] sm:$0xff]
        %v5390 = vld [vmem:[#allocation2 + $0xa48] sm:$0xff]
        %v5391 = vld [vmem:[#allocation2 + $0xa50] sm:$0xff]
        %v5392 = vld [vmem:[#allocation2 + $0xa58] sm:$0xff]
        %v5393 = vld [vmem:[#allocation2 + $0xa60] sm:$0xff]
        %v5394 = vld [vmem:[#allocation2 + $0xa68] sm:$0xff]
        %v5395 = vld [vmem:[#allocation2 + $0xa70] sm:$0xff]
        %v5396 = vld [vmem:[#allocation2 + $0xa78] sm:$0xff]
        %v5397 = vld [vmem:[#allocation2 + $0xa80] sm:$0xff]
        %v5398 = vld [vmem:[#allocation2 + $0xa88] sm:$0xff]
        %v5399 = vld [vmem:[#allocation2 + $0xa90] sm:$0xff]
        %v5400 = vld [vmem:[#allocation2 + $0xa98] sm:$0xff]
        %v5401 = vld [vmem:[#allocation2 + $0xaa0] sm:$0xff]
        %v5402 = vld [vmem:[#allocation2 + $0xaa8] sm:$0xff]
        %v5403 = vld [vmem:[#allocation2 + $0xab0] sm:$0xff]
        %v5404 = vld [vmem:[#allocation2 + $0xab8] sm:$0xff]
        %v5405 = vld [vmem:[#allocation2 + $0xac0] sm:$0xff]
        %v5406 = vld [vmem:[#allocation2 + $0xac8] sm:$0xff]
        %v5407 = vld [vmem:[#allocation2 + $0xad0] sm:$0xff]
        %v5408 = vld [vmem:[#allocation2 + $0xad8] sm:$0xff]
        %v5409 = vld [vmem:[#allocation2 + $0xae0] sm:$0xff]
        %v5410 = vld [vmem:[#allocation2 + $0xae8] sm:$0xff]
        %v5411 = vld [vmem:[#allocation2 + $0xaf0] sm:$0xff]
        %v5412 = vld [vmem:[#allocation2 + $0xaf8] sm:$0xff]
        %v5413 = vld [vmem:[#allocation2 + $0xb00] sm:$0xff]
        %v5414 = vld [vmem:[#allocation2 + $0xb08] sm:$0xff]
        %v5415 = vld [vmem:[#allocation2 + $0xb10] sm:$0xff]
        %v5416 = vld [vmem:[#allocation2 + $0xb18] sm:$0xff]
        %v5417 = vld [vmem:[#allocation2 + $0xb20] sm:$0xff]
        %v5418 = vld [vmem:[#allocation2 + $0xb28] sm:$0xff]
        %v5419 = vld [vmem:[#allocation2 + $0xb30] sm:$0xff]
        %v5420 = vld [vmem:[#allocation2 + $0xb38] sm:$0xff]
        %v5421 = vld [vmem:[#allocation2 + $0xb40] sm:$0xff]
        %v5422 = vld [vmem:[#allocation2 + $0xb48] sm:$0xff]
        %v5423 = vld [vmem:[#allocation2 + $0xb50] sm:$0xff]
        %v5424 = vld [vmem:[#allocation2 + $0xb58] sm:$0xff]
        %v5425 = vld [vmem:[#allocation2 + $0xb60] sm:$0xff]
        %v5426 = vld [vmem:[#allocation2 + $0xb68] sm:$0xff]
        %v5427 = vld [vmem:[#allocation2 + $0xb70] sm:$0xff]
        %v5428 = vld [vmem:[#allocation2 + $0xb78] sm:$0xff]
        %v5429 = vld [vmem:[#allocation2 + $0xb80] sm:$0xff]
        %v5430 = vld [vmem:[#allocation2 + $0xb88] sm:$0xff]
        %v5431 = vld [vmem:[#allocation2 + $0xb90] sm:$0xff]
        %v5432 = vld [vmem:[#allocation2 + $0xb98] sm:$0xff]
        %v5433 = vld [vmem:[#allocation2 + $0xba0] sm:$0xff]
        %v5434 = vld [vmem:[#allocation2 + $0xba8] sm:$0xff]
        %v5435 = vld [vmem:[#allocation2 + $0xbb0] sm:$0xff]
        %v5436 = vld [vmem:[#allocation2 + $0xbb8] sm:$0xff]
        %v5437 = vld [vmem:[#allocation2 + $0xbc0] sm:$0xff]
        %v5438 = vld [vmem:[#allocation2 + $0xbc8] sm:$0xff]
        %v5439 = vld [vmem:[#allocation2 + $0xbd0] sm:$0xff]
        %v5440 = vld [vmem:[#allocation2 + $0xbd8] sm:$0xff]
        %v5441 = vld [vmem:[#allocation2 + $0xbe0] sm:$0xff]
        %v5442 = vld [vmem:[#allocation2 + $0xbe8] sm:$0xff]
        %v5443 = vld [vmem:[#allocation2 + $0xbf0] sm:$0xff]
        %v5444 = vld [vmem:[#allocation2 + $0xbf8] sm:$0xff]
        %v5445 = vld [vmem:[#allocation2 + $0xc00] sm:$0xff]
        %v5446 = vld [vmem:[#allocation2 + $0xc08] sm:$0xff]
        %v5447 = vld [vmem:[#allocation2 + $0xc10] sm:$0xff]
        %v5448 = vld [vmem:[#allocation2 + $0xc18] sm:$0xff]
        %v5449 = vld [vmem:[#allocation2 + $0xc20] sm:$0xff]
        %v5450 = vld [vmem:[#allocation2 + $0xc28] sm:$0xff]
        %v5451 = vld [vmem:[#allocation2 + $0xc30] sm:$0xff]
        %v5452 = vld [vmem:[#allocation2 + $0xc38] sm:$0xff]
        %v5453 = vld [vmem:[#allocation2 + $0xc40] sm:$0xff]
        %v5454 = vld [vmem:[#allocation2 + $0xc48] sm:$0xff]
        %v5455 = vld [vmem:[#allocation2 + $0xc50] sm:$0xff]
        %v5456 = vld [vmem:[#allocation2 + $0xc58] sm:$0xff]
        %v5457 = vld [vmem:[#allocation2 + $0xc60] sm:$0xff]
        %v5458 = vld [vmem:[#allocation2 + $0xc68] sm:$0xff]
        %v5459 = vld [vmem:[#allocation2 + $0xc70] sm:$0xff]
        %v5460 = vld [vmem:[#allocation2 + $0xc78] sm:$0xff]
        %v5461 = vld [vmem:[#allocation2 + $0xc80] sm:$0xff]
        %v5462 = vld [vmem:[#allocation2 + $0xc88] sm:$0xff]
        %v5463 = vld [vmem:[#allocation2 + $0xc90] sm:$0xff]
        %v5464 = vld [vmem:[#allocation2 + $0xc98] sm:$0xff]
        %v5465 = vld [vmem:[#allocation2 + $0xca0] sm:$0xff]
        %v5466 = vld [vmem:[#allocation2 + $0xca8] sm:$0xff]
        %v5467 = vld [vmem:[#allocation2 + $0xcb0] sm:$0xff]
        %v5468 = vld [vmem:[#allocation2 + $0xcb8] sm:$0xff]
        %v5469 = vld [vmem:[#allocation2 + $0xcc0] sm:$0xff]
        %v5470 = vld [vmem:[#allocation2 + $0xcc8] sm:$0xff]
        %v5471 = vld [vmem:[#allocation2 + $0xcd0] sm:$0xff]
        %v5472 = vld [vmem:[#allocation2 + $0xcd8] sm:$0xff]
        %v5473 = vld [vmem:[#allocation2 + $0xce0] sm:$0xff]
        %v5474 = vld [vmem:[#allocation2 + $0xce8] sm:$0xff]
        %v5475 = vld [vmem:[#allocation2 + $0xcf0] sm:$0xff]
        %v5476 = vld [vmem:[#allocation2 + $0xcf8] sm:$0xff]
        %v5477 = vld [vmem:[#allocation2 + $0xd00] sm:$0xff]
        %v5478 = vld [vmem:[#allocation2 + $0xd08] sm:$0xff]
        %v5479 = vld [vmem:[#allocation2 + $0xd10] sm:$0xff]
        %v5480 = vld [vmem:[#allocation2 + $0xd18] sm:$0xff]
        %v5481 = vld [vmem:[#allocation2 + $0xd20] sm:$0xff]
        %v5482 = vld [vmem:[#allocation2 + $0xd28] sm:$0xff]
        %v5483 = vld [vmem:[#allocation2 + $0xd30] sm:$0xff]
        %v5484 = vld [vmem:[#allocation2 + $0xd38] sm:$0xff]
        %v5485 = vld [vmem:[#allocation2 + $0xd40] sm:$0xff]
        %v5486 = vld [vmem:[#allocation2 + $0xd48] sm:$0xff]
        %v5487 = vld [vmem:[#allocation2 + $0xd50] sm:$0xff]
        %v5488 = vld [vmem:[#allocation2 + $0xd58] sm:$0xff]
        %v5489 = vld [vmem:[#allocation2 + $0xd60] sm:$0xff]
        %v5490 = vld [vmem:[#allocation2 + $0xd68] sm:$0xff]
        %v5491 = vld [vmem:[#allocation2 + $0xd70] sm:$0xff]
        %v5492 = vld [vmem:[#allocation2 + $0xd78] sm:$0xff]
        %v5493 = vld [vmem:[#allocation9] sm:$0xff]
        %v5494 = vld [vmem:[#allocation9 + $0x8] sm:$0xff]
        %v5495 = vld [vmem:[#allocation9 + $0x10] sm:$0xff]
        %v5496 = vld [vmem:[#allocation9 + $0x18] sm:$0xff]
        %v5497 = vld [vmem:[#allocation9 + $0x20] sm:$0xff]
        %v5498 = vld [vmem:[#allocation9 + $0x28] sm:$0xff]
        %v5499 = vld [vmem:[#allocation9 + $0x30] sm:$0xff]
        %v5500 = vld [vmem:[#allocation9 + $0x38] sm:$0xff]
        %v5501 = vld [vmem:[#allocation9 + $0x40] sm:$0xff]
        %v5502 = vld [vmem:[#allocation9 + $0x48] sm:$0xff]
        %v5503 = vld [vmem:[#allocation9 + $0x50] sm:$0xff]
        %v5504 = vld [vmem:[#allocation9 + $0x58] sm:$0xff]
        %v5505 = vld [vmem:[#allocation9 + $0x60] sm:$0xff]
        %v5506 = vld [vmem:[#allocation9 + $0x68] sm:$0xff]
        %v5507 = vld [vmem:[#allocation9 + $0x70] sm:$0xff]
        %v5508 = vld [vmem:[#allocation9 + $0x78] sm:$0xff]
        %v5509 = vld [vmem:[#allocation9 + $0x80] sm:$0xff]
        %v5510 = vld [vmem:[#allocation9 + $0x88] sm:$0xff]
        %v5511 = vld [vmem:[#allocation9 + $0x90] sm:$0xff]
        %v5512 = vld [vmem:[#allocation9 + $0x98] sm:$0xff]
        %v5513 = vld [vmem:[#allocation9 + $0xa0] sm:$0xff]
        %v5514 = vld [vmem:[#allocation9 + $0xa8] sm:$0xff]
        %v5515 = vld [vmem:[#allocation9 + $0xb0] sm:$0xff]
        %v5516 = vld [vmem:[#allocation9 + $0xb8] sm:$0xff]
        %v5517 = vld [vmem:[#allocation9 + $0xc0] sm:$0xff]
        %v5518 = vld [vmem:[#allocation9 + $0xc8] sm:$0xff]
        %v5519 = vld [vmem:[#allocation9 + $0xd0] sm:$0xff]
        %v5520 = vld [vmem:[#allocation9 + $0xd8] sm:$0xff]
        %5522 = vset.pattern.permute.xlu0 0
        %5523 = vperm.xlu0 %5522, %v3377
        %v5524 = vpop.permute.xlu0 %5523
        %5527 = vset.pattern.permute.xlu0 0
        %5528 = vperm.xlu0 %5527, %v3378
        %v5529 = vpop.permute.xlu0 %5528
        %5532 = vset.pattern.permute.xlu0 0
        %5533 = vperm.xlu0 %5532, %v3379
        %v5534 = vpop.permute.xlu0 %5533
        %5537 = vset.pattern.permute.xlu0 0
        %5538 = vperm.xlu0 %5537, %v3380
        %v5539 = vpop.permute.xlu0 %5538
        %vm5541 = vcmask 785408
        %v5543 = vsel %vm5541, %v5499, 0
        %v5546 = vsel %vm5541, %v5506, 0
        %v5549 = vsel %vm5541, %v5513, 0
        %v5552 = vsel %vm5541, %v5520, 0
        %5554 = vmatpush.msra.mxu0 %v5121
        %5555 = vmatpush.msra.mxu0 %v5117
        %5556 = vmatpush.msra.mxu0 %v5113
        %5557 = vmatpush.msra.mxu0 %v5109
        %5558 = vmatpush.msra.mxu0 %v5105
        %5559 = vmatpush.msra.mxu0 %v5101
        %5560 = vmatpush.msra.mxu0 %v5097
        %5561 = vmatpush.msra.mxu0 %v5093
        %5562 = vmatpush.msra.mxu0 %v5089
        %5563 = vmatpush.msra.mxu0 %v5085
        %5564 = vmatpush.msra.mxu0 %v5081
        %5565 = vmatpush.msra.mxu0 %v5077
        %5566 = vmatpush.msra.mxu0 %v5073
        %5567 = vmatpush.msra.mxu0 %v5069
        %5568 = vmatpush.msra.mxu0 %v5065
        %5569 = vmatpush.msra.mxu0 %v5061
        %5570 = vmatmul.f32.gmra.mxu0 %v5493
        %v5571 = vpop.f32.mrf.mxu0
        %v5572 = vadd.f32 %v5524, %v5571
        %5573 = vmatmul.f32.gmra.mxu0 %v5500
        %v5574 = vpop.f32.mrf.mxu0
        %v5575 = vadd.f32 %v5529, %v5574
        %5576 = vmatmul.f32.gmra.mxu0 %v5507
        %v5577 = vpop.f32.mrf.mxu0
        %v5578 = vadd.f32 %v5534, %v5577
        %5579 = vmatmul.f32.gmra.mxu0 %v5514
        %v5580 = vpop.f32.mrf.mxu0
        %v5581 = vadd.f32 %v5539, %v5580
        %5582 = vdwg.mxu0
        %5583 = vmatpush.msra.mxu0 %v5185
        %5584 = vmatpush.msra.mxu0 %v5181
        %5585 = vmatpush.msra.mxu0 %v5177
        %5586 = vmatpush.msra.mxu0 %v5173
        %5587 = vmatpush.msra.mxu0 %v5169
        %5588 = vmatpush.msra.mxu0 %v5165
        %5589 = vmatpush.msra.mxu0 %v5161
        %5590 = vmatpush.msra.mxu0 %v5157
        %5591 = vmatpush.msra.mxu0 %v5153
        %5592 = vmatpush.msra.mxu0 %v5149
        %5593 = vmatpush.msra.mxu0 %v5145
        %5594 = vmatpush.msra.mxu0 %v5141
        %5595 = vmatpush.msra.mxu0 %v5137
        %5596 = vmatpush.msra.mxu0 %v5133
        %5597 = vmatpush.msra.mxu0 %v5129
        %5598 = vmatpush.msra.mxu0 %v5125
        %5599 = vmatmul.f32.gmra.mxu0 %v5494
        %v5600 = vpop.f32.mrf.mxu0
        %v5601 = vadd.f32 %v5572, %v5600
        %5602 = vmatmul.f32.gmra.mxu0 %v5501
        %v5603 = vpop.f32.mrf.mxu0
        %v5604 = vadd.f32 %v5575, %v5603
        %5605 = vmatmul.f32.gmra.mxu0 %v5508
        %v5606 = vpop.f32.mrf.mxu0
        %v5607 = vadd.f32 %v5578, %v5606
        %5608 = vmatmul.f32.gmra.mxu0 %v5515
        %v5609 = vpop.f32.mrf.mxu0
        %v5610 = vadd.f32 %v5581, %v5609
        %5611 = vdwg.mxu0
        %5612 = vmatpush.msra.mxu0 %v5249
        %5613 = vmatpush.msra.mxu0 %v5245
        %5614 = vmatpush.msra.mxu0 %v5241
        %5615 = vmatpush.msra.mxu0 %v5237
        %5616 = vmatpush.msra.mxu0 %v5233
        %5617 = vmatpush.msra.mxu0 %v5229
        %5618 = vmatpush.msra.mxu0 %v5225
        %5619 = vmatpush.msra.mxu0 %v5221
        %5620 = vmatpush.msra.mxu0 %v5217
        %5621 = vmatpush.msra.mxu0 %v5213
        %5622 = vmatpush.msra.mxu0 %v5209
        %5623 = vmatpush.msra.mxu0 %v5205
        %5624 = vmatpush.msra.mxu0 %v5201
        %5625 = vmatpush.msra.mxu0 %v5197
        %5626 = vmatpush.msra.mxu0 %v5193
        %5627 = vmatpush.msra.mxu0 %v5189
        %5628 = vmatmul.f32.gmra.mxu0 %v5495
        %v5629 = vpop.f32.mrf.mxu0
        %v5630 = vadd.f32 %v5601, %v5629
        %5631 = vmatmul.f32.gmra.mxu0 %v5502
        %v5632 = vpop.f32.mrf.mxu0
        %v5633 = vadd.f32 %v5604, %v5632
        %5634 = vmatmul.f32.gmra.mxu0 %v5509
        %v5635 = vpop.f32.mrf.mxu0
        %v5636 = vadd.f32 %v5607, %v5635
        %5637 = vmatmul.f32.gmra.mxu0 %v5516
        %v5638 = vpop.f32.mrf.mxu0
        %v5639 = vadd.f32 %v5610, %v5638
        %5640 = vdwg.mxu0
        %5641 = vmatpush.msra.mxu0 %v5313
        %5642 = vmatpush.msra.mxu0 %v5309
        %5643 = vmatpush.msra.mxu0 %v5305
        %5644 = vmatpush.msra.mxu0 %v5301
        %5645 = vmatpush.msra.mxu0 %v5297
        %5646 = vmatpush.msra.mxu0 %v5293
        %5647 = vmatpush.msra.mxu0 %v5289
        %5648 = vmatpush.msra.mxu0 %v5285
        %5649 = vmatpush.msra.mxu0 %v5281
        %5650 = vmatpush.msra.mxu0 %v5277
        %5651 = vmatpush.msra.mxu0 %v5273
        %5652 = vmatpush.msra.mxu0 %v5269
        %5653 = vmatpush.msra.mxu0 %v5265
        %5654 = vmatpush.msra.mxu0 %v5261
        %5655 = vmatpush.msra.mxu0 %v5257
        %5656 = vmatpush.msra.mxu0 %v5253
        %5657 = vmatmul.f32.gmra.mxu0 %v5496
        %v5658 = vpop.f32.mrf.mxu0
        %v5659 = vadd.f32 %v5630, %v5658
        %5660 = vmatmul.f32.gmra.mxu0 %v5503
        %v5661 = vpop.f32.mrf.mxu0
        %v5662 = vadd.f32 %v5633, %v5661
        %5663 = vmatmul.f32.gmra.mxu0 %v5510
        %v5664 = vpop.f32.mrf.mxu0
        %v5665 = vadd.f32 %v5636, %v5664
        %5666 = vmatmul.f32.gmra.mxu0 %v5517
        %v5667 = vpop.f32.mrf.mxu0
        %v5668 = vadd.f32 %v5639, %v5667
        %5669 = vdwg.mxu0
        %5670 = vmatpush.msra.mxu0 %v5377
        %5671 = vmatpush.msra.mxu0 %v5373
        %5672 = vmatpush.msra.mxu0 %v5369
        %5673 = vmatpush.msra.mxu0 %v5365
        %5674 = vmatpush.msra.mxu0 %v5361
        %5675 = vmatpush.msra.mxu0 %v5357
        %5676 = vmatpush.msra.mxu0 %v5353
        %5677 = vmatpush.msra.mxu0 %v5349
        %5678 = vmatpush.msra.mxu0 %v5345
        %5679 = vmatpush.msra.mxu0 %v5341
        %5680 = vmatpush.msra.mxu0 %v5337
        %5681 = vmatpush.msra.mxu0 %v5333
        %5682 = vmatpush.msra.mxu0 %v5329
        %5683 = vmatpush.msra.mxu0 %v5325
        %5684 = vmatpush.msra.mxu0 %v5321
        %5685 = vmatpush.msra.mxu0 %v5317
        %5686 = vmatmul.f32.gmra.mxu0 %v5497
        %v5687 = vpop.f32.mrf.mxu0
        %v5688 = vadd.f32 %v5659, %v5687
        %5689 = vmatmul.f32.gmra.mxu0 %v5504
        %v5690 = vpop.f32.mrf.mxu0
        %v5691 = vadd.f32 %v5662, %v5690
        %5692 = vmatmul.f32.gmra.mxu0 %v5511
        %v5693 = vpop.f32.mrf.mxu0
        %v5694 = vadd.f32 %v5665, %v5693
        %5695 = vmatmul.f32.gmra.mxu0 %v5518
        %v5696 = vpop.f32.mrf.mxu0
        %v5697 = vadd.f32 %v5668, %v5696
        %5698 = vdwg.mxu0
        %5699 = vmatpush.msra.mxu0 %v5441
        %5700 = vmatpush.msra.mxu0 %v5437
        %5701 = vmatpush.msra.mxu0 %v5433
        %5702 = vmatpush.msra.mxu0 %v5429
        %5703 = vmatpush.msra.mxu0 %v5425
        %5704 = vmatpush.msra.mxu0 %v5421
        %5705 = vmatpush.msra.mxu0 %v5417
        %5706 = vmatpush.msra.mxu0 %v5413
        %5707 = vmatpush.msra.mxu0 %v5409
        %5708 = vmatpush.msra.mxu0 %v5405
        %5709 = vmatpush.msra.mxu0 %v5401
        %5710 = vmatpush.msra.mxu0 %v5397
        %5711 = vmatpush.msra.mxu0 %v5393
        %5712 = vmatpush.msra.mxu0 %v5389
        %5713 = vmatpush.msra.mxu0 %v5385
        %5714 = vmatpush.msra.mxu0 %v5381
        %5715 = vmatmul.f32.gmra.mxu0 %v5498
        %v5716 = vpop.f32.mrf.mxu0
        %v5717 = vadd.f32 %v5688, %v5716
        %5718 = vmatmul.f32.gmra.mxu0 %v5505
        %v5719 = vpop.f32.mrf.mxu0
        %v5720 = vadd.f32 %v5691, %v5719
        %5721 = vmatmul.f32.gmra.mxu0 %v5512
        %v5722 = vpop.f32.mrf.mxu0
        %v5723 = vadd.f32 %v5694, %v5722
        %5724 = vmatmul.f32.gmra.mxu0 %v5519
        %v5725 = vpop.f32.mrf.mxu0
        %v5726 = vadd.f32 %v5697, %v5725
        %5727 = vdwg.mxu0
        %5728 = vmatpush.msra.mxu0 0.0
        %5729 = vmatpush.msra.mxu0 0.0
        %5730 = vmatpush.msra.mxu0 0.0
        %5731 = vmatpush.msra.mxu0 0.0
        %5732 = vmatpush.msra.mxu0 %v5489
        %5733 = vmatpush.msra.mxu0 %v5485
        %5734 = vmatpush.msra.mxu0 %v5481
        %5735 = vmatpush.msra.mxu0 %v5477
        %5736 = vmatpush.msra.mxu0 %v5473
        %5737 = vmatpush.msra.mxu0 %v5469
        %5738 = vmatpush.msra.mxu0 %v5465
        %5739 = vmatpush.msra.mxu0 %v5461
        %5740 = vmatpush.msra.mxu0 %v5457
        %5741 = vmatpush.msra.mxu0 %v5453
        %5742 = vmatpush.msra.mxu0 %v5449
        %5743 = vmatpush.msra.mxu0 %v5445
        %5744 = vmatmul.f32.gmra.mxu0 %v5543
        %v5745 = vpop.f32.mrf.mxu0
        %v5746 = vadd.f32 %v5717, %v5745
        %5747 = vmatmul.f32.gmra.mxu0 %v5546
        %v5748 = vpop.f32.mrf.mxu0
        %v5749 = vadd.f32 %v5720, %v5748
        %5750 = vmatmul.f32.gmra.mxu0 %v5549
        %v5751 = vpop.f32.mrf.mxu0
        %v5752 = vadd.f32 %v5723, %v5751
        %5753 = vmatmul.f32.gmra.mxu0 %v5552
        %v5754 = vpop.f32.mrf.mxu0
        %v5755 = vadd.f32 %v5726, %v5754
        %5756 = vdwg.mxu0
        %5757 = vmatpush.msra.mxu0 %v5122
        %5758 = vmatpush.msra.mxu0 %v5118
        %5759 = vmatpush.msra.mxu0 %v5114
        %5760 = vmatpush.msra.mxu0 %v5110
        %5761 = vmatpush.msra.mxu0 %v5106
        %5762 = vmatpush.msra.mxu0 %v5102
        %5763 = vmatpush.msra.mxu0 %v5098
        %5764 = vmatpush.msra.mxu0 %v5094
        %5765 = vmatpush.msra.mxu0 %v5090
        %5766 = vmatpush.msra.mxu0 %v5086
        %5767 = vmatpush.msra.mxu0 %v5082
        %5768 = vmatpush.msra.mxu0 %v5078
        %5769 = vmatpush.msra.mxu0 %v5074
        %5770 = vmatpush.msra.mxu0 %v5070
        %5771 = vmatpush.msra.mxu0 %v5066
        %5772 = vmatpush.msra.mxu0 %v5062
        %5773 = vmatmul.f32.gmra.mxu0 %v5493
        %v5774 = vpop.f32.mrf.mxu0
        %v5775 = vadd.f32 %v5524, %v5774
        %5776 = vmatmul.f32.gmra.mxu0 %v5500
        %v5777 = vpop.f32.mrf.mxu0
        %v5778 = vadd.f32 %v5529, %v5777
        %5779 = vmatmul.f32.gmra.mxu0 %v5507
        %v5780 = vpop.f32.mrf.mxu0
        %v5781 = vadd.f32 %v5534, %v5780
        %5782 = vmatmul.f32.gmra.mxu0 %v5514
        %v5783 = vpop.f32.mrf.mxu0
        %v5784 = vadd.f32 %v5539, %v5783
        %5785 = vdwg.mxu0
        %5786 = vmatpush.msra.mxu0 %v5186
        %5787 = vmatpush.msra.mxu0 %v5182
        %5788 = vmatpush.msra.mxu0 %v5178
        %5789 = vmatpush.msra.mxu0 %v5174
        %5790 = vmatpush.msra.mxu0 %v5170
        %5791 = vmatpush.msra.mxu0 %v5166
        %5792 = vmatpush.msra.mxu0 %v5162
        %5793 = vmatpush.msra.mxu0 %v5158
        %5794 = vmatpush.msra.mxu0 %v5154
        %5795 = vmatpush.msra.mxu0 %v5150
        %5796 = vmatpush.msra.mxu0 %v5146
        %5797 = vmatpush.msra.mxu0 %v5142
        %5798 = vmatpush.msra.mxu0 %v5138
        %5799 = vmatpush.msra.mxu0 %v5134
        %5800 = vmatpush.msra.mxu0 %v5130
        %5801 = vmatpush.msra.mxu0 %v5126
        %5802 = vmatmul.f32.gmra.mxu0 %v5494
        %v5803 = vpop.f32.mrf.mxu0
        %v5804 = vadd.f32 %v5775, %v5803
        %5805 = vmatmul.f32.gmra.mxu0 %v5501
        %v5806 = vpop.f32.mrf.mxu0
        %v5807 = vadd.f32 %v5778, %v5806
        %5808 = vmatmul.f32.gmra.mxu0 %v5508
        %v5809 = vpop.f32.mrf.mxu0
        %v5810 = vadd.f32 %v5781, %v5809
        %5811 = vmatmul.f32.gmra.mxu0 %v5515
        %v5812 = vpop.f32.mrf.mxu0
        %v5813 = vadd.f32 %v5784, %v5812
        %5814 = vdwg.mxu0
        %5815 = vmatpush.msra.mxu0 %v5250
        %5816 = vmatpush.msra.mxu0 %v5246
        %5817 = vmatpush.msra.mxu0 %v5242
        %5818 = vmatpush.msra.mxu0 %v5238
        %5819 = vmatpush.msra.mxu0 %v5234
        %5820 = vmatpush.msra.mxu0 %v5230
        %5821 = vmatpush.msra.mxu0 %v5226
        %5822 = vmatpush.msra.mxu0 %v5222
        %5823 = vmatpush.msra.mxu0 %v5218
        %5824 = vmatpush.msra.mxu0 %v5214
        %5825 = vmatpush.msra.mxu0 %v5210
        %5826 = vmatpush.msra.mxu0 %v5206
        %5827 = vmatpush.msra.mxu0 %v5202
        %5828 = vmatpush.msra.mxu0 %v5198
        %5829 = vmatpush.msra.mxu0 %v5194
        %5830 = vmatpush.msra.mxu0 %v5190
        %5831 = vmatmul.f32.gmra.mxu0 %v5495
        %v5832 = vpop.f32.mrf.mxu0
        %v5833 = vadd.f32 %v5804, %v5832
        %5834 = vmatmul.f32.gmra.mxu0 %v5502
        %v5835 = vpop.f32.mrf.mxu0
        %v5836 = vadd.f32 %v5807, %v5835
        %5837 = vmatmul.f32.gmra.mxu0 %v5509
        %v5838 = vpop.f32.mrf.mxu0
        %v5839 = vadd.f32 %v5810, %v5838
        %5840 = vmatmul.f32.gmra.mxu0 %v5516
        %v5841 = vpop.f32.mrf.mxu0
        %v5842 = vadd.f32 %v5813, %v5841
        %5843 = vdwg.mxu0
        %5844 = vmatpush.msra.mxu0 %v5314
        %5845 = vmatpush.msra.mxu0 %v5310
        %5846 = vmatpush.msra.mxu0 %v5306
        %5847 = vmatpush.msra.mxu0 %v5302
        %5848 = vmatpush.msra.mxu0 %v5298
        %5849 = vmatpush.msra.mxu0 %v5294
        %5850 = vmatpush.msra.mxu0 %v5290
        %5851 = vmatpush.msra.mxu0 %v5286
        %5852 = vmatpush.msra.mxu0 %v5282
        %5853 = vmatpush.msra.mxu0 %v5278
        %5854 = vmatpush.msra.mxu0 %v5274
        %5855 = vmatpush.msra.mxu0 %v5270
        %5856 = vmatpush.msra.mxu0 %v5266
        %5857 = vmatpush.msra.mxu0 %v5262
        %5858 = vmatpush.msra.mxu0 %v5258
        %5859 = vmatpush.msra.mxu0 %v5254
        %5860 = vmatmul.f32.gmra.mxu0 %v5496
        %v5861 = vpop.f32.mrf.mxu0
        %v5862 = vadd.f32 %v5833, %v5861
        %5863 = vmatmul.f32.gmra.mxu0 %v5503
        %v5864 = vpop.f32.mrf.mxu0
        %v5865 = vadd.f32 %v5836, %v5864
        %5866 = vmatmul.f32.gmra.mxu0 %v5510
        %v5867 = vpop.f32.mrf.mxu0
        %v5868 = vadd.f32 %v5839, %v5867
        %5869 = vmatmul.f32.gmra.mxu0 %v5517
        %v5870 = vpop.f32.mrf.mxu0
        %v5871 = vadd.f32 %v5842, %v5870
        %5872 = vdwg.mxu0
        %5873 = vmatpush.msra.mxu0 %v5378
        %5874 = vmatpush.msra.mxu0 %v5374
        %5875 = vmatpush.msra.mxu0 %v5370
        %5876 = vmatpush.msra.mxu0 %v5366
        %5877 = vmatpush.msra.mxu0 %v5362
        %5878 = vmatpush.msra.mxu0 %v5358
        %5879 = vmatpush.msra.mxu0 %v5354
        %5880 = vmatpush.msra.mxu0 %v5350
        %5881 = vmatpush.msra.mxu0 %v5346
        %5882 = vmatpush.msra.mxu0 %v5342
        %5883 = vmatpush.msra.mxu0 %v5338
        %5884 = vmatpush.msra.mxu0 %v5334
        %5885 = vmatpush.msra.mxu0 %v5330
        %5886 = vmatpush.msra.mxu0 %v5326
        %5887 = vmatpush.msra.mxu0 %v5322
        %5888 = vmatpush.msra.mxu0 %v5318
        %5889 = vmatmul.f32.gmra.mxu0 %v5497
        %v5890 = vpop.f32.mrf.mxu0
        %v5891 = vadd.f32 %v5862, %v5890
        %5892 = vmatmul.f32.gmra.mxu0 %v5504
        %v5893 = vpop.f32.mrf.mxu0
        %v5894 = vadd.f32 %v5865, %v5893
        %5895 = vmatmul.f32.gmra.mxu0 %v5511
        %v5896 = vpop.f32.mrf.mxu0
        %v5897 = vadd.f32 %v5868, %v5896
        %5898 = vmatmul.f32.gmra.mxu0 %v5518
        %v5899 = vpop.f32.mrf.mxu0
        %v5900 = vadd.f32 %v5871, %v5899
        %5901 = vdwg.mxu0
        %5902 = vmatpush.msra.mxu0 %v5442
        %5903 = vmatpush.msra.mxu0 %v5438
        %5904 = vmatpush.msra.mxu0 %v5434
        %5905 = vmatpush.msra.mxu0 %v5430
        %5906 = vmatpush.msra.mxu0 %v5426
        %5907 = vmatpush.msra.mxu0 %v5422
        %5908 = vmatpush.msra.mxu0 %v5418
        %5909 = vmatpush.msra.mxu0 %v5414
        %5910 = vmatpush.msra.mxu0 %v5410
        %5911 = vmatpush.msra.mxu0 %v5406
        %5912 = vmatpush.msra.mxu0 %v5402
        %5913 = vmatpush.msra.mxu0 %v5398
        %5914 = vmatpush.msra.mxu0 %v5394
        %5915 = vmatpush.msra.mxu0 %v5390
        %5916 = vmatpush.msra.mxu0 %v5386
        %5917 = vmatpush.msra.mxu0 %v5382
        %5918 = vmatmul.f32.gmra.mxu0 %v5498
        %v5919 = vpop.f32.mrf.mxu0
        %v5920 = vadd.f32 %v5891, %v5919
        %5921 = vmatmul.f32.gmra.mxu0 %v5505
        %v5922 = vpop.f32.mrf.mxu0
        %v5923 = vadd.f32 %v5894, %v5922
        %5924 = vmatmul.f32.gmra.mxu0 %v5512
        %v5925 = vpop.f32.mrf.mxu0
        %v5926 = vadd.f32 %v5897, %v5925
        %5927 = vmatmul.f32.gmra.mxu0 %v5519
        %v5928 = vpop.f32.mrf.mxu0
        %v5929 = vadd.f32 %v5900, %v5928
        %5930 = vdwg.mxu0
        %5931 = vmatpush.msra.mxu0 0.0
        %5932 = vmatpush.msra.mxu0 0.0
        %5933 = vmatpush.msra.mxu0 0.0
        %5934 = vmatpush.msra.mxu0 0.0
        %5935 = vmatpush.msra.mxu0 %v5490
        %5936 = vmatpush.msra.mxu0 %v5486
        %5937 = vmatpush.msra.mxu0 %v5482
        %5938 = vmatpush.msra.mxu0 %v5478
        %5939 = vmatpush.msra.mxu0 %v5474
        %5940 = vmatpush.msra.mxu0 %v5470
        %5941 = vmatpush.msra.mxu0 %v5466
        %5942 = vmatpush.msra.mxu0 %v5462
        %5943 = vmatpush.msra.mxu0 %v5458
        %5944 = vmatpush.msra.mxu0 %v5454
        %5945 = vmatpush.msra.mxu0 %v5450
        %5946 = vmatpush.msra.mxu0 %v5446
        %5947 = vmatmul.f32.gmra.mxu0 %v5543
        %v5948 = vpop.f32.mrf.mxu0
        %v5949 = vadd.f32 %v5920, %v5948
        %5950 = vmatmul.f32.gmra.mxu0 %v5546
        %v5951 = vpop.f32.mrf.mxu0
        %v5952 = vadd.f32 %v5923, %v5951
        %5953 = vmatmul.f32.gmra.mxu0 %v5549
        %v5954 = vpop.f32.mrf.mxu0
        %v5955 = vadd.f32 %v5926, %v5954
        %5956 = vmatmul.f32.gmra.mxu0 %v5552
        %v5957 = vpop.f32.mrf.mxu0
        %v5958 = vadd.f32 %v5929, %v5957
        %5959 = vdwg.mxu0
        %5960 = vmatpush.msra.mxu0 %v5123
        %5961 = vmatpush.msra.mxu0 %v5119
        %5962 = vmatpush.msra.mxu0 %v5115
        %5963 = vmatpush.msra.mxu0 %v5111
        %5964 = vmatpush.msra.mxu0 %v5107
        %5965 = vmatpush.msra.mxu0 %v5103
        %5966 = vmatpush.msra.mxu0 %v5099
        %5967 = vmatpush.msra.mxu0 %v5095
        %5968 = vmatpush.msra.mxu0 %v5091
        %5969 = vmatpush.msra.mxu0 %v5087
        %5970 = vmatpush.msra.mxu0 %v5083
        %5971 = vmatpush.msra.mxu0 %v5079
        %5972 = vmatpush.msra.mxu0 %v5075
        %5973 = vmatpush.msra.mxu0 %v5071
        %5974 = vmatpush.msra.mxu0 %v5067
        %5975 = vmatpush.msra.mxu0 %v5063
        %5976 = vmatmul.f32.gmra.mxu0 %v5493
        %v5977 = vpop.f32.mrf.mxu0
        %v5978 = vadd.f32 %v5524, %v5977
        %5979 = vmatmul.f32.gmra.mxu0 %v5500
        %v5980 = vpop.f32.mrf.mxu0
        %v5981 = vadd.f32 %v5529, %v5980
        %5982 = vmatmul.f32.gmra.mxu0 %v5507
        %v5983 = vpop.f32.mrf.mxu0
        %v5984 = vadd.f32 %v5534, %v5983
        %5985 = vmatmul.f32.gmra.mxu0 %v5514
        %v5986 = vpop.f32.mrf.mxu0
        %v5987 = vadd.f32 %v5539, %v5986
        %5988 = vdwg.mxu0
        %5989 = vmatpush.msra.mxu0 %v5187
        %5990 = vmatpush.msra.mxu0 %v5183
        %5991 = vmatpush.msra.mxu0 %v5179
        %5992 = vmatpush.msra.mxu0 %v5175
        %5993 = vmatpush.msra.mxu0 %v5171
        %5994 = vmatpush.msra.mxu0 %v5167
        %5995 = vmatpush.msra.mxu0 %v5163
        %5996 = vmatpush.msra.mxu0 %v5159
        %5997 = vmatpush.msra.mxu0 %v5155
        %5998 = vmatpush.msra.mxu0 %v5151
        %5999 = vmatpush.msra.mxu0 %v5147
        %6000 = vmatpush.msra.mxu0 %v5143
        %6001 = vmatpush.msra.mxu0 %v5139
        %6002 = vmatpush.msra.mxu0 %v5135
        %6003 = vmatpush.msra.mxu0 %v5131
        %6004 = vmatpush.msra.mxu0 %v5127
        %6005 = vmatmul.f32.gmra.mxu0 %v5494
        %v6006 = vpop.f32.mrf.mxu0
        %v6007 = vadd.f32 %v5978, %v6006
        %6008 = vmatmul.f32.gmra.mxu0 %v5501
        %v6009 = vpop.f32.mrf.mxu0
        %v6010 = vadd.f32 %v5981, %v6009
        %6011 = vmatmul.f32.gmra.mxu0 %v5508
        %v6012 = vpop.f32.mrf.mxu0
        %v6013 = vadd.f32 %v5984, %v6012
        %6014 = vmatmul.f32.gmra.mxu0 %v5515
        %v6015 = vpop.f32.mrf.mxu0
        %v6016 = vadd.f32 %v5987, %v6015
        %6017 = vdwg.mxu0
        %6018 = vmatpush.msra.mxu0 %v5251
        %6019 = vmatpush.msra.mxu0 %v5247
        %6020 = vmatpush.msra.mxu0 %v5243
        %6021 = vmatpush.msra.mxu0 %v5239
        %6022 = vmatpush.msra.mxu0 %v5235
        %6023 = vmatpush.msra.mxu0 %v5231
        %6024 = vmatpush.msra.mxu0 %v5227
        %6025 = vmatpush.msra.mxu0 %v5223
        %6026 = vmatpush.msra.mxu0 %v5219
        %6027 = vmatpush.msra.mxu0 %v5215
        %6028 = vmatpush.msra.mxu0 %v5211
        %6029 = vmatpush.msra.mxu0 %v5207
        %6030 = vmatpush.msra.mxu0 %v5203
        %6031 = vmatpush.msra.mxu0 %v5199
        %6032 = vmatpush.msra.mxu0 %v5195
        %6033 = vmatpush.msra.mxu0 %v5191
        %6034 = vmatmul.f32.gmra.mxu0 %v5495
        %v6035 = vpop.f32.mrf.mxu0
        %v6036 = vadd.f32 %v6007, %v6035
        %6037 = vmatmul.f32.gmra.mxu0 %v5502
        %v6038 = vpop.f32.mrf.mxu0
        %v6039 = vadd.f32 %v6010, %v6038
        %6040 = vmatmul.f32.gmra.mxu0 %v5509
        %v6041 = vpop.f32.mrf.mxu0
        %v6042 = vadd.f32 %v6013, %v6041
        %6043 = vmatmul.f32.gmra.mxu0 %v5516
        %v6044 = vpop.f32.mrf.mxu0
        %v6045 = vadd.f32 %v6016, %v6044
        %6046 = vdwg.mxu0
        %6047 = vmatpush.msra.mxu0 %v5315
        %6048 = vmatpush.msra.mxu0 %v5311
        %6049 = vmatpush.msra.mxu0 %v5307
        %6050 = vmatpush.msra.mxu0 %v5303
        %6051 = vmatpush.msra.mxu0 %v5299
        %6052 = vmatpush.msra.mxu0 %v5295
        %6053 = vmatpush.msra.mxu0 %v5291
        %6054 = vmatpush.msra.mxu0 %v5287
        %6055 = vmatpush.msra.mxu0 %v5283
        %6056 = vmatpush.msra.mxu0 %v5279
        %6057 = vmatpush.msra.mxu0 %v5275
        %6058 = vmatpush.msra.mxu0 %v5271
        %6059 = vmatpush.msra.mxu0 %v5267
        %6060 = vmatpush.msra.mxu0 %v5263
        %6061 = vmatpush.msra.mxu0 %v5259
        %6062 = vmatpush.msra.mxu0 %v5255
        %6063 = vmatmul.f32.gmra.mxu0 %v5496
        %v6064 = vpop.f32.mrf.mxu0
        %v6065 = vadd.f32 %v6036, %v6064
        %6066 = vmatmul.f32.gmra.mxu0 %v5503
        %v6067 = vpop.f32.mrf.mxu0
        %v6068 = vadd.f32 %v6039, %v6067
        %6069 = vmatmul.f32.gmra.mxu0 %v5510
        %v6070 = vpop.f32.mrf.mxu0
        %v6071 = vadd.f32 %v6042, %v6070
        %6072 = vmatmul.f32.gmra.mxu0 %v5517
        %v6073 = vpop.f32.mrf.mxu0
        %v6074 = vadd.f32 %v6045, %v6073
        %6075 = vdwg.mxu0
        %6076 = vmatpush.msra.mxu0 %v5379
        %6077 = vmatpush.msra.mxu0 %v5375
        %6078 = vmatpush.msra.mxu0 %v5371
        %6079 = vmatpush.msra.mxu0 %v5367
        %6080 = vmatpush.msra.mxu0 %v5363
        %6081 = vmatpush.msra.mxu0 %v5359
        %6082 = vmatpush.msra.mxu0 %v5355
        %6083 = vmatpush.msra.mxu0 %v5351
        %6084 = vmatpush.msra.mxu0 %v5347
        %6085 = vmatpush.msra.mxu0 %v5343
        %6086 = vmatpush.msra.mxu0 %v5339
        %6087 = vmatpush.msra.mxu0 %v5335
        %6088 = vmatpush.msra.mxu0 %v5331
        %6089 = vmatpush.msra.mxu0 %v5327
        %6090 = vmatpush.msra.mxu0 %v5323
        %6091 = vmatpush.msra.mxu0 %v5319
        %6092 = vmatmul.f32.gmra.mxu0 %v5497
        %v6093 = vpop.f32.mrf.mxu0
        %v6094 = vadd.f32 %v6065, %v6093
        %6095 = vmatmul.f32.gmra.mxu0 %v5504
        %v6096 = vpop.f32.mrf.mxu0
        %v6097 = vadd.f32 %v6068, %v6096
        %6098 = vmatmul.f32.gmra.mxu0 %v5511
        %v6099 = vpop.f32.mrf.mxu0
        %v6100 = vadd.f32 %v6071, %v6099
        %6101 = vmatmul.f32.gmra.mxu0 %v5518
        %v6102 = vpop.f32.mrf.mxu0
        %v6103 = vadd.f32 %v6074, %v6102
        %6104 = vdwg.mxu0
        %6105 = vmatpush.msra.mxu0 %v5443
        %6106 = vmatpush.msra.mxu0 %v5439
        %6107 = vmatpush.msra.mxu0 %v5435
        %6108 = vmatpush.msra.mxu0 %v5431
        %6109 = vmatpush.msra.mxu0 %v5427
        %6110 = vmatpush.msra.mxu0 %v5423
        %6111 = vmatpush.msra.mxu0 %v5419
        %6112 = vmatpush.msra.mxu0 %v5415
        %6113 = vmatpush.msra.mxu0 %v5411
        %6114 = vmatpush.msra.mxu0 %v5407
        %6115 = vmatpush.msra.mxu0 %v5403
        %6116 = vmatpush.msra.mxu0 %v5399
        %6117 = vmatpush.msra.mxu0 %v5395
        %6118 = vmatpush.msra.mxu0 %v5391
        %6119 = vmatpush.msra.mxu0 %v5387
        %6120 = vmatpush.msra.mxu0 %v5383
        %6121 = vmatmul.f32.gmra.mxu0 %v5498
        %v6122 = vpop.f32.mrf.mxu0
        %v6123 = vadd.f32 %v6094, %v6122
        %6124 = vmatmul.f32.gmra.mxu0 %v5505
        %v6125 = vpop.f32.mrf.mxu0
        %v6126 = vadd.f32 %v6097, %v6125
        %6127 = vmatmul.f32.gmra.mxu0 %v5512
        %v6128 = vpop.f32.mrf.mxu0
        %v6129 = vadd.f32 %v6100, %v6128
        %6130 = vmatmul.f32.gmra.mxu0 %v5519
        %v6131 = vpop.f32.mrf.mxu0
        %v6132 = vadd.f32 %v6103, %v6131
        %6133 = vdwg.mxu0
        %6134 = vmatpush.msra.mxu0 0.0
        %6135 = vmatpush.msra.mxu0 0.0
        %6136 = vmatpush.msra.mxu0 0.0
        %6137 = vmatpush.msra.mxu0 0.0
        %6138 = vmatpush.msra.mxu0 %v5491
        %6139 = vmatpush.msra.mxu0 %v5487
        %6140 = vmatpush.msra.mxu0 %v5483
        %6141 = vmatpush.msra.mxu0 %v5479
        %6142 = vmatpush.msra.mxu0 %v5475
        %6143 = vmatpush.msra.mxu0 %v5471
        %6144 = vmatpush.msra.mxu0 %v5467
        %6145 = vmatpush.msra.mxu0 %v5463
        %6146 = vmatpush.msra.mxu0 %v5459
        %6147 = vmatpush.msra.mxu0 %v5455
        %6148 = vmatpush.msra.mxu0 %v5451
        %6149 = vmatpush.msra.mxu0 %v5447
        %6150 = vmatmul.f32.gmra.mxu0 %v5543
        %v6151 = vpop.f32.mrf.mxu0
        %v6152 = vadd.f32 %v6123, %v6151
        %6153 = vmatmul.f32.gmra.mxu0 %v5546
        %v6154 = vpop.f32.mrf.mxu0
        %v6155 = vadd.f32 %v6126, %v6154
        %6156 = vmatmul.f32.gmra.mxu0 %v5549
        %v6157 = vpop.f32.mrf.mxu0
        %v6158 = vadd.f32 %v6129, %v6157
        %6159 = vmatmul.f32.gmra.mxu0 %v5552
        %v6160 = vpop.f32.mrf.mxu0
        %v6161 = vadd.f32 %v6132, %v6160
        %6162 = vdwg.mxu0
        %6163 = vmatpush.msra.mxu0 %v5124
        %6164 = vmatpush.msra.mxu0 %v5120
        %6165 = vmatpush.msra.mxu0 %v5116
        %6166 = vmatpush.msra.mxu0 %v5112
        %6167 = vmatpush.msra.mxu0 %v5108
        %6168 = vmatpush.msra.mxu0 %v5104
        %6169 = vmatpush.msra.mxu0 %v5100
        %6170 = vmatpush.msra.mxu0 %v5096
        %6171 = vmatpush.msra.mxu0 %v5092
        %6172 = vmatpush.msra.mxu0 %v5088
        %6173 = vmatpush.msra.mxu0 %v5084
        %6174 = vmatpush.msra.mxu0 %v5080
        %6175 = vmatpush.msra.mxu0 %v5076
        %6176 = vmatpush.msra.mxu0 %v5072
        %6177 = vmatpush.msra.mxu0 %v5068
        %6178 = vmatpush.msra.mxu0 %v5064
        %6179 = vmatmul.f32.gmra.mxu0 %v5493
        %v6180 = vpop.f32.mrf.mxu0
        %v6181 = vadd.f32 %v5524, %v6180
        %6182 = vmatmul.f32.gmra.mxu0 %v5500
        %v6183 = vpop.f32.mrf.mxu0
        %v6184 = vadd.f32 %v5529, %v6183
        %6185 = vmatmul.f32.gmra.mxu0 %v5507
        %v6186 = vpop.f32.mrf.mxu0
        %v6187 = vadd.f32 %v5534, %v6186
        %6188 = vmatmul.f32.gmra.mxu0 %v5514
        %v6189 = vpop.f32.mrf.mxu0
        %v6190 = vadd.f32 %v5539, %v6189
        %6191 = vdwg.mxu0
        %6192 = vmatpush.msra.mxu0 %v5188
        %6193 = vmatpush.msra.mxu0 %v5184
        %6194 = vmatpush.msra.mxu0 %v5180
        %6195 = vmatpush.msra.mxu0 %v5176
        %6196 = vmatpush.msra.mxu0 %v5172
        %6197 = vmatpush.msra.mxu0 %v5168
        %6198 = vmatpush.msra.mxu0 %v5164
        %6199 = vmatpush.msra.mxu0 %v5160
        %6200 = vmatpush.msra.mxu0 %v5156
        %6201 = vmatpush.msra.mxu0 %v5152
        %6202 = vmatpush.msra.mxu0 %v5148
        %6203 = vmatpush.msra.mxu0 %v5144
        %6204 = vmatpush.msra.mxu0 %v5140
        %6205 = vmatpush.msra.mxu0 %v5136
        %6206 = vmatpush.msra.mxu0 %v5132
        %6207 = vmatpush.msra.mxu0 %v5128
        %6208 = vmatmul.f32.gmra.mxu0 %v5494
        %v6209 = vpop.f32.mrf.mxu0
        %v6210 = vadd.f32 %v6181, %v6209
        %6211 = vmatmul.f32.gmra.mxu0 %v5501
        %v6212 = vpop.f32.mrf.mxu0
        %v6213 = vadd.f32 %v6184, %v6212
        %6214 = vmatmul.f32.gmra.mxu0 %v5508
        %v6215 = vpop.f32.mrf.mxu0
        %v6216 = vadd.f32 %v6187, %v6215
        %6217 = vmatmul.f32.gmra.mxu0 %v5515
        %v6218 = vpop.f32.mrf.mxu0
        %v6219 = vadd.f32 %v6190, %v6218
        %6220 = vdwg.mxu0
        %6221 = vmatpush.msra.mxu0 %v5252
        %6222 = vmatpush.msra.mxu0 %v5248
        %6223 = vmatpush.msra.mxu0 %v5244
        %6224 = vmatpush.msra.mxu0 %v5240
        %6225 = vmatpush.msra.mxu0 %v5236
        %6226 = vmatpush.msra.mxu0 %v5232
        %6227 = vmatpush.msra.mxu0 %v5228
        %6228 = vmatpush.msra.mxu0 %v5224
        %6229 = vmatpush.msra.mxu0 %v5220
        %6230 = vmatpush.msra.mxu0 %v5216
        %6231 = vmatpush.msra.mxu0 %v5212
        %6232 = vmatpush.msra.mxu0 %v5208
        %6233 = vmatpush.msra.mxu0 %v5204
        %6234 = vmatpush.msra.mxu0 %v5200
        %6235 = vmatpush.msra.mxu0 %v5196
        %6236 = vmatpush.msra.mxu0 %v5192
        %6237 = vmatmul.f32.gmra.mxu0 %v5495
        %v6238 = vpop.f32.mrf.mxu0
        %v6239 = vadd.f32 %v6210, %v6238
        %6240 = vmatmul.f32.gmra.mxu0 %v5502
        %v6241 = vpop.f32.mrf.mxu0
        %v6242 = vadd.f32 %v6213, %v6241
        %6243 = vmatmul.f32.gmra.mxu0 %v5509
        %v6244 = vpop.f32.mrf.mxu0
        %v6245 = vadd.f32 %v6216, %v6244
        %6246 = vmatmul.f32.gmra.mxu0 %v5516
        %v6247 = vpop.f32.mrf.mxu0
        %v6248 = vadd.f32 %v6219, %v6247
        %6249 = vdwg.mxu0
        %6250 = vmatpush.msra.mxu0 %v5316
        %6251 = vmatpush.msra.mxu0 %v5312
        %6252 = vmatpush.msra.mxu0 %v5308
        %6253 = vmatpush.msra.mxu0 %v5304
        %6254 = vmatpush.msra.mxu0 %v5300
        %6255 = vmatpush.msra.mxu0 %v5296
        %6256 = vmatpush.msra.mxu0 %v5292
        %6257 = vmatpush.msra.mxu0 %v5288
        %6258 = vmatpush.msra.mxu0 %v5284
        %6259 = vmatpush.msra.mxu0 %v5280
        %6260 = vmatpush.msra.mxu0 %v5276
        %6261 = vmatpush.msra.mxu0 %v5272
        %6262 = vmatpush.msra.mxu0 %v5268
        %6263 = vmatpush.msra.mxu0 %v5264
        %6264 = vmatpush.msra.mxu0 %v5260
        %6265 = vmatpush.msra.mxu0 %v5256
        %6266 = vmatmul.f32.gmra.mxu0 %v5496
        %v6267 = vpop.f32.mrf.mxu0
        %v6268 = vadd.f32 %v6239, %v6267
        %6269 = vmatmul.f32.gmra.mxu0 %v5503
        %v6270 = vpop.f32.mrf.mxu0
        %v6271 = vadd.f32 %v6242, %v6270
        %6272 = vmatmul.f32.gmra.mxu0 %v5510
        %v6273 = vpop.f32.mrf.mxu0
        %v6274 = vadd.f32 %v6245, %v6273
        %6275 = vmatmul.f32.gmra.mxu0 %v5517
        %v6276 = vpop.f32.mrf.mxu0
        %v6277 = vadd.f32 %v6248, %v6276
        %6278 = vdwg.mxu0
        %6279 = vmatpush.msra.mxu0 %v5380
        %6280 = vmatpush.msra.mxu0 %v5376
        %6281 = vmatpush.msra.mxu0 %v5372
        %6282 = vmatpush.msra.mxu0 %v5368
        %6283 = vmatpush.msra.mxu0 %v5364
        %6284 = vmatpush.msra.mxu0 %v5360
        %6285 = vmatpush.msra.mxu0 %v5356
        %6286 = vmatpush.msra.mxu0 %v5352
        %6287 = vmatpush.msra.mxu0 %v5348
        %6288 = vmatpush.msra.mxu0 %v5344
        %6289 = vmatpush.msra.mxu0 %v5340
        %6290 = vmatpush.msra.mxu0 %v5336
        %6291 = vmatpush.msra.mxu0 %v5332
        %6292 = vmatpush.msra.mxu0 %v5328
        %6293 = vmatpush.msra.mxu0 %v5324
        %6294 = vmatpush.msra.mxu0 %v5320
        %6295 = vmatmul.f32.gmra.mxu0 %v5497
        %v6296 = vpop.f32.mrf.mxu0
        %v6297 = vadd.f32 %v6268, %v6296
        %6298 = vmatmul.f32.gmra.mxu0 %v5504
        %v6299 = vpop.f32.mrf.mxu0
        %v6300 = vadd.f32 %v6271, %v6299
        %6301 = vmatmul.f32.gmra.mxu0 %v5511
        %v6302 = vpop.f32.mrf.mxu0
        %v6303 = vadd.f32 %v6274, %v6302
        %6304 = vmatmul.f32.gmra.mxu0 %v5518
        %v6305 = vpop.f32.mrf.mxu0
        %v6306 = vadd.f32 %v6277, %v6305
        %6307 = vdwg.mxu0
        %6308 = vmatpush.msra.mxu0 %v5444
        %6309 = vmatpush.msra.mxu0 %v5440
        %6310 = vmatpush.msra.mxu0 %v5436
        %6311 = vmatpush.msra.mxu0 %v5432
        %6312 = vmatpush.msra.mxu0 %v5428
        %6313 = vmatpush.msra.mxu0 %v5424
        %6314 = vmatpush.msra.mxu0 %v5420
        %6315 = vmatpush.msra.mxu0 %v5416
        %6316 = vmatpush.msra.mxu0 %v5412
        %6317 = vmatpush.msra.mxu0 %v5408
        %6318 = vmatpush.msra.mxu0 %v5404
        %6319 = vmatpush.msra.mxu0 %v5400
        %6320 = vmatpush.msra.mxu0 %v5396
        %6321 = vmatpush.msra.mxu0 %v5392
        %6322 = vmatpush.msra.mxu0 %v5388
        %6323 = vmatpush.msra.mxu0 %v5384
        %6324 = vmatmul.f32.gmra.mxu0 %v5498
        %v6325 = vpop.f32.mrf.mxu0
        %v6326 = vadd.f32 %v6297, %v6325
        %6327 = vmatmul.f32.gmra.mxu0 %v5505
        %v6328 = vpop.f32.mrf.mxu0
        %v6329 = vadd.f32 %v6300, %v6328
        %6330 = vmatmul.f32.gmra.mxu0 %v5512
        %v6331 = vpop.f32.mrf.mxu0
        %v6332 = vadd.f32 %v6303, %v6331
        %6333 = vmatmul.f32.gmra.mxu0 %v5519
        %v6334 = vpop.f32.mrf.mxu0
        %v6335 = vadd.f32 %v6306, %v6334
        %6336 = vdwg.mxu0
        %6337 = vmatpush.msra.mxu0 0.0
        %6338 = vmatpush.msra.mxu0 0.0
        %6339 = vmatpush.msra.mxu0 0.0
        %6340 = vmatpush.msra.mxu0 0.0
        %6341 = vmatpush.msra.mxu0 %v5492
        %6342 = vmatpush.msra.mxu0 %v5488
        %6343 = vmatpush.msra.mxu0 %v5484
        %6344 = vmatpush.msra.mxu0 %v5480
        %6345 = vmatpush.msra.mxu0 %v5476
        %6346 = vmatpush.msra.mxu0 %v5472
        %6347 = vmatpush.msra.mxu0 %v5468
        %6348 = vmatpush.msra.mxu0 %v5464
        %6349 = vmatpush.msra.mxu0 %v5460
        %6350 = vmatpush.msra.mxu0 %v5456
        %6351 = vmatpush.msra.mxu0 %v5452
        %6352 = vmatpush.msra.mxu0 %v5448
        %6353 = vmatmul.f32.gmra.mxu0 %v5543
        %v6354 = vpop.f32.mrf.mxu0
        %v6355 = vadd.f32 %v6326, %v6354
        %6356 = vmatmul.f32.gmra.mxu0 %v5546
        %v6357 = vpop.f32.mrf.mxu0
        %v6358 = vadd.f32 %v6329, %v6357
        %6359 = vmatmul.f32.gmra.mxu0 %v5549
        %v6360 = vpop.f32.mrf.mxu0
        %v6361 = vadd.f32 %v6332, %v6360
        %6362 = vmatmul.f32.gmra.mxu0 %v5552
        %v6363 = vpop.f32.mrf.mxu0
        %v6364 = vadd.f32 %v6335, %v6363
        %6365 = vdwg.mxu0
        %v6366 = vld [vmem:[%s12] sm:$0xff]
        %v6367 = vld [vmem:[%s12 + $0x8] sm:$0xff]
        %v6368 = vld [vmem:[%s12 + $0x10] sm:$0xff]
        %v6369 = vld [vmem:[%s12 + $0x18] sm:$0xff]
        %v6370 = vld [vmem:[%s13] sm:$0xff]
        %v6371 = vld [vmem:[%s13 + $0x8] sm:$0xff]
        %v6372 = vld [vmem:[%s13 + $0x10] sm:$0xff]
        %v6373 = vld [vmem:[%s13 + $0x18] sm:$0xff]
        %6375 = vset.pattern.permute.xlu0 0
        %6376 = vperm.xlu0 %6375, %v6370
        %v6377 = vpop.permute.xlu0 %6376
        %6380 = vset.pattern.permute.xlu0 0
        %6381 = vperm.xlu0 %6380, %v6371
        %v6382 = vpop.permute.xlu0 %6381
        %6385 = vset.pattern.permute.xlu0 0
        %6386 = vperm.xlu0 %6385, %v6372
        %v6387 = vpop.permute.xlu0 %6386
        %6390 = vset.pattern.permute.xlu0 0
        %6391 = vperm.xlu0 %6390, %v6373
        %v6392 = vpop.permute.xlu0 %6391
        %v6395 = vsel %vm596, %v6366, 0
        %v6398 = vsel %vm596, %v6367, 0
        %v6401 = vsel %vm596, %v6368, 0
        %v6404 = vsel %vm596, %v6369, 0
        %6406 = vmatpush.msra.mxu0 0.0
        %6407 = vmatpush.msra.mxu0 0.0
        %6408 = vmatpush.msra.mxu0 0.0
        %6409 = vmatpush.msra.mxu0 0.0
        %6410 = vmatpush.msra.mxu0 0.0
        %6411 = vmatpush.msra.mxu0 0.0
        %6412 = vmatpush.msra.mxu0 0.0
        %6413 = vmatpush.msra.mxu0 0.0
        %6414 = vmatpush.msra.mxu0 0.0
        %6415 = vmatpush.msra.mxu0 0.0
        %6416 = vmatpush.msra.mxu0 0.0
        %6417 = vmatpush.msra.mxu0 0.0
        %6418 = vmatpush.msra.mxu0 0.0
        %6419 = vmatpush.msra.mxu0 0.0
        %6420 = vmatpush.msra.mxu0 %v542
        %6421 = vmatpush.msra.mxu0 %v538
        %6422 = vmatmul.f32.gmra.mxu0 %v6395
        %v6423 = vpop.f32.mrf.mxu0
        %v6424 = vadd.f32 %v6377, %v6423
        %6425 = vmatmul.f32.gmra.mxu0 %v6398
        %v6426 = vpop.f32.mrf.mxu0
        %v6427 = vadd.f32 %v6382, %v6426
        %6428 = vmatmul.f32.gmra.mxu0 %v6401
        %v6429 = vpop.f32.mrf.mxu0
        %v6430 = vadd.f32 %v6387, %v6429
        %6431 = vmatmul.f32.gmra.mxu0 %v6404
        %v6432 = vpop.f32.mrf.mxu0
        %v6433 = vadd.f32 %v6392, %v6432
        %6434 = vdwg.mxu0
        %6435 = vmatpush.msra.mxu0 0.0
        %6436 = vmatpush.msra.mxu0 0.0
        %6437 = vmatpush.msra.mxu0 0.0
        %6438 = vmatpush.msra.mxu0 0.0
        %6439 = vmatpush.msra.mxu0 0.0
        %6440 = vmatpush.msra.mxu0 0.0
        %6441 = vmatpush.msra.mxu0 0.0
        %6442 = vmatpush.msra.mxu0 0.0
        %6443 = vmatpush.msra.mxu0 0.0
        %6444 = vmatpush.msra.mxu0 0.0
        %6445 = vmatpush.msra.mxu0 0.0
        %6446 = vmatpush.msra.mxu0 0.0
        %6447 = vmatpush.msra.mxu0 0.0
        %6448 = vmatpush.msra.mxu0 0.0
        %6449 = vmatpush.msra.mxu0 %v543
        %6450 = vmatpush.msra.mxu0 %v539
        %6451 = vmatmul.f32.gmra.mxu0 %v6395
        %v6452 = vpop.f32.mrf.mxu0
        %v6453 = vadd.f32 %v6377, %v6452
        %6454 = vmatmul.f32.gmra.mxu0 %v6398
        %v6455 = vpop.f32.mrf.mxu0
        %v6456 = vadd.f32 %v6382, %v6455
        %6457 = vmatmul.f32.gmra.mxu0 %v6401
        %v6458 = vpop.f32.mrf.mxu0
        %v6459 = vadd.f32 %v6387, %v6458
        %6460 = vmatmul.f32.gmra.mxu0 %v6404
        %v6461 = vpop.f32.mrf.mxu0
        %v6462 = vadd.f32 %v6392, %v6461
        %6463 = vdwg.mxu0
        %6464 = vmatpush.msra.mxu0 0.0
        %6465 = vmatpush.msra.mxu0 0.0
        %6466 = vmatpush.msra.mxu0 0.0
        %6467 = vmatpush.msra.mxu0 0.0
        %6468 = vmatpush.msra.mxu0 0.0
        %6469 = vmatpush.msra.mxu0 0.0
        %6470 = vmatpush.msra.mxu0 0.0
        %6471 = vmatpush.msra.mxu0 0.0
        %6472 = vmatpush.msra.mxu0 0.0
        %6473 = vmatpush.msra.mxu0 0.0
        %6474 = vmatpush.msra.mxu0 0.0
        %6475 = vmatpush.msra.mxu0 0.0
        %6476 = vmatpush.msra.mxu0 0.0
        %6477 = vmatpush.msra.mxu0 0.0
        %6478 = vmatpush.msra.mxu0 %v544
        %6479 = vmatpush.msra.mxu0 %v540
        %6480 = vmatmul.f32.gmra.mxu0 %v6395
        %v6481 = vpop.f32.mrf.mxu0
        %v6482 = vadd.f32 %v6377, %v6481
        %6483 = vmatmul.f32.gmra.mxu0 %v6398
        %v6484 = vpop.f32.mrf.mxu0
        %v6485 = vadd.f32 %v6382, %v6484
        %6486 = vmatmul.f32.gmra.mxu0 %v6401
        %v6487 = vpop.f32.mrf.mxu0
        %v6488 = vadd.f32 %v6387, %v6487
        %6489 = vmatmul.f32.gmra.mxu0 %v6404
        %v6490 = vpop.f32.mrf.mxu0
        %v6491 = vadd.f32 %v6392, %v6490
        %6492 = vdwg.mxu0
        %6493 = vmatpush.msra.mxu0 0.0
        %6494 = vmatpush.msra.mxu0 0.0
        %6495 = vmatpush.msra.mxu0 0.0
        %6496 = vmatpush.msra.mxu0 0.0
        %6497 = vmatpush.msra.mxu0 0.0
        %6498 = vmatpush.msra.mxu0 0.0
        %6499 = vmatpush.msra.mxu0 0.0
        %6500 = vmatpush.msra.mxu0 0.0
        %6501 = vmatpush.msra.mxu0 0.0
        %6502 = vmatpush.msra.mxu0 0.0
        %6503 = vmatpush.msra.mxu0 0.0
        %6504 = vmatpush.msra.mxu0 0.0
        %6505 = vmatpush.msra.mxu0 0.0
        %6506 = vmatpush.msra.mxu0 0.0
        %6507 = vmatpush.msra.mxu0 %v545
        %6508 = vmatpush.msra.mxu0 %v541
        %6509 = vmatmul.f32.gmra.mxu0 %v6395
        %v6510 = vpop.f32.mrf.mxu0
        %v6511 = vadd.f32 %v6377, %v6510
        %6512 = vmatmul.f32.gmra.mxu0 %v6398
        %v6513 = vpop.f32.mrf.mxu0
        %v6514 = vadd.f32 %v6382, %v6513
        %6515 = vmatmul.f32.gmra.mxu0 %v6401
        %v6516 = vpop.f32.mrf.mxu0
        %v6517 = vadd.f32 %v6387, %v6516
        %6518 = vmatmul.f32.gmra.mxu0 %v6404
        %v6519 = vpop.f32.mrf.mxu0
        %v6520 = vadd.f32 %v6392, %v6519
        %6521 = vdwg.mxu0
        %v6522 = vadd.f32 %v5746, %v6424
        %v6523 = vadd.f32 %v5949, %v6453
        %v6524 = vadd.f32 %v6152, %v6482
        %v6525 = vadd.f32 %v6355, %v6511
        %v6526 = vadd.f32 %v5749, %v6427
        %v6527 = vadd.f32 %v5952, %v6456
        %v6528 = vadd.f32 %v6155, %v6485
        %v6529 = vadd.f32 %v6358, %v6514
        %v6530 = vadd.f32 %v5752, %v6430
        %v6531 = vadd.f32 %v5955, %v6459
        %v6532 = vadd.f32 %v6158, %v6488
        %v6533 = vadd.f32 %v6361, %v6517
        %v6534 = vadd.f32 %v5755, %v6433
        %v6535 = vadd.f32 %v5958, %v6462
        %v6536 = vadd.f32 %v6161, %v6491
        %v6537 = vadd.f32 %v6364, %v6520
        %6538 = vst [vmem:[%s537] sm:$0xff] %v6522
        %6539 = vst [vmem:[%s537 + $0x8] sm:$0xff] %v6523
        %6540 = vst [vmem:[%s537 + $0x10] sm:$0xff] %v6524
        %6541 = vst [vmem:[%s537 + $0x18] sm:$0xff] %v6525
        %6542 = vst [vmem:[%s537 + $0x20] sm:$0xff] %v6526
        %6543 = vst [vmem:[%s537 + $0x28] sm:$0xff] %v6527
        %6544 = vst [vmem:[%s537 + $0x30] sm:$0xff] %v6528
        %6545 = vst [vmem:[%s537 + $0x38] sm:$0xff] %v6529
        %6546 = vst [vmem:[%s537 + $0x40] sm:$0xff] %v6530
        %6547 = vst [vmem:[%s537 + $0x48] sm:$0xff] %v6531
        %6548 = vst [vmem:[%s537 + $0x50] sm:$0xff] %v6532
        %6549 = vst [vmem:[%s537 + $0x58] sm:$0xff] %v6533
        %6550 = vst [vmem:[%s537 + $0x60] sm:$0xff] %v6534
        %6551 = vst [vmem:[%s537 + $0x68] sm:$0xff] %v6535
        %6552 = vst [vmem:[%s537 + $0x70] sm:$0xff] %v6536
        %6553 = vst [vmem:[%s537 + $0x78] sm:$0xff] %v6537
        %s6554 = sand.u32 %s340, 1
        %s6555 = scalar_lea.sflag [#allocation5], %s6554
        %s6556 = sand.u32 %s340, 1
        %s6557 = smul.addr %s6556, 128
        %s6558 = scalar_lea.vmem [#allocation11], %s6557
        // Predicated region
        $region93: #{tpu_custom_call.1} parent=75 // pred_check
          %p6559 = pneg %p350
        $region94: #{tpu_custom_call.1} parent=75 // pred_check_branch
          %6561 = sbr.rel (%p6559) target = $region96
        $region95: #{tpu_custom_call.1} parent=75 // pred_region
          %6563 = vsyncadd %s6555, 0
          %s6564 = smul.addr %s33, 16
          %s6565 = smul.addr %s6564, 8
          %s6566 = scalar_lea.hbm %s14, %s6565
          %s6567 = sshll.u32 %s6558, 4
          %s6568 = int_to_ptr.vmem [resolvable:$true] %s6567
          %s6569 = sshll.u32 %s6566, 4
          %s6570 = int_to_ptr.hbm [resolvable:$true] %s6569
          %6575 = dma.vmem_to_hbm [thread:$0]  %s6568, 2048, %s6570, %s6555, 512, 512, 32
        $region96: #{tpu_custom_call.1} parent=75 // pred_fallthru
          _
      $region76: #{tpu_custom_call.1} parent=5 // pred_fallthru
        _
      %p6576 = scmp.le.s32.totalorder 2, %s28
      // Predicated region
      $region97: #{tpu_custom_call.1} parent=5 // pred_check
        %p6577 = pneg %p6576
      $region98: #{tpu_custom_call.1} parent=5 // pred_check_branch
        %6579 = sbr.rel (%p6577) target = $region100
      $region99: #{tpu_custom_call.1} parent=5 // pred_region
        %s6580 = ssub.s32 %s28, 2
        // Predicated region
        $region101: #{tpu_custom_call.1} parent=99 // pred_check
          %p6581 = pneg %p356
        $region102: #{tpu_custom_call.1} parent=99 // pred_check_branch
          %6583 = sbr.rel (%p6581) target = $region104
        $region103: #{tpu_custom_call.1} parent=99 // pred_region
          %s6584 = sand.u32 %s341, 1
          %s6585 = scalar_lea.sflag [#allocation5], %s6584
          %s6586 = sand.u32 %s341, 1
          %s6587 = smul.addr %s6586, 128
          %s6588 = scalar_lea.vmem [#allocation11], %s6587
          %6590 = dma.done %s6585, 2048
        $region104: #{tpu_custom_call.1} parent=99 // pred_fallthru
          _
      $region100: #{tpu_custom_call.1} parent=5 // pred_fallthru
        _
    $region6: #{tpu_custom_call.1} parent=1 // loop_footer
      %s32 = sadd.s32 1, %s28
    $region7: #{tpu_custom_call.1} parent=1 // loop_footer_branch
      %27 = sbr.rel target = $region3
    $region8: #{tpu_custom_call.1} parent=1 // loop_exit
      _
    %6591 = vsyncpa [#allocation4], 1
    %s6592 = scalar_lea.sflag [#allocation4], 1
    %6593 = vsyncpa %s6592, 1
    %6594 = vsyncpa [#allocation7], 1
    %6595 = vsyncpa [#allocation10], 1
    %6596 = vsyncpa [#allocation5], 1
    %s6597 = scalar_lea.sflag [#allocation5], 1
    %6598 = vsyncpa %s6597, 1

</llo_original>
